<compile_context>
chip_gen: v6e
topology: v6e:2x2x1
jax: 0.10.0
libtpu: 0.0.40
codegen_flags: <defaults>
</compile_context>

<pallas_src>
"""Pallas TPU implementation of the PyTorch `TaskMonitor` forward pass.

Single fused pallas_call (conv3x3 -> maxpool2x2 -> BatchNorm2d(train stats) ->
ReLU -> Linear(7200,32) -> ReLU), redesigned per perf review:

  * conv is an im2col MXU matmul: glue builds, per max-pool parity (di,dj),
    a patch matrix  patches[p, k, b*256 + (m*15+n)] = x_nchw[b, c, 2m+di+ki, 2n+dj+kj]
    with k = (ki*3+kj)*3 + c, spatial padded 225 -> 256 so every column segment
    is lane-aligned.  4 matmuls [32,27]@[27,B*256] + elementwise max = conv+pool.
  * the 2x2x3x3x3 VPU broadcast-MAC loops (and their vreg spills) are gone.
  * BatchNorm batch stats are computed in one pass (masked sum / sum-of-squares;
    pad columns excluded), then fused scale/shift + ReLU.
  * the FC never round-trips HBM: features stay in a VMEM scratch and the
    7200->32 matmul is done as 32 per-channel MXU matmuls (K = padded spatial),
    against an FC weight that is pre-packed ONCE (pack_params) into
    [c, s(pad 256, zero rows), oc] bf16 -- no per-call 0.92 MB transpose, half
    the weight bytes, zero pad rows make the padding contribute nothing.
  * only the final (B, 32) result is written to HBM.
  * BN/ReLU/bias math stays in f32 (portable v5e path); only MXU operands of
    the FC are bf16.

With B=2 the whole problem fits one grid step; a batch grid axis for v7x's
second TensorCore would require a cross-step BN-stats pass and is left out at
this toy size.
"""

import numpy as np

import jax
import jax.numpy as jnp
from jax.experimental import pallas as pl
from jax.experimental.pallas import tpu as pltpu

_BN_EPS = 1e-5
_S = 15 * 15          # valid pooled pixels per image
_SP = 256             # padded per-image spatial size (lane aligned: 2 * 128)


# ---------------------------------------------------------------------------
# Fused kernel: conv (im2col matmul) + maxpool + BN(train stats) + ReLU + FC + ReLU
# ---------------------------------------------------------------------------
def _fused_kernel(patches_ref, wconvT_ref, bconv_ref, gamma_ref, beta_ref,
                  mask_ref, wfc_ref, bfc_ref, out_ref, feat_ref):
    B = out_ref.shape[0]
    C = wfc_ref.shape[0]          # 32 conv output channels
    SP = wfc_ref.shape[1]         # padded per-image spatial size (256)
    n_valid = float(B * _S)

    # --- conv 3x3 (3->32) as an MXU matmul per max-pool parity, pool = max ----
    wconvT = wconvT_ref[...]                                     # [32, 27]
    pooled = None
    for p in range(4):
        y = jnp.dot(wconvT, patches_ref[p],
                    preferred_element_type=jnp.float32)          # [32, B*SP]
        pooled = y if pooled is None else jnp.maximum(pooled, y)
    # per-channel conv bias commutes with the max-pool; add once here.
    pooled = pooled + bconv_ref[...]                             # + [32, 1]

    # --- BatchNorm2d training-mode batch stats, single pass, pad cols masked --
    mask = mask_ref[...]                                         # [1, B*SP]
    pm = pooled * mask
    ssum = jnp.sum(pm, axis=1, keepdims=True)                    # [32, 1]
    sqsum = jnp.sum(pm * pooled, axis=1, keepdims=True)          # [32, 1]
    mean = ssum * (1.0 / n_valid)
    var = sqsum * (1.0 / n_valid) - mean * mean                  # biased variance
    scale = jax.lax.rsqrt(var + _BN_EPS) * gamma_ref[...]        # [32, 1]
    shift = beta_ref[...] - mean * scale                         # [32, 1]
    feat = jnp.maximum(pooled * scale + shift, 0.0)              # [32, B*SP]
    feat_ref[...] = feat                                         # keep in VMEM

    # --- FC 7200 -> 32 (+ReLU): 32 per-channel MXU matmuls, K = SP.
    #     FC weight rows for the pad region (s >= 225) are zero, so the garbage
    #     in pad columns of `feat` contributes nothing.
    acc = jnp.zeros((B, C), jnp.float32)
    for c in range(C):
        row = feat_ref[pl.ds(c, 1), :]                           # [1, B*SP]
        a = jnp.concatenate(
            [row[:, b * SP:(b + 1) * SP] for b in range(B)],
            axis=0).astype(jnp.bfloat16)                         # [B, SP]
        acc = acc + jnp.dot(a, wfc_ref[c],
                            preferred_element_type=jnp.float32)  # [B, 32]
    out_ref[...] = jnp.maximum(acc + bfc_ref[...], 0.0)


# ---------------------------------------------------------------------------
# One-time parameter repacking (do NOT call per forward).
# ---------------------------------------------------------------------------
def pack_params(params):
    # Conv weight [oc, c, ki, kj] -> [oc, (ki*3+kj)*3 + c]
    wconvT = jnp.transpose(params["w_conv"], (0, 2, 3, 1)).reshape(32, 27)
    # FC weight [oc, c*225 + s] -> [c, s(padded to 256 with zero rows), oc], bf16
    wfc = params["w_fc"].reshape(32, 32, _S)          # [oc, c, s]
    wfc = jnp.transpose(wfc, (1, 2, 0))               # [c, s, oc]
    wfc = jnp.pad(wfc, ((0, 0), (0, _SP - _S), (0, 0)))
    return {
        "wconvT": wconvT.astype(jnp.float32),
        "bconv": params["b_conv"].reshape(32, 1).astype(jnp.float32),
        "gamma": params["gamma"].reshape(32, 1).astype(jnp.float32),
        "beta": params["beta"].reshape(32, 1).astype(jnp.float32),
        "wfc": wfc.astype(jnp.bfloat16),
        "bfc": params["b_fc"].reshape(1, 32).astype(jnp.float32),
    }


# ---------------------------------------------------------------------------
# Forward wrapper: layout glue (im2col per max-pool parity) + fused pallas_call.
# ---------------------------------------------------------------------------
def task_monitor_forward(x, packed):
    B = x.shape[0]

    # PyTorch: x.transpose(4, 2).reshape([B, 3, 32, 32])
    x_nchw = jnp.reshape(jnp.swapaxes(x, 4, 2), (B, 3, 32, 32)).astype(jnp.float32)

    # im2col per max-pool parity p = di*2 + dj:
    #   patches[p, (ki*3+kj)*3 + c, b*256 + (m*15+n)] = x[b, c, 2m+di+ki, 2n+dj+kj]
    planes = []
    for di in range(2):
        for dj in range(2):
            per_k = []
            for ki in range(3):
                for kj in range(3):
                    i0, j0 = di + ki, dj + kj
                    sl = x_nchw[:, :, i0:i0 + 29:2, j0:j0 + 29:2]   # [B, 3, 15, 15]
                    per_k.append(jnp.transpose(sl, (1, 0, 2, 3)).reshape(3, B, _S))
            plane = jnp.concatenate(per_k, axis=0)                   # [27, B, 225]
            plane = jnp.pad(plane, ((0, 0), (0, 0), (0, _SP - _S)))  # [27, B, 256]
            planes.append(plane.reshape(27, B * _SP))
    patches = jnp.stack(planes, axis=0)                              # [4, 27, B*256]

    # Valid-column mask (pad columns excluded from the BN batch statistics).
    mask = (jnp.arange(B * _SP) % _SP < _S).astype(jnp.float32).reshape(1, B * _SP)

    out = pl.pallas_call(
        _fused_kernel,
        out_shape=jax.ShapeDtypeStruct((B, 32), jnp.float32),
        grid=(1,),
        in_specs=[
            pl.BlockSpec((4, 27, B * _SP), lambda i: (0, 0, 0)),
            pl.BlockSpec((32, 27), lambda i: (0, 0)),
            pl.BlockSpec((32, 1), lambda i: (0, 0)),
            pl.BlockSpec((32, 1), lambda i: (0, 0)),
            pl.BlockSpec((32, 1), lambda i: (0, 0)),
            pl.BlockSpec((1, B * _SP), lambda i: (0, 0)),
            pl.BlockSpec((32, _SP, 32), lambda i: (0, 0, 0)),
            pl.BlockSpec((1, 32), lambda i: (0, 0)),
        ],
        out_specs=pl.BlockSpec((B, 32), lambda i: (0, 0)),
        scratch_shapes=[pltpu.VMEM((32, B * _SP), jnp.float32)],
        compiler_params=pltpu.CompilerParams(
            dimension_semantics=("arbitrary",)),
    )(patches, packed["wconvT"], packed["bconv"], packed["gamma"],
      packed["beta"], mask, packed["wfc"], packed["bfc"])
    return out


# ---------------------------------------------------------------------------
# Deterministic synthetic parameters (shapes from TaskMonitor.__init__).
# ---------------------------------------------------------------------------
def init_params(key):
    ks = jax.random.split(key, 6)
    bc = 1.0 / (3 * 3 * 3) ** 0.5
    bf = 1.0 / 7200.0 ** 0.5
    return {
        "w_conv": jax.random.uniform(ks[0], (32, 3, 3, 3), jnp.float32, -bc, bc),
        "b_conv": jax.random.uniform(ks[1], (32,), jnp.float32, -bc, bc),
        "gamma": 1.0 + 0.1 * jax.random.normal(ks[2], (32,), jnp.float32),
        "beta": 0.1 * jax.random.normal(ks[3], (32,), jnp.float32),
        "w_fc": jax.random.uniform(ks[4], (32, 7200), jnp.float32, -bf, bf),
        "b_fc": jax.random.uniform(ks[5], (32,), jnp.float32, -bf, bf),
    }


# Pure-JAX reference (same semantics, f32 weights, HIGHEST precision).
def reference_forward(x, params):
    B = x.shape[0]
    xc = jnp.reshape(jnp.swapaxes(x, 4, 2), (B, 3, 32, 32)).astype(jnp.float32)
    y = jax.lax.conv_general_dilated(
        xc, params["w_conv"], window_strides=(1, 1), padding="VALID",
        dimension_numbers=("NCHW", "OIHW", "NCHW"),
        precision=jax.lax.Precision.HIGHEST)
    y = y + params["b_conv"][None, :, None, None]
    y = jax.lax.reduce_window(y, -jnp.inf, jax.lax.max,
                              (1, 1, 2, 2), (1, 1, 2, 2), "VALID")
    mean = jnp.mean(y, axis=(0, 2, 3), keepdims=True)
    var = jnp.mean((y - mean) ** 2, axis=(0, 2, 3), keepdims=True)
    y = (y - mean) * jax.lax.rsqrt(var + _BN_EPS)
    y = y * params["gamma"][None, :, None, None] + params["beta"][None, :, None, None]
    y = jnp.maximum(y, 0.0).reshape(B, 7200)
    out = jnp.dot(y, params["w_fc"].T,
                  precision=jax.lax.Precision.HIGHEST) + params["b_fc"]
    return jnp.maximum(out, 0.0)


if __name__ == "__main__":
    key = jax.random.PRNGKey(0)
    kx, kp = jax.random.split(key)
    B = 2
    # Input implied by the module: [B, 1, 32, 32, 3] (transpose(4,2) -> [B,1,3,32,32]).
    x = jax.random.normal(kx, (B, 1, 32, 32, 3), jnp.float32)
    params = init_params(kp)
    packed = pack_params(params)   # one-time weight repack (bf16 FC weight, no per-call transpose)

    fwd = jax.jit(task_monitor_forward)
    out = jax.block_until_ready(fwd(x, packed))
    assert out.shape == (B, 32) and out.dtype == jnp.float32

    ref = reference_forward(x, params)
    # Tolerance covers bf16 FC weights/activations + MXU pass decomposition.
    np.testing.assert_allclose(np.asarray(out), np.asarray(ref),
                               rtol=3e-2, atol=3e-2)
    # TODO(synk): BatchNorm running-stat buffer updates (training-time side
    # effect, unused by this forward) are not materialized.
    print("KERNEL_OK")
</pallas_src>

<mosaic_0001>
module attributes {stable_mosaic.version = 11 : i64} {
  func.func @_fused_kernel(%arg0: i32, %arg1: memref<4x27x512xf32, #tpu.memory_space<vmem>>, %arg2: memref<32x27xf32, #tpu.memory_space<vmem>>, %arg3: memref<32x1xf32, #tpu.memory_space<vmem>>, %arg4: memref<32x1xf32, #tpu.memory_space<vmem>>, %arg5: memref<32x1xf32, #tpu.memory_space<vmem>>, %arg6: memref<1x512xf32, #tpu.memory_space<vmem>>, %arg7: memref<32x256x32xbf16, #tpu.memory_space<vmem>>, %arg8: memref<1x32xf32, #tpu.memory_space<vmem>>, %arg9: memref<2x32xf32, #tpu.memory_space<vmem>>, %arg10: memref<32x512xf32, #tpu.memory_space<vmem>>) attributes {dimension_semantics = [#tpu.dimension_semantics<arbitrary>], iteration_bounds = array<i64: 1>, scalar_prefetch = 0 : i64, scratch_operands = 1 : i64, tpu.core_type = #tpu.core_type<tc>, window_params = [{pipeline_mode = #tpu.pipeline_mode<synchronous>, transform_indices = @transform_0, window_bounds = array<i64: 4, 27, 512>}, {pipeline_mode = #tpu.pipeline_mode<synchronous>, transform_indices = @transform_1, window_bounds = array<i64: 32, 27>}, {pipeline_mode = #tpu.pipeline_mode<synchronous>, transform_indices = @transform_2, window_bounds = array<i64: 32, 1>}, {pipeline_mode = #tpu.pipeline_mode<synchronous>, transform_indices = @transform_3, window_bounds = array<i64: 32, 1>}, {pipeline_mode = #tpu.pipeline_mode<synchronous>, transform_indices = @transform_4, window_bounds = array<i64: 32, 1>}, {pipeline_mode = #tpu.pipeline_mode<synchronous>, transform_indices = @transform_5, window_bounds = array<i64: 1, 512>}, {pipeline_mode = #tpu.pipeline_mode<synchronous>, transform_indices = @transform_6, window_bounds = array<i64: 32, 256, 32>}, {pipeline_mode = #tpu.pipeline_mode<synchronous>, transform_indices = @transform_7, window_bounds = array<i64: 1, 32>}, {pipeline_mode = #tpu.pipeline_mode<synchronous>, transform_indices = @transform_8, window_bounds = array<i64: 2, 32>}]} {
    %c0 = arith.constant 0 : index
    %c0_0 = arith.constant 0 : index
    %0 = vector.load %arg2[%c0, %c0_0] : memref<32x27xf32, #tpu.memory_space<vmem>>, vector<32x27xf32>
    %c0_1 = arith.constant 0 : index
    %c0_2 = arith.constant 0 : index
    %c0_3 = arith.constant 0 : index
    %1 = vector.load %arg1[%c0_1, %c0_2, %c0_3] : memref<4x27x512xf32, #tpu.memory_space<vmem>>, vector<1x27x512xf32>
    %2 = vector.shape_cast %1 : vector<1x27x512xf32> to vector<27x512xf32>
    %cst = arith.constant dense<0.000000e+00> : vector<32x512xf32>
    %3 = tpu.matmul %0, %2, %cst {dimension_numbers = #tpu.dot_dimension_numbers<[1], [0], [0], [1], [0, 0, 1, 1], [], []>} : vector<32x27xf32>, vector<27x512xf32>, vector<32x512xf32> -> vector<32x512xf32>
    %c1 = arith.constant 1 : index
    %c0_4 = arith.constant 0 : index
    %c0_5 = arith.constant 0 : index
    %4 = vector.load %arg1[%c1, %c0_4, %c0_5] : memref<4x27x512xf32, #tpu.memory_space<vmem>>, vector<1x27x512xf32>
    %5 = vector.shape_cast %4 : vector<1x27x512xf32> to vector<27x512xf32>
    %cst_6 = arith.constant dense<0.000000e+00> : vector<32x512xf32>
    %6 = tpu.matmul %0, %5, %cst_6 {dimension_numbers = #tpu.dot_dimension_numbers<[1], [0], [0], [1], [0, 0, 1, 1], [], []>} : vector<32x27xf32>, vector<27x512xf32>, vector<32x512xf32> -> vector<32x512xf32>
    %7 = arith.maximumf %3, %6 : vector<32x512xf32>
    %c2 = arith.constant 2 : index
    %c0_7 = arith.constant 0 : index
    %c0_8 = arith.constant 0 : index
    %8 = vector.load %arg1[%c2, %c0_7, %c0_8] : memref<4x27x512xf32, #tpu.memory_space<vmem>>, vector<1x27x512xf32>
    %9 = vector.shape_cast %8 : vector<1x27x512xf32> to vector<27x512xf32>
    %cst_9 = arith.constant dense<0.000000e+00> : vector<32x512xf32>
    %10 = tpu.matmul %0, %9, %cst_9 {dimension_numbers = #tpu.dot_dimension_numbers<[1], [0], [0], [1], [0, 0, 1, 1], [], []>} : vector<32x27xf32>, vector<27x512xf32>, vector<32x512xf32> -> vector<32x512xf32>
    %11 = arith.maximumf %7, %10 : vector<32x512xf32>
    %c3 = arith.constant 3 : index
    %c0_10 = arith.constant 0 : index
    %c0_11 = arith.constant 0 : index
    %12 = vector.load %arg1[%c3, %c0_10, %c0_11] : memref<4x27x512xf32, #tpu.memory_space<vmem>>, vector<1x27x512xf32>
    %13 = vector.shape_cast %12 : vector<1x27x512xf32> to vector<27x512xf32>
    %cst_12 = arith.constant dense<0.000000e+00> : vector<32x512xf32>
    %14 = tpu.matmul %0, %13, %cst_12 {dimension_numbers = #tpu.dot_dimension_numbers<[1], [0], [0], [1], [0, 0, 1, 1], [], []>} : vector<32x27xf32>, vector<27x512xf32>, vector<32x512xf32> -> vector<32x512xf32>
    %15 = arith.maximumf %11, %14 : vector<32x512xf32>
    %c0_13 = arith.constant 0 : index
    %c0_14 = arith.constant 0 : index
    %16 = vector.load %arg3[%c0_13, %c0_14] : memref<32x1xf32, #tpu.memory_space<vmem>>, vector<32x1xf32>
    %17 = vector.broadcast %16 : vector<32x1xf32> to vector<32x512xf32>
    %18 = arith.addf %15, %17 : vector<32x512xf32>
    %c0_15 = arith.constant 0 : index
    %c0_16 = arith.constant 0 : index
    %19 = vector.load %arg6[%c0_15, %c0_16] : memref<1x512xf32, #tpu.memory_space<vmem>>, vector<1x512xf32>
    %20 = vector.broadcast %19 : vector<1x512xf32> to vector<32x512xf32>
    %21 = arith.mulf %18, %20 : vector<32x512xf32>
    %cst_17 = arith.constant dense<0.000000e+00> : vector<32xf32>
    %22 = vector.multi_reduction <add>, %21, %cst_17 [1] : vector<32x512xf32> to vector<32xf32>
    %23 = vector.shape_cast %22 : vector<32xf32> to vector<32x1xf32>
    %24 = arith.mulf %21, %18 : vector<32x512xf32>
    %cst_18 = arith.constant dense<0.000000e+00> : vector<32xf32>
    %25 = vector.multi_reduction <add>, %24, %cst_18 [1] : vector<32x512xf32> to vector<32xf32>
    %26 = vector.shape_cast %25 : vector<32xf32> to vector<32x1xf32>
    %cst_19 = arith.constant 0.00222222228 : f32
    %27 = vector.broadcast %cst_19 : f32 to vector<32x1xf32>
    %28 = arith.mulf %23, %27 : vector<32x1xf32>
    %cst_20 = arith.constant 0.00222222228 : f32
    %29 = vector.broadcast %cst_20 : f32 to vector<32x1xf32>
    %30 = arith.mulf %26, %29 : vector<32x1xf32>
    %31 = arith.mulf %28, %28 : vector<32x1xf32>
    %32 = arith.subf %30, %31 : vector<32x1xf32>
    %cst_21 = arith.constant 9.99999974E-6 : f32
    %33 = vector.broadcast %cst_21 : f32 to vector<32x1xf32>
    %34 = arith.addf %32, %33 : vector<32x1xf32>
    %35 = math.rsqrt %34 : vector<32x1xf32>
    %c0_22 = arith.constant 0 : index
    %c0_23 = arith.constant 0 : index
    %36 = vector.load %arg4[%c0_22, %c0_23] : memref<32x1xf32, #tpu.memory_space<vmem>>, vector<32x1xf32>
    %37 = arith.mulf %35, %36 : vector<32x1xf32>
    %c0_24 = arith.constant 0 : index
    %c0_25 = arith.constant 0 : index
    %38 = vector.load %arg5[%c0_24, %c0_25] : memref<32x1xf32, #tpu.memory_space<vmem>>, vector<32x1xf32>
    %39 = arith.mulf %28, %37 : vector<32x1xf32>
    %40 = arith.subf %38, %39 : vector<32x1xf32>
    %41 = vector.broadcast %37 : vector<32x1xf32> to vector<32x512xf32>
    %42 = arith.mulf %18, %41 : vector<32x512xf32>
    %43 = vector.broadcast %40 : vector<32x1xf32> to vector<32x512xf32>
    %44 = arith.addf %42, %43 : vector<32x512xf32>
    %cst_26 = arith.constant 0.000000e+00 : f32
    %45 = vector.broadcast %cst_26 : f32 to vector<32x512xf32>
    %46 = arith.maximumf %44, %45 : vector<32x512xf32>
    %c0_27 = arith.constant 0 : index
    %c0_28 = arith.constant 0 : index
    %47 = vector.load %arg10[%c0_27, %c0_28] : memref<32x512xf32, #tpu.memory_space<vmem>>, vector<32x512xf32>
    tpu.vector_store %arg10[%c0_27, %c0_28], %46 {strides = array<i32>} : memref<32x512xf32, #tpu.memory_space<vmem>>, vector<32x512xf32>,
    %cst_29 = arith.constant 0.000000e+00 : f32
    %48 = vector.broadcast %cst_29 : f32 to vector<2x32xf32>
    %c0_30 = arith.constant 0 : index
    %c0_31 = arith.constant 0 : index
    %49 = vector.load %arg10[%c0_30, %c0_31] : memref<32x512xf32, #tpu.memory_space<vmem>>, vector<1x512xf32>
    %50 = vector.extract_strided_slice %49 {offsets = [0, 0], sizes = [1, 256], strides = [1, 1]} : vector<1x512xf32> to vector<1x256xf32>
    %51 = vector.extract_strided_slice %49 {offsets = [0, 256], sizes = [1, 256], strides = [1, 1]} : vector<1x512xf32> to vector<1x256xf32>
    %52 = tpu.concatenate %50, %51 in 0 : vector<1x256xf32>, vector<1x256xf32> -> vector<2x256xf32>
    %53 = arith.truncf %52 : vector<2x256xf32> to vector<2x256xbf16>
    %c0_32 = arith.constant 0 : index
    %c0_33 = arith.constant 0 : index
    %c0_34 = arith.constant 0 : index
    %54 = vector.load %arg7[%c0_32, %c0_33, %c0_34] : memref<32x256x32xbf16, #tpu.memory_space<vmem>>, vector<1x256x32xbf16>
    %55 = vector.shape_cast %54 : vector<1x256x32xbf16> to vector<256x32xbf16>
    %cst_35 = arith.constant dense<0.000000e+00> : vector<2x32xf32>
    %56 = tpu.matmul %53, %55, %cst_35 {dimension_numbers = #tpu.dot_dimension_numbers<[1], [0], [0], [1], [0, 0, 1, 1], [], []>} : vector<2x256xbf16>, vector<256x32xbf16>, vector<2x32xf32> -> vector<2x32xf32>
    %57 = arith.addf %48, %56 : vector<2x32xf32>
    %c1_36 = arith.constant 1 : index
    %c0_37 = arith.constant 0 : index
    %58 = vector.load %arg10[%c1_36, %c0_37] : memref<32x512xf32, #tpu.memory_space<vmem>>, vector<1x512xf32>
    %59 = vector.extract_strided_slice %58 {offsets = [0, 0], sizes = [1, 256], strides = [1, 1]} : vector<1x512xf32> to vector<1x256xf32>
    %60 = vector.extract_strided_slice %58 {offsets = [0, 256], sizes = [1, 256], strides = [1, 1]} : vector<1x512xf32> to vector<1x256xf32>
    %61 = tpu.concatenate %59, %60 in 0 : vector<1x256xf32>, vector<1x256xf32> -> vector<2x256xf32>
    %62 = arith.truncf %61 : vector<2x256xf32> to vector<2x256xbf16>
    %c1_38 = arith.constant 1 : index
    %c0_39 = arith.constant 0 : index
    %c0_40 = arith.constant 0 : index
    %63 = vector.load %arg7[%c1_38, %c0_39, %c0_40] : memref<32x256x32xbf16, #tpu.memory_space<vmem>>, vector<1x256x32xbf16>
    %64 = vector.shape_cast %63 : vector<1x256x32xbf16> to vector<256x32xbf16>
    %cst_41 = arith.constant dense<0.000000e+00> : vector<2x32xf32>
    %65 = tpu.matmul %62, %64, %cst_41 {dimension_numbers = #tpu.dot_dimension_numbers<[1], [0], [0], [1], [0, 0, 1, 1], [], []>} : vector<2x256xbf16>, vector<256x32xbf16>, vector<2x32xf32> -> vector<2x32xf32>
    %66 = arith.addf %57, %65 : vector<2x32xf32>
    %c2_42 = arith.constant 2 : index
    %c0_43 = arith.constant 0 : index
    %67 = vector.load %arg10[%c2_42, %c0_43] : memref<32x512xf32, #tpu.memory_space<vmem>>, vector<1x512xf32>
    %68 = vector.extract_strided_slice %67 {offsets = [0, 0], sizes = [1, 256], strides = [1, 1]} : vector<1x512xf32> to vector<1x256xf32>
    %69 = vector.extract_strided_slice %67 {offsets = [0, 256], sizes = [1, 256], strides = [1, 1]} : vector<1x512xf32> to vector<1x256xf32>
    %70 = tpu.concatenate %68, %69 in 0 : vector<1x256xf32>, vector<1x256xf32> -> vector<2x256xf32>
    %71 = arith.truncf %70 : vector<2x256xf32> to vector<2x256xbf16>
    %c2_44 = arith.constant 2 : index
    %c0_45 = arith.constant 0 : index
    %c0_46 = arith.constant 0 : index
    %72 = vector.load %arg7[%c2_44, %c0_45, %c0_46] : memref<32x256x32xbf16, #tpu.memory_space<vmem>>, vector<1x256x32xbf16>
    %73 = vector.shape_cast %72 : vector<1x256x32xbf16> to vector<256x32xbf16>
    %cst_47 = arith.constant dense<0.000000e+00> : vector<2x32xf32>
    %74 = tpu.matmul %71, %73, %cst_47 {dimension_numbers = #tpu.dot_dimension_numbers<[1], [0], [0], [1], [0, 0, 1, 1], [], []>} : vector<2x256xbf16>, vector<256x32xbf16>, vector<2x32xf32> -> vector<2x32xf32>
    %75 = arith.addf %66, %74 : vector<2x32xf32>
    %c3_48 = arith.constant 3 : index
    %c0_49 = arith.constant 0 : index
    %76 = vector.load %arg10[%c3_48, %c0_49] : memref<32x512xf32, #tpu.memory_space<vmem>>, vector<1x512xf32>
    %77 = vector.extract_strided_slice %76 {offsets = [0, 0], sizes = [1, 256], strides = [1, 1]} : vector<1x512xf32> to vector<1x256xf32>
    %78 = vector.extract_strided_slice %76 {offsets = [0, 256], sizes = [1, 256], strides = [1, 1]} : vector<1x512xf32> to vector<1x256xf32>
    %79 = tpu.concatenate %77, %78 in 0 : vector<1x256xf32>, vector<1x256xf32> -> vector<2x256xf32>
    %80 = arith.truncf %79 : vector<2x256xf32> to vector<2x256xbf16>
    %c3_50 = arith.constant 3 : index
    %c0_51 = arith.constant 0 : index
    %c0_52 = arith.constant 0 : index
    %81 = vector.load %arg7[%c3_50, %c0_51, %c0_52] : memref<32x256x32xbf16, #tpu.memory_space<vmem>>, vector<1x256x32xbf16>
    %82 = vector.shape_cast %81 : vector<1x256x32xbf16> to vector<256x32xbf16>
    %cst_53 = arith.constant dense<0.000000e+00> : vector<2x32xf32>
    %83 = tpu.matmul %80, %82, %cst_53 {dimension_numbers = #tpu.dot_dimension_numbers<[1], [0], [0], [1], [0, 0, 1, 1], [], []>} : vector<2x256xbf16>, vector<256x32xbf16>, vector<2x32xf32> -> vector<2x32xf32>
    %84 = arith.addf %75, %83 : vector<2x32xf32>
    %c4 = arith.constant 4 : index
    %c0_54 = arith.constant 0 : index
    %85 = vector.load %arg10[%c4, %c0_54] : memref<32x512xf32, #tpu.memory_space<vmem>>, vector<1x512xf32>
    %86 = vector.extract_strided_slice %85 {offsets = [0, 0], sizes = [1, 256], strides = [1, 1]} : vector<1x512xf32> to vector<1x256xf32>
    %87 = vector.extract_strided_slice %85 {offsets = [0, 256], sizes = [1, 256], strides = [1, 1]} : vector<1x512xf32> to vector<1x256xf32>
    %88 = tpu.concatenate %86, %87 in 0 : vector<1x256xf32>, vector<1x256xf32> -> vector<2x256xf32>
    %89 = arith.truncf %88 : vector<2x256xf32> to vector<2x256xbf16>
    %c4_55 = arith.constant 4 : index
    %c0_56 = arith.constant 0 : index
    %c0_57 = arith.constant 0 : index
    %90 = vector.load %arg7[%c4_55, %c0_56, %c0_57] : memref<32x256x32xbf16, #tpu.memory_space<vmem>>, vector<1x256x32xbf16>
    %91 = vector.shape_cast %90 : vector<1x256x32xbf16> to vector<256x32xbf16>
    %cst_58 = arith.constant dense<0.000000e+00> : vector<2x32xf32>
    %92 = tpu.matmul %89, %91, %cst_58 {dimension_numbers = #tpu.dot_dimension_numbers<[1], [0], [0], [1], [0, 0, 1, 1], [], []>} : vector<2x256xbf16>, vector<256x32xbf16>, vector<2x32xf32> -> vector<2x32xf32>
    %93 = arith.addf %84, %92 : vector<2x32xf32>
    %c5 = arith.constant 5 : index
    %c0_59 = arith.constant 0 : index
    %94 = vector.load %arg10[%c5, %c0_59] : memref<32x512xf32, #tpu.memory_space<vmem>>, vector<1x512xf32>
    %95 = vector.extract_strided_slice %94 {offsets = [0, 0], sizes = [1, 256], strides = [1, 1]} : vector<1x512xf32> to vector<1x256xf32>
    %96 = vector.extract_strided_slice %94 {offsets = [0, 256], sizes = [1, 256], strides = [1, 1]} : vector<1x512xf32> to vector<1x256xf32>
    %97 = tpu.concatenate %95, %96 in 0 : vector<1x256xf32>, vector<1x256xf32> -> vector<2x256xf32>
    %98 = arith.truncf %97 : vector<2x256xf32> to vector<2x256xbf16>
    %c5_60 = arith.constant 5 : index
    %c0_61 = arith.constant 0 : index
    %c0_62 = arith.constant 0 : index
    %99 = vector.load %arg7[%c5_60, %c0_61, %c0_62] : memref<32x256x32xbf16, #tpu.memory_space<vmem>>, vector<1x256x32xbf16>
    %100 = vector.shape_cast %99 : vector<1x256x32xbf16> to vector<256x32xbf16>
    %cst_63 = arith.constant dense<0.000000e+00> : vector<2x32xf32>
    %101 = tpu.matmul %98, %100, %cst_63 {dimension_numbers = #tpu.dot_dimension_numbers<[1], [0], [0], [1], [0, 0, 1, 1], [], []>} : vector<2x256xbf16>, vector<256x32xbf16>, vector<2x32xf32> -> vector<2x32xf32>
    %102 = arith.addf %93, %101 : vector<2x32xf32>
    %c6 = arith.constant 6 : index
    %c0_64 = arith.constant 0 : index
    %103 = vector.load %arg10[%c6, %c0_64] : memref<32x512xf32, #tpu.memory_space<vmem>>, vector<1x512xf32>
    %104 = vector.extract_strided_slice %103 {offsets = [0, 0], sizes = [1, 256], strides = [1, 1]} : vector<1x512xf32> to vector<1x256xf32>
    %105 = vector.extract_strided_slice %103 {offsets = [0, 256], sizes = [1, 256], strides = [1, 1]} : vector<1x512xf32> to vector<1x256xf32>
    %106 = tpu.concatenate %104, %105 in 0 : vector<1x256xf32>, vector<1x256xf32> -> vector<2x256xf32>
    %107 = arith.truncf %106 : vector<2x256xf32> to vector<2x256xbf16>
    %c6_65 = arith.constant 6 : index
    %c0_66 = arith.constant 0 : index
    %c0_67 = arith.constant 0 : index
    %108 = vector.load %arg7[%c6_65, %c0_66, %c0_67] : memref<32x256x32xbf16, #tpu.memory_space<vmem>>, vector<1x256x32xbf16>
    %109 = vector.shape_cast %108 : vector<1x256x32xbf16> to vector<256x32xbf16>
    %cst_68 = arith.constant dense<0.000000e+00> : vector<2x32xf32>
    %110 = tpu.matmul %107, %109, %cst_68 {dimension_numbers = #tpu.dot_dimension_numbers<[1], [0], [0], [1], [0, 0, 1, 1], [], []>} : vector<2x256xbf16>, vector<256x32xbf16>, vector<2x32xf32> -> vector<2x32xf32>
    %111 = arith.addf %102, %110 : vector<2x32xf32>
    %c7 = arith.constant 7 : index
    %c0_69 = arith.constant 0 : index
    %112 = vector.load %arg10[%c7, %c0_69] : memref<32x512xf32, #tpu.memory_space<vmem>>, vector<1x512xf32>
    %113 = vector.extract_strided_slice %112 {offsets = [0, 0], sizes = [1, 256], strides = [1, 1]} : vector<1x512xf32> to vector<1x256xf32>
    %114 = vector.extract_strided_slice %112 {offsets = [0, 256], sizes = [1, 256], strides = [1, 1]} : vector<1x512xf32> to vector<1x256xf32>
    %115 = tpu.concatenate %113, %114 in 0 : vector<1x256xf32>, vector<1x256xf32> -> vector<2x256xf32>
    %116 = arith.truncf %115 : vector<2x256xf32> to vector<2x256xbf16>
    %c7_70 = arith.constant 7 : index
    %c0_71 = arith.constant 0 : index
    %c0_72 = arith.constant 0 : index
    %117 = vector.load %arg7[%c7_70, %c0_71, %c0_72] : memref<32x256x32xbf16, #tpu.memory_space<vmem>>, vector<1x256x32xbf16>
    %118 = vector.shape_cast %117 : vector<1x256x32xbf16> to vector<256x32xbf16>
    %cst_73 = arith.constant dense<0.000000e+00> : vector<2x32xf32>
    %119 = tpu.matmul %116, %118, %cst_73 {dimension_numbers = #tpu.dot_dimension_numbers<[1], [0], [0], [1], [0, 0, 1, 1], [], []>} : vector<2x256xbf16>, vector<256x32xbf16>, vector<2x32xf32> -> vector<2x32xf32>
    %120 = arith.addf %111, %119 : vector<2x32xf32>
    %c8 = arith.constant 8 : index
    %c0_74 = arith.constant 0 : index
    %121 = vector.load %arg10[%c8, %c0_74] : memref<32x512xf32, #tpu.memory_space<vmem>>, vector<1x512xf32>
    %122 = vector.extract_strided_slice %121 {offsets = [0, 0], sizes = [1, 256], strides = [1, 1]} : vector<1x512xf32> to vector<1x256xf32>
    %123 = vector.extract_strided_slice %121 {offsets = [0, 256], sizes = [1, 256], strides = [1, 1]} : vector<1x512xf32> to vector<1x256xf32>
    %124 = tpu.concatenate %122, %123 in 0 : vector<1x256xf32>, vector<1x256xf32> -> vector<2x256xf32>
    %125 = arith.truncf %124 : vector<2x256xf32> to vector<2x256xbf16>
    %c8_75 = arith.constant 8 : index
    %c0_76 = arith.constant 0 : index
    %c0_77 = arith.constant 0 : index
    %126 = vector.load %arg7[%c8_75, %c0_76, %c0_77] : memref<32x256x32xbf16, #tpu.memory_space<vmem>>, vector<1x256x32xbf16>
    %127 = vector.shape_cast %126 : vector<1x256x32xbf16> to vector<256x32xbf16>
    %cst_78 = arith.constant dense<0.000000e+00> : vector<2x32xf32>
    %128 = tpu.matmul %125, %127, %cst_78 {dimension_numbers = #tpu.dot_dimension_numbers<[1], [0], [0], [1], [0, 0, 1, 1], [], []>} : vector<2x256xbf16>, vector<256x32xbf16>, vector<2x32xf32> -> vector<2x32xf32>
    %129 = arith.addf %120, %128 : vector<2x32xf32>
    %c9 = arith.constant 9 : index
    %c0_79 = arith.constant 0 : index
    %130 = vector.load %arg10[%c9, %c0_79] : memref<32x512xf32, #tpu.memory_space<vmem>>, vector<1x512xf32>
    %131 = vector.extract_strided_slice %130 {offsets = [0, 0], sizes = [1, 256], strides = [1, 1]} : vector<1x512xf32> to vector<1x256xf32>
    %132 = vector.extract_strided_slice %130 {offsets = [0, 256], sizes = [1, 256], strides = [1, 1]} : vector<1x512xf32> to vector<1x256xf32>
    %133 = tpu.concatenate %131, %132 in 0 : vector<1x256xf32>, vector<1x256xf32> -> vector<2x256xf32>
    %134 = arith.truncf %133 : vector<2x256xf32> to vector<2x256xbf16>
    %c9_80 = arith.constant 9 : index
    %c0_81 = arith.constant 0 : index
    %c0_82 = arith.constant 0 : index
    %135 = vector.load %arg7[%c9_80, %c0_81, %c0_82] : memref<32x256x32xbf16, #tpu.memory_space<vmem>>, vector<1x256x32xbf16>
    %136 = vector.shape_cast %135 : vector<1x256x32xbf16> to vector<256x32xbf16>
    %cst_83 = arith.constant dense<0.000000e+00> : vector<2x32xf32>
    %137 = tpu.matmul %134, %136, %cst_83 {dimension_numbers = #tpu.dot_dimension_numbers<[1], [0], [0], [1], [0, 0, 1, 1], [], []>} : vector<2x256xbf16>, vector<256x32xbf16>, vector<2x32xf32> -> vector<2x32xf32>
    %138 = arith.addf %129, %137 : vector<2x32xf32>
    %c10 = arith.constant 10 : index
    %c0_84 = arith.constant 0 : index
    %139 = vector.load %arg10[%c10, %c0_84] : memref<32x512xf32, #tpu.memory_space<vmem>>, vector<1x512xf32>
    %140 = vector.extract_strided_slice %139 {offsets = [0, 0], sizes = [1, 256], strides = [1, 1]} : vector<1x512xf32> to vector<1x256xf32>
    %141 = vector.extract_strided_slice %139 {offsets = [0, 256], sizes = [1, 256], strides = [1, 1]} : vector<1x512xf32> to vector<1x256xf32>
    %142 = tpu.concatenate %140, %141 in 0 : vector<1x256xf32>, vector<1x256xf32> -> vector<2x256xf32>
    %143 = arith.truncf %142 : vector<2x256xf32> to vector<2x256xbf16>
    %c10_85 = arith.constant 10 : index
    %c0_86 = arith.constant 0 : index
    %c0_87 = arith.constant 0 : index
    %144 = vector.load %arg7[%c10_85, %c0_86, %c0_87] : memref<32x256x32xbf16, #tpu.memory_space<vmem>>, vector<1x256x32xbf16>
    %145 = vector.shape_cast %144 : vector<1x256x32xbf16> to vector<256x32xbf16>
    %cst_88 = arith.constant dense<0.000000e+00> : vector<2x32xf32>
    %146 = tpu.matmul %143, %145, %cst_88 {dimension_numbers = #tpu.dot_dimension_numbers<[1], [0], [0], [1], [0, 0, 1, 1], [], []>} : vector<2x256xbf16>, vector<256x32xbf16>, vector<2x32xf32> -> vector<2x32xf32>
    %147 = arith.addf %138, %146 : vector<2x32xf32>
    %c11 = arith.constant 11 : index
    %c0_89 = arith.constant 0 : index
    %148 = vector.load %arg10[%c11, %c0_89] : memref<32x512xf32, #tpu.memory_space<vmem>>, vector<1x512xf32>
    %149 = vector.extract_strided_slice %148 {offsets = [0, 0], sizes = [1, 256], strides = [1, 1]} : vector<1x512xf32> to vector<1x256xf32>
    %150 = vector.extract_strided_slice %148 {offsets = [0, 256], sizes = [1, 256], strides = [1, 1]} : vector<1x512xf32> to vector<1x256xf32>
    %151 = tpu.concatenate %149, %150 in 0 : vector<1x256xf32>, vector<1x256xf32> -> vector<2x256xf32>
    %152 = arith.truncf %151 : vector<2x256xf32> to vector<2x256xbf16>
    %c11_90 = arith.constant 11 : index
    %c0_91 = arith.constant 0 : index
    %c0_92 = arith.constant 0 : index
    %153 = vector.load %arg7[%c11_90, %c0_91, %c0_92] : memref<32x256x32xbf16, #tpu.memory_space<vmem>>, vector<1x256x32xbf16>
    %154 = vector.shape_cast %153 : vector<1x256x32xbf16> to vector<256x32xbf16>
    %cst_93 = arith.constant dense<0.000000e+00> : vector<2x32xf32>
    %155 = tpu.matmul %152, %154, %cst_93 {dimension_numbers = #tpu.dot_dimension_numbers<[1], [0], [0], [1], [0, 0, 1, 1], [], []>} : vector<2x256xbf16>, vector<256x32xbf16>, vector<2x32xf32> -> vector<2x32xf32>
    %156 = arith.addf %147, %155 : vector<2x32xf32>
    %c12 = arith.constant 12 : index
    %c0_94 = arith.constant 0 : index
    %157 = vector.load %arg10[%c12, %c0_94] : memref<32x512xf32, #tpu.memory_space<vmem>>, vector<1x512xf32>
    %158 = vector.extract_strided_slice %157 {offsets = [0, 0], sizes = [1, 256], strides = [1, 1]} : vector<1x512xf32> to vector<1x256xf32>
    %159 = vector.extract_strided_slice %157 {offsets = [0, 256], sizes = [1, 256], strides = [1, 1]} : vector<1x512xf32> to vector<1x256xf32>
    %160 = tpu.concatenate %158, %159 in 0 : vector<1x256xf32>, vector<1x256xf32> -> vector<2x256xf32>
    %161 = arith.truncf %160 : vector<2x256xf32> to vector<2x256xbf16>
    %c12_95 = arith.constant 12 : index
    %c0_96 = arith.constant 0 : index
    %c0_97 = arith.constant 0 : index
    %162 = vector.load %arg7[%c12_95, %c0_96, %c0_97] : memref<32x256x32xbf16, #tpu.memory_space<vmem>>, vector<1x256x32xbf16>
    %163 = vector.shape_cast %162 : vector<1x256x32xbf16> to vector<256x32xbf16>
    %cst_98 = arith.constant dense<0.000000e+00> : vector<2x32xf32>
    %164 = tpu.matmul %161, %163, %cst_98 {dimension_numbers = #tpu.dot_dimension_numbers<[1], [0], [0], [1], [0, 0, 1, 1], [], []>} : vector<2x256xbf16>, vector<256x32xbf16>, vector<2x32xf32> -> vector<2x32xf32>
    %165 = arith.addf %156, %164 : vector<2x32xf32>
    %c13 = arith.constant 13 : index
    %c0_99 = arith.constant 0 : index
    %166 = vector.load %arg10[%c13, %c0_99] : memref<32x512xf32, #tpu.memory_space<vmem>>, vector<1x512xf32>
    %167 = vector.extract_strided_slice %166 {offsets = [0, 0], sizes = [1, 256], strides = [1, 1]} : vector<1x512xf32> to vector<1x256xf32>
    %168 = vector.extract_strided_slice %166 {offsets = [0, 256], sizes = [1, 256], strides = [1, 1]} : vector<1x512xf32> to vector<1x256xf32>
    %169 = tpu.concatenate %167, %168 in 0 : vector<1x256xf32>, vector<1x256xf32> -> vector<2x256xf32>
    %170 = arith.truncf %169 : vector<2x256xf32> to vector<2x256xbf16>
    %c13_100 = arith.constant 13 : index
    %c0_101 = arith.constant 0 : index
    %c0_102 = arith.constant 0 : index
    %171 = vector.load %arg7[%c13_100, %c0_101, %c0_102] : memref<32x256x32xbf16, #tpu.memory_space<vmem>>, vector<1x256x32xbf16>
    %172 = vector.shape_cast %171 : vector<1x256x32xbf16> to vector<256x32xbf16>
    %cst_103 = arith.constant dense<0.000000e+00> : vector<2x32xf32>
    %173 = tpu.matmul %170, %172, %cst_103 {dimension_numbers = #tpu.dot_dimension_numbers<[1], [0], [0], [1], [0, 0, 1, 1], [], []>} : vector<2x256xbf16>, vector<256x32xbf16>, vector<2x32xf32> -> vector<2x32xf32>
    %174 = arith.addf %165, %173 : vector<2x32xf32>
    %c14 = arith.constant 14 : index
    %c0_104 = arith.constant 0 : index
    %175 = vector.load %arg10[%c14, %c0_104] : memref<32x512xf32, #tpu.memory_space<vmem>>, vector<1x512xf32>
    %176 = vector.extract_strided_slice %175 {offsets = [0, 0], sizes = [1, 256], strides = [1, 1]} : vector<1x512xf32> to vector<1x256xf32>
    %177 = vector.extract_strided_slice %175 {offsets = [0, 256], sizes = [1, 256], strides = [1, 1]} : vector<1x512xf32> to vector<1x256xf32>
    %178 = tpu.concatenate %176, %177 in 0 : vector<1x256xf32>, vector<1x256xf32> -> vector<2x256xf32>
    %179 = arith.truncf %178 : vector<2x256xf32> to vector<2x256xbf16>
    %c14_105 = arith.constant 14 : index
    %c0_106 = arith.constant 0 : index
    %c0_107 = arith.constant 0 : index
    %180 = vector.load %arg7[%c14_105, %c0_106, %c0_107] : memref<32x256x32xbf16, #tpu.memory_space<vmem>>, vector<1x256x32xbf16>
    %181 = vector.shape_cast %180 : vector<1x256x32xbf16> to vector<256x32xbf16>
    %cst_108 = arith.constant dense<0.000000e+00> : vector<2x32xf32>
    %182 = tpu.matmul %179, %181, %cst_108 {dimension_numbers = #tpu.dot_dimension_numbers<[1], [0], [0], [1], [0, 0, 1, 1], [], []>} : vector<2x256xbf16>, vector<256x32xbf16>, vector<2x32xf32> -> vector<2x32xf32>
    %183 = arith.addf %174, %182 : vector<2x32xf32>
    %c15 = arith.constant 15 : index
    %c0_109 = arith.constant 0 : index
    %184 = vector.load %arg10[%c15, %c0_109] : memref<32x512xf32, #tpu.memory_space<vmem>>, vector<1x512xf32>
    %185 = vector.extract_strided_slice %184 {offsets = [0, 0], sizes = [1, 256], strides = [1, 1]} : vector<1x512xf32> to vector<1x256xf32>
    %186 = vector.extract_strided_slice %184 {offsets = [0, 256], sizes = [1, 256], strides = [1, 1]} : vector<1x512xf32> to vector<1x256xf32>
    %187 = tpu.concatenate %185, %186 in 0 : vector<1x256xf32>, vector<1x256xf32> -> vector<2x256xf32>
    %188 = arith.truncf %187 : vector<2x256xf32> to vector<2x256xbf16>
    %c15_110 = arith.constant 15 : index
    %c0_111 = arith.constant 0 : index
    %c0_112 = arith.constant 0 : index
    %189 = vector.load %arg7[%c15_110, %c0_111, %c0_112] : memref<32x256x32xbf16, #tpu.memory_space<vmem>>, vector<1x256x32xbf16>
    %190 = vector.shape_cast %189 : vector<1x256x32xbf16> to vector<256x32xbf16>
    %cst_113 = arith.constant dense<0.000000e+00> : vector<2x32xf32>
    %191 = tpu.matmul %188, %190, %cst_113 {dimension_numbers = #tpu.dot_dimension_numbers<[1], [0], [0], [1], [0, 0, 1, 1], [], []>} : vector<2x256xbf16>, vector<256x32xbf16>, vector<2x32xf32> -> vector<2x32xf32>
    %192 = arith.addf %183, %191 : vector<2x32xf32>
    %c16 = arith.constant 16 : index
    %c0_114 = arith.constant 0 : index
    %193 = vector.load %arg10[%c16, %c0_114] : memref<32x512xf32, #tpu.memory_space<vmem>>, vector<1x512xf32>
    %194 = vector.extract_strided_slice %193 {offsets = [0, 0], sizes = [1, 256], strides = [1, 1]} : vector<1x512xf32> to vector<1x256xf32>
    %195 = vector.extract_strided_slice %193 {offsets = [0, 256], sizes = [1, 256], strides = [1, 1]} : vector<1x512xf32> to vector<1x256xf32>
    %196 = tpu.concatenate %194, %195 in 0 : vector<1x256xf32>, vector<1x256xf32> -> vector<2x256xf32>
    %197 = arith.truncf %196 : vector<2x256xf32> to vector<2x256xbf16>
    %c16_115 = arith.constant 16 : index
    %c0_116 = arith.constant 0 : index
    %c0_117 = arith.constant 0 : index
    %198 = vector.load %arg7[%c16_115, %c0_116, %c0_117] : memref<32x256x32xbf16, #tpu.memory_space<vmem>>, vector<1x256x32xbf16>
    %199 = vector.shape_cast %198 : vector<1x256x32xbf16> to vector<256x32xbf16>
    %cst_118 = arith.constant dense<0.000000e+00> : vector<2x32xf32>
    %200 = tpu.matmul %197, %199, %cst_118 {dimension_numbers = #tpu.dot_dimension_numbers<[1], [0], [0], [1], [0, 0, 1, 1], [], []>} : vector<2x256xbf16>, vector<256x32xbf16>, vector<2x32xf32> -> vector<2x32xf32>
    %201 = arith.addf %192, %200 : vector<2x32xf32>
    %c17 = arith.constant 17 : index
    %c0_119 = arith.constant 0 : index
    %202 = vector.load %arg10[%c17, %c0_119] : memref<32x512xf32, #tpu.memory_space<vmem>>, vector<1x512xf32>
    %203 = vector.extract_strided_slice %202 {offsets = [0, 0], sizes = [1, 256], strides = [1, 1]} : vector<1x512xf32> to vector<1x256xf32>
    %204 = vector.extract_strided_slice %202 {offsets = [0, 256], sizes = [1, 256], strides = [1, 1]} : vector<1x512xf32> to vector<1x256xf32>
    %205 = tpu.concatenate %203, %204 in 0 : vector<1x256xf32>, vector<1x256xf32> -> vector<2x256xf32>
    %206 = arith.truncf %205 : vector<2x256xf32> to vector<2x256xbf16>
    %c17_120 = arith.constant 17 : index
    %c0_121 = arith.constant 0 : index
    %c0_122 = arith.constant 0 : index
    %207 = vector.load %arg7[%c17_120, %c0_121, %c0_122] : memref<32x256x32xbf16, #tpu.memory_space<vmem>>, vector<1x256x32xbf16>
    %208 = vector.shape_cast %207 : vector<1x256x32xbf16> to vector<256x32xbf16>
    %cst_123 = arith.constant dense<0.000000e+00> : vector<2x32xf32>
    %209 = tpu.matmul %206, %208, %cst_123 {dimension_numbers = #tpu.dot_dimension_numbers<[1], [0], [0], [1], [0, 0, 1, 1], [], []>} : vector<2x256xbf16>, vector<256x32xbf16>, vector<2x32xf32> -> vector<2x32xf32>
    %210 = arith.addf %201, %209 : vector<2x32xf32>
    %c18 = arith.constant 18 : index
    %c0_124 = arith.constant 0 : index
    %211 = vector.load %arg10[%c18, %c0_124] : memref<32x512xf32, #tpu.memory_space<vmem>>, vector<1x512xf32>
    %212 = vector.extract_strided_slice %211 {offsets = [0, 0], sizes = [1, 256], strides = [1, 1]} : vector<1x512xf32> to vector<1x256xf32>
    %213 = vector.extract_strided_slice %211 {offsets = [0, 256], sizes = [1, 256], strides = [1, 1]} : vector<1x512xf32> to vector<1x256xf32>
    %214 = tpu.concatenate %212, %213 in 0 : vector<1x256xf32>, vector<1x256xf32> -> vector<2x256xf32>
    %215 = arith.truncf %214 : vector<2x256xf32> to vector<2x256xbf16>
    %c18_125 = arith.constant 18 : index
    %c0_126 = arith.constant 0 : index
    %c0_127 = arith.constant 0 : index
    %216 = vector.load %arg7[%c18_125, %c0_126, %c0_127] : memref<32x256x32xbf16, #tpu.memory_space<vmem>>, vector<1x256x32xbf16>
    %217 = vector.shape_cast %216 : vector<1x256x32xbf16> to vector<256x32xbf16>
    %cst_128 = arith.constant dense<0.000000e+00> : vector<2x32xf32>
    %218 = tpu.matmul %215, %217, %cst_128 {dimension_numbers = #tpu.dot_dimension_numbers<[1], [0], [0], [1], [0, 0, 1, 1], [], []>} : vector<2x256xbf16>, vector<256x32xbf16>, vector<2x32xf32> -> vector<2x32xf32>
    %219 = arith.addf %210, %218 : vector<2x32xf32>
    %c19 = arith.constant 19 : index
    %c0_129 = arith.constant 0 : index
    %220 = vector.load %arg10[%c19, %c0_129] : memref<32x512xf32, #tpu.memory_space<vmem>>, vector<1x512xf32>
    %221 = vector.extract_strided_slice %220 {offsets = [0, 0], sizes = [1, 256], strides = [1, 1]} : vector<1x512xf32> to vector<1x256xf32>
    %222 = vector.extract_strided_slice %220 {offsets = [0, 256], sizes = [1, 256], strides = [1, 1]} : vector<1x512xf32> to vector<1x256xf32>
    %223 = tpu.concatenate %221, %222 in 0 : vector<1x256xf32>, vector<1x256xf32> -> vector<2x256xf32>
    %224 = arith.truncf %223 : vector<2x256xf32> to vector<2x256xbf16>
    %c19_130 = arith.constant 19 : index
    %c0_131 = arith.constant 0 : index
    %c0_132 = arith.constant 0 : index
    %225 = vector.load %arg7[%c19_130, %c0_131, %c0_132] : memref<32x256x32xbf16, #tpu.memory_space<vmem>>, vector<1x256x32xbf16>
    %226 = vector.shape_cast %225 : vector<1x256x32xbf16> to vector<256x32xbf16>
    %cst_133 = arith.constant dense<0.000000e+00> : vector<2x32xf32>
    %227 = tpu.matmul %224, %226, %cst_133 {dimension_numbers = #tpu.dot_dimension_numbers<[1], [0], [0], [1], [0, 0, 1, 1], [], []>} : vector<2x256xbf16>, vector<256x32xbf16>, vector<2x32xf32> -> vector<2x32xf32>
    %228 = arith.addf %219, %227 : vector<2x32xf32>
    %c20 = arith.constant 20 : index
    %c0_134 = arith.constant 0 : index
    %229 = vector.load %arg10[%c20, %c0_134] : memref<32x512xf32, #tpu.memory_space<vmem>>, vector<1x512xf32>
    %230 = vector.extract_strided_slice %229 {offsets = [0, 0], sizes = [1, 256], strides = [1, 1]} : vector<1x512xf32> to vector<1x256xf32>
    %231 = vector.extract_strided_slice %229 {offsets = [0, 256], sizes = [1, 256], strides = [1, 1]} : vector<1x512xf32> to vector<1x256xf32>
    %232 = tpu.concatenate %230, %231 in 0 : vector<1x256xf32>, vector<1x256xf32> -> vector<2x256xf32>
    %233 = arith.truncf %232 : vector<2x256xf32> to vector<2x256xbf16>
    %c20_135 = arith.constant 20 : index
    %c0_136 = arith.constant 0 : index
    %c0_137 = arith.constant 0 : index
    %234 = vector.load %arg7[%c20_135, %c0_136, %c0_137] : memref<32x256x32xbf16, #tpu.memory_space<vmem>>, vector<1x256x32xbf16>
    %235 = vector.shape_cast %234 : vector<1x256x32xbf16> to vector<256x32xbf16>
    %cst_138 = arith.constant dense<0.000000e+00> : vector<2x32xf32>
    %236 = tpu.matmul %233, %235, %cst_138 {dimension_numbers = #tpu.dot_dimension_numbers<[1], [0], [0], [1], [0, 0, 1, 1], [], []>} : vector<2x256xbf16>, vector<256x32xbf16>, vector<2x32xf32> -> vector<2x32xf32>
    %237 = arith.addf %228, %236 : vector<2x32xf32>
    %c21 = arith.constant 21 : index
    %c0_139 = arith.constant 0 : index
    %238 = vector.load %arg10[%c21, %c0_139] : memref<32x512xf32, #tpu.memory_space<vmem>>, vector<1x512xf32>
    %239 = vector.extract_strided_slice %238 {offsets = [0, 0], sizes = [1, 256], strides = [1, 1]} : vector<1x512xf32> to vector<1x256xf32>
    %240 = vector.extract_strided_slice %238 {offsets = [0, 256], sizes = [1, 256], strides = [1, 1]} : vector<1x512xf32> to vector<1x256xf32>
    %241 = tpu.concatenate %239, %240 in 0 : vector<1x256xf32>, vector<1x256xf32> -> vector<2x256xf32>
    %242 = arith.truncf %241 : vector<2x256xf32> to vector<2x256xbf16>
    %c21_140 = arith.constant 21 : index
    %c0_141 = arith.constant 0 : index
    %c0_142 = arith.constant 0 : index
    %243 = vector.load %arg7[%c21_140, %c0_141, %c0_142] : memref<32x256x32xbf16, #tpu.memory_space<vmem>>, vector<1x256x32xbf16>
    %244 = vector.shape_cast %243 : vector<1x256x32xbf16> to vector<256x32xbf16>
    %cst_143 = arith.constant dense<0.000000e+00> : vector<2x32xf32>
    %245 = tpu.matmul %242, %244, %cst_143 {dimension_numbers = #tpu.dot_dimension_numbers<[1], [0], [0], [1], [0, 0, 1, 1], [], []>} : vector<2x256xbf16>, vector<256x32xbf16>, vector<2x32xf32> -> vector<2x32xf32>
    %246 = arith.addf %237, %245 : vector<2x32xf32>
    %c22 = arith.constant 22 : index
    %c0_144 = arith.constant 0 : index
    %247 = vector.load %arg10[%c22, %c0_144] : memref<32x512xf32, #tpu.memory_space<vmem>>, vector<1x512xf32>
    %248 = vector.extract_strided_slice %247 {offsets = [0, 0], sizes = [1, 256], strides = [1, 1]} : vector<1x512xf32> to vector<1x256xf32>
    %249 = vector.extract_strided_slice %247 {offsets = [0, 256], sizes = [1, 256], strides = [1, 1]} : vector<1x512xf32> to vector<1x256xf32>
    %250 = tpu.concatenate %248, %249 in 0 : vector<1x256xf32>, vector<1x256xf32> -> vector<2x256xf32>
    %251 = arith.truncf %250 : vector<2x256xf32> to vector<2x256xbf16>
    %c22_145 = arith.constant 22 : index
    %c0_146 = arith.constant 0 : index
    %c0_147 = arith.constant 0 : index
    %252 = vector.load %arg7[%c22_145, %c0_146, %c0_147] : memref<32x256x32xbf16, #tpu.memory_space<vmem>>, vector<1x256x32xbf16>
    %253 = vector.shape_cast %252 : vector<1x256x32xbf16> to vector<256x32xbf16>
    %cst_148 = arith.constant dense<0.000000e+00> : vector<2x32xf32>
    %254 = tpu.matmul %251, %253, %cst_148 {dimension_numbers = #tpu.dot_dimension_numbers<[1], [0], [0], [1], [0, 0, 1, 1], [], []>} : vector<2x256xbf16>, vector<256x32xbf16>, vector<2x32xf32> -> vector<2x32xf32>
    %255 = arith.addf %246, %254 : vector<2x32xf32>
    %c23 = arith.constant 23 : index
    %c0_149 = arith.constant 0 : index
    %256 = vector.load %arg10[%c23, %c0_149] : memref<32x512xf32, #tpu.memory_space<vmem>>, vector<1x512xf32>
    %257 = vector.extract_strided_slice %256 {offsets = [0, 0], sizes = [1, 256], strides = [1, 1]} : vector<1x512xf32> to vector<1x256xf32>
    %258 = vector.extract_strided_slice %256 {offsets = [0, 256], sizes = [1, 256], strides = [1, 1]} : vector<1x512xf32> to vector<1x256xf32>
    %259 = tpu.concatenate %257, %258 in 0 : vector<1x256xf32>, vector<1x256xf32> -> vector<2x256xf32>
    %260 = arith.truncf %259 : vector<2x256xf32> to vector<2x256xbf16>
    %c23_150 = arith.constant 23 : index
    %c0_151 = arith.constant 0 : index
    %c0_152 = arith.constant 0 : index
    %261 = vector.load %arg7[%c23_150, %c0_151, %c0_152] : memref<32x256x32xbf16, #tpu.memory_space<vmem>>, vector<1x256x32xbf16>
    %262 = vector.shape_cast %261 : vector<1x256x32xbf16> to vector<256x32xbf16>
    %cst_153 = arith.constant dense<0.000000e+00> : vector<2x32xf32>
    %263 = tpu.matmul %260, %262, %cst_153 {dimension_numbers = #tpu.dot_dimension_numbers<[1], [0], [0], [1], [0, 0, 1, 1], [], []>} : vector<2x256xbf16>, vector<256x32xbf16>, vector<2x32xf32> -> vector<2x32xf32>
    %264 = arith.addf %255, %263 : vector<2x32xf32>
    %c24 = arith.constant 24 : index
    %c0_154 = arith.constant 0 : index
    %265 = vector.load %arg10[%c24, %c0_154] : memref<32x512xf32, #tpu.memory_space<vmem>>, vector<1x512xf32>
    %266 = vector.extract_strided_slice %265 {offsets = [0, 0], sizes = [1, 256], strides = [1, 1]} : vector<1x512xf32> to vector<1x256xf32>
    %267 = vector.extract_strided_slice %265 {offsets = [0, 256], sizes = [1, 256], strides = [1, 1]} : vector<1x512xf32> to vector<1x256xf32>
    %268 = tpu.concatenate %266, %267 in 0 : vector<1x256xf32>, vector<1x256xf32> -> vector<2x256xf32>
    %269 = arith.truncf %268 : vector<2x256xf32> to vector<2x256xbf16>
    %c24_155 = arith.constant 24 : index
    %c0_156 = arith.constant 0 : index
    %c0_157 = arith.constant 0 : index
    %270 = vector.load %arg7[%c24_155, %c0_156, %c0_157] : memref<32x256x32xbf16, #tpu.memory_space<vmem>>, vector<1x256x32xbf16>
    %271 = vector.shape_cast %270 : vector<1x256x32xbf16> to vector<256x32xbf16>
    %cst_158 = arith.constant dense<0.000000e+00> : vector<2x32xf32>
    %272 = tpu.matmul %269, %271, %cst_158 {dimension_numbers = #tpu.dot_dimension_numbers<[1], [0], [0], [1], [0, 0, 1, 1], [], []>} : vector<2x256xbf16>, vector<256x32xbf16>, vector<2x32xf32> -> vector<2x32xf32>
    %273 = arith.addf %264, %272 : vector<2x32xf32>
    %c25 = arith.constant 25 : index
    %c0_159 = arith.constant 0 : index
    %274 = vector.load %arg10[%c25, %c0_159] : memref<32x512xf32, #tpu.memory_space<vmem>>, vector<1x512xf32>
    %275 = vector.extract_strided_slice %274 {offsets = [0, 0], sizes = [1, 256], strides = [1, 1]} : vector<1x512xf32> to vector<1x256xf32>
    %276 = vector.extract_strided_slice %274 {offsets = [0, 256], sizes = [1, 256], strides = [1, 1]} : vector<1x512xf32> to vector<1x256xf32>
    %277 = tpu.concatenate %275, %276 in 0 : vector<1x256xf32>, vector<1x256xf32> -> vector<2x256xf32>
    %278 = arith.truncf %277 : vector<2x256xf32> to vector<2x256xbf16>
    %c25_160 = arith.constant 25 : index
    %c0_161 = arith.constant 0 : index
    %c0_162 = arith.constant 0 : index
    %279 = vector.load %arg7[%c25_160, %c0_161, %c0_162] : memref<32x256x32xbf16, #tpu.memory_space<vmem>>, vector<1x256x32xbf16>
    %280 = vector.shape_cast %279 : vector<1x256x32xbf16> to vector<256x32xbf16>
    %cst_163 = arith.constant dense<0.000000e+00> : vector<2x32xf32>
    %281 = tpu.matmul %278, %280, %cst_163 {dimension_numbers = #tpu.dot_dimension_numbers<[1], [0], [0], [1], [0, 0, 1, 1], [], []>} : vector<2x256xbf16>, vector<256x32xbf16>, vector<2x32xf32> -> vector<2x32xf32>
    %282 = arith.addf %273, %281 : vector<2x32xf32>
    %c26 = arith.constant 26 : index
    %c0_164 = arith.constant 0 : index
    %283 = vector.load %arg10[%c26, %c0_164] : memref<32x512xf32, #tpu.memory_space<vmem>>, vector<1x512xf32>
    %284 = vector.extract_strided_slice %283 {offsets = [0, 0], sizes = [1, 256], strides = [1, 1]} : vector<1x512xf32> to vector<1x256xf32>
    %285 = vector.extract_strided_slice %283 {offsets = [0, 256], sizes = [1, 256], strides = [1, 1]} : vector<1x512xf32> to vector<1x256xf32>
    %286 = tpu.concatenate %284, %285 in 0 : vector<1x256xf32>, vector<1x256xf32> -> vector<2x256xf32>
    %287 = arith.truncf %286 : vector<2x256xf32> to vector<2x256xbf16>
    %c26_165 = arith.constant 26 : index
    %c0_166 = arith.constant 0 : index
    %c0_167 = arith.constant 0 : index
    %288 = vector.load %arg7[%c26_165, %c0_166, %c0_167] : memref<32x256x32xbf16, #tpu.memory_space<vmem>>, vector<1x256x32xbf16>
    %289 = vector.shape_cast %288 : vector<1x256x32xbf16> to vector<256x32xbf16>
    %cst_168 = arith.constant dense<0.000000e+00> : vector<2x32xf32>
    %290 = tpu.matmul %287, %289, %cst_168 {dimension_numbers = #tpu.dot_dimension_numbers<[1], [0], [0], [1], [0, 0, 1, 1], [], []>} : vector<2x256xbf16>, vector<256x32xbf16>, vector<2x32xf32> -> vector<2x32xf32>
    %291 = arith.addf %282, %290 : vector<2x32xf32>
    %c27 = arith.constant 27 : index
    %c0_169 = arith.constant 0 : index
    %292 = vector.load %arg10[%c27, %c0_169] : memref<32x512xf32, #tpu.memory_space<vmem>>, vector<1x512xf32>
    %293 = vector.extract_strided_slice %292 {offsets = [0, 0], sizes = [1, 256], strides = [1, 1]} : vector<1x512xf32> to vector<1x256xf32>
    %294 = vector.extract_strided_slice %292 {offsets = [0, 256], sizes = [1, 256], strides = [1, 1]} : vector<1x512xf32> to vector<1x256xf32>
    %295 = tpu.concatenate %293, %294 in 0 : vector<1x256xf32>, vector<1x256xf32> -> vector<2x256xf32>
    %296 = arith.truncf %295 : vector<2x256xf32> to vector<2x256xbf16>
    %c27_170 = arith.constant 27 : index
    %c0_171 = arith.constant 0 : index
    %c0_172 = arith.constant 0 : index
    %297 = vector.load %arg7[%c27_170, %c0_171, %c0_172] : memref<32x256x32xbf16, #tpu.memory_space<vmem>>, vector<1x256x32xbf16>
    %298 = vector.shape_cast %297 : vector<1x256x32xbf16> to vector<256x32xbf16>
    %cst_173 = arith.constant dense<0.000000e+00> : vector<2x32xf32>
    %299 = tpu.matmul %296, %298, %cst_173 {dimension_numbers = #tpu.dot_dimension_numbers<[1], [0], [0], [1], [0, 0, 1, 1], [], []>} : vector<2x256xbf16>, vector<256x32xbf16>, vector<2x32xf32> -> vector<2x32xf32>
    %300 = arith.addf %291, %299 : vector<2x32xf32>
    %c28 = arith.constant 28 : index
    %c0_174 = arith.constant 0 : index
    %301 = vector.load %arg10[%c28, %c0_174] : memref<32x512xf32, #tpu.memory_space<vmem>>, vector<1x512xf32>
    %302 = vector.extract_strided_slice %301 {offsets = [0, 0], sizes = [1, 256], strides = [1, 1]} : vector<1x512xf32> to vector<1x256xf32>
    %303 = vector.extract_strided_slice %301 {offsets = [0, 256], sizes = [1, 256], strides = [1, 1]} : vector<1x512xf32> to vector<1x256xf32>
    %304 = tpu.concatenate %302, %303 in 0 : vector<1x256xf32>, vector<1x256xf32> -> vector<2x256xf32>
    %305 = arith.truncf %304 : vector<2x256xf32> to vector<2x256xbf16>
    %c28_175 = arith.constant 28 : index
    %c0_176 = arith.constant 0 : index
    %c0_177 = arith.constant 0 : index
    %306 = vector.load %arg7[%c28_175, %c0_176, %c0_177] : memref<32x256x32xbf16, #tpu.memory_space<vmem>>, vector<1x256x32xbf16>
    %307 = vector.shape_cast %306 : vector<1x256x32xbf16> to vector<256x32xbf16>
    %cst_178 = arith.constant dense<0.000000e+00> : vector<2x32xf32>
    %308 = tpu.matmul %305, %307, %cst_178 {dimension_numbers = #tpu.dot_dimension_numbers<[1], [0], [0], [1], [0, 0, 1, 1], [], []>} : vector<2x256xbf16>, vector<256x32xbf16>, vector<2x32xf32> -> vector<2x32xf32>
    %309 = arith.addf %300, %308 : vector<2x32xf32>
    %c29 = arith.constant 29 : index
    %c0_179 = arith.constant 0 : index
    %310 = vector.load %arg10[%c29, %c0_179] : memref<32x512xf32, #tpu.memory_space<vmem>>, vector<1x512xf32>
    %311 = vector.extract_strided_slice %310 {offsets = [0, 0], sizes = [1, 256], strides = [1, 1]} : vector<1x512xf32> to vector<1x256xf32>
    %312 = vector.extract_strided_slice %310 {offsets = [0, 256], sizes = [1, 256], strides = [1, 1]} : vector<1x512xf32> to vector<1x256xf32>
    %313 = tpu.concatenate %311, %312 in 0 : vector<1x256xf32>, vector<1x256xf32> -> vector<2x256xf32>
    %314 = arith.truncf %313 : vector<2x256xf32> to vector<2x256xbf16>
    %c29_180 = arith.constant 29 : index
    %c0_181 = arith.constant 0 : index
    %c0_182 = arith.constant 0 : index
    %315 = vector.load %arg7[%c29_180, %c0_181, %c0_182] : memref<32x256x32xbf16, #tpu.memory_space<vmem>>, vector<1x256x32xbf16>
    %316 = vector.shape_cast %315 : vector<1x256x32xbf16> to vector<256x32xbf16>
    %cst_183 = arith.constant dense<0.000000e+00> : vector<2x32xf32>
    %317 = tpu.matmul %314, %316, %cst_183 {dimension_numbers = #tpu.dot_dimension_numbers<[1], [0], [0], [1], [0, 0, 1, 1], [], []>} : vector<2x256xbf16>, vector<256x32xbf16>, vector<2x32xf32> -> vector<2x32xf32>
    %318 = arith.addf %309, %317 : vector<2x32xf32>
    %c30 = arith.constant 30 : index
    %c0_184 = arith.constant 0 : index
    %319 = vector.load %arg10[%c30, %c0_184] : memref<32x512xf32, #tpu.memory_space<vmem>>, vector<1x512xf32>
    %320 = vector.extract_strided_slice %319 {offsets = [0, 0], sizes = [1, 256], strides = [1, 1]} : vector<1x512xf32> to vector<1x256xf32>
    %321 = vector.extract_strided_slice %319 {offsets = [0, 256], sizes = [1, 256], strides = [1, 1]} : vector<1x512xf32> to vector<1x256xf32>
    %322 = tpu.concatenate %320, %321 in 0 : vector<1x256xf32>, vector<1x256xf32> -> vector<2x256xf32>
    %323 = arith.truncf %322 : vector<2x256xf32> to vector<2x256xbf16>
    %c30_185 = arith.constant 30 : index
    %c0_186 = arith.constant 0 : index
    %c0_187 = arith.constant 0 : index
    %324 = vector.load %arg7[%c30_185, %c0_186, %c0_187] : memref<32x256x32xbf16, #tpu.memory_space<vmem>>, vector<1x256x32xbf16>
    %325 = vector.shape_cast %324 : vector<1x256x32xbf16> to vector<256x32xbf16>
    %cst_188 = arith.constant dense<0.000000e+00> : vector<2x32xf32>
    %326 = tpu.matmul %323, %325, %cst_188 {dimension_numbers = #tpu.dot_dimension_numbers<[1], [0], [0], [1], [0, 0, 1, 1], [], []>} : vector<2x256xbf16>, vector<256x32xbf16>, vector<2x32xf32> -> vector<2x32xf32>
    %327 = arith.addf %318, %326 : vector<2x32xf32>
    %c31 = arith.constant 31 : index
    %c0_189 = arith.constant 0 : index
    %328 = vector.load %arg10[%c31, %c0_189] : memref<32x512xf32, #tpu.memory_space<vmem>>, vector<1x512xf32>
    %329 = vector.extract_strided_slice %328 {offsets = [0, 0], sizes = [1, 256], strides = [1, 1]} : vector<1x512xf32> to vector<1x256xf32>
    %330 = vector.extract_strided_slice %328 {offsets = [0, 256], sizes = [1, 256], strides = [1, 1]} : vector<1x512xf32> to vector<1x256xf32>
    %331 = tpu.concatenate %329, %330 in 0 : vector<1x256xf32>, vector<1x256xf32> -> vector<2x256xf32>
    %332 = arith.truncf %331 : vector<2x256xf32> to vector<2x256xbf16>
    %c31_190 = arith.constant 31 : index
    %c0_191 = arith.constant 0 : index
    %c0_192 = arith.constant 0 : index
    %333 = vector.load %arg7[%c31_190, %c0_191, %c0_192] : memref<32x256x32xbf16, #tpu.memory_space<vmem>>, vector<1x256x32xbf16>
    %334 = vector.shape_cast %333 : vector<1x256x32xbf16> to vector<256x32xbf16>
    %cst_193 = arith.constant dense<0.000000e+00> : vector<2x32xf32>
    %335 = tpu.matmul %332, %334, %cst_193 {dimension_numbers = #tpu.dot_dimension_numbers<[1], [0], [0], [1], [0, 0, 1, 1], [], []>} : vector<2x256xbf16>, vector<256x32xbf16>, vector<2x32xf32> -> vector<2x32xf32>
    %336 = arith.addf %327, %335 : vector<2x32xf32>
    %c0_194 = arith.constant 0 : index
    %c0_195 = arith.constant 0 : index
    %337 = vector.load %arg8[%c0_194, %c0_195] : memref<1x32xf32, #tpu.memory_space<vmem>>, vector<1x32xf32>
    %338 = vector.broadcast %337 : vector<1x32xf32> to vector<2x32xf32>
    %339 = arith.addf %336, %338 : vector<2x32xf32>
    %cst_196 = arith.constant 0.000000e+00 : f32
    %340 = vector.broadcast %cst_196 : f32 to vector<2x32xf32>
    %341 = arith.maximumf %339, %340 : vector<2x32xf32>
    %c0_197 = arith.constant 0 : index
    %c0_198 = arith.constant 0 : index
    %342 = vector.load %arg9[%c0_197, %c0_198] : memref<2x32xf32, #tpu.memory_space<vmem>>, vector<2x32xf32>
    tpu.vector_store %arg9[%c0_197, %c0_198], %341 {strides = array<i32>} : memref<2x32xf32, #tpu.memory_space<vmem>>, vector<2x32xf32>,
    return
  }
  func.func @transform_0(%arg0: i32) -> (i32, i32, i32) {
    %c0_i32 = arith.constant 0 : i32
    %c0_i32_0 = arith.constant 0 : i32
    %c0_i32_1 = arith.constant 0 : i32
    %c0_i32_2 = arith.constant 0 : i32
    return %c0_i32, %c0_i32_0, %c0_i32_1 : i32, i32, i32
  }
  func.func @transform_1(%arg0: i32) -> (i32, i32) {
    %c0_i32 = arith.constant 0 : i32
    %c0_i32_0 = arith.constant 0 : i32
    %c0_i32_1 = arith.constant 0 : i32
    return %c0_i32, %c0_i32_0 : i32, i32
  }
  func.func @transform_2(%arg0: i32) -> (i32, i32) {
    %c0_i32 = arith.constant 0 : i32
    %c0_i32_0 = arith.constant 0 : i32
    %c0_i32_1 = arith.constant 0 : i32
    return %c0_i32, %c0_i32_0 : i32, i32
  }
  func.func @transform_3(%arg0: i32) -> (i32, i32) {
    %c0_i32 = arith.constant 0 : i32
    %c0_i32_0 = arith.constant 0 : i32
    %c0_i32_1 = arith.constant 0 : i32
    return %c0_i32, %c0_i32_0 : i32, i32
  }
  func.func @transform_4(%arg0: i32) -> (i32, i32) {
    %c0_i32 = arith.constant 0 : i32
    %c0_i32_0 = arith.constant 0 : i32
    %c0_i32_1 = arith.constant 0 : i32
    return %c0_i32, %c0_i32_0 : i32, i32
  }
  func.func @transform_5(%arg0: i32) -> (i32, i32) {
    %c0_i32 = arith.constant 0 : i32
    %c0_i32_0 = arith.constant 0 : i32
    %c0_i32_1 = arith.constant 0 : i32
    return %c0_i32, %c0_i32_0 : i32, i32
  }
  func.func @transform_6(%arg0: i32) -> (i32, i32, i32) {
    %c0_i32 = arith.constant 0 : i32
    %c0_i32_0 = arith.constant 0 : i32
    %c0_i32_1 = arith.constant 0 : i32
    %c0_i32_2 = arith.constant 0 : i32
    return %c0_i32, %c0_i32_0, %c0_i32_1 : i32, i32, i32
  }
  func.func @transform_7(%arg0: i32) -> (i32, i32) {
    %c0_i32 = arith.constant 0 : i32
    %c0_i32_0 = arith.constant 0 : i32
    %c0_i32_1 = arith.constant 0 : i32
    return %c0_i32, %c0_i32_0 : i32, i32
  }
  func.func @transform_8(%arg0: i32) -> (i32, i32) {
    %c0_i32 = arith.constant 0 : i32
    %c0_i32_0 = arith.constant 0 : i32
    %c0_i32_1 = arith.constant 0 : i32
    return %c0_i32, %c0_i32_0 : i32, i32
  }
}

</mosaic_0001>

<llo_original>
// kernel: task_monitor_forward.1
$region0: #{task_monitor_forward.1}
  #allocation0 [shape = 'u32[]', space=smem, size = 0x4, offset = 0x4, fixed_abs, tag = 'smem constant byte address 0x4 - core index']
  #allocation1 [shape = 'u32[144,128]{1,0:T(1,128)}', space=vmem, size = 0x12000, scoped, tag = 'internal scratch']
  #allocation2 [shape = 'f32[32,512]{1,0:T(8,128)}', space=vmem, size = 0x10000, scoped, tag = 'scratch operand']
  %s0 = inlined_call_operand.vmem [shape: f32[4,27,512], index: 0, kind: input, shape index: {}]
  %s1 = inlined_call_operand.vmem [shape: f32[32,27], index: 1, kind: input, shape index: {}]
  %s2 = inlined_call_operand.vmem [shape: f32[32,1], index: 2, kind: input, shape index: {}]
  %s3 = inlined_call_operand.vmem [shape: f32[32,1], index: 3, kind: input, shape index: {}]
  %s4 = inlined_call_operand.vmem [shape: f32[32,1], index: 4, kind: input, shape index: {}]
  %s5 = inlined_call_operand.vmem [shape: f32[1,512], index: 5, kind: input, shape index: {}]
  %s6 = inlined_call_operand.vmem [shape: bf16[32,256,32], index: 6, kind: input, shape index: {}]
  %s7 = inlined_call_operand.vmem [shape: f32[1,32], index: 7, kind: input, shape index: {}]
  %s8 = inlined_call_operand.hbm [shape: f32[2,32], index: 8, kind: output, shape index: {}]
  %s9 = sld [smem:[#allocation0]]
  $region42: #{task_monitor_forward.1} parent=0
    _
  %s11 = ssub.s32 1, %s9
  %s12 = scalar_select 0, %s11, %s9
  $region1: #{task_monitor_forward.1} parent=0
    #allocation3 [shape = 'u8[1024]{0}', space=vmem, size = 0x400, scoped, tag = 'output window, operand 0, single buffered']
    #allocation4 [shape = 's32[1]{0}', space=sflag, size = 0x4, scoped, tag = 'scoped memory for task_monitor_forward.1']
    %13 = vsyncpa [#allocation4], 0
    // Predicated region
    $region2: #{task_monitor_forward.1} parent=1 // pred_check
      _
    $region3: #{task_monitor_forward.1} parent=1 // pred_check_branch
      %15 = sbr.rel (0) target = $region5
    $region4: #{task_monitor_forward.1} parent=1 // pred_region
      _
    $region5: #{task_monitor_forward.1} parent=1 // pred_fallthru
      _
    // Predicated region
    $region6: #{task_monitor_forward.1} parent=1 // pred_check
      _
    $region7: #{task_monitor_forward.1} parent=1 // pred_check_branch
      %17 = sbr.rel (0) target = $region9
    $region8: #{task_monitor_forward.1} parent=1 // pred_region
      _
    $region9: #{task_monitor_forward.1} parent=1 // pred_fallthru
      _
    // Predicated region
    $region10: #{task_monitor_forward.1} parent=1 // pred_check
      _
    $region11: #{task_monitor_forward.1} parent=1 // pred_check_branch
      %19 = sbr.rel (0) target = $region13
    $region12: #{task_monitor_forward.1} parent=1 // pred_region
      _
    $region13: #{task_monitor_forward.1} parent=1 // pred_fallthru
      _
    // Predicated region
    $region14: #{task_monitor_forward.1} parent=1 // pred_check
      _
    $region15: #{task_monitor_forward.1} parent=1 // pred_check_branch
      %21 = sbr.rel (0) target = $region17
    $region16: #{task_monitor_forward.1} parent=1 // pred_region
      _
    $region17: #{task_monitor_forward.1} parent=1 // pred_fallthru
      _
    // Predicated region
    $region18: #{task_monitor_forward.1} parent=1 // pred_check
      _
    $region19: #{task_monitor_forward.1} parent=1 // pred_check_branch
      %23 = sbr.rel (0) target = $region21
    $region20: #{task_monitor_forward.1} parent=1 // pred_region
      _
    $region21: #{task_monitor_forward.1} parent=1 // pred_fallthru
      _
    // Predicated region
    $region22: #{task_monitor_forward.1} parent=1 // pred_check
      _
    $region23: #{task_monitor_forward.1} parent=1 // pred_check_branch
      %25 = sbr.rel (0) target = $region25
    $region24: #{task_monitor_forward.1} parent=1 // pred_region
      _
    $region25: #{task_monitor_forward.1} parent=1 // pred_fallthru
      _
    // Predicated region
    $region26: #{task_monitor_forward.1} parent=1 // pred_check
      _
    $region27: #{task_monitor_forward.1} parent=1 // pred_check_branch
      %27 = sbr.rel (0) target = $region29
    $region28: #{task_monitor_forward.1} parent=1 // pred_region
      _
    $region29: #{task_monitor_forward.1} parent=1 // pred_fallthru
      _
    // Predicated region
    $region30: #{task_monitor_forward.1} parent=1 // pred_check
      _
    $region31: #{task_monitor_forward.1} parent=1 // pred_check_branch
      %29 = sbr.rel (0) target = $region33
    $region32: #{task_monitor_forward.1} parent=1 // pred_region
      _
    $region33: #{task_monitor_forward.1} parent=1 // pred_fallthru
      _
    %v31 = vld [vmem:[%s1] sm:$0xff]
    %v32 = vld [vmem:[%s1 + $0x8] sm:$0xff]
    %v33 = vld [vmem:[%s1 + $0x10] sm:$0xff]
    %v34 = vld [vmem:[%s1 + $0x18] sm:$0xff]
    %v35 = vld [vmem:[%s0] sm:$0xff]
    %v36 = vld [vmem:[%s0 + $0x8] sm:$0xff]
    %v37 = vld [vmem:[%s0 + $0x10] sm:$0xff]
    %v38 = vld [vmem:[%s0 + $0x18] sm:$0xff]
    %v39 = vld [vmem:[%s0 + $0x20] sm:$0xff]
    %v40 = vld [vmem:[%s0 + $0x28] sm:$0xff]
    %v41 = vld [vmem:[%s0 + $0x30] sm:$0xff]
    %v42 = vld [vmem:[%s0 + $0x38] sm:$0xff]
    %v43 = vld [vmem:[%s0 + $0x40] sm:$0xff]
    %v44 = vld [vmem:[%s0 + $0x48] sm:$0xff]
    %v45 = vld [vmem:[%s0 + $0x50] sm:$0xff]
    %v46 = vld [vmem:[%s0 + $0x58] sm:$0xff]
    %v47 = vld [vmem:[%s0 + $0x60] sm:$0x7]
    %v48 = vld [vmem:[%s0 + $0x68] sm:$0x7]
    %v49 = vld [vmem:[%s0 + $0x70] sm:$0x7]
    %v50 = vld [vmem:[%s0 + $0x78] sm:$0x7]
    %vm51 = vcmask 220160
    %v53 = vsel %vm51, %v31, 0
    %v56 = vsel %vm51, %v32, 0
    %v59 = vsel %vm51, %v33, 0
    %v62 = vsel %vm51, %v34, 0
    %vm64 = vcmask 1042432
    %v66 = vsel %vm64, %v47, 0
    %v69 = vsel %vm64, %v48, 0
    %v72 = vsel %vm64, %v49, 0
    %v75 = vsel %vm64, %v50, 0
    %77 = vmatprep.subr.mxu0 0.0
    %78 = vmatpush1.msra.mxu0 0.0
    %79 = vmatprep.subr.mxu0 0.0
    %80 = vmatpush1.msra.mxu0 0.0
    %81 = vmatprep.subr.mxu0 0.0
    %82 = vmatpush1.msra.mxu0 0.0
    %83 = vmatprep.subr.mxu0 0.0
    %84 = vmatpush1.msra.mxu0 0.0
    %85 = vmatprep.subr.mxu0 0.0
    %86 = vmatpush1.msra.mxu0 0.0
    %87 = vmatprep.subr.mxu0 0.0
    %88 = vmatpush1.msra.mxu0 0.0
    %89 = vmatprep.subr.mxu0 0.0
    %90 = vmatpush1.msra.mxu0 0.0
    %91 = vmatprep.subr.mxu0 0.0
    %92 = vmatpush1.msra.mxu0 0.0
    %93 = vmatprep.subr.mxu0 0.0
    %94 = vmatpush1.msra.mxu0 0.0
    %95 = vmatprep.subr.mxu0 0.0
    %96 = vmatpush1.msra.mxu0 0.0
    %97 = vmatprep.subr.mxu0 0.0
    %98 = vmatpush1.msra.mxu0 0.0
    %99 = vmatprep.subr.mxu0 0.0
    %100 = vmatpush1.msra.mxu0 0.0
    %101 = vmatprep.subr.mxu0 %v69
    %102 = vmatpush1.msra.mxu0 %v66
    %103 = vmatprep.subr.mxu0 %v44
    %104 = vmatpush1.msra.mxu0 %v43
    %105 = vmatprep.subr.mxu0 %v40
    %106 = vmatpush1.msra.mxu0 %v39
    %107 = vmatprep.subr.mxu0 %v36
    %108 = vmatpush1.msra.mxu0 %v35
    %109 = vmatprep.subr.mxu0 0.0
    %110 = vmatpush2.msra.mxu0 0.0
    %111 = vmatprep.subr.mxu0 0.0
    %112 = vmatpush2.msra.mxu0 0.0
    %113 = vmatprep.subr.mxu0 0.0
    %114 = vmatpush2.msra.mxu0 0.0
    %115 = vmatprep.subr.mxu0 0.0
    %116 = vmatpush2.msra.mxu0 0.0
    %117 = vmatprep.subr.mxu0 0.0
    %118 = vmatpush2.msra.mxu0 0.0
    %119 = vmatprep.subr.mxu0 0.0
    %120 = vmatpush2.msra.mxu0 0.0
    %121 = vmatprep.subr.mxu0 0.0
    %122 = vmatpush2.msra.mxu0 0.0
    %123 = vmatprep.subr.mxu0 0.0
    %124 = vmatpush2.msra.mxu0 0.0
    %125 = vmatprep.subr.mxu0 0.0
    %126 = vmatpush2.msra.mxu0 0.0
    %127 = vmatprep.subr.mxu0 0.0
    %128 = vmatpush2.msra.mxu0 0.0
    %129 = vmatprep.subr.mxu0 0.0
    %130 = vmatpush2.msra.mxu0 0.0
    %131 = vmatprep.subr.mxu0 0.0
    %132 = vmatpush2.msra.mxu0 0.0
    %133 = vmatprep.subr.mxu0 0.0
    %134 = vmatpush2.msra.mxu0 0.0
    %135 = vmatprep.subr.mxu0 0.0
    %136 = vmatpush2.msra.mxu0 0.0
    %137 = vmatprep.subr.mxu0 0.0
    %138 = vmatpush2.msra.mxu0 0.0
    %139 = vmatprep.subr.mxu0 0.0
    %140 = vmatpush2.msra.mxu0 0.0
    %141 = vmatprep.mubr.f32.mxu0 0.0
    %142 = vmatmul.mubr.f32.gmra.mxu0 %v53
    %v143 = vpop.f32.mrf.mxu0
    %v144 = vadd.f32 0.0, %v143
    %v145 = vpop.f32.mrf.mxu0
    %v146 = vadd.f32 0.0, %v145
    %147 = vmatprep.mubr.f32.mxu0 0.0
    %148 = vmatmul.mubr.f32.gmra.mxu0 %v56
    %v149 = vpop.f32.mrf.mxu0
    %v150 = vadd.f32 0.0, %v149
    %v151 = vpop.f32.mrf.mxu0
    %v152 = vadd.f32 0.0, %v151
    %153 = vmatprep.mubr.f32.mxu0 0.0
    %154 = vmatmul.mubr.f32.gmra.mxu0 %v59
    %v155 = vpop.f32.mrf.mxu0
    %v156 = vadd.f32 0.0, %v155
    %v157 = vpop.f32.mrf.mxu0
    %v158 = vadd.f32 0.0, %v157
    %159 = vmatprep.mubr.f32.mxu0 0.0
    %160 = vmatmul.mubr.f32.gmra.mxu0 %v62
    %v161 = vpop.f32.mrf.mxu0
    %v162 = vadd.f32 0.0, %v161
    %v163 = vpop.f32.mrf.mxu0
    %v164 = vadd.f32 0.0, %v163
    %165 = vdwg.mxu0
    %166 = vmatprep.subr.mxu0 0.0
    %167 = vmatpush1.msra.mxu0 0.0
    %168 = vmatprep.subr.mxu0 0.0
    %169 = vmatpush1.msra.mxu0 0.0
    %170 = vmatprep.subr.mxu0 0.0
    %171 = vmatpush1.msra.mxu0 0.0
    %172 = vmatprep.subr.mxu0 0.0
    %173 = vmatpush1.msra.mxu0 0.0
    %174 = vmatprep.subr.mxu0 0.0
    %175 = vmatpush1.msra.mxu0 0.0
    %176 = vmatprep.subr.mxu0 0.0
    %177 = vmatpush1.msra.mxu0 0.0
    %178 = vmatprep.subr.mxu0 0.0
    %179 = vmatpush1.msra.mxu0 0.0
    %180 = vmatprep.subr.mxu0 0.0
    %181 = vmatpush1.msra.mxu0 0.0
    %182 = vmatprep.subr.mxu0 0.0
    %183 = vmatpush1.msra.mxu0 0.0
    %184 = vmatprep.subr.mxu0 0.0
    %185 = vmatpush1.msra.mxu0 0.0
    %186 = vmatprep.subr.mxu0 0.0
    %187 = vmatpush1.msra.mxu0 0.0
    %188 = vmatprep.subr.mxu0 0.0
    %189 = vmatpush1.msra.mxu0 0.0
    %190 = vmatprep.subr.mxu0 %v75
    %191 = vmatpush1.msra.mxu0 %v72
    %192 = vmatprep.subr.mxu0 %v46
    %193 = vmatpush1.msra.mxu0 %v45
    %194 = vmatprep.subr.mxu0 %v42
    %195 = vmatpush1.msra.mxu0 %v41
    %196 = vmatprep.subr.mxu0 %v38
    %197 = vmatpush1.msra.mxu0 %v37
    %198 = vmatprep.subr.mxu0 0.0
    %199 = vmatpush2.msra.mxu0 0.0
    %200 = vmatprep.subr.mxu0 0.0
    %201 = vmatpush2.msra.mxu0 0.0
    %202 = vmatprep.subr.mxu0 0.0
    %203 = vmatpush2.msra.mxu0 0.0
    %204 = vmatprep.subr.mxu0 0.0
    %205 = vmatpush2.msra.mxu0 0.0
    %206 = vmatprep.subr.mxu0 0.0
    %207 = vmatpush2.msra.mxu0 0.0
    %208 = vmatprep.subr.mxu0 0.0
    %209 = vmatpush2.msra.mxu0 0.0
    %210 = vmatprep.subr.mxu0 0.0
    %211 = vmatpush2.msra.mxu0 0.0
    %212 = vmatprep.subr.mxu0 0.0
    %213 = vmatpush2.msra.mxu0 0.0
    %214 = vmatprep.subr.mxu0 0.0
    %215 = vmatpush2.msra.mxu0 0.0
    %216 = vmatprep.subr.mxu0 0.0
    %217 = vmatpush2.msra.mxu0 0.0
    %218 = vmatprep.subr.mxu0 0.0
    %219 = vmatpush2.msra.mxu0 0.0
    %220 = vmatprep.subr.mxu0 0.0
    %221 = vmatpush2.msra.mxu0 0.0
    %222 = vmatprep.subr.mxu0 0.0
    %223 = vmatpush2.msra.mxu0 0.0
    %224 = vmatprep.subr.mxu0 0.0
    %225 = vmatpush2.msra.mxu0 0.0
    %226 = vmatprep.subr.mxu0 0.0
    %227 = vmatpush2.msra.mxu0 0.0
    %228 = vmatprep.subr.mxu0 0.0
    %229 = vmatpush2.msra.mxu0 0.0
    %230 = vmatprep.mubr.f32.mxu0 0.0
    %231 = vmatmul.mubr.f32.gmra.mxu0 %v53
    %v232 = vpop.f32.mrf.mxu0
    %v233 = vadd.f32 0.0, %v232
    %v234 = vpop.f32.mrf.mxu0
    %v235 = vadd.f32 0.0, %v234
    %236 = vmatprep.mubr.f32.mxu0 0.0
    %237 = vmatmul.mubr.f32.gmra.mxu0 %v56
    %v238 = vpop.f32.mrf.mxu0
    %v239 = vadd.f32 0.0, %v238
    %v240 = vpop.f32.mrf.mxu0
    %v241 = vadd.f32 0.0, %v240
    %242 = vmatprep.mubr.f32.mxu0 0.0
    %243 = vmatmul.mubr.f32.gmra.mxu0 %v59
    %v244 = vpop.f32.mrf.mxu0
    %v245 = vadd.f32 0.0, %v244
    %v246 = vpop.f32.mrf.mxu0
    %v247 = vadd.f32 0.0, %v246
    %248 = vmatprep.mubr.f32.mxu0 0.0
    %249 = vmatmul.mubr.f32.gmra.mxu0 %v62
    %v250 = vpop.f32.mrf.mxu0
    %v251 = vadd.f32 0.0, %v250
    %v252 = vpop.f32.mrf.mxu0
    %v253 = vadd.f32 0.0, %v252
    %254 = vdwg.mxu0
    %s255 = scalar_lea.vmem %s0, 128
    %v256 = vld [vmem:[%s255] sm:$0xff]
    %v257 = vld [vmem:[%s255 + $0x8] sm:$0xff]
    %v258 = vld [vmem:[%s255 + $0x10] sm:$0xff]
    %v259 = vld [vmem:[%s255 + $0x18] sm:$0xff]
    %v260 = vld [vmem:[%s255 + $0x20] sm:$0xff]
    %v261 = vld [vmem:[%s255 + $0x28] sm:$0xff]
    %v262 = vld [vmem:[%s255 + $0x30] sm:$0xff]
    %v263 = vld [vmem:[%s255 + $0x38] sm:$0xff]
    %v264 = vld [vmem:[%s255 + $0x40] sm:$0xff]
    %v265 = vld [vmem:[%s255 + $0x48] sm:$0xff]
    %v266 = vld [vmem:[%s255 + $0x50] sm:$0xff]
    %v267 = vld [vmem:[%s255 + $0x58] sm:$0xff]
    %v268 = vld [vmem:[%s255 + $0x60] sm:$0x7]
    %v269 = vld [vmem:[%s255 + $0x68] sm:$0x7]
    %v270 = vld [vmem:[%s255 + $0x70] sm:$0x7]
    %v271 = vld [vmem:[%s255 + $0x78] sm:$0x7]
    %v273 = vsel %vm64, %v268, 0
    %v276 = vsel %vm64, %v269, 0
    %v279 = vsel %vm64, %v270, 0
    %v282 = vsel %vm64, %v271, 0
    %284 = vmatprep.subr.mxu0 0.0
    %285 = vmatpush1.msra.mxu0 0.0
    %286 = vmatprep.subr.mxu0 0.0
    %287 = vmatpush1.msra.mxu0 0.0
    %288 = vmatprep.subr.mxu0 0.0
    %289 = vmatpush1.msra.mxu0 0.0
    %290 = vmatprep.subr.mxu0 0.0
    %291 = vmatpush1.msra.mxu0 0.0
    %292 = vmatprep.subr.mxu0 0.0
    %293 = vmatpush1.msra.mxu0 0.0
    %294 = vmatprep.subr.mxu0 0.0
    %295 = vmatpush1.msra.mxu0 0.0
    %296 = vmatprep.subr.mxu0 0.0
    %297 = vmatpush1.msra.mxu0 0.0
    %298 = vmatprep.subr.mxu0 0.0
    %299 = vmatpush1.msra.mxu0 0.0
    %300 = vmatprep.subr.mxu0 0.0
    %301 = vmatpush1.msra.mxu0 0.0
    %302 = vmatprep.subr.mxu0 0.0
    %303 = vmatpush1.msra.mxu0 0.0
    %304 = vmatprep.subr.mxu0 0.0
    %305 = vmatpush1.msra.mxu0 0.0
    %306 = vmatprep.subr.mxu0 0.0
    %307 = vmatpush1.msra.mxu0 0.0
    %308 = vmatprep.subr.mxu0 %v276
    %309 = vmatpush1.msra.mxu0 %v273
    %310 = vmatprep.subr.mxu0 %v265
    %311 = vmatpush1.msra.mxu0 %v264
    %312 = vmatprep.subr.mxu0 %v261
    %313 = vmatpush1.msra.mxu0 %v260
    %314 = vmatprep.subr.mxu0 %v257
    %315 = vmatpush1.msra.mxu0 %v256
    %316 = vmatprep.subr.mxu0 0.0
    %317 = vmatpush2.msra.mxu0 0.0
    %318 = vmatprep.subr.mxu0 0.0
    %319 = vmatpush2.msra.mxu0 0.0
    %320 = vmatprep.subr.mxu0 0.0
    %321 = vmatpush2.msra.mxu0 0.0
    %322 = vmatprep.subr.mxu0 0.0
    %323 = vmatpush2.msra.mxu0 0.0
    %324 = vmatprep.subr.mxu0 0.0
    %325 = vmatpush2.msra.mxu0 0.0
    %326 = vmatprep.subr.mxu0 0.0
    %327 = vmatpush2.msra.mxu0 0.0
    %328 = vmatprep.subr.mxu0 0.0
    %329 = vmatpush2.msra.mxu0 0.0
    %330 = vmatprep.subr.mxu0 0.0
    %331 = vmatpush2.msra.mxu0 0.0
    %332 = vmatprep.subr.mxu0 0.0
    %333 = vmatpush2.msra.mxu0 0.0
    %334 = vmatprep.subr.mxu0 0.0
    %335 = vmatpush2.msra.mxu0 0.0
    %336 = vmatprep.subr.mxu0 0.0
    %337 = vmatpush2.msra.mxu0 0.0
    %338 = vmatprep.subr.mxu0 0.0
    %339 = vmatpush2.msra.mxu0 0.0
    %340 = vmatprep.subr.mxu0 0.0
    %341 = vmatpush2.msra.mxu0 0.0
    %342 = vmatprep.subr.mxu0 0.0
    %343 = vmatpush2.msra.mxu0 0.0
    %344 = vmatprep.subr.mxu0 0.0
    %345 = vmatpush2.msra.mxu0 0.0
    %346 = vmatprep.subr.mxu0 0.0
    %347 = vmatpush2.msra.mxu0 0.0
    %348 = vmatprep.mubr.f32.mxu0 0.0
    %349 = vmatmul.mubr.f32.gmra.mxu0 %v53
    %v350 = vpop.f32.mrf.mxu0
    %v351 = vadd.f32 0.0, %v350
    %v352 = vpop.f32.mrf.mxu0
    %v353 = vadd.f32 0.0, %v352
    %354 = vmatprep.mubr.f32.mxu0 0.0
    %355 = vmatmul.mubr.f32.gmra.mxu0 %v56
    %v356 = vpop.f32.mrf.mxu0
    %v357 = vadd.f32 0.0, %v356
    %v358 = vpop.f32.mrf.mxu0
    %v359 = vadd.f32 0.0, %v358
    %360 = vmatprep.mubr.f32.mxu0 0.0
    %361 = vmatmul.mubr.f32.gmra.mxu0 %v59
    %v362 = vpop.f32.mrf.mxu0
    %v363 = vadd.f32 0.0, %v362
    %v364 = vpop.f32.mrf.mxu0
    %v365 = vadd.f32 0.0, %v364
    %366 = vmatprep.mubr.f32.mxu0 0.0
    %367 = vmatmul.mubr.f32.gmra.mxu0 %v62
    %v368 = vpop.f32.mrf.mxu0
    %v369 = vadd.f32 0.0, %v368
    %v370 = vpop.f32.mrf.mxu0
    %v371 = vadd.f32 0.0, %v370
    %372 = vdwg.mxu0
    %373 = vmatprep.subr.mxu0 0.0
    %374 = vmatpush1.msra.mxu0 0.0
    %375 = vmatprep.subr.mxu0 0.0
    %376 = vmatpush1.msra.mxu0 0.0
    %377 = vmatprep.subr.mxu0 0.0
    %378 = vmatpush1.msra.mxu0 0.0
    %379 = vmatprep.subr.mxu0 0.0
    %380 = vmatpush1.msra.mxu0 0.0
    %381 = vmatprep.subr.mxu0 0.0
    %382 = vmatpush1.msra.mxu0 0.0
    %383 = vmatprep.subr.mxu0 0.0
    %384 = vmatpush1.msra.mxu0 0.0
    %385 = vmatprep.subr.mxu0 0.0
    %386 = vmatpush1.msra.mxu0 0.0
    %387 = vmatprep.subr.mxu0 0.0
    %388 = vmatpush1.msra.mxu0 0.0
    %389 = vmatprep.subr.mxu0 0.0
    %390 = vmatpush1.msra.mxu0 0.0
    %391 = vmatprep.subr.mxu0 0.0
    %392 = vmatpush1.msra.mxu0 0.0
    %393 = vmatprep.subr.mxu0 0.0
    %394 = vmatpush1.msra.mxu0 0.0
    %395 = vmatprep.subr.mxu0 0.0
    %396 = vmatpush1.msra.mxu0 0.0
    %397 = vmatprep.subr.mxu0 %v282
    %398 = vmatpush1.msra.mxu0 %v279
    %399 = vmatprep.subr.mxu0 %v267
    %400 = vmatpush1.msra.mxu0 %v266
    %401 = vmatprep.subr.mxu0 %v263
    %402 = vmatpush1.msra.mxu0 %v262
    %403 = vmatprep.subr.mxu0 %v259
    %404 = vmatpush1.msra.mxu0 %v258
    %405 = vmatprep.subr.mxu0 0.0
    %406 = vmatpush2.msra.mxu0 0.0
    %407 = vmatprep.subr.mxu0 0.0
    %408 = vmatpush2.msra.mxu0 0.0
    %409 = vmatprep.subr.mxu0 0.0
    %410 = vmatpush2.msra.mxu0 0.0
    %411 = vmatprep.subr.mxu0 0.0
    %412 = vmatpush2.msra.mxu0 0.0
    %413 = vmatprep.subr.mxu0 0.0
    %414 = vmatpush2.msra.mxu0 0.0
    %415 = vmatprep.subr.mxu0 0.0
    %416 = vmatpush2.msra.mxu0 0.0
    %417 = vmatprep.subr.mxu0 0.0
    %418 = vmatpush2.msra.mxu0 0.0
    %419 = vmatprep.subr.mxu0 0.0
    %420 = vmatpush2.msra.mxu0 0.0
    %421 = vmatprep.subr.mxu0 0.0
    %422 = vmatpush2.msra.mxu0 0.0
    %423 = vmatprep.subr.mxu0 0.0
    %424 = vmatpush2.msra.mxu0 0.0
    %425 = vmatprep.subr.mxu0 0.0
    %426 = vmatpush2.msra.mxu0 0.0
    %427 = vmatprep.subr.mxu0 0.0
    %428 = vmatpush2.msra.mxu0 0.0
    %429 = vmatprep.subr.mxu0 0.0
    %430 = vmatpush2.msra.mxu0 0.0
    %431 = vmatprep.subr.mxu0 0.0
    %432 = vmatpush2.msra.mxu0 0.0
    %433 = vmatprep.subr.mxu0 0.0
    %434 = vmatpush2.msra.mxu0 0.0
    %435 = vmatprep.subr.mxu0 0.0
    %436 = vmatpush2.msra.mxu0 0.0
    %437 = vmatprep.mubr.f32.mxu0 0.0
    %438 = vmatmul.mubr.f32.gmra.mxu0 %v53
    %v439 = vpop.f32.mrf.mxu0
    %v440 = vadd.f32 0.0, %v439
    %v441 = vpop.f32.mrf.mxu0
    %v442 = vadd.f32 0.0, %v441
    %443 = vmatprep.mubr.f32.mxu0 0.0
    %444 = vmatmul.mubr.f32.gmra.mxu0 %v56
    %v445 = vpop.f32.mrf.mxu0
    %v446 = vadd.f32 0.0, %v445
    %v447 = vpop.f32.mrf.mxu0
    %v448 = vadd.f32 0.0, %v447
    %449 = vmatprep.mubr.f32.mxu0 0.0
    %450 = vmatmul.mubr.f32.gmra.mxu0 %v59
    %v451 = vpop.f32.mrf.mxu0
    %v452 = vadd.f32 0.0, %v451
    %v453 = vpop.f32.mrf.mxu0
    %v454 = vadd.f32 0.0, %v453
    %455 = vmatprep.mubr.f32.mxu0 0.0
    %456 = vmatmul.mubr.f32.gmra.mxu0 %v62
    %v457 = vpop.f32.mrf.mxu0
    %v458 = vadd.f32 0.0, %v457
    %v459 = vpop.f32.mrf.mxu0
    %v460 = vadd.f32 0.0, %v459
    %461 = vdwg.mxu0
    %v462 = vmax.f32 %v144, %v351
    %v463 = vmax.f32 %v146, %v353
    %v464 = vmax.f32 %v233, %v440
    %v465 = vmax.f32 %v235, %v442
    %v466 = vmax.f32 %v150, %v357
    %v467 = vmax.f32 %v152, %v359
    %v468 = vmax.f32 %v239, %v446
    %v469 = vmax.f32 %v241, %v448
    %v470 = vmax.f32 %v156, %v363
    %v471 = vmax.f32 %v158, %v365
    %v472 = vmax.f32 %v245, %v452
    %v473 = vmax.f32 %v247, %v454
    %v474 = vmax.f32 %v162, %v369
    %v475 = vmax.f32 %v164, %v371
    %v476 = vmax.f32 %v251, %v458
    %v477 = vmax.f32 %v253, %v460
    %s478 = scalar_lea.vmem %s0, 256
    %v479 = vld [vmem:[%s478] sm:$0xff]
    %v480 = vld [vmem:[%s478 + $0x8] sm:$0xff]
    %v481 = vld [vmem:[%s478 + $0x10] sm:$0xff]
    %v482 = vld [vmem:[%s478 + $0x18] sm:$0xff]
    %v483 = vld [vmem:[%s478 + $0x20] sm:$0xff]
    %v484 = vld [vmem:[%s478 + $0x28] sm:$0xff]
    %v485 = vld [vmem:[%s478 + $0x30] sm:$0xff]
    %v486 = vld [vmem:[%s478 + $0x38] sm:$0xff]
    %v487 = vld [vmem:[%s478 + $0x40] sm:$0xff]
    %v488 = vld [vmem:[%s478 + $0x48] sm:$0xff]
    %v489 = vld [vmem:[%s478 + $0x50] sm:$0xff]
    %v490 = vld [vmem:[%s478 + $0x58] sm:$0xff]
    %v491 = vld [vmem:[%s478 + $0x60] sm:$0x7]
    %v492 = vld [vmem:[%s478 + $0x68] sm:$0x7]
    %v493 = vld [vmem:[%s478 + $0x70] sm:$0x7]
    %v494 = vld [vmem:[%s478 + $0x78] sm:$0x7]
    %v496 = vsel %vm64, %v491, 0
    %v499 = vsel %vm64, %v492, 0
    %v502 = vsel %vm64, %v493, 0
    %v505 = vsel %vm64, %v494, 0
    %507 = vmatprep.subr.mxu0 0.0
    %508 = vmatpush1.msra.mxu0 0.0
    %509 = vmatprep.subr.mxu0 0.0
    %510 = vmatpush1.msra.mxu0 0.0
    %511 = vmatprep.subr.mxu0 0.0
    %512 = vmatpush1.msra.mxu0 0.0
    %513 = vmatprep.subr.mxu0 0.0
    %514 = vmatpush1.msra.mxu0 0.0
    %515 = vmatprep.subr.mxu0 0.0
    %516 = vmatpush1.msra.mxu0 0.0
    %517 = vmatprep.subr.mxu0 0.0
    %518 = vmatpush1.msra.mxu0 0.0
    %519 = vmatprep.subr.mxu0 0.0
    %520 = vmatpush1.msra.mxu0 0.0
    %521 = vmatprep.subr.mxu0 0.0
    %522 = vmatpush1.msra.mxu0 0.0
    %523 = vmatprep.subr.mxu0 0.0
    %524 = vmatpush1.msra.mxu0 0.0
    %525 = vmatprep.subr.mxu0 0.0
    %526 = vmatpush1.msra.mxu0 0.0
    %527 = vmatprep.subr.mxu0 0.0
    %528 = vmatpush1.msra.mxu0 0.0
    %529 = vmatprep.subr.mxu0 0.0
    %530 = vmatpush1.msra.mxu0 0.0
    %531 = vmatprep.subr.mxu0 %v499
    %532 = vmatpush1.msra.mxu0 %v496
    %533 = vmatprep.subr.mxu0 %v488
    %534 = vmatpush1.msra.mxu0 %v487
    %535 = vmatprep.subr.mxu0 %v484
    %536 = vmatpush1.msra.mxu0 %v483
    %537 = vmatprep.subr.mxu0 %v480
    %538 = vmatpush1.msra.mxu0 %v479
    %539 = vmatprep.subr.mxu0 0.0
    %540 = vmatpush2.msra.mxu0 0.0
    %541 = vmatprep.subr.mxu0 0.0
    %542 = vmatpush2.msra.mxu0 0.0
    %543 = vmatprep.subr.mxu0 0.0
    %544 = vmatpush2.msra.mxu0 0.0
    %545 = vmatprep.subr.mxu0 0.0
    %546 = vmatpush2.msra.mxu0 0.0
    %547 = vmatprep.subr.mxu0 0.0
    %548 = vmatpush2.msra.mxu0 0.0
    %549 = vmatprep.subr.mxu0 0.0
    %550 = vmatpush2.msra.mxu0 0.0
    %551 = vmatprep.subr.mxu0 0.0
    %552 = vmatpush2.msra.mxu0 0.0
    %553 = vmatprep.subr.mxu0 0.0
    %554 = vmatpush2.msra.mxu0 0.0
    %555 = vmatprep.subr.mxu0 0.0
    %556 = vmatpush2.msra.mxu0 0.0
    %557 = vmatprep.subr.mxu0 0.0
    %558 = vmatpush2.msra.mxu0 0.0
    %559 = vmatprep.subr.mxu0 0.0
    %560 = vmatpush2.msra.mxu0 0.0
    %561 = vmatprep.subr.mxu0 0.0
    %562 = vmatpush2.msra.mxu0 0.0
    %563 = vmatprep.subr.mxu0 0.0
    %564 = vmatpush2.msra.mxu0 0.0
    %565 = vmatprep.subr.mxu0 0.0
    %566 = vmatpush2.msra.mxu0 0.0
    %567 = vmatprep.subr.mxu0 0.0
    %568 = vmatpush2.msra.mxu0 0.0
    %569 = vmatprep.subr.mxu0 0.0
    %570 = vmatpush2.msra.mxu0 0.0
    %571 = vmatprep.mubr.f32.mxu0 0.0
    %572 = vmatmul.mubr.f32.gmra.mxu0 %v53
    %v573 = vpop.f32.mrf.mxu0
    %v574 = vadd.f32 0.0, %v573
    %v575 = vpop.f32.mrf.mxu0
    %v576 = vadd.f32 0.0, %v575
    %577 = vmatprep.mubr.f32.mxu0 0.0
    %578 = vmatmul.mubr.f32.gmra.mxu0 %v56
    %v579 = vpop.f32.mrf.mxu0
    %v580 = vadd.f32 0.0, %v579
    %v581 = vpop.f32.mrf.mxu0
    %v582 = vadd.f32 0.0, %v581
    %583 = vmatprep.mubr.f32.mxu0 0.0
    %584 = vmatmul.mubr.f32.gmra.mxu0 %v59
    %v585 = vpop.f32.mrf.mxu0
    %v586 = vadd.f32 0.0, %v585
    %v587 = vpop.f32.mrf.mxu0
    %v588 = vadd.f32 0.0, %v587
    %589 = vmatprep.mubr.f32.mxu0 0.0
    %590 = vmatmul.mubr.f32.gmra.mxu0 %v62
    %v591 = vpop.f32.mrf.mxu0
    %v592 = vadd.f32 0.0, %v591
    %v593 = vpop.f32.mrf.mxu0
    %v594 = vadd.f32 0.0, %v593
    %595 = vdwg.mxu0
    %596 = vmatprep.subr.mxu0 0.0
    %597 = vmatpush1.msra.mxu0 0.0
    %598 = vmatprep.subr.mxu0 0.0
    %599 = vmatpush1.msra.mxu0 0.0
    %600 = vmatprep.subr.mxu0 0.0
    %601 = vmatpush1.msra.mxu0 0.0
    %602 = vmatprep.subr.mxu0 0.0
    %603 = vmatpush1.msra.mxu0 0.0
    %604 = vmatprep.subr.mxu0 0.0
    %605 = vmatpush1.msra.mxu0 0.0
    %606 = vmatprep.subr.mxu0 0.0
    %607 = vmatpush1.msra.mxu0 0.0
    %608 = vmatprep.subr.mxu0 0.0
    %609 = vmatpush1.msra.mxu0 0.0
    %610 = vmatprep.subr.mxu0 0.0
    %611 = vmatpush1.msra.mxu0 0.0
    %612 = vmatprep.subr.mxu0 0.0
    %613 = vmatpush1.msra.mxu0 0.0
    %614 = vmatprep.subr.mxu0 0.0
    %615 = vmatpush1.msra.mxu0 0.0
    %616 = vmatprep.subr.mxu0 0.0
    %617 = vmatpush1.msra.mxu0 0.0
    %618 = vmatprep.subr.mxu0 0.0
    %619 = vmatpush1.msra.mxu0 0.0
    %620 = vmatprep.subr.mxu0 %v505
    %621 = vmatpush1.msra.mxu0 %v502
    %622 = vmatprep.subr.mxu0 %v490
    %623 = vmatpush1.msra.mxu0 %v489
    %624 = vmatprep.subr.mxu0 %v486
    %625 = vmatpush1.msra.mxu0 %v485
    %626 = vmatprep.subr.mxu0 %v482
    %627 = vmatpush1.msra.mxu0 %v481
    %628 = vmatprep.subr.mxu0 0.0
    %629 = vmatpush2.msra.mxu0 0.0
    %630 = vmatprep.subr.mxu0 0.0
    %631 = vmatpush2.msra.mxu0 0.0
    %632 = vmatprep.subr.mxu0 0.0
    %633 = vmatpush2.msra.mxu0 0.0
    %634 = vmatprep.subr.mxu0 0.0
    %635 = vmatpush2.msra.mxu0 0.0
    %636 = vmatprep.subr.mxu0 0.0
    %637 = vmatpush2.msra.mxu0 0.0
    %638 = vmatprep.subr.mxu0 0.0
    %639 = vmatpush2.msra.mxu0 0.0
    %640 = vmatprep.subr.mxu0 0.0
    %641 = vmatpush2.msra.mxu0 0.0
    %642 = vmatprep.subr.mxu0 0.0
    %643 = vmatpush2.msra.mxu0 0.0
    %644 = vmatprep.subr.mxu0 0.0
    %645 = vmatpush2.msra.mxu0 0.0
    %646 = vmatprep.subr.mxu0 0.0
    %647 = vmatpush2.msra.mxu0 0.0
    %648 = vmatprep.subr.mxu0 0.0
    %649 = vmatpush2.msra.mxu0 0.0
    %650 = vmatprep.subr.mxu0 0.0
    %651 = vmatpush2.msra.mxu0 0.0
    %652 = vmatprep.subr.mxu0 0.0
    %653 = vmatpush2.msra.mxu0 0.0
    %654 = vmatprep.subr.mxu0 0.0
    %655 = vmatpush2.msra.mxu0 0.0
    %656 = vmatprep.subr.mxu0 0.0
    %657 = vmatpush2.msra.mxu0 0.0
    %658 = vmatprep.subr.mxu0 0.0
    %659 = vmatpush2.msra.mxu0 0.0
    %660 = vmatprep.mubr.f32.mxu0 0.0
    %661 = vmatmul.mubr.f32.gmra.mxu0 %v53
    %v662 = vpop.f32.mrf.mxu0
    %v663 = vadd.f32 0.0, %v662
    %v664 = vpop.f32.mrf.mxu0
    %v665 = vadd.f32 0.0, %v664
    %666 = vmatprep.mubr.f32.mxu0 0.0
    %667 = vmatmul.mubr.f32.gmra.mxu0 %v56
    %v668 = vpop.f32.mrf.mxu0
    %v669 = vadd.f32 0.0, %v668
    %v670 = vpop.f32.mrf.mxu0
    %v671 = vadd.f32 0.0, %v670
    %672 = vmatprep.mubr.f32.mxu0 0.0
    %673 = vmatmul.mubr.f32.gmra.mxu0 %v59
    %v674 = vpop.f32.mrf.mxu0
    %v675 = vadd.f32 0.0, %v674
    %v676 = vpop.f32.mrf.mxu0
    %v677 = vadd.f32 0.0, %v676
    %678 = vmatprep.mubr.f32.mxu0 0.0
    %679 = vmatmul.mubr.f32.gmra.mxu0 %v62
    %v680 = vpop.f32.mrf.mxu0
    %v681 = vadd.f32 0.0, %v680
    %v682 = vpop.f32.mrf.mxu0
    %v683 = vadd.f32 0.0, %v682
    %684 = vdwg.mxu0
    %v685 = vmax.f32 %v462, %v574
    %v686 = vmax.f32 %v463, %v576
    %v687 = vmax.f32 %v464, %v663
    %v688 = vmax.f32 %v465, %v665
    %v689 = vmax.f32 %v466, %v580
    %v690 = vmax.f32 %v467, %v582
    %v691 = vmax.f32 %v468, %v669
    %v692 = vmax.f32 %v469, %v671
    %v693 = vmax.f32 %v470, %v586
    %v694 = vmax.f32 %v471, %v588
    %v695 = vmax.f32 %v472, %v675
    %v696 = vmax.f32 %v473, %v677
    %v697 = vmax.f32 %v474, %v592
    %v698 = vmax.f32 %v475, %v594
    %v699 = vmax.f32 %v476, %v681
    %v700 = vmax.f32 %v477, %v683
    %s701 = scalar_lea.vmem %s0, 384
    %v702 = vld [vmem:[%s701] sm:$0xff]
    %v703 = vld [vmem:[%s701 + $0x8] sm:$0xff]
    %v704 = vld [vmem:[%s701 + $0x10] sm:$0xff]
    %v705 = vld [vmem:[%s701 + $0x18] sm:$0xff]
    %v706 = vld [vmem:[%s701 + $0x20] sm:$0xff]
    %v707 = vld [vmem:[%s701 + $0x28] sm:$0xff]
    %v708 = vld [vmem:[%s701 + $0x30] sm:$0xff]
    %v709 = vld [vmem:[%s701 + $0x38] sm:$0xff]
    %v710 = vld [vmem:[%s701 + $0x40] sm:$0xff]
    %v711 = vld [vmem:[%s701 + $0x48] sm:$0xff]
    %v712 = vld [vmem:[%s701 + $0x50] sm:$0xff]
    %v713 = vld [vmem:[%s701 + $0x58] sm:$0xff]
    %v714 = vld [vmem:[%s701 + $0x60] sm:$0x7]
    %v715 = vld [vmem:[%s701 + $0x68] sm:$0x7]
    %v716 = vld [vmem:[%s701 + $0x70] sm:$0x7]
    %v717 = vld [vmem:[%s701 + $0x78] sm:$0x7]
    %v719 = vsel %vm64, %v714, 0
    %v722 = vsel %vm64, %v715, 0
    %v725 = vsel %vm64, %v716, 0
    %v728 = vsel %vm64, %v717, 0
    %730 = vmatprep.subr.mxu0 0.0
    %731 = vmatpush1.msra.mxu0 0.0
    %732 = vmatprep.subr.mxu0 0.0
    %733 = vmatpush1.msra.mxu0 0.0
    %734 = vmatprep.subr.mxu0 0.0
    %735 = vmatpush1.msra.mxu0 0.0
    %736 = vmatprep.subr.mxu0 0.0
    %737 = vmatpush1.msra.mxu0 0.0
    %738 = vmatprep.subr.mxu0 0.0
    %739 = vmatpush1.msra.mxu0 0.0
    %740 = vmatprep.subr.mxu0 0.0
    %741 = vmatpush1.msra.mxu0 0.0
    %742 = vmatprep.subr.mxu0 0.0
    %743 = vmatpush1.msra.mxu0 0.0
    %744 = vmatprep.subr.mxu0 0.0
    %745 = vmatpush1.msra.mxu0 0.0
    %746 = vmatprep.subr.mxu0 0.0
    %747 = vmatpush1.msra.mxu0 0.0
    %748 = vmatprep.subr.mxu0 0.0
    %749 = vmatpush1.msra.mxu0 0.0
    %750 = vmatprep.subr.mxu0 0.0
    %751 = vmatpush1.msra.mxu0 0.0
    %752 = vmatprep.subr.mxu0 0.0
    %753 = vmatpush1.msra.mxu0 0.0
    %754 = vmatprep.subr.mxu0 %v722
    %755 = vmatpush1.msra.mxu0 %v719
    %756 = vmatprep.subr.mxu0 %v711
    %757 = vmatpush1.msra.mxu0 %v710
    %758 = vmatprep.subr.mxu0 %v707
    %759 = vmatpush1.msra.mxu0 %v706
    %760 = vmatprep.subr.mxu0 %v703
    %761 = vmatpush1.msra.mxu0 %v702
    %762 = vmatprep.subr.mxu0 0.0
    %763 = vmatpush2.msra.mxu0 0.0
    %764 = vmatprep.subr.mxu0 0.0
    %765 = vmatpush2.msra.mxu0 0.0
    %766 = vmatprep.subr.mxu0 0.0
    %767 = vmatpush2.msra.mxu0 0.0
    %768 = vmatprep.subr.mxu0 0.0
    %769 = vmatpush2.msra.mxu0 0.0
    %770 = vmatprep.subr.mxu0 0.0
    %771 = vmatpush2.msra.mxu0 0.0
    %772 = vmatprep.subr.mxu0 0.0
    %773 = vmatpush2.msra.mxu0 0.0
    %774 = vmatprep.subr.mxu0 0.0
    %775 = vmatpush2.msra.mxu0 0.0
    %776 = vmatprep.subr.mxu0 0.0
    %777 = vmatpush2.msra.mxu0 0.0
    %778 = vmatprep.subr.mxu0 0.0
    %779 = vmatpush2.msra.mxu0 0.0
    %780 = vmatprep.subr.mxu0 0.0
    %781 = vmatpush2.msra.mxu0 0.0
    %782 = vmatprep.subr.mxu0 0.0
    %783 = vmatpush2.msra.mxu0 0.0
    %784 = vmatprep.subr.mxu0 0.0
    %785 = vmatpush2.msra.mxu0 0.0
    %786 = vmatprep.subr.mxu0 0.0
    %787 = vmatpush2.msra.mxu0 0.0
    %788 = vmatprep.subr.mxu0 0.0
    %789 = vmatpush2.msra.mxu0 0.0
    %790 = vmatprep.subr.mxu0 0.0
    %791 = vmatpush2.msra.mxu0 0.0
    %792 = vmatprep.subr.mxu0 0.0
    %793 = vmatpush2.msra.mxu0 0.0
    %794 = vmatprep.mubr.f32.mxu0 0.0
    %795 = vmatmul.mubr.f32.gmra.mxu0 %v53
    %v796 = vpop.f32.mrf.mxu0
    %v797 = vadd.f32 0.0, %v796
    %v798 = vpop.f32.mrf.mxu0
    %v799 = vadd.f32 0.0, %v798
    %800 = vmatprep.mubr.f32.mxu0 0.0
    %801 = vmatmul.mubr.f32.gmra.mxu0 %v56
    %v802 = vpop.f32.mrf.mxu0
    %v803 = vadd.f32 0.0, %v802
    %v804 = vpop.f32.mrf.mxu0
    %v805 = vadd.f32 0.0, %v804
    %806 = vmatprep.mubr.f32.mxu0 0.0
    %807 = vmatmul.mubr.f32.gmra.mxu0 %v59
    %v808 = vpop.f32.mrf.mxu0
    %v809 = vadd.f32 0.0, %v808
    %v810 = vpop.f32.mrf.mxu0
    %v811 = vadd.f32 0.0, %v810
    %812 = vmatprep.mubr.f32.mxu0 0.0
    %813 = vmatmul.mubr.f32.gmra.mxu0 %v62
    %v814 = vpop.f32.mrf.mxu0
    %v815 = vadd.f32 0.0, %v814
    %v816 = vpop.f32.mrf.mxu0
    %v817 = vadd.f32 0.0, %v816
    %818 = vdwg.mxu0
    %819 = vmatprep.subr.mxu0 0.0
    %820 = vmatpush1.msra.mxu0 0.0
    %821 = vmatprep.subr.mxu0 0.0
    %822 = vmatpush1.msra.mxu0 0.0
    %823 = vmatprep.subr.mxu0 0.0
    %824 = vmatpush1.msra.mxu0 0.0
    %825 = vmatprep.subr.mxu0 0.0
    %826 = vmatpush1.msra.mxu0 0.0
    %827 = vmatprep.subr.mxu0 0.0
    %828 = vmatpush1.msra.mxu0 0.0
    %829 = vmatprep.subr.mxu0 0.0
    %830 = vmatpush1.msra.mxu0 0.0
    %831 = vmatprep.subr.mxu0 0.0
    %832 = vmatpush1.msra.mxu0 0.0
    %833 = vmatprep.subr.mxu0 0.0
    %834 = vmatpush1.msra.mxu0 0.0
    %835 = vmatprep.subr.mxu0 0.0
    %836 = vmatpush1.msra.mxu0 0.0
    %837 = vmatprep.subr.mxu0 0.0
    %838 = vmatpush1.msra.mxu0 0.0
    %839 = vmatprep.subr.mxu0 0.0
    %840 = vmatpush1.msra.mxu0 0.0
    %841 = vmatprep.subr.mxu0 0.0
    %842 = vmatpush1.msra.mxu0 0.0
    %843 = vmatprep.subr.mxu0 %v728
    %844 = vmatpush1.msra.mxu0 %v725
    %845 = vmatprep.subr.mxu0 %v713
    %846 = vmatpush1.msra.mxu0 %v712
    %847 = vmatprep.subr.mxu0 %v709
    %848 = vmatpush1.msra.mxu0 %v708
    %849 = vmatprep.subr.mxu0 %v705
    %850 = vmatpush1.msra.mxu0 %v704
    %851 = vmatprep.subr.mxu0 0.0
    %852 = vmatpush2.msra.mxu0 0.0
    %853 = vmatprep.subr.mxu0 0.0
    %854 = vmatpush2.msra.mxu0 0.0
    %855 = vmatprep.subr.mxu0 0.0
    %856 = vmatpush2.msra.mxu0 0.0
    %857 = vmatprep.subr.mxu0 0.0
    %858 = vmatpush2.msra.mxu0 0.0
    %859 = vmatprep.subr.mxu0 0.0
    %860 = vmatpush2.msra.mxu0 0.0
    %861 = vmatprep.subr.mxu0 0.0
    %862 = vmatpush2.msra.mxu0 0.0
    %863 = vmatprep.subr.mxu0 0.0
    %864 = vmatpush2.msra.mxu0 0.0
    %865 = vmatprep.subr.mxu0 0.0
    %866 = vmatpush2.msra.mxu0 0.0
    %867 = vmatprep.subr.mxu0 0.0
    %868 = vmatpush2.msra.mxu0 0.0
    %869 = vmatprep.subr.mxu0 0.0
    %870 = vmatpush2.msra.mxu0 0.0
    %871 = vmatprep.subr.mxu0 0.0
    %872 = vmatpush2.msra.mxu0 0.0
    %873 = vmatprep.subr.mxu0 0.0
    %874 = vmatpush2.msra.mxu0 0.0
    %875 = vmatprep.subr.mxu0 0.0
    %876 = vmatpush2.msra.mxu0 0.0
    %877 = vmatprep.subr.mxu0 0.0
    %878 = vmatpush2.msra.mxu0 0.0
    %879 = vmatprep.subr.mxu0 0.0
    %880 = vmatpush2.msra.mxu0 0.0
    %881 = vmatprep.subr.mxu0 0.0
    %882 = vmatpush2.msra.mxu0 0.0
    %883 = vmatprep.mubr.f32.mxu0 0.0
    %884 = vmatmul.mubr.f32.gmra.mxu0 %v53
    %v885 = vpop.f32.mrf.mxu0
    %v886 = vadd.f32 0.0, %v885
    %v887 = vpop.f32.mrf.mxu0
    %v888 = vadd.f32 0.0, %v887
    %889 = vmatprep.mubr.f32.mxu0 0.0
    %890 = vmatmul.mubr.f32.gmra.mxu0 %v56
    %v891 = vpop.f32.mrf.mxu0
    %v892 = vadd.f32 0.0, %v891
    %v893 = vpop.f32.mrf.mxu0
    %v894 = vadd.f32 0.0, %v893
    %895 = vmatprep.mubr.f32.mxu0 0.0
    %896 = vmatmul.mubr.f32.gmra.mxu0 %v59
    %v897 = vpop.f32.mrf.mxu0
    %v898 = vadd.f32 0.0, %v897
    %v899 = vpop.f32.mrf.mxu0
    %v900 = vadd.f32 0.0, %v899
    %901 = vmatprep.mubr.f32.mxu0 0.0
    %902 = vmatmul.mubr.f32.gmra.mxu0 %v62
    %v903 = vpop.f32.mrf.mxu0
    %v904 = vadd.f32 0.0, %v903
    %v905 = vpop.f32.mrf.mxu0
    %v906 = vadd.f32 0.0, %v905
    %907 = vdwg.mxu0
    %v908 = vmax.f32 %v685, %v797
    %v909 = vmax.f32 %v686, %v799
    %v910 = vmax.f32 %v687, %v886
    %v911 = vmax.f32 %v688, %v888
    %v912 = vmax.f32 %v689, %v803
    %v913 = vmax.f32 %v690, %v805
    %v914 = vmax.f32 %v691, %v892
    %v915 = vmax.f32 %v692, %v894
    %v916 = vmax.f32 %v693, %v809
    %v917 = vmax.f32 %v694, %v811
    %v918 = vmax.f32 %v695, %v898
    %v919 = vmax.f32 %v696, %v900
    %v920 = vmax.f32 %v697, %v815
    %v921 = vmax.f32 %v698, %v817
    %v922 = vmax.f32 %v699, %v904
    %v923 = vmax.f32 %v700, %v906
    %v924 = vld [vmem:[%s2] sm:$0xff]
    %v925 = vld [vmem:[%s2 + $0x8] sm:$0xff]
    %v926 = vld [vmem:[%s2 + $0x10] sm:$0xff]
    %v927 = vld [vmem:[%s2 + $0x18] sm:$0xff]
    %929 = vset.pattern.permute.xlu0 0
    %930 = vperm.xlu0 %929, %v924
    %v931 = vpop.permute.xlu0 %930
    %934 = vset.pattern.permute.xlu0 0
    %935 = vperm.xlu0 %934, %v925
    %v936 = vpop.permute.xlu0 %935
    %939 = vset.pattern.permute.xlu0 0
    %940 = vperm.xlu0 %939, %v926
    %v941 = vpop.permute.xlu0 %940
    %944 = vset.pattern.permute.xlu0 0
    %945 = vperm.xlu0 %944, %v927
    %v946 = vpop.permute.xlu0 %945
    %v948 = vadd.f32 %v908, %v931
    %v949 = vadd.f32 %v909, %v931
    %v950 = vadd.f32 %v910, %v931
    %v951 = vadd.f32 %v911, %v931
    %v952 = vadd.f32 %v912, %v936
    %v953 = vadd.f32 %v913, %v936
    %v954 = vadd.f32 %v914, %v936
    %v955 = vadd.f32 %v915, %v936
    %v956 = vadd.f32 %v916, %v941
    %v957 = vadd.f32 %v917, %v941
    %v958 = vadd.f32 %v918, %v941
    %v959 = vadd.f32 %v919, %v941
    %v960 = vadd.f32 %v920, %v946
    %v961 = vadd.f32 %v921, %v946
    %v962 = vadd.f32 %v922, %v946
    %v963 = vadd.f32 %v923, %v946
    %v964 = vld [vmem:[%s5] sm:$0xf]
    %v966 = vlaneseq
    %v967 = vshrl.u32 %v966, 7
    %v968 = vsub.s32 0, %v967
    %v969 = vrot.slane %v964, %v968
    %v970 = vlaneseq
    %v971 = vshrl.u32 %v970, 7
    %v972 = vsub.s32 1, %v971
    %v973 = vrot.slane %v964, %v972
    %v974 = vlaneseq
    %v975 = vshrl.u32 %v974, 7
    %v976 = vsub.s32 2, %v975
    %v977 = vrot.slane %v964, %v976
    %v978 = vlaneseq
    %v979 = vshrl.u32 %v978, 7
    %v980 = vsub.s32 3, %v979
    %v981 = vrot.slane %v964, %v980
    %v986 = vmul.f32 %v948, %v969
    %v987 = vmul.f32 %v949, %v973
    %v988 = vmul.f32 %v950, %v977
    %v989 = vmul.f32 %v951, %v981
    %v990 = vmul.f32 %v952, %v969
    %v991 = vmul.f32 %v953, %v973
    %v992 = vmul.f32 %v954, %v977
    %v993 = vmul.f32 %v955, %v981
    %v994 = vmul.f32 %v956, %v969
    %v995 = vmul.f32 %v957, %v973
    %v996 = vmul.f32 %v958, %v977
    %v997 = vmul.f32 %v959, %v981
    %v998 = vmul.f32 %v960, %v969
    %v999 = vmul.f32 %v961, %v973
    %v1000 = vmul.f32 %v962, %v977
    %v1001 = vmul.f32 %v963, %v981
    %v1002 = vadd.f32 %v986, %v987
    %v1003 = vadd.f32 %v1002, %v988
    %v1004 = vadd.f32 %v1003, %v989
    %1005 = vadd.xlane.f32.xlu0 %v1004
    %v1006 = vpop.xlane.xlu0 %1005
    %v1007 = vadd.f32 %v990, %v991
    %v1008 = vadd.f32 %v1007, %v992
    %v1009 = vadd.f32 %v1008, %v993
    %1010 = vadd.xlane.f32.xlu0 %v1009
    %v1011 = vpop.xlane.xlu0 %1010
    %v1012 = vadd.f32 %v994, %v995
    %v1013 = vadd.f32 %v1012, %v996
    %v1014 = vadd.f32 %v1013, %v997
    %1015 = vadd.xlane.f32.xlu0 %v1014
    %v1016 = vpop.xlane.xlu0 %1015
    %v1017 = vadd.f32 %v998, %v999
    %v1018 = vadd.f32 %v1017, %v1000
    %v1019 = vadd.f32 %v1018, %v1001
    %1020 = vadd.xlane.f32.xlu0 %v1019
    %v1021 = vpop.xlane.xlu0 %1020
    %v1022 = vmul.f32 %v986, %v948
    %v1023 = vmul.f32 %v987, %v949
    %v1024 = vmul.f32 %v988, %v950
    %v1025 = vmul.f32 %v989, %v951
    %v1026 = vmul.f32 %v990, %v952
    %v1027 = vmul.f32 %v991, %v953
    %v1028 = vmul.f32 %v992, %v954
    %v1029 = vmul.f32 %v993, %v955
    %v1030 = vmul.f32 %v994, %v956
    %v1031 = vmul.f32 %v995, %v957
    %v1032 = vmul.f32 %v996, %v958
    %v1033 = vmul.f32 %v997, %v959
    %v1034 = vmul.f32 %v998, %v960
    %v1035 = vmul.f32 %v999, %v961
    %v1036 = vmul.f32 %v1000, %v962
    %v1037 = vmul.f32 %v1001, %v963
    %v1038 = vadd.f32 %v1022, %v1023
    %v1039 = vadd.f32 %v1038, %v1024
    %v1040 = vadd.f32 %v1039, %v1025
    %1041 = vadd.xlane.f32.xlu0 %v1040
    %v1042 = vpop.xlane.xlu0 %1041
    %v1043 = vadd.f32 %v1026, %v1027
    %v1044 = vadd.f32 %v1043, %v1028
    %v1045 = vadd.f32 %v1044, %v1029
    %1046 = vadd.xlane.f32.xlu0 %v1045
    %v1047 = vpop.xlane.xlu0 %1046
    %v1048 = vadd.f32 %v1030, %v1031
    %v1049 = vadd.f32 %v1048, %v1032
    %v1050 = vadd.f32 %v1049, %v1033
    %1051 = vadd.xlane.f32.xlu0 %v1050
    %v1052 = vpop.xlane.xlu0 %1051
    %v1053 = vadd.f32 %v1034, %v1035
    %v1054 = vadd.f32 %v1053, %v1036
    %v1055 = vadd.f32 %v1054, %v1037
    %1056 = vadd.xlane.f32.xlu0 %v1055
    %v1057 = vpop.xlane.xlu0 %1056
    %v1058 = vmul.f32 %v1006, 0.0022222223
    %v1059 = vmul.f32 %v1011, 0.0022222223
    %v1060 = vmul.f32 %v1016, 0.0022222223
    %v1061 = vmul.f32 %v1021, 0.0022222223
    %v1062 = vmul.f32 %v1042, 0.0022222223
    %v1063 = vmul.f32 %v1047, 0.0022222223
    %v1064 = vmul.f32 %v1052, 0.0022222223
    %v1065 = vmul.f32 %v1057, 0.0022222223
    %v1066 = vmul.f32 %v1058, %v1058
    %v1067 = vmul.f32 %v1059, %v1059
    %v1068 = vmul.f32 %v1060, %v1060
    %v1069 = vmul.f32 %v1061, %v1061
    %v1070 = vsub.f32 %v1062, %v1066
    %v1071 = vsub.f32 %v1063, %v1067
    %v1072 = vsub.f32 %v1064, %v1068
    %v1073 = vsub.f32 %v1065, %v1069
    %v1074 = vadd.f32 %v1070, 1e-05
    %v1075 = vadd.f32 %v1071, 1e-05
    %v1076 = vadd.f32 %v1072, 1e-05
    %v1077 = vadd.f32 %v1073, 1e-05
    %v1078 = vrsqrt.pop %v1074
    %v1079 = vrsqrt.pop %v1075
    %v1080 = vrsqrt.pop %v1076
    %v1081 = vrsqrt.pop %v1077
    %v1082 = vld [vmem:[%s3] sm:$0xff]
    %v1083 = vld [vmem:[%s3 + $0x8] sm:$0xff]
    %v1084 = vld [vmem:[%s3 + $0x10] sm:$0xff]
    %v1085 = vld [vmem:[%s3 + $0x18] sm:$0xff]
    %v1086 = vmul.f32 %v1078, %v1082
    %v1087 = vmul.f32 %v1079, %v1083
    %v1088 = vmul.f32 %v1080, %v1084
    %v1089 = vmul.f32 %v1081, %v1085
    %v1090 = vld [vmem:[%s4] sm:$0xff]
    %v1091 = vld [vmem:[%s4 + $0x8] sm:$0xff]
    %v1092 = vld [vmem:[%s4 + $0x10] sm:$0xff]
    %v1093 = vld [vmem:[%s4 + $0x18] sm:$0xff]
    %v1094 = vmul.f32 %v1058, %v1086
    %v1095 = vmul.f32 %v1059, %v1087
    %v1096 = vmul.f32 %v1060, %v1088
    %v1097 = vmul.f32 %v1061, %v1089
    %v1098 = vsub.f32 %v1090, %v1094
    %v1099 = vsub.f32 %v1091, %v1095
    %v1100 = vsub.f32 %v1092, %v1096
    %v1101 = vsub.f32 %v1093, %v1097
    %1103 = vset.pattern.permute.xlu0 0
    %1104 = vperm.xlu0 %1103, %v1086
    %v1105 = vpop.permute.xlu0 %1104
    %1108 = vset.pattern.permute.xlu0 0
    %1109 = vperm.xlu0 %1108, %v1087
    %v1110 = vpop.permute.xlu0 %1109
    %1113 = vset.pattern.permute.xlu0 0
    %1114 = vperm.xlu0 %1113, %v1088
    %v1115 = vpop.permute.xlu0 %1114
    %1118 = vset.pattern.permute.xlu0 0
    %1119 = vperm.xlu0 %1118, %v1089
    %v1120 = vpop.permute.xlu0 %1119
    %v1122 = vmul.f32 %v948, %v1105
    %v1123 = vmul.f32 %v949, %v1105
    %v1124 = vmul.f32 %v950, %v1105
    %v1125 = vmul.f32 %v951, %v1105
    %v1126 = vmul.f32 %v952, %v1110
    %v1127 = vmul.f32 %v953, %v1110
    %v1128 = vmul.f32 %v954, %v1110
    %v1129 = vmul.f32 %v955, %v1110
    %v1130 = vmul.f32 %v956, %v1115
    %v1131 = vmul.f32 %v957, %v1115
    %v1132 = vmul.f32 %v958, %v1115
    %v1133 = vmul.f32 %v959, %v1115
    %v1134 = vmul.f32 %v960, %v1120
    %v1135 = vmul.f32 %v961, %v1120
    %v1136 = vmul.f32 %v962, %v1120
    %v1137 = vmul.f32 %v963, %v1120
    %1139 = vset.pattern.permute.xlu0 0
    %1140 = vperm.xlu0 %1139, %v1098
    %v1141 = vpop.permute.xlu0 %1140
    %1144 = vset.pattern.permute.xlu0 0
    %1145 = vperm.xlu0 %1144, %v1099
    %v1146 = vpop.permute.xlu0 %1145
    %1149 = vset.pattern.permute.xlu0 0
    %1150 = vperm.xlu0 %1149, %v1100
    %v1151 = vpop.permute.xlu0 %1150
    %1154 = vset.pattern.permute.xlu0 0
    %1155 = vperm.xlu0 %1154, %v1101
    %v1156 = vpop.permute.xlu0 %1155
    %v1158 = vadd.f32 %v1122, %v1141
    %v1159 = vadd.f32 %v1123, %v1141
    %v1160 = vadd.f32 %v1124, %v1141
    %v1161 = vadd.f32 %v1125, %v1141
    %v1162 = vadd.f32 %v1126, %v1146
    %v1163 = vadd.f32 %v1127, %v1146
    %v1164 = vadd.f32 %v1128, %v1146
    %v1165 = vadd.f32 %v1129, %v1146
    %v1166 = vadd.f32 %v1130, %v1151
    %v1167 = vadd.f32 %v1131, %v1151
    %v1168 = vadd.f32 %v1132, %v1151
    %v1169 = vadd.f32 %v1133, %v1151
    %v1170 = vadd.f32 %v1134, %v1156
    %v1171 = vadd.f32 %v1135, %v1156
    %v1172 = vadd.f32 %v1136, %v1156
    %v1173 = vadd.f32 %v1137, %v1156
    %v1174 = vmax.f32 %v1158, 0.0
    %v1175 = vmax.f32 %v1159, 0.0
    %v1176 = vmax.f32 %v1160, 0.0
    %v1177 = vmax.f32 %v1161, 0.0
    %v1178 = vmax.f32 %v1162, 0.0
    %v1179 = vmax.f32 %v1163, 0.0
    %v1180 = vmax.f32 %v1164, 0.0
    %v1181 = vmax.f32 %v1165, 0.0
    %v1182 = vmax.f32 %v1166, 0.0
    %v1183 = vmax.f32 %v1167, 0.0
    %v1184 = vmax.f32 %v1168, 0.0
    %v1185 = vmax.f32 %v1169, 0.0
    %v1186 = vmax.f32 %v1170, 0.0
    %v1187 = vmax.f32 %v1171, 0.0
    %v1188 = vmax.f32 %v1172, 0.0
    %v1189 = vmax.f32 %v1173, 0.0
    %1190 = vst [vmem:[#allocation2] sm:$0xff] %v1174
    %1191 = vst [vmem:[#allocation2 + $0x8] sm:$0xff] %v1175
    %1192 = vst [vmem:[#allocation2 + $0x10] sm:$0xff] %v1176
    %1193 = vst [vmem:[#allocation2 + $0x18] sm:$0xff] %v1177
    %1194 = vst [vmem:[#allocation2 + $0x20] sm:$0xff] %v1178
    %1195 = vst [vmem:[#allocation2 + $0x28] sm:$0xff] %v1179
    %1196 = vst [vmem:[#allocation2 + $0x30] sm:$0xff] %v1180
    %1197 = vst [vmem:[#allocation2 + $0x38] sm:$0xff] %v1181
    %1198 = vst [vmem:[#allocation2 + $0x40] sm:$0xff] %v1182
    %1199 = vst [vmem:[#allocation2 + $0x48] sm:$0xff] %v1183
    %1200 = vst [vmem:[#allocation2 + $0x50] sm:$0xff] %v1184
    %1201 = vst [vmem:[#allocation2 + $0x58] sm:$0xff] %v1185
    %1202 = vst [vmem:[#allocation2 + $0x60] sm:$0xff] %v1186
    %1203 = vst [vmem:[#allocation2 + $0x68] sm:$0xff] %v1187
    %1204 = vst [vmem:[#allocation2 + $0x70] sm:$0xff] %v1188
    %1205 = vst [vmem:[#allocation2 + $0x78] sm:$0xff] %v1189
    %v1206 = vld [vmem:[#allocation2] ss:$8 sm:$0xf]
    %v1208 = vlaneseq
    %v1209 = vshrl.u32 %v1208, 7
    %v1210 = vsub.s32 0, %v1209
    %v1211 = vrot.slane %v1206, %v1210
    %v1212 = vlaneseq
    %v1213 = vshrl.u32 %v1212, 7
    %v1214 = vsub.s32 1, %v1213
    %v1215 = vrot.slane %v1206, %v1214
    %v1218 = vlaneseq
    %v1219 = vshrl.u32 %v1218, 7
    %v1220 = vsub.s32 2, %v1219
    %v1221 = vrot.slane %v1206, %v1220
    %v1222 = vlaneseq
    %v1223 = vshrl.u32 %v1222, 7
    %v1224 = vsub.s32 3, %v1223
    %v1225 = vrot.slane %v1206, %v1224
    %vm1228 = vcmask 1040384
    %v1229 = vsel %vm1228, %v1211, %v1221
    %v1230 = vsel %vm1228, %v1215, %v1225
    %v1231 = vpack.c.bf16 %v1229, %v1229
    %v1232 = vpack.c.bf16 %v1230, %v1230
    %v1233 = vld [vmem:[%s6] sm:$0xf]
    %v1234 = vld [vmem:[%s6 + $0x4] sm:$0xf]
    %v1235 = vld [vmem:[%s6 + $0x8] sm:$0xf]
    %v1236 = vld [vmem:[%s6 + $0xc] sm:$0xf]
    %v1237 = vld [vmem:[%s6 + $0x10] sm:$0xf]
    %v1238 = vld [vmem:[%s6 + $0x14] sm:$0xf]
    %v1239 = vld [vmem:[%s6 + $0x18] sm:$0xf]
    %v1240 = vld [vmem:[%s6 + $0x1c] sm:$0xf]
    %v1241 = vld [vmem:[%s6 + $0x20] sm:$0xf]
    %v1242 = vld [vmem:[%s6 + $0x24] sm:$0xf]
    %v1243 = vld [vmem:[%s6 + $0x28] sm:$0xf]
    %v1244 = vld [vmem:[%s6 + $0x2c] sm:$0xf]
    %v1245 = vld [vmem:[%s6 + $0x30] sm:$0xf]
    %v1246 = vld [vmem:[%s6 + $0x34] sm:$0xf]
    %v1247 = vld [vmem:[%s6 + $0x38] sm:$0xf]
    %v1248 = vld [vmem:[%s6 + $0x3c] sm:$0xf]
    %v1249 = vld [vmem:[%s6 + $0x40] sm:$0xf]
    %v1250 = vld [vmem:[%s6 + $0x44] sm:$0xf]
    %v1251 = vld [vmem:[%s6 + $0x48] sm:$0xf]
    %v1252 = vld [vmem:[%s6 + $0x4c] sm:$0xf]
    %v1253 = vld [vmem:[%s6 + $0x50] sm:$0xf]
    %v1254 = vld [vmem:[%s6 + $0x54] sm:$0xf]
    %v1255 = vld [vmem:[%s6 + $0x58] sm:$0xf]
    %v1256 = vld [vmem:[%s6 + $0x5c] sm:$0xf]
    %v1257 = vld [vmem:[%s6 + $0x60] sm:$0xf]
    %v1258 = vld [vmem:[%s6 + $0x64] sm:$0xf]
    %v1259 = vld [vmem:[%s6 + $0x68] sm:$0xf]
    %v1260 = vld [vmem:[%s6 + $0x6c] sm:$0xf]
    %v1261 = vld [vmem:[%s6 + $0x70] sm:$0xf]
    %v1262 = vld [vmem:[%s6 + $0x74] sm:$0xf]
    %v1263 = vld [vmem:[%s6 + $0x78] sm:$0xf]
    %v1264 = vld [vmem:[%s6 + $0x7c] sm:$0xf]
    %s1265 = scalar_lea.vmem [#allocation2], 1
    %v1266 = vld [vmem:[%s1265] ss:$8 sm:$0xf]
    %v1268 = vlaneseq
    %v1269 = vshrl.u32 %v1268, 7
    %v1270 = vsub.s32 0, %v1269
    %v1271 = vrot.slane %v1266, %v1270
    %v1272 = vlaneseq
    %v1273 = vshrl.u32 %v1272, 7
    %v1274 = vsub.s32 1, %v1273
    %v1275 = vrot.slane %v1266, %v1274
    %v1278 = vlaneseq
    %v1279 = vshrl.u32 %v1278, 7
    %v1280 = vsub.s32 2, %v1279
    %v1281 = vrot.slane %v1266, %v1280
    %v1282 = vlaneseq
    %v1283 = vshrl.u32 %v1282, 7
    %v1284 = vsub.s32 3, %v1283
    %v1285 = vrot.slane %v1266, %v1284
    %v1288 = vsel %vm1228, %v1271, %v1281
    %v1289 = vsel %vm1228, %v1275, %v1285
    %v1290 = vpack.c.bf16 %v1288, %v1288
    %v1291 = vpack.c.bf16 %v1289, %v1289
    %s1292 = scalar_lea.vmem %s6, 128
    %v1293 = vld [vmem:[%s1292] sm:$0xf]
    %v1294 = vld [vmem:[%s1292 + $0x4] sm:$0xf]
    %v1295 = vld [vmem:[%s1292 + $0x8] sm:$0xf]
    %v1296 = vld [vmem:[%s1292 + $0xc] sm:$0xf]
    %v1297 = vld [vmem:[%s1292 + $0x10] sm:$0xf]
    %v1298 = vld [vmem:[%s1292 + $0x14] sm:$0xf]
    %v1299 = vld [vmem:[%s1292 + $0x18] sm:$0xf]
    %v1300 = vld [vmem:[%s1292 + $0x1c] sm:$0xf]
    %v1301 = vld [vmem:[%s1292 + $0x20] sm:$0xf]
    %v1302 = vld [vmem:[%s1292 + $0x24] sm:$0xf]
    %v1303 = vld [vmem:[%s1292 + $0x28] sm:$0xf]
    %v1304 = vld [vmem:[%s1292 + $0x2c] sm:$0xf]
    %v1305 = vld [vmem:[%s1292 + $0x30] sm:$0xf]
    %v1306 = vld [vmem:[%s1292 + $0x34] sm:$0xf]
    %v1307 = vld [vmem:[%s1292 + $0x38] sm:$0xf]
    %v1308 = vld [vmem:[%s1292 + $0x3c] sm:$0xf]
    %v1309 = vld [vmem:[%s1292 + $0x40] sm:$0xf]
    %v1310 = vld [vmem:[%s1292 + $0x44] sm:$0xf]
    %v1311 = vld [vmem:[%s1292 + $0x48] sm:$0xf]
    %v1312 = vld [vmem:[%s1292 + $0x4c] sm:$0xf]
    %v1313 = vld [vmem:[%s1292 + $0x50] sm:$0xf]
    %v1314 = vld [vmem:[%s1292 + $0x54] sm:$0xf]
    %v1315 = vld [vmem:[%s1292 + $0x58] sm:$0xf]
    %v1316 = vld [vmem:[%s1292 + $0x5c] sm:$0xf]
    %v1317 = vld [vmem:[%s1292 + $0x60] sm:$0xf]
    %v1318 = vld [vmem:[%s1292 + $0x64] sm:$0xf]
    %v1319 = vld [vmem:[%s1292 + $0x68] sm:$0xf]
    %v1320 = vld [vmem:[%s1292 + $0x6c] sm:$0xf]
    %v1321 = vld [vmem:[%s1292 + $0x70] sm:$0xf]
    %v1322 = vld [vmem:[%s1292 + $0x74] sm:$0xf]
    %v1323 = vld [vmem:[%s1292 + $0x78] sm:$0xf]
    %v1324 = vld [vmem:[%s1292 + $0x7c] sm:$0xf]
    %v1357 = vunpack.c.l.b16 %v1293
    %v1358 = vunpack.c.l.b16 %v1294
    %v1359 = vunpack.c.l.b16 %v1295
    %v1360 = vunpack.c.l.b16 %v1296
    %v1361 = vunpack.c.l.b16 %v1297
    %v1362 = vunpack.c.l.b16 %v1298
    %v1363 = vunpack.c.l.b16 %v1299
    %v1364 = vunpack.c.l.b16 %v1300
    %v1365 = vunpack.c.l.b16 %v1301
    %v1366 = vunpack.c.l.b16 %v1302
    %v1367 = vunpack.c.l.b16 %v1303
    %v1368 = vunpack.c.l.b16 %v1304
    %v1369 = vunpack.c.l.b16 %v1305
    %v1370 = vunpack.c.l.b16 %v1306
    %v1371 = vunpack.c.l.b16 %v1307
    %v1372 = vunpack.c.l.b16 %v1308
    %v1373 = vunpack.c.l.b16 %v1309
    %v1374 = vunpack.c.l.b16 %v1310
    %v1375 = vunpack.c.l.b16 %v1311
    %v1376 = vunpack.c.l.b16 %v1312
    %v1377 = vunpack.c.l.b16 %v1313
    %v1378 = vunpack.c.l.b16 %v1314
    %v1379 = vunpack.c.l.b16 %v1315
    %v1380 = vunpack.c.l.b16 %v1316
    %v1381 = vunpack.c.l.b16 %v1317
    %v1382 = vunpack.c.l.b16 %v1318
    %v1383 = vunpack.c.l.b16 %v1319
    %v1384 = vunpack.c.l.b16 %v1320
    %v1385 = vunpack.c.l.b16 %v1321
    %v1386 = vunpack.c.l.b16 %v1322
    %v1387 = vunpack.c.l.b16 %v1323
    %v1388 = vunpack.c.l.b16 %v1324
    %v1389 = vpack.c.b16 %v1358, %v1357
    %v1390 = vpack.c.b16 %v1360, %v1359
    %v1391 = vpack.c.b16 %v1362, %v1361
    %v1392 = vpack.c.b16 %v1364, %v1363
    %v1393 = vpack.c.b16 %v1366, %v1365
    %v1394 = vpack.c.b16 %v1368, %v1367
    %v1395 = vpack.c.b16 %v1370, %v1369
    %v1396 = vpack.c.b16 %v1372, %v1371
    %v1397 = vpack.c.b16 %v1374, %v1373
    %v1398 = vpack.c.b16 %v1376, %v1375
    %v1399 = vpack.c.b16 %v1378, %v1377
    %v1400 = vpack.c.b16 %v1380, %v1379
    %v1401 = vpack.c.b16 %v1382, %v1381
    %v1402 = vpack.c.b16 %v1384, %v1383
    %v1403 = vpack.c.b16 %v1386, %v1385
    %v1404 = vpack.c.b16 %v1388, %v1387
    %1421 = vmatprep.subr.bf16.mxu0 0
    %1422 = vmatpush1.bf16.msra.mxu0 %v1396
    %1423 = vmatprep.subr.bf16.mxu0 0
    %1424 = vmatpush1.bf16.msra.mxu0 %v1395
    %1425 = vmatprep.subr.bf16.mxu0 0
    %1426 = vmatpush1.bf16.msra.mxu0 %v1394
    %1427 = vmatprep.subr.bf16.mxu0 0
    %1428 = vmatpush1.bf16.msra.mxu0 %v1393
    %1429 = vmatprep.subr.bf16.mxu0 0
    %1430 = vmatpush1.bf16.msra.mxu0 %v1392
    %1431 = vmatprep.subr.bf16.mxu0 0
    %1432 = vmatpush1.bf16.msra.mxu0 %v1391
    %1433 = vmatprep.subr.bf16.mxu0 0
    %1434 = vmatpush1.bf16.msra.mxu0 %v1390
    %1435 = vmatprep.subr.bf16.mxu0 0
    %1436 = vmatpush1.bf16.msra.mxu0 %v1389
    %1437 = vmatprep.subr.bf16.mxu0 0
    %1438 = vmatpush2.bf16.msra.mxu0 %v1404
    %1439 = vmatprep.subr.bf16.mxu0 0
    %1440 = vmatpush2.bf16.msra.mxu0 %v1403
    %1441 = vmatprep.subr.bf16.mxu0 0
    %1442 = vmatpush2.bf16.msra.mxu0 %v1402
    %1443 = vmatprep.subr.bf16.mxu0 0
    %1444 = vmatpush2.bf16.msra.mxu0 %v1401
    %1445 = vmatprep.subr.bf16.mxu0 0
    %1446 = vmatpush2.bf16.msra.mxu0 %v1400
    %1447 = vmatprep.subr.bf16.mxu0 0
    %1448 = vmatpush2.bf16.msra.mxu0 %v1399
    %1449 = vmatprep.subr.bf16.mxu0 0
    %1450 = vmatpush2.bf16.msra.mxu0 %v1398
    %1451 = vmatprep.subr.bf16.mxu0 0
    %1452 = vmatpush2.bf16.msra.mxu0 %v1397
    %1453 = vmatprep.mubr.bf16.mxu0 %v1291
    %1454 = vmatmul.mubr.bf16.gmra.mxu0 %v1290
    %v1455 = vpop.f32.mrf.mxu0
    %v1456 = vadd.f32 0.0, %v1455
    %v1457 = vpop.f32.mrf.mxu0
    %v1458 = vpop.f32.mrf.mxu0
    %v1459 = vpop.f32.mrf.mxu0
    %1460 = vdwg.mxu0
    %v1493 = vunpack.c.l.b16 %v1233
    %v1494 = vunpack.c.l.b16 %v1234
    %v1495 = vunpack.c.l.b16 %v1235
    %v1496 = vunpack.c.l.b16 %v1236
    %v1497 = vunpack.c.l.b16 %v1237
    %v1498 = vunpack.c.l.b16 %v1238
    %v1499 = vunpack.c.l.b16 %v1239
    %v1500 = vunpack.c.l.b16 %v1240
    %v1501 = vunpack.c.l.b16 %v1241
    %v1502 = vunpack.c.l.b16 %v1242
    %v1503 = vunpack.c.l.b16 %v1243
    %v1504 = vunpack.c.l.b16 %v1244
    %v1505 = vunpack.c.l.b16 %v1245
    %v1506 = vunpack.c.l.b16 %v1246
    %v1507 = vunpack.c.l.b16 %v1247
    %v1508 = vunpack.c.l.b16 %v1248
    %v1509 = vunpack.c.l.b16 %v1249
    %v1510 = vunpack.c.l.b16 %v1250
    %v1511 = vunpack.c.l.b16 %v1251
    %v1512 = vunpack.c.l.b16 %v1252
    %v1513 = vunpack.c.l.b16 %v1253
    %v1514 = vunpack.c.l.b16 %v1254
    %v1515 = vunpack.c.l.b16 %v1255
    %v1516 = vunpack.c.l.b16 %v1256
    %v1517 = vunpack.c.l.b16 %v1257
    %v1518 = vunpack.c.l.b16 %v1258
    %v1519 = vunpack.c.l.b16 %v1259
    %v1520 = vunpack.c.l.b16 %v1260
    %v1521 = vunpack.c.l.b16 %v1261
    %v1522 = vunpack.c.l.b16 %v1262
    %v1523 = vunpack.c.l.b16 %v1263
    %v1524 = vunpack.c.l.b16 %v1264
    %v1525 = vpack.c.b16 %v1494, %v1493
    %v1526 = vpack.c.b16 %v1496, %v1495
    %v1527 = vpack.c.b16 %v1498, %v1497
    %v1528 = vpack.c.b16 %v1500, %v1499
    %v1529 = vpack.c.b16 %v1502, %v1501
    %v1530 = vpack.c.b16 %v1504, %v1503
    %v1531 = vpack.c.b16 %v1506, %v1505
    %v1532 = vpack.c.b16 %v1508, %v1507
    %v1533 = vpack.c.b16 %v1510, %v1509
    %v1534 = vpack.c.b16 %v1512, %v1511
    %v1535 = vpack.c.b16 %v1514, %v1513
    %v1536 = vpack.c.b16 %v1516, %v1515
    %v1537 = vpack.c.b16 %v1518, %v1517
    %v1538 = vpack.c.b16 %v1520, %v1519
    %v1539 = vpack.c.b16 %v1522, %v1521
    %v1540 = vpack.c.b16 %v1524, %v1523
    %1557 = vmatprep.subr.bf16.mxu0 0
    %1558 = vmatpush1.bf16.msra.mxu0 %v1532
    %1559 = vmatprep.subr.bf16.mxu0 0
    %1560 = vmatpush1.bf16.msra.mxu0 %v1531
    %1561 = vmatprep.subr.bf16.mxu0 0
    %1562 = vmatpush1.bf16.msra.mxu0 %v1530
    %1563 = vmatprep.subr.bf16.mxu0 0
    %1564 = vmatpush1.bf16.msra.mxu0 %v1529
    %1565 = vmatprep.subr.bf16.mxu0 0
    %1566 = vmatpush1.bf16.msra.mxu0 %v1528
    %1567 = vmatprep.subr.bf16.mxu0 0
    %1568 = vmatpush1.bf16.msra.mxu0 %v1527
    %1569 = vmatprep.subr.bf16.mxu0 0
    %1570 = vmatpush1.bf16.msra.mxu0 %v1526
    %1571 = vmatprep.subr.bf16.mxu0 0
    %1572 = vmatpush1.bf16.msra.mxu0 %v1525
    %1573 = vmatprep.subr.bf16.mxu0 0
    %1574 = vmatpush2.bf16.msra.mxu0 %v1540
    %1575 = vmatprep.subr.bf16.mxu0 0
    %1576 = vmatpush2.bf16.msra.mxu0 %v1539
    %1577 = vmatprep.subr.bf16.mxu0 0
    %1578 = vmatpush2.bf16.msra.mxu0 %v1538
    %1579 = vmatprep.subr.bf16.mxu0 0
    %1580 = vmatpush2.bf16.msra.mxu0 %v1537
    %1581 = vmatprep.subr.bf16.mxu0 0
    %1582 = vmatpush2.bf16.msra.mxu0 %v1536
    %1583 = vmatprep.subr.bf16.mxu0 0
    %1584 = vmatpush2.bf16.msra.mxu0 %v1535
    %1585 = vmatprep.subr.bf16.mxu0 0
    %1586 = vmatpush2.bf16.msra.mxu0 %v1534
    %1587 = vmatprep.subr.bf16.mxu0 0
    %1588 = vmatpush2.bf16.msra.mxu0 %v1533
    %1589 = vmatprep.mubr.bf16.mxu0 %v1232
    %1590 = vmatmul.mubr.bf16.gmra.mxu0 %v1231
    %v1591 = vpop.f32.mrf.mxu0
    %v1592 = vadd.f32 %v1456, %v1591
    %v1593 = vpop.f32.mrf.mxu0
    %v1594 = vpop.f32.mrf.mxu0
    %v1595 = vpop.f32.mrf.mxu0
    %1596 = vdwg.mxu0
    %s1597 = scalar_lea.vmem [#allocation2], 2
    %v1598 = vld [vmem:[%s1597] ss:$8 sm:$0xf]
    %v1600 = vlaneseq
    %v1601 = vshrl.u32 %v1600, 7
    %v1602 = vsub.s32 0, %v1601
    %v1603 = vrot.slane %v1598, %v1602
    %v1604 = vlaneseq
    %v1605 = vshrl.u32 %v1604, 7
    %v1606 = vsub.s32 1, %v1605
    %v1607 = vrot.slane %v1598, %v1606
    %v1610 = vlaneseq
    %v1611 = vshrl.u32 %v1610, 7
    %v1612 = vsub.s32 2, %v1611
    %v1613 = vrot.slane %v1598, %v1612
    %v1614 = vlaneseq
    %v1615 = vshrl.u32 %v1614, 7
    %v1616 = vsub.s32 3, %v1615
    %v1617 = vrot.slane %v1598, %v1616
    %v1620 = vsel %vm1228, %v1603, %v1613
    %v1621 = vsel %vm1228, %v1607, %v1617
    %v1622 = vpack.c.bf16 %v1620, %v1620
    %v1623 = vpack.c.bf16 %v1621, %v1621
    %s1624 = scalar_lea.vmem %s6, 256
    %v1625 = vld [vmem:[%s1624] sm:$0xf]
    %v1626 = vld [vmem:[%s1624 + $0x4] sm:$0xf]
    %v1627 = vld [vmem:[%s1624 + $0x8] sm:$0xf]
    %v1628 = vld [vmem:[%s1624 + $0xc] sm:$0xf]
    %v1629 = vld [vmem:[%s1624 + $0x10] sm:$0xf]
    %v1630 = vld [vmem:[%s1624 + $0x14] sm:$0xf]
    %v1631 = vld [vmem:[%s1624 + $0x18] sm:$0xf]
    %v1632 = vld [vmem:[%s1624 + $0x1c] sm:$0xf]
    %v1633 = vld [vmem:[%s1624 + $0x20] sm:$0xf]
    %v1634 = vld [vmem:[%s1624 + $0x24] sm:$0xf]
    %v1635 = vld [vmem:[%s1624 + $0x28] sm:$0xf]
    %v1636 = vld [vmem:[%s1624 + $0x2c] sm:$0xf]
    %v1637 = vld [vmem:[%s1624 + $0x30] sm:$0xf]
    %v1638 = vld [vmem:[%s1624 + $0x34] sm:$0xf]
    %v1639 = vld [vmem:[%s1624 + $0x38] sm:$0xf]
    %v1640 = vld [vmem:[%s1624 + $0x3c] sm:$0xf]
    %v1641 = vld [vmem:[%s1624 + $0x40] sm:$0xf]
    %v1642 = vld [vmem:[%s1624 + $0x44] sm:$0xf]
    %v1643 = vld [vmem:[%s1624 + $0x48] sm:$0xf]
    %v1644 = vld [vmem:[%s1624 + $0x4c] sm:$0xf]
    %v1645 = vld [vmem:[%s1624 + $0x50] sm:$0xf]
    %v1646 = vld [vmem:[%s1624 + $0x54] sm:$0xf]
    %v1647 = vld [vmem:[%s1624 + $0x58] sm:$0xf]
    %v1648 = vld [vmem:[%s1624 + $0x5c] sm:$0xf]
    %v1649 = vld [vmem:[%s1624 + $0x60] sm:$0xf]
    %v1650 = vld [vmem:[%s1624 + $0x64] sm:$0xf]
    %v1651 = vld [vmem:[%s1624 + $0x68] sm:$0xf]
    %v1652 = vld [vmem:[%s1624 + $0x6c] sm:$0xf]
    %v1653 = vld [vmem:[%s1624 + $0x70] sm:$0xf]
    %v1654 = vld [vmem:[%s1624 + $0x74] sm:$0xf]
    %v1655 = vld [vmem:[%s1624 + $0x78] sm:$0xf]
    %v1656 = vld [vmem:[%s1624 + $0x7c] sm:$0xf]
    %v1689 = vunpack.c.l.b16 %v1625
    %v1690 = vunpack.c.l.b16 %v1626
    %v1691 = vunpack.c.l.b16 %v1627
    %v1692 = vunpack.c.l.b16 %v1628
    %v1693 = vunpack.c.l.b16 %v1629
    %v1694 = vunpack.c.l.b16 %v1630
    %v1695 = vunpack.c.l.b16 %v1631
    %v1696 = vunpack.c.l.b16 %v1632
    %v1697 = vunpack.c.l.b16 %v1633
    %v1698 = vunpack.c.l.b16 %v1634
    %v1699 = vunpack.c.l.b16 %v1635
    %v1700 = vunpack.c.l.b16 %v1636
    %v1701 = vunpack.c.l.b16 %v1637
    %v1702 = vunpack.c.l.b16 %v1638
    %v1703 = vunpack.c.l.b16 %v1639
    %v1704 = vunpack.c.l.b16 %v1640
    %v1705 = vunpack.c.l.b16 %v1641
    %v1706 = vunpack.c.l.b16 %v1642
    %v1707 = vunpack.c.l.b16 %v1643
    %v1708 = vunpack.c.l.b16 %v1644
    %v1709 = vunpack.c.l.b16 %v1645
    %v1710 = vunpack.c.l.b16 %v1646
    %v1711 = vunpack.c.l.b16 %v1647
    %v1712 = vunpack.c.l.b16 %v1648
    %v1713 = vunpack.c.l.b16 %v1649
    %v1714 = vunpack.c.l.b16 %v1650
    %v1715 = vunpack.c.l.b16 %v1651
    %v1716 = vunpack.c.l.b16 %v1652
    %v1717 = vunpack.c.l.b16 %v1653
    %v1718 = vunpack.c.l.b16 %v1654
    %v1719 = vunpack.c.l.b16 %v1655
    %v1720 = vunpack.c.l.b16 %v1656
    %v1721 = vpack.c.b16 %v1690, %v1689
    %v1722 = vpack.c.b16 %v1692, %v1691
    %v1723 = vpack.c.b16 %v1694, %v1693
    %v1724 = vpack.c.b16 %v1696, %v1695
    %v1725 = vpack.c.b16 %v1698, %v1697
    %v1726 = vpack.c.b16 %v1700, %v1699
    %v1727 = vpack.c.b16 %v1702, %v1701
    %v1728 = vpack.c.b16 %v1704, %v1703
    %v1729 = vpack.c.b16 %v1706, %v1705
    %v1730 = vpack.c.b16 %v1708, %v1707
    %v1731 = vpack.c.b16 %v1710, %v1709
    %v1732 = vpack.c.b16 %v1712, %v1711
    %v1733 = vpack.c.b16 %v1714, %v1713
    %v1734 = vpack.c.b16 %v1716, %v1715
    %v1735 = vpack.c.b16 %v1718, %v1717
    %v1736 = vpack.c.b16 %v1720, %v1719
    %1753 = vmatprep.subr.bf16.mxu0 0
    %1754 = vmatpush1.bf16.msra.mxu0 %v1728
    %1755 = vmatprep.subr.bf16.mxu0 0
    %1756 = vmatpush1.bf16.msra.mxu0 %v1727
    %1757 = vmatprep.subr.bf16.mxu0 0
    %1758 = vmatpush1.bf16.msra.mxu0 %v1726
    %1759 = vmatprep.subr.bf16.mxu0 0
    %1760 = vmatpush1.bf16.msra.mxu0 %v1725
    %1761 = vmatprep.subr.bf16.mxu0 0
    %1762 = vmatpush1.bf16.msra.mxu0 %v1724
    %1763 = vmatprep.subr.bf16.mxu0 0
    %1764 = vmatpush1.bf16.msra.mxu0 %v1723
    %1765 = vmatprep.subr.bf16.mxu0 0
    %1766 = vmatpush1.bf16.msra.mxu0 %v1722
    %1767 = vmatprep.subr.bf16.mxu0 0
    %1768 = vmatpush1.bf16.msra.mxu0 %v1721
    %1769 = vmatprep.subr.bf16.mxu0 0
    %1770 = vmatpush2.bf16.msra.mxu0 %v1736
    %1771 = vmatprep.subr.bf16.mxu0 0
    %1772 = vmatpush2.bf16.msra.mxu0 %v1735
    %1773 = vmatprep.subr.bf16.mxu0 0
    %1774 = vmatpush2.bf16.msra.mxu0 %v1734
    %1775 = vmatprep.subr.bf16.mxu0 0
    %1776 = vmatpush2.bf16.msra.mxu0 %v1733
    %1777 = vmatprep.subr.bf16.mxu0 0
    %1778 = vmatpush2.bf16.msra.mxu0 %v1732
    %1779 = vmatprep.subr.bf16.mxu0 0
    %1780 = vmatpush2.bf16.msra.mxu0 %v1731
    %1781 = vmatprep.subr.bf16.mxu0 0
    %1782 = vmatpush2.bf16.msra.mxu0 %v1730
    %1783 = vmatprep.subr.bf16.mxu0 0
    %1784 = vmatpush2.bf16.msra.mxu0 %v1729
    %1785 = vmatprep.mubr.bf16.mxu0 %v1623
    %1786 = vmatmul.mubr.bf16.gmra.mxu0 %v1622
    %v1787 = vpop.f32.mrf.mxu0
    %v1788 = vadd.f32 0.0, %v1787
    %v1789 = vpop.f32.mrf.mxu0
    %v1790 = vpop.f32.mrf.mxu0
    %v1791 = vpop.f32.mrf.mxu0
    %1792 = vdwg.mxu0
    %v1793 = vadd.f32 %v1592, %v1788
    %s1794 = scalar_lea.vmem [#allocation2], 3
    %v1795 = vld [vmem:[%s1794] ss:$8 sm:$0xf]
    %v1797 = vlaneseq
    %v1798 = vshrl.u32 %v1797, 7
    %v1799 = vsub.s32 0, %v1798
    %v1800 = vrot.slane %v1795, %v1799
    %v1801 = vlaneseq
    %v1802 = vshrl.u32 %v1801, 7
    %v1803 = vsub.s32 1, %v1802
    %v1804 = vrot.slane %v1795, %v1803
    %v1807 = vlaneseq
    %v1808 = vshrl.u32 %v1807, 7
    %v1809 = vsub.s32 2, %v1808
    %v1810 = vrot.slane %v1795, %v1809
    %v1811 = vlaneseq
    %v1812 = vshrl.u32 %v1811, 7
    %v1813 = vsub.s32 3, %v1812
    %v1814 = vrot.slane %v1795, %v1813
    %v1817 = vsel %vm1228, %v1800, %v1810
    %v1818 = vsel %vm1228, %v1804, %v1814
    %v1819 = vpack.c.bf16 %v1817, %v1817
    %v1820 = vpack.c.bf16 %v1818, %v1818
    %s1821 = scalar_lea.vmem %s6, 384
    %v1822 = vld [vmem:[%s1821] sm:$0xf]
    %v1823 = vld [vmem:[%s1821 + $0x4] sm:$0xf]
    %v1824 = vld [vmem:[%s1821 + $0x8] sm:$0xf]
    %v1825 = vld [vmem:[%s1821 + $0xc] sm:$0xf]
    %v1826 = vld [vmem:[%s1821 + $0x10] sm:$0xf]
    %v1827 = vld [vmem:[%s1821 + $0x14] sm:$0xf]
    %v1828 = vld [vmem:[%s1821 + $0x18] sm:$0xf]
    %v1829 = vld [vmem:[%s1821 + $0x1c] sm:$0xf]
    %v1830 = vld [vmem:[%s1821 + $0x20] sm:$0xf]
    %v1831 = vld [vmem:[%s1821 + $0x24] sm:$0xf]
    %v1832 = vld [vmem:[%s1821 + $0x28] sm:$0xf]
    %v1833 = vld [vmem:[%s1821 + $0x2c] sm:$0xf]
    %v1834 = vld [vmem:[%s1821 + $0x30] sm:$0xf]
    %v1835 = vld [vmem:[%s1821 + $0x34] sm:$0xf]
    %v1836 = vld [vmem:[%s1821 + $0x38] sm:$0xf]
    %v1837 = vld [vmem:[%s1821 + $0x3c] sm:$0xf]
    %v1838 = vld [vmem:[%s1821 + $0x40] sm:$0xf]
    %v1839 = vld [vmem:[%s1821 + $0x44] sm:$0xf]
    %v1840 = vld [vmem:[%s1821 + $0x48] sm:$0xf]
    %v1841 = vld [vmem:[%s1821 + $0x4c] sm:$0xf]
    %v1842 = vld [vmem:[%s1821 + $0x50] sm:$0xf]
    %v1843 = vld [vmem:[%s1821 + $0x54] sm:$0xf]
    %v1844 = vld [vmem:[%s1821 + $0x58] sm:$0xf]
    %v1845 = vld [vmem:[%s1821 + $0x5c] sm:$0xf]
    %v1846 = vld [vmem:[%s1821 + $0x60] sm:$0xf]
    %v1847 = vld [vmem:[%s1821 + $0x64] sm:$0xf]
    %v1848 = vld [vmem:[%s1821 + $0x68] sm:$0xf]
    %v1849 = vld [vmem:[%s1821 + $0x6c] sm:$0xf]
    %v1850 = vld [vmem:[%s1821 + $0x70] sm:$0xf]
    %v1851 = vld [vmem:[%s1821 + $0x74] sm:$0xf]
    %v1852 = vld [vmem:[%s1821 + $0x78] sm:$0xf]
    %v1853 = vld [vmem:[%s1821 + $0x7c] sm:$0xf]
    %v1886 = vunpack.c.l.b16 %v1822
    %v1887 = vunpack.c.l.b16 %v1823
    %v1888 = vunpack.c.l.b16 %v1824
    %v1889 = vunpack.c.l.b16 %v1825
    %v1890 = vunpack.c.l.b16 %v1826
    %v1891 = vunpack.c.l.b16 %v1827
    %v1892 = vunpack.c.l.b16 %v1828
    %v1893 = vunpack.c.l.b16 %v1829
    %v1894 = vunpack.c.l.b16 %v1830
    %v1895 = vunpack.c.l.b16 %v1831
    %v1896 = vunpack.c.l.b16 %v1832
    %v1897 = vunpack.c.l.b16 %v1833
    %v1898 = vunpack.c.l.b16 %v1834
    %v1899 = vunpack.c.l.b16 %v1835
    %v1900 = vunpack.c.l.b16 %v1836
    %v1901 = vunpack.c.l.b16 %v1837
    %v1902 = vunpack.c.l.b16 %v1838
    %v1903 = vunpack.c.l.b16 %v1839
    %v1904 = vunpack.c.l.b16 %v1840
    %v1905 = vunpack.c.l.b16 %v1841
    %v1906 = vunpack.c.l.b16 %v1842
    %v1907 = vunpack.c.l.b16 %v1843
    %v1908 = vunpack.c.l.b16 %v1844
    %v1909 = vunpack.c.l.b16 %v1845
    %v1910 = vunpack.c.l.b16 %v1846
    %v1911 = vunpack.c.l.b16 %v1847
    %v1912 = vunpack.c.l.b16 %v1848
    %v1913 = vunpack.c.l.b16 %v1849
    %v1914 = vunpack.c.l.b16 %v1850
    %v1915 = vunpack.c.l.b16 %v1851
    %v1916 = vunpack.c.l.b16 %v1852
    %v1917 = vunpack.c.l.b16 %v1853
    %v1918 = vpack.c.b16 %v1887, %v1886
    %v1919 = vpack.c.b16 %v1889, %v1888
    %v1920 = vpack.c.b16 %v1891, %v1890
    %v1921 = vpack.c.b16 %v1893, %v1892
    %v1922 = vpack.c.b16 %v1895, %v1894
    %v1923 = vpack.c.b16 %v1897, %v1896
    %v1924 = vpack.c.b16 %v1899, %v1898
    %v1925 = vpack.c.b16 %v1901, %v1900
    %v1926 = vpack.c.b16 %v1903, %v1902
    %v1927 = vpack.c.b16 %v1905, %v1904
    %v1928 = vpack.c.b16 %v1907, %v1906
    %v1929 = vpack.c.b16 %v1909, %v1908
    %v1930 = vpack.c.b16 %v1911, %v1910
    %v1931 = vpack.c.b16 %v1913, %v1912
    %v1932 = vpack.c.b16 %v1915, %v1914
    %v1933 = vpack.c.b16 %v1917, %v1916
    %1950 = vmatprep.subr.bf16.mxu0 0
    %1951 = vmatpush1.bf16.msra.mxu0 %v1925
    %1952 = vmatprep.subr.bf16.mxu0 0
    %1953 = vmatpush1.bf16.msra.mxu0 %v1924
    %1954 = vmatprep.subr.bf16.mxu0 0
    %1955 = vmatpush1.bf16.msra.mxu0 %v1923
    %1956 = vmatprep.subr.bf16.mxu0 0
    %1957 = vmatpush1.bf16.msra.mxu0 %v1922
    %1958 = vmatprep.subr.bf16.mxu0 0
    %1959 = vmatpush1.bf16.msra.mxu0 %v1921
    %1960 = vmatprep.subr.bf16.mxu0 0
    %1961 = vmatpush1.bf16.msra.mxu0 %v1920
    %1962 = vmatprep.subr.bf16.mxu0 0
    %1963 = vmatpush1.bf16.msra.mxu0 %v1919
    %1964 = vmatprep.subr.bf16.mxu0 0
    %1965 = vmatpush1.bf16.msra.mxu0 %v1918
    %1966 = vmatprep.subr.bf16.mxu0 0
    %1967 = vmatpush2.bf16.msra.mxu0 %v1933
    %1968 = vmatprep.subr.bf16.mxu0 0
    %1969 = vmatpush2.bf16.msra.mxu0 %v1932
    %1970 = vmatprep.subr.bf16.mxu0 0
    %1971 = vmatpush2.bf16.msra.mxu0 %v1931
    %1972 = vmatprep.subr.bf16.mxu0 0
    %1973 = vmatpush2.bf16.msra.mxu0 %v1930
    %1974 = vmatprep.subr.bf16.mxu0 0
    %1975 = vmatpush2.bf16.msra.mxu0 %v1929
    %1976 = vmatprep.subr.bf16.mxu0 0
    %1977 = vmatpush2.bf16.msra.mxu0 %v1928
    %1978 = vmatprep.subr.bf16.mxu0 0
    %1979 = vmatpush2.bf16.msra.mxu0 %v1927
    %1980 = vmatprep.subr.bf16.mxu0 0
    %1981 = vmatpush2.bf16.msra.mxu0 %v1926
    %1982 = vmatprep.mubr.bf16.mxu0 %v1820
    %1983 = vmatmul.mubr.bf16.gmra.mxu0 %v1819
    %v1984 = vpop.f32.mrf.mxu0
    %v1985 = vadd.f32 0.0, %v1984
    %v1986 = vpop.f32.mrf.mxu0
    %v1987 = vpop.f32.mrf.mxu0
    %v1988 = vpop.f32.mrf.mxu0
    %1989 = vdwg.mxu0
    %v1990 = vadd.f32 %v1793, %v1985
    %s1991 = scalar_lea.vmem [#allocation2], 4
    %v1992 = vld [vmem:[%s1991] ss:$8 sm:$0xf]
    %v1994 = vlaneseq
    %v1995 = vshrl.u32 %v1994, 7
    %v1996 = vsub.s32 0, %v1995
    %v1997 = vrot.slane %v1992, %v1996
    %v1998 = vlaneseq
    %v1999 = vshrl.u32 %v1998, 7
    %v2000 = vsub.s32 1, %v1999
    %v2001 = vrot.slane %v1992, %v2000
    %v2004 = vlaneseq
    %v2005 = vshrl.u32 %v2004, 7
    %v2006 = vsub.s32 2, %v2005
    %v2007 = vrot.slane %v1992, %v2006
    %v2008 = vlaneseq
    %v2009 = vshrl.u32 %v2008, 7
    %v2010 = vsub.s32 3, %v2009
    %v2011 = vrot.slane %v1992, %v2010
    %v2014 = vsel %vm1228, %v1997, %v2007
    %v2015 = vsel %vm1228, %v2001, %v2011
    %v2016 = vpack.c.bf16 %v2014, %v2014
    %v2017 = vpack.c.bf16 %v2015, %v2015
    %s2018 = scalar_lea.vmem %s6, 512
    %v2019 = vld [vmem:[%s2018] sm:$0xf]
    %v2020 = vld [vmem:[%s2018 + $0x4] sm:$0xf]
    %v2021 = vld [vmem:[%s2018 + $0x8] sm:$0xf]
    %v2022 = vld [vmem:[%s2018 + $0xc] sm:$0xf]
    %v2023 = vld [vmem:[%s2018 + $0x10] sm:$0xf]
    %v2024 = vld [vmem:[%s2018 + $0x14] sm:$0xf]
    %v2025 = vld [vmem:[%s2018 + $0x18] sm:$0xf]
    %v2026 = vld [vmem:[%s2018 + $0x1c] sm:$0xf]
    %v2027 = vld [vmem:[%s2018 + $0x20] sm:$0xf]
    %v2028 = vld [vmem:[%s2018 + $0x24] sm:$0xf]
    %v2029 = vld [vmem:[%s2018 + $0x28] sm:$0xf]
    %v2030 = vld [vmem:[%s2018 + $0x2c] sm:$0xf]
    %v2031 = vld [vmem:[%s2018 + $0x30] sm:$0xf]
    %v2032 = vld [vmem:[%s2018 + $0x34] sm:$0xf]
    %v2033 = vld [vmem:[%s2018 + $0x38] sm:$0xf]
    %v2034 = vld [vmem:[%s2018 + $0x3c] sm:$0xf]
    %v2035 = vld [vmem:[%s2018 + $0x40] sm:$0xf]
    %v2036 = vld [vmem:[%s2018 + $0x44] sm:$0xf]
    %v2037 = vld [vmem:[%s2018 + $0x48] sm:$0xf]
    %v2038 = vld [vmem:[%s2018 + $0x4c] sm:$0xf]
    %v2039 = vld [vmem:[%s2018 + $0x50] sm:$0xf]
    %v2040 = vld [vmem:[%s2018 + $0x54] sm:$0xf]
    %v2041 = vld [vmem:[%s2018 + $0x58] sm:$0xf]
    %v2042 = vld [vmem:[%s2018 + $0x5c] sm:$0xf]
    %v2043 = vld [vmem:[%s2018 + $0x60] sm:$0xf]
    %v2044 = vld [vmem:[%s2018 + $0x64] sm:$0xf]
    %v2045 = vld [vmem:[%s2018 + $0x68] sm:$0xf]
    %v2046 = vld [vmem:[%s2018 + $0x6c] sm:$0xf]
    %v2047 = vld [vmem:[%s2018 + $0x70] sm:$0xf]
    %v2048 = vld [vmem:[%s2018 + $0x74] sm:$0xf]
    %v2049 = vld [vmem:[%s2018 + $0x78] sm:$0xf]
    %v2050 = vld [vmem:[%s2018 + $0x7c] sm:$0xf]
    %v2083 = vunpack.c.l.b16 %v2019
    %v2084 = vunpack.c.l.b16 %v2020
    %v2085 = vunpack.c.l.b16 %v2021
    %v2086 = vunpack.c.l.b16 %v2022
    %v2087 = vunpack.c.l.b16 %v2023
    %v2088 = vunpack.c.l.b16 %v2024
    %v2089 = vunpack.c.l.b16 %v2025
    %v2090 = vunpack.c.l.b16 %v2026
    %v2091 = vunpack.c.l.b16 %v2027
    %v2092 = vunpack.c.l.b16 %v2028
    %v2093 = vunpack.c.l.b16 %v2029
    %v2094 = vunpack.c.l.b16 %v2030
    %v2095 = vunpack.c.l.b16 %v2031
    %v2096 = vunpack.c.l.b16 %v2032
    %v2097 = vunpack.c.l.b16 %v2033
    %v2098 = vunpack.c.l.b16 %v2034
    %v2099 = vunpack.c.l.b16 %v2035
    %v2100 = vunpack.c.l.b16 %v2036
    %v2101 = vunpack.c.l.b16 %v2037
    %v2102 = vunpack.c.l.b16 %v2038
    %v2103 = vunpack.c.l.b16 %v2039
    %v2104 = vunpack.c.l.b16 %v2040
    %v2105 = vunpack.c.l.b16 %v2041
    %v2106 = vunpack.c.l.b16 %v2042
    %v2107 = vunpack.c.l.b16 %v2043
    %v2108 = vunpack.c.l.b16 %v2044
    %v2109 = vunpack.c.l.b16 %v2045
    %v2110 = vunpack.c.l.b16 %v2046
    %v2111 = vunpack.c.l.b16 %v2047
    %v2112 = vunpack.c.l.b16 %v2048
    %v2113 = vunpack.c.l.b16 %v2049
    %v2114 = vunpack.c.l.b16 %v2050
    %v2115 = vpack.c.b16 %v2084, %v2083
    %v2116 = vpack.c.b16 %v2086, %v2085
    %v2117 = vpack.c.b16 %v2088, %v2087
    %v2118 = vpack.c.b16 %v2090, %v2089
    %v2119 = vpack.c.b16 %v2092, %v2091
    %v2120 = vpack.c.b16 %v2094, %v2093
    %v2121 = vpack.c.b16 %v2096, %v2095
    %v2122 = vpack.c.b16 %v2098, %v2097
    %v2123 = vpack.c.b16 %v2100, %v2099
    %v2124 = vpack.c.b16 %v2102, %v2101
    %v2125 = vpack.c.b16 %v2104, %v2103
    %v2126 = vpack.c.b16 %v2106, %v2105
    %v2127 = vpack.c.b16 %v2108, %v2107
    %v2128 = vpack.c.b16 %v2110, %v2109
    %v2129 = vpack.c.b16 %v2112, %v2111
    %v2130 = vpack.c.b16 %v2114, %v2113
    %2147 = vmatprep.subr.bf16.mxu0 0
    %2148 = vmatpush1.bf16.msra.mxu0 %v2122
    %2149 = vmatprep.subr.bf16.mxu0 0
    %2150 = vmatpush1.bf16.msra.mxu0 %v2121
    %2151 = vmatprep.subr.bf16.mxu0 0
    %2152 = vmatpush1.bf16.msra.mxu0 %v2120
    %2153 = vmatprep.subr.bf16.mxu0 0
    %2154 = vmatpush1.bf16.msra.mxu0 %v2119
    %2155 = vmatprep.subr.bf16.mxu0 0
    %2156 = vmatpush1.bf16.msra.mxu0 %v2118
    %2157 = vmatprep.subr.bf16.mxu0 0
    %2158 = vmatpush1.bf16.msra.mxu0 %v2117
    %2159 = vmatprep.subr.bf16.mxu0 0
    %2160 = vmatpush1.bf16.msra.mxu0 %v2116
    %2161 = vmatprep.subr.bf16.mxu0 0
    %2162 = vmatpush1.bf16.msra.mxu0 %v2115
    %2163 = vmatprep.subr.bf16.mxu0 0
    %2164 = vmatpush2.bf16.msra.mxu0 %v2130
    %2165 = vmatprep.subr.bf16.mxu0 0
    %2166 = vmatpush2.bf16.msra.mxu0 %v2129
    %2167 = vmatprep.subr.bf16.mxu0 0
    %2168 = vmatpush2.bf16.msra.mxu0 %v2128
    %2169 = vmatprep.subr.bf16.mxu0 0
    %2170 = vmatpush2.bf16.msra.mxu0 %v2127
    %2171 = vmatprep.subr.bf16.mxu0 0
    %2172 = vmatpush2.bf16.msra.mxu0 %v2126
    %2173 = vmatprep.subr.bf16.mxu0 0
    %2174 = vmatpush2.bf16.msra.mxu0 %v2125
    %2175 = vmatprep.subr.bf16.mxu0 0
    %2176 = vmatpush2.bf16.msra.mxu0 %v2124
    %2177 = vmatprep.subr.bf16.mxu0 0
    %2178 = vmatpush2.bf16.msra.mxu0 %v2123
    %2179 = vmatprep.mubr.bf16.mxu0 %v2017
    %2180 = vmatmul.mubr.bf16.gmra.mxu0 %v2016
    %v2181 = vpop.f32.mrf.mxu0
    %v2182 = vadd.f32 0.0, %v2181
    %v2183 = vpop.f32.mrf.mxu0
    %v2184 = vpop.f32.mrf.mxu0
    %v2185 = vpop.f32.mrf.mxu0
    %2186 = vdwg.mxu0
    %v2187 = vadd.f32 %v1990, %v2182
    %s2188 = scalar_lea.vmem [#allocation2], 5
    %v2189 = vld [vmem:[%s2188] ss:$8 sm:$0xf]
    %v2191 = vlaneseq
    %v2192 = vshrl.u32 %v2191, 7
    %v2193 = vsub.s32 0, %v2192
    %v2194 = vrot.slane %v2189, %v2193
    %v2195 = vlaneseq
    %v2196 = vshrl.u32 %v2195, 7
    %v2197 = vsub.s32 1, %v2196
    %v2198 = vrot.slane %v2189, %v2197
    %v2201 = vlaneseq
    %v2202 = vshrl.u32 %v2201, 7
    %v2203 = vsub.s32 2, %v2202
    %v2204 = vrot.slane %v2189, %v2203
    %v2205 = vlaneseq
    %v2206 = vshrl.u32 %v2205, 7
    %v2207 = vsub.s32 3, %v2206
    %v2208 = vrot.slane %v2189, %v2207
    %v2211 = vsel %vm1228, %v2194, %v2204
    %v2212 = vsel %vm1228, %v2198, %v2208
    %v2213 = vpack.c.bf16 %v2211, %v2211
    %v2214 = vpack.c.bf16 %v2212, %v2212
    %s2215 = scalar_lea.vmem %s6, 640
    %v2216 = vld [vmem:[%s2215] sm:$0xf]
    %v2217 = vld [vmem:[%s2215 + $0x4] sm:$0xf]
    %v2218 = vld [vmem:[%s2215 + $0x8] sm:$0xf]
    %v2219 = vld [vmem:[%s2215 + $0xc] sm:$0xf]
    %v2220 = vld [vmem:[%s2215 + $0x10] sm:$0xf]
    %v2221 = vld [vmem:[%s2215 + $0x14] sm:$0xf]
    %v2222 = vld [vmem:[%s2215 + $0x18] sm:$0xf]
    %v2223 = vld [vmem:[%s2215 + $0x1c] sm:$0xf]
    %v2224 = vld [vmem:[%s2215 + $0x20] sm:$0xf]
    %v2225 = vld [vmem:[%s2215 + $0x24] sm:$0xf]
    %v2226 = vld [vmem:[%s2215 + $0x28] sm:$0xf]
    %v2227 = vld [vmem:[%s2215 + $0x2c] sm:$0xf]
    %v2228 = vld [vmem:[%s2215 + $0x30] sm:$0xf]
    %v2229 = vld [vmem:[%s2215 + $0x34] sm:$0xf]
    %v2230 = vld [vmem:[%s2215 + $0x38] sm:$0xf]
    %v2231 = vld [vmem:[%s2215 + $0x3c] sm:$0xf]
    %v2232 = vld [vmem:[%s2215 + $0x40] sm:$0xf]
    %v2233 = vld [vmem:[%s2215 + $0x44] sm:$0xf]
    %v2234 = vld [vmem:[%s2215 + $0x48] sm:$0xf]
    %v2235 = vld [vmem:[%s2215 + $0x4c] sm:$0xf]
    %v2236 = vld [vmem:[%s2215 + $0x50] sm:$0xf]
    %v2237 = vld [vmem:[%s2215 + $0x54] sm:$0xf]
    %v2238 = vld [vmem:[%s2215 + $0x58] sm:$0xf]
    %v2239 = vld [vmem:[%s2215 + $0x5c] sm:$0xf]
    %v2240 = vld [vmem:[%s2215 + $0x60] sm:$0xf]
    %v2241 = vld [vmem:[%s2215 + $0x64] sm:$0xf]
    %v2242 = vld [vmem:[%s2215 + $0x68] sm:$0xf]
    %v2243 = vld [vmem:[%s2215 + $0x6c] sm:$0xf]
    %v2244 = vld [vmem:[%s2215 + $0x70] sm:$0xf]
    %v2245 = vld [vmem:[%s2215 + $0x74] sm:$0xf]
    %v2246 = vld [vmem:[%s2215 + $0x78] sm:$0xf]
    %v2247 = vld [vmem:[%s2215 + $0x7c] sm:$0xf]
    %v2280 = vunpack.c.l.b16 %v2216
    %v2281 = vunpack.c.l.b16 %v2217
    %v2282 = vunpack.c.l.b16 %v2218
    %v2283 = vunpack.c.l.b16 %v2219
    %v2284 = vunpack.c.l.b16 %v2220
    %v2285 = vunpack.c.l.b16 %v2221
    %v2286 = vunpack.c.l.b16 %v2222
    %v2287 = vunpack.c.l.b16 %v2223
    %v2288 = vunpack.c.l.b16 %v2224
    %v2289 = vunpack.c.l.b16 %v2225
    %v2290 = vunpack.c.l.b16 %v2226
    %v2291 = vunpack.c.l.b16 %v2227
    %v2292 = vunpack.c.l.b16 %v2228
    %v2293 = vunpack.c.l.b16 %v2229
    %v2294 = vunpack.c.l.b16 %v2230
    %v2295 = vunpack.c.l.b16 %v2231
    %v2296 = vunpack.c.l.b16 %v2232
    %v2297 = vunpack.c.l.b16 %v2233
    %v2298 = vunpack.c.l.b16 %v2234
    %v2299 = vunpack.c.l.b16 %v2235
    %v2300 = vunpack.c.l.b16 %v2236
    %v2301 = vunpack.c.l.b16 %v2237
    %v2302 = vunpack.c.l.b16 %v2238
    %v2303 = vunpack.c.l.b16 %v2239
    %v2304 = vunpack.c.l.b16 %v2240
    %v2305 = vunpack.c.l.b16 %v2241
    %v2306 = vunpack.c.l.b16 %v2242
    %v2307 = vunpack.c.l.b16 %v2243
    %v2308 = vunpack.c.l.b16 %v2244
    %v2309 = vunpack.c.l.b16 %v2245
    %v2310 = vunpack.c.l.b16 %v2246
    %v2311 = vunpack.c.l.b16 %v2247
    %v2312 = vpack.c.b16 %v2281, %v2280
    %v2313 = vpack.c.b16 %v2283, %v2282
    %v2314 = vpack.c.b16 %v2285, %v2284
    %v2315 = vpack.c.b16 %v2287, %v2286
    %v2316 = vpack.c.b16 %v2289, %v2288
    %v2317 = vpack.c.b16 %v2291, %v2290
    %v2318 = vpack.c.b16 %v2293, %v2292
    %v2319 = vpack.c.b16 %v2295, %v2294
    %v2320 = vpack.c.b16 %v2297, %v2296
    %v2321 = vpack.c.b16 %v2299, %v2298
    %v2322 = vpack.c.b16 %v2301, %v2300
    %v2323 = vpack.c.b16 %v2303, %v2302
    %v2324 = vpack.c.b16 %v2305, %v2304
    %v2325 = vpack.c.b16 %v2307, %v2306
    %v2326 = vpack.c.b16 %v2309, %v2308
    %v2327 = vpack.c.b16 %v2311, %v2310
    %2344 = vmatprep.subr.bf16.mxu0 0
    %2345 = vmatpush1.bf16.msra.mxu0 %v2319
    %2346 = vmatprep.subr.bf16.mxu0 0
    %2347 = vmatpush1.bf16.msra.mxu0 %v2318
    %2348 = vmatprep.subr.bf16.mxu0 0
    %2349 = vmatpush1.bf16.msra.mxu0 %v2317
    %2350 = vmatprep.subr.bf16.mxu0 0
    %2351 = vmatpush1.bf16.msra.mxu0 %v2316
    %2352 = vmatprep.subr.bf16.mxu0 0
    %2353 = vmatpush1.bf16.msra.mxu0 %v2315
    %2354 = vmatprep.subr.bf16.mxu0 0
    %2355 = vmatpush1.bf16.msra.mxu0 %v2314
    %2356 = vmatprep.subr.bf16.mxu0 0
    %2357 = vmatpush1.bf16.msra.mxu0 %v2313
    %2358 = vmatprep.subr.bf16.mxu0 0
    %2359 = vmatpush1.bf16.msra.mxu0 %v2312
    %2360 = vmatprep.subr.bf16.mxu0 0
    %2361 = vmatpush2.bf16.msra.mxu0 %v2327
    %2362 = vmatprep.subr.bf16.mxu0 0
    %2363 = vmatpush2.bf16.msra.mxu0 %v2326
    %2364 = vmatprep.subr.bf16.mxu0 0
    %2365 = vmatpush2.bf16.msra.mxu0 %v2325
    %2366 = vmatprep.subr.bf16.mxu0 0
    %2367 = vmatpush2.bf16.msra.mxu0 %v2324
    %2368 = vmatprep.subr.bf16.mxu0 0
    %2369 = vmatpush2.bf16.msra.mxu0 %v2323
    %2370 = vmatprep.subr.bf16.mxu0 0
    %2371 = vmatpush2.bf16.msra.mxu0 %v2322
    %2372 = vmatprep.subr.bf16.mxu0 0
    %2373 = vmatpush2.bf16.msra.mxu0 %v2321
    %2374 = vmatprep.subr.bf16.mxu0 0
    %2375 = vmatpush2.bf16.msra.mxu0 %v2320
    %2376 = vmatprep.mubr.bf16.mxu0 %v2214
    %2377 = vmatmul.mubr.bf16.gmra.mxu0 %v2213
    %v2378 = vpop.f32.mrf.mxu0
    %v2379 = vadd.f32 0.0, %v2378
    %v2380 = vpop.f32.mrf.mxu0
    %v2381 = vpop.f32.mrf.mxu0
    %v2382 = vpop.f32.mrf.mxu0
    %2383 = vdwg.mxu0
    %v2384 = vadd.f32 %v2187, %v2379
    %s2385 = scalar_lea.vmem [#allocation2], 6
    %v2386 = vld [vmem:[%s2385] ss:$8 sm:$0xf]
    %v2388 = vlaneseq
    %v2389 = vshrl.u32 %v2388, 7
    %v2390 = vsub.s32 0, %v2389
    %v2391 = vrot.slane %v2386, %v2390
    %v2392 = vlaneseq
    %v2393 = vshrl.u32 %v2392, 7
    %v2394 = vsub.s32 1, %v2393
    %v2395 = vrot.slane %v2386, %v2394
    %v2398 = vlaneseq
    %v2399 = vshrl.u32 %v2398, 7
    %v2400 = vsub.s32 2, %v2399
    %v2401 = vrot.slane %v2386, %v2400
    %v2402 = vlaneseq
    %v2403 = vshrl.u32 %v2402, 7
    %v2404 = vsub.s32 3, %v2403
    %v2405 = vrot.slane %v2386, %v2404
    %v2408 = vsel %vm1228, %v2391, %v2401
    %v2409 = vsel %vm1228, %v2395, %v2405
    %v2410 = vpack.c.bf16 %v2408, %v2408
    %v2411 = vpack.c.bf16 %v2409, %v2409
    %s2412 = scalar_lea.vmem %s6, 768
    %v2413 = vld [vmem:[%s2412] sm:$0xf]
    %v2414 = vld [vmem:[%s2412 + $0x4] sm:$0xf]
    %v2415 = vld [vmem:[%s2412 + $0x8] sm:$0xf]
    %v2416 = vld [vmem:[%s2412 + $0xc] sm:$0xf]
    %v2417 = vld [vmem:[%s2412 + $0x10] sm:$0xf]
    %v2418 = vld [vmem:[%s2412 + $0x14] sm:$0xf]
    %v2419 = vld [vmem:[%s2412 + $0x18] sm:$0xf]
    %v2420 = vld [vmem:[%s2412 + $0x1c] sm:$0xf]
    %v2421 = vld [vmem:[%s2412 + $0x20] sm:$0xf]
    %v2422 = vld [vmem:[%s2412 + $0x24] sm:$0xf]
    %v2423 = vld [vmem:[%s2412 + $0x28] sm:$0xf]
    %v2424 = vld [vmem:[%s2412 + $0x2c] sm:$0xf]
    %v2425 = vld [vmem:[%s2412 + $0x30] sm:$0xf]
    %v2426 = vld [vmem:[%s2412 + $0x34] sm:$0xf]
    %v2427 = vld [vmem:[%s2412 + $0x38] sm:$0xf]
    %v2428 = vld [vmem:[%s2412 + $0x3c] sm:$0xf]
    %v2429 = vld [vmem:[%s2412 + $0x40] sm:$0xf]
    %v2430 = vld [vmem:[%s2412 + $0x44] sm:$0xf]
    %v2431 = vld [vmem:[%s2412 + $0x48] sm:$0xf]
    %v2432 = vld [vmem:[%s2412 + $0x4c] sm:$0xf]
    %v2433 = vld [vmem:[%s2412 + $0x50] sm:$0xf]
    %v2434 = vld [vmem:[%s2412 + $0x54] sm:$0xf]
    %v2435 = vld [vmem:[%s2412 + $0x58] sm:$0xf]
    %v2436 = vld [vmem:[%s2412 + $0x5c] sm:$0xf]
    %v2437 = vld [vmem:[%s2412 + $0x60] sm:$0xf]
    %v2438 = vld [vmem:[%s2412 + $0x64] sm:$0xf]
    %v2439 = vld [vmem:[%s2412 + $0x68] sm:$0xf]
    %v2440 = vld [vmem:[%s2412 + $0x6c] sm:$0xf]
    %v2441 = vld [vmem:[%s2412 + $0x70] sm:$0xf]
    %v2442 = vld [vmem:[%s2412 + $0x74] sm:$0xf]
    %v2443 = vld [vmem:[%s2412 + $0x78] sm:$0xf]
    %v2444 = vld [vmem:[%s2412 + $0x7c] sm:$0xf]
    %v2477 = vunpack.c.l.b16 %v2413
    %v2478 = vunpack.c.l.b16 %v2414
    %v2479 = vunpack.c.l.b16 %v2415
    %v2480 = vunpack.c.l.b16 %v2416
    %v2481 = vunpack.c.l.b16 %v2417
    %v2482 = vunpack.c.l.b16 %v2418
    %v2483 = vunpack.c.l.b16 %v2419
    %v2484 = vunpack.c.l.b16 %v2420
    %v2485 = vunpack.c.l.b16 %v2421
    %v2486 = vunpack.c.l.b16 %v2422
    %v2487 = vunpack.c.l.b16 %v2423
    %v2488 = vunpack.c.l.b16 %v2424
    %v2489 = vunpack.c.l.b16 %v2425
    %v2490 = vunpack.c.l.b16 %v2426
    %v2491 = vunpack.c.l.b16 %v2427
    %v2492 = vunpack.c.l.b16 %v2428
    %v2493 = vunpack.c.l.b16 %v2429
    %v2494 = vunpack.c.l.b16 %v2430
    %v2495 = vunpack.c.l.b16 %v2431
    %v2496 = vunpack.c.l.b16 %v2432
    %v2497 = vunpack.c.l.b16 %v2433
    %v2498 = vunpack.c.l.b16 %v2434
    %v2499 = vunpack.c.l.b16 %v2435
    %v2500 = vunpack.c.l.b16 %v2436
    %v2501 = vunpack.c.l.b16 %v2437
    %v2502 = vunpack.c.l.b16 %v2438
    %v2503 = vunpack.c.l.b16 %v2439
    %v2504 = vunpack.c.l.b16 %v2440
    %v2505 = vunpack.c.l.b16 %v2441
    %v2506 = vunpack.c.l.b16 %v2442
    %v2507 = vunpack.c.l.b16 %v2443
    %v2508 = vunpack.c.l.b16 %v2444
    %v2509 = vpack.c.b16 %v2478, %v2477
    %v2510 = vpack.c.b16 %v2480, %v2479
    %v2511 = vpack.c.b16 %v2482, %v2481
    %v2512 = vpack.c.b16 %v2484, %v2483
    %v2513 = vpack.c.b16 %v2486, %v2485
    %v2514 = vpack.c.b16 %v2488, %v2487
    %v2515 = vpack.c.b16 %v2490, %v2489
    %v2516 = vpack.c.b16 %v2492, %v2491
    %v2517 = vpack.c.b16 %v2494, %v2493
    %v2518 = vpack.c.b16 %v2496, %v2495
    %v2519 = vpack.c.b16 %v2498, %v2497
    %v2520 = vpack.c.b16 %v2500, %v2499
    %v2521 = vpack.c.b16 %v2502, %v2501
    %v2522 = vpack.c.b16 %v2504, %v2503
    %v2523 = vpack.c.b16 %v2506, %v2505
    %v2524 = vpack.c.b16 %v2508, %v2507
    %2541 = vmatprep.subr.bf16.mxu0 0
    %2542 = vmatpush1.bf16.msra.mxu0 %v2516
    %2543 = vmatprep.subr.bf16.mxu0 0
    %2544 = vmatpush1.bf16.msra.mxu0 %v2515
    %2545 = vmatprep.subr.bf16.mxu0 0
    %2546 = vmatpush1.bf16.msra.mxu0 %v2514
    %2547 = vmatprep.subr.bf16.mxu0 0
    %2548 = vmatpush1.bf16.msra.mxu0 %v2513
    %2549 = vmatprep.subr.bf16.mxu0 0
    %2550 = vmatpush1.bf16.msra.mxu0 %v2512
    %2551 = vmatprep.subr.bf16.mxu0 0
    %2552 = vmatpush1.bf16.msra.mxu0 %v2511
    %2553 = vmatprep.subr.bf16.mxu0 0
    %2554 = vmatpush1.bf16.msra.mxu0 %v2510
    %2555 = vmatprep.subr.bf16.mxu0 0
    %2556 = vmatpush1.bf16.msra.mxu0 %v2509
    %2557 = vmatprep.subr.bf16.mxu0 0
    %2558 = vmatpush2.bf16.msra.mxu0 %v2524
    %2559 = vmatprep.subr.bf16.mxu0 0
    %2560 = vmatpush2.bf16.msra.mxu0 %v2523
    %2561 = vmatprep.subr.bf16.mxu0 0
    %2562 = vmatpush2.bf16.msra.mxu0 %v2522
    %2563 = vmatprep.subr.bf16.mxu0 0
    %2564 = vmatpush2.bf16.msra.mxu0 %v2521
    %2565 = vmatprep.subr.bf16.mxu0 0
    %2566 = vmatpush2.bf16.msra.mxu0 %v2520
    %2567 = vmatprep.subr.bf16.mxu0 0
    %2568 = vmatpush2.bf16.msra.mxu0 %v2519
    %2569 = vmatprep.subr.bf16.mxu0 0
    %2570 = vmatpush2.bf16.msra.mxu0 %v2518
    %2571 = vmatprep.subr.bf16.mxu0 0
    %2572 = vmatpush2.bf16.msra.mxu0 %v2517
    %2573 = vmatprep.mubr.bf16.mxu0 %v2411
    %2574 = vmatmul.mubr.bf16.gmra.mxu0 %v2410
    %v2575 = vpop.f32.mrf.mxu0
    %v2576 = vadd.f32 0.0, %v2575
    %v2577 = vpop.f32.mrf.mxu0
    %v2578 = vpop.f32.mrf.mxu0
    %v2579 = vpop.f32.mrf.mxu0
    %2580 = vdwg.mxu0
    %v2581 = vadd.f32 %v2384, %v2576
    %s2582 = scalar_lea.vmem [#allocation2], 7
    %v2583 = vld [vmem:[%s2582] ss:$8 sm:$0xf]
    %v2585 = vlaneseq
    %v2586 = vshrl.u32 %v2585, 7
    %v2587 = vsub.s32 0, %v2586
    %v2588 = vrot.slane %v2583, %v2587
    %v2589 = vlaneseq
    %v2590 = vshrl.u32 %v2589, 7
    %v2591 = vsub.s32 1, %v2590
    %v2592 = vrot.slane %v2583, %v2591
    %v2595 = vlaneseq
    %v2596 = vshrl.u32 %v2595, 7
    %v2597 = vsub.s32 2, %v2596
    %v2598 = vrot.slane %v2583, %v2597
    %v2599 = vlaneseq
    %v2600 = vshrl.u32 %v2599, 7
    %v2601 = vsub.s32 3, %v2600
    %v2602 = vrot.slane %v2583, %v2601
    %v2605 = vsel %vm1228, %v2588, %v2598
    %v2606 = vsel %vm1228, %v2592, %v2602
    %v2607 = vpack.c.bf16 %v2605, %v2605
    %v2608 = vpack.c.bf16 %v2606, %v2606
    %s2609 = scalar_lea.vmem %s6, 896
    %v2610 = vld [vmem:[%s2609] sm:$0xf]
    %v2611 = vld [vmem:[%s2609 + $0x4] sm:$0xf]
    %v2612 = vld [vmem:[%s2609 + $0x8] sm:$0xf]
    %v2613 = vld [vmem:[%s2609 + $0xc] sm:$0xf]
    %v2614 = vld [vmem:[%s2609 + $0x10] sm:$0xf]
    %v2615 = vld [vmem:[%s2609 + $0x14] sm:$0xf]
    %v2616 = vld [vmem:[%s2609 + $0x18] sm:$0xf]
    %v2617 = vld [vmem:[%s2609 + $0x1c] sm:$0xf]
    %v2618 = vld [vmem:[%s2609 + $0x20] sm:$0xf]
    %v2619 = vld [vmem:[%s2609 + $0x24] sm:$0xf]
    %v2620 = vld [vmem:[%s2609 + $0x28] sm:$0xf]
    %v2621 = vld [vmem:[%s2609 + $0x2c] sm:$0xf]
    %v2622 = vld [vmem:[%s2609 + $0x30] sm:$0xf]
    %v2623 = vld [vmem:[%s2609 + $0x34] sm:$0xf]
    %v2624 = vld [vmem:[%s2609 + $0x38] sm:$0xf]
    %v2625 = vld [vmem:[%s2609 + $0x3c] sm:$0xf]
    %v2626 = vld [vmem:[%s2609 + $0x40] sm:$0xf]
    %v2627 = vld [vmem:[%s2609 + $0x44] sm:$0xf]
    %v2628 = vld [vmem:[%s2609 + $0x48] sm:$0xf]
    %v2629 = vld [vmem:[%s2609 + $0x4c] sm:$0xf]
    %v2630 = vld [vmem:[%s2609 + $0x50] sm:$0xf]
    %v2631 = vld [vmem:[%s2609 + $0x54] sm:$0xf]
    %v2632 = vld [vmem:[%s2609 + $0x58] sm:$0xf]
    %v2633 = vld [vmem:[%s2609 + $0x5c] sm:$0xf]
    %v2634 = vld [vmem:[%s2609 + $0x60] sm:$0xf]
    %v2635 = vld [vmem:[%s2609 + $0x64] sm:$0xf]
    %v2636 = vld [vmem:[%s2609 + $0x68] sm:$0xf]
    %v2637 = vld [vmem:[%s2609 + $0x6c] sm:$0xf]
    %v2638 = vld [vmem:[%s2609 + $0x70] sm:$0xf]
    %v2639 = vld [vmem:[%s2609 + $0x74] sm:$0xf]
    %v2640 = vld [vmem:[%s2609 + $0x78] sm:$0xf]
    %v2641 = vld [vmem:[%s2609 + $0x7c] sm:$0xf]
    %v2674 = vunpack.c.l.b16 %v2610
    %v2675 = vunpack.c.l.b16 %v2611
    %v2676 = vunpack.c.l.b16 %v2612
    %v2677 = vunpack.c.l.b16 %v2613
    %v2678 = vunpack.c.l.b16 %v2614
    %v2679 = vunpack.c.l.b16 %v2615
    %v2680 = vunpack.c.l.b16 %v2616
    %v2681 = vunpack.c.l.b16 %v2617
    %v2682 = vunpack.c.l.b16 %v2618
    %v2683 = vunpack.c.l.b16 %v2619
    %v2684 = vunpack.c.l.b16 %v2620
    %v2685 = vunpack.c.l.b16 %v2621
    %v2686 = vunpack.c.l.b16 %v2622
    %v2687 = vunpack.c.l.b16 %v2623
    %v2688 = vunpack.c.l.b16 %v2624
    %v2689 = vunpack.c.l.b16 %v2625
    %v2690 = vunpack.c.l.b16 %v2626
    %v2691 = vunpack.c.l.b16 %v2627
    %v2692 = vunpack.c.l.b16 %v2628
    %v2693 = vunpack.c.l.b16 %v2629
    %v2694 = vunpack.c.l.b16 %v2630
    %v2695 = vunpack.c.l.b16 %v2631
    %v2696 = vunpack.c.l.b16 %v2632
    %v2697 = vunpack.c.l.b16 %v2633
    %v2698 = vunpack.c.l.b16 %v2634
    %v2699 = vunpack.c.l.b16 %v2635
    %v2700 = vunpack.c.l.b16 %v2636
    %v2701 = vunpack.c.l.b16 %v2637
    %v2702 = vunpack.c.l.b16 %v2638
    %v2703 = vunpack.c.l.b16 %v2639
    %v2704 = vunpack.c.l.b16 %v2640
    %v2705 = vunpack.c.l.b16 %v2641
    %v2706 = vpack.c.b16 %v2675, %v2674
    %v2707 = vpack.c.b16 %v2677, %v2676
    %v2708 = vpack.c.b16 %v2679, %v2678
    %v2709 = vpack.c.b16 %v2681, %v2680
    %v2710 = vpack.c.b16 %v2683, %v2682
    %v2711 = vpack.c.b16 %v2685, %v2684
    %v2712 = vpack.c.b16 %v2687, %v2686
    %v2713 = vpack.c.b16 %v2689, %v2688
    %v2714 = vpack.c.b16 %v2691, %v2690
    %v2715 = vpack.c.b16 %v2693, %v2692
    %v2716 = vpack.c.b16 %v2695, %v2694
    %v2717 = vpack.c.b16 %v2697, %v2696
    %v2718 = vpack.c.b16 %v2699, %v2698
    %v2719 = vpack.c.b16 %v2701, %v2700
    %v2720 = vpack.c.b16 %v2703, %v2702
    %v2721 = vpack.c.b16 %v2705, %v2704
    %2738 = vmatprep.subr.bf16.mxu0 0
    %2739 = vmatpush1.bf16.msra.mxu0 %v2713
    %2740 = vmatprep.subr.bf16.mxu0 0
    %2741 = vmatpush1.bf16.msra.mxu0 %v2712
    %2742 = vmatprep.subr.bf16.mxu0 0
    %2743 = vmatpush1.bf16.msra.mxu0 %v2711
    %2744 = vmatprep.subr.bf16.mxu0 0
    %2745 = vmatpush1.bf16.msra.mxu0 %v2710
    %2746 = vmatprep.subr.bf16.mxu0 0
    %2747 = vmatpush1.bf16.msra.mxu0 %v2709
    %2748 = vmatprep.subr.bf16.mxu0 0
    %2749 = vmatpush1.bf16.msra.mxu0 %v2708
    %2750 = vmatprep.subr.bf16.mxu0 0
    %2751 = vmatpush1.bf16.msra.mxu0 %v2707
    %2752 = vmatprep.subr.bf16.mxu0 0
    %2753 = vmatpush1.bf16.msra.mxu0 %v2706
    %2754 = vmatprep.subr.bf16.mxu0 0
    %2755 = vmatpush2.bf16.msra.mxu0 %v2721
    %2756 = vmatprep.subr.bf16.mxu0 0
    %2757 = vmatpush2.bf16.msra.mxu0 %v2720
    %2758 = vmatprep.subr.bf16.mxu0 0
    %2759 = vmatpush2.bf16.msra.mxu0 %v2719
    %2760 = vmatprep.subr.bf16.mxu0 0
    %2761 = vmatpush2.bf16.msra.mxu0 %v2718
    %2762 = vmatprep.subr.bf16.mxu0 0
    %2763 = vmatpush2.bf16.msra.mxu0 %v2717
    %2764 = vmatprep.subr.bf16.mxu0 0
    %2765 = vmatpush2.bf16.msra.mxu0 %v2716
    %2766 = vmatprep.subr.bf16.mxu0 0
    %2767 = vmatpush2.bf16.msra.mxu0 %v2715
    %2768 = vmatprep.subr.bf16.mxu0 0
    %2769 = vmatpush2.bf16.msra.mxu0 %v2714
    %2770 = vmatprep.mubr.bf16.mxu0 %v2608
    %2771 = vmatmul.mubr.bf16.gmra.mxu0 %v2607
    %v2772 = vpop.f32.mrf.mxu0
    %v2773 = vadd.f32 0.0, %v2772
    %v2774 = vpop.f32.mrf.mxu0
    %v2775 = vpop.f32.mrf.mxu0
    %v2776 = vpop.f32.mrf.mxu0
    %2777 = vdwg.mxu0
    %v2778 = vadd.f32 %v2581, %v2773
    %s2779 = scalar_lea.vmem [#allocation2], 32
    %v2780 = vld [vmem:[%s2779] ss:$8 sm:$0xf]
    %v2782 = vlaneseq
    %v2783 = vshrl.u32 %v2782, 7
    %v2784 = vsub.s32 0, %v2783
    %v2785 = vrot.slane %v2780, %v2784
    %v2786 = vlaneseq
    %v2787 = vshrl.u32 %v2786, 7
    %v2788 = vsub.s32 1, %v2787
    %v2789 = vrot.slane %v2780, %v2788
    %v2792 = vlaneseq
    %v2793 = vshrl.u32 %v2792, 7
    %v2794 = vsub.s32 2, %v2793
    %v2795 = vrot.slane %v2780, %v2794
    %v2796 = vlaneseq
    %v2797 = vshrl.u32 %v2796, 7
    %v2798 = vsub.s32 3, %v2797
    %v2799 = vrot.slane %v2780, %v2798
    %v2802 = vsel %vm1228, %v2785, %v2795
    %v2803 = vsel %vm1228, %v2789, %v2799
    %v2804 = vpack.c.bf16 %v2802, %v2802
    %v2805 = vpack.c.bf16 %v2803, %v2803
    %s2806 = scalar_lea.vmem %s6, 1024
    %v2807 = vld [vmem:[%s2806] sm:$0xf]
    %v2808 = vld [vmem:[%s2806 + $0x4] sm:$0xf]
    %v2809 = vld [vmem:[%s2806 + $0x8] sm:$0xf]
    %v2810 = vld [vmem:[%s2806 + $0xc] sm:$0xf]
    %v2811 = vld [vmem:[%s2806 + $0x10] sm:$0xf]
    %v2812 = vld [vmem:[%s2806 + $0x14] sm:$0xf]
    %v2813 = vld [vmem:[%s2806 + $0x18] sm:$0xf]
    %v2814 = vld [vmem:[%s2806 + $0x1c] sm:$0xf]
    %v2815 = vld [vmem:[%s2806 + $0x20] sm:$0xf]
    %v2816 = vld [vmem:[%s2806 + $0x24] sm:$0xf]
    %v2817 = vld [vmem:[%s2806 + $0x28] sm:$0xf]
    %v2818 = vld [vmem:[%s2806 + $0x2c] sm:$0xf]
    %v2819 = vld [vmem:[%s2806 + $0x30] sm:$0xf]
    %v2820 = vld [vmem:[%s2806 + $0x34] sm:$0xf]
    %v2821 = vld [vmem:[%s2806 + $0x38] sm:$0xf]
    %v2822 = vld [vmem:[%s2806 + $0x3c] sm:$0xf]
    %v2823 = vld [vmem:[%s2806 + $0x40] sm:$0xf]
    %v2824 = vld [vmem:[%s2806 + $0x44] sm:$0xf]
    %v2825 = vld [vmem:[%s2806 + $0x48] sm:$0xf]
    %v2826 = vld [vmem:[%s2806 + $0x4c] sm:$0xf]
    %v2827 = vld [vmem:[%s2806 + $0x50] sm:$0xf]
    %v2828 = vld [vmem:[%s2806 + $0x54] sm:$0xf]
    %v2829 = vld [vmem:[%s2806 + $0x58] sm:$0xf]
    %v2830 = vld [vmem:[%s2806 + $0x5c] sm:$0xf]
    %v2831 = vld [vmem:[%s2806 + $0x60] sm:$0xf]
    %v2832 = vld [vmem:[%s2806 + $0x64] sm:$0xf]
    %v2833 = vld [vmem:[%s2806 + $0x68] sm:$0xf]
    %v2834 = vld [vmem:[%s2806 + $0x6c] sm:$0xf]
    %v2835 = vld [vmem:[%s2806 + $0x70] sm:$0xf]
    %v2836 = vld [vmem:[%s2806 + $0x74] sm:$0xf]
    %v2837 = vld [vmem:[%s2806 + $0x78] sm:$0xf]
    %v2838 = vld [vmem:[%s2806 + $0x7c] sm:$0xf]
    %v2871 = vunpack.c.l.b16 %v2807
    %v2872 = vunpack.c.l.b16 %v2808
    %v2873 = vunpack.c.l.b16 %v2809
    %v2874 = vunpack.c.l.b16 %v2810
    %v2875 = vunpack.c.l.b16 %v2811
    %v2876 = vunpack.c.l.b16 %v2812
    %v2877 = vunpack.c.l.b16 %v2813
    %v2878 = vunpack.c.l.b16 %v2814
    %v2879 = vunpack.c.l.b16 %v2815
    %v2880 = vunpack.c.l.b16 %v2816
    %v2881 = vunpack.c.l.b16 %v2817
    %v2882 = vunpack.c.l.b16 %v2818
    %v2883 = vunpack.c.l.b16 %v2819
    %v2884 = vunpack.c.l.b16 %v2820
    %v2885 = vunpack.c.l.b16 %v2821
    %v2886 = vunpack.c.l.b16 %v2822
    %v2887 = vunpack.c.l.b16 %v2823
    %v2888 = vunpack.c.l.b16 %v2824
    %v2889 = vunpack.c.l.b16 %v2825
    %v2890 = vunpack.c.l.b16 %v2826
    %v2891 = vunpack.c.l.b16 %v2827
    %v2892 = vunpack.c.l.b16 %v2828
    %v2893 = vunpack.c.l.b16 %v2829
    %v2894 = vunpack.c.l.b16 %v2830
    %v2895 = vunpack.c.l.b16 %v2831
    %v2896 = vunpack.c.l.b16 %v2832
    %v2897 = vunpack.c.l.b16 %v2833
    %v2898 = vunpack.c.l.b16 %v2834
    %v2899 = vunpack.c.l.b16 %v2835
    %v2900 = vunpack.c.l.b16 %v2836
    %v2901 = vunpack.c.l.b16 %v2837
    %v2902 = vunpack.c.l.b16 %v2838
    %v2903 = vpack.c.b16 %v2872, %v2871
    %v2904 = vpack.c.b16 %v2874, %v2873
    %v2905 = vpack.c.b16 %v2876, %v2875
    %v2906 = vpack.c.b16 %v2878, %v2877
    %v2907 = vpack.c.b16 %v2880, %v2879
    %v2908 = vpack.c.b16 %v2882, %v2881
    %v2909 = vpack.c.b16 %v2884, %v2883
    %v2910 = vpack.c.b16 %v2886, %v2885
    %v2911 = vpack.c.b16 %v2888, %v2887
    %v2912 = vpack.c.b16 %v2890, %v2889
    %v2913 = vpack.c.b16 %v2892, %v2891
    %v2914 = vpack.c.b16 %v2894, %v2893
    %v2915 = vpack.c.b16 %v2896, %v2895
    %v2916 = vpack.c.b16 %v2898, %v2897
    %v2917 = vpack.c.b16 %v2900, %v2899
    %v2918 = vpack.c.b16 %v2902, %v2901
    %2935 = vmatprep.subr.bf16.mxu0 0
    %2936 = vmatpush1.bf16.msra.mxu0 %v2910
    %2937 = vmatprep.subr.bf16.mxu0 0
    %2938 = vmatpush1.bf16.msra.mxu0 %v2909
    %2939 = vmatprep.subr.bf16.mxu0 0
    %2940 = vmatpush1.bf16.msra.mxu0 %v2908
    %2941 = vmatprep.subr.bf16.mxu0 0
    %2942 = vmatpush1.bf16.msra.mxu0 %v2907
    %2943 = vmatprep.subr.bf16.mxu0 0
    %2944 = vmatpush1.bf16.msra.mxu0 %v2906
    %2945 = vmatprep.subr.bf16.mxu0 0
    %2946 = vmatpush1.bf16.msra.mxu0 %v2905
    %2947 = vmatprep.subr.bf16.mxu0 0
    %2948 = vmatpush1.bf16.msra.mxu0 %v2904
    %2949 = vmatprep.subr.bf16.mxu0 0
    %2950 = vmatpush1.bf16.msra.mxu0 %v2903
    %2951 = vmatprep.subr.bf16.mxu0 0
    %2952 = vmatpush2.bf16.msra.mxu0 %v2918
    %2953 = vmatprep.subr.bf16.mxu0 0
    %2954 = vmatpush2.bf16.msra.mxu0 %v2917
    %2955 = vmatprep.subr.bf16.mxu0 0
    %2956 = vmatpush2.bf16.msra.mxu0 %v2916
    %2957 = vmatprep.subr.bf16.mxu0 0
    %2958 = vmatpush2.bf16.msra.mxu0 %v2915
    %2959 = vmatprep.subr.bf16.mxu0 0
    %2960 = vmatpush2.bf16.msra.mxu0 %v2914
    %2961 = vmatprep.subr.bf16.mxu0 0
    %2962 = vmatpush2.bf16.msra.mxu0 %v2913
    %2963 = vmatprep.subr.bf16.mxu0 0
    %2964 = vmatpush2.bf16.msra.mxu0 %v2912
    %2965 = vmatprep.subr.bf16.mxu0 0
    %2966 = vmatpush2.bf16.msra.mxu0 %v2911
    %2967 = vmatprep.mubr.bf16.mxu0 %v2805
    %2968 = vmatmul.mubr.bf16.gmra.mxu0 %v2804
    %v2969 = vpop.f32.mrf.mxu0
    %v2970 = vadd.f32 0.0, %v2969
    %v2971 = vpop.f32.mrf.mxu0
    %v2972 = vpop.f32.mrf.mxu0
    %v2973 = vpop.f32.mrf.mxu0
    %2974 = vdwg.mxu0
    %v2975 = vadd.f32 %v2778, %v2970
    %s2976 = scalar_lea.vmem [#allocation2], 33
    %v2977 = vld [vmem:[%s2976] ss:$8 sm:$0xf]
    %v2979 = vlaneseq
    %v2980 = vshrl.u32 %v2979, 7
    %v2981 = vsub.s32 0, %v2980
    %v2982 = vrot.slane %v2977, %v2981
    %v2983 = vlaneseq
    %v2984 = vshrl.u32 %v2983, 7
    %v2985 = vsub.s32 1, %v2984
    %v2986 = vrot.slane %v2977, %v2985
    %v2989 = vlaneseq
    %v2990 = vshrl.u32 %v2989, 7
    %v2991 = vsub.s32 2, %v2990
    %v2992 = vrot.slane %v2977, %v2991
    %v2993 = vlaneseq
    %v2994 = vshrl.u32 %v2993, 7
    %v2995 = vsub.s32 3, %v2994
    %v2996 = vrot.slane %v2977, %v2995
    %v2999 = vsel %vm1228, %v2982, %v2992
    %v3000 = vsel %vm1228, %v2986, %v2996
    %v3001 = vpack.c.bf16 %v2999, %v2999
    %v3002 = vpack.c.bf16 %v3000, %v3000
    %s3003 = scalar_lea.vmem %s6, 1152
    %v3004 = vld [vmem:[%s3003] sm:$0xf]
    %v3005 = vld [vmem:[%s3003 + $0x4] sm:$0xf]
    %v3006 = vld [vmem:[%s3003 + $0x8] sm:$0xf]
    %v3007 = vld [vmem:[%s3003 + $0xc] sm:$0xf]
    %v3008 = vld [vmem:[%s3003 + $0x10] sm:$0xf]
    %v3009 = vld [vmem:[%s3003 + $0x14] sm:$0xf]
    %v3010 = vld [vmem:[%s3003 + $0x18] sm:$0xf]
    %v3011 = vld [vmem:[%s3003 + $0x1c] sm:$0xf]
    %v3012 = vld [vmem:[%s3003 + $0x20] sm:$0xf]
    %v3013 = vld [vmem:[%s3003 + $0x24] sm:$0xf]
    %v3014 = vld [vmem:[%s3003 + $0x28] sm:$0xf]
    %v3015 = vld [vmem:[%s3003 + $0x2c] sm:$0xf]
    %v3016 = vld [vmem:[%s3003 + $0x30] sm:$0xf]
    %v3017 = vld [vmem:[%s3003 + $0x34] sm:$0xf]
    %v3018 = vld [vmem:[%s3003 + $0x38] sm:$0xf]
    %v3019 = vld [vmem:[%s3003 + $0x3c] sm:$0xf]
    %v3020 = vld [vmem:[%s3003 + $0x40] sm:$0xf]
    %v3021 = vld [vmem:[%s3003 + $0x44] sm:$0xf]
    %v3022 = vld [vmem:[%s3003 + $0x48] sm:$0xf]
    %v3023 = vld [vmem:[%s3003 + $0x4c] sm:$0xf]
    %v3024 = vld [vmem:[%s3003 + $0x50] sm:$0xf]
    %v3025 = vld [vmem:[%s3003 + $0x54] sm:$0xf]
    %v3026 = vld [vmem:[%s3003 + $0x58] sm:$0xf]
    %v3027 = vld [vmem:[%s3003 + $0x5c] sm:$0xf]
    %v3028 = vld [vmem:[%s3003 + $0x60] sm:$0xf]
    %v3029 = vld [vmem:[%s3003 + $0x64] sm:$0xf]
    %v3030 = vld [vmem:[%s3003 + $0x68] sm:$0xf]
    %v3031 = vld [vmem:[%s3003 + $0x6c] sm:$0xf]
    %v3032 = vld [vmem:[%s3003 + $0x70] sm:$0xf]
    %v3033 = vld [vmem:[%s3003 + $0x74] sm:$0xf]
    %v3034 = vld [vmem:[%s3003 + $0x78] sm:$0xf]
    %v3035 = vld [vmem:[%s3003 + $0x7c] sm:$0xf]
    %v3068 = vunpack.c.l.b16 %v3004
    %v3069 = vunpack.c.l.b16 %v3005
    %v3070 = vunpack.c.l.b16 %v3006
    %v3071 = vunpack.c.l.b16 %v3007
    %v3072 = vunpack.c.l.b16 %v3008
    %v3073 = vunpack.c.l.b16 %v3009
    %v3074 = vunpack.c.l.b16 %v3010
    %v3075 = vunpack.c.l.b16 %v3011
    %v3076 = vunpack.c.l.b16 %v3012
    %v3077 = vunpack.c.l.b16 %v3013
    %v3078 = vunpack.c.l.b16 %v3014
    %v3079 = vunpack.c.l.b16 %v3015
    %v3080 = vunpack.c.l.b16 %v3016
    %v3081 = vunpack.c.l.b16 %v3017
    %v3082 = vunpack.c.l.b16 %v3018
    %v3083 = vunpack.c.l.b16 %v3019
    %v3084 = vunpack.c.l.b16 %v3020
    %v3085 = vunpack.c.l.b16 %v3021
    %v3086 = vunpack.c.l.b16 %v3022
    %v3087 = vunpack.c.l.b16 %v3023
    %v3088 = vunpack.c.l.b16 %v3024
    %v3089 = vunpack.c.l.b16 %v3025
    %v3090 = vunpack.c.l.b16 %v3026
    %v3091 = vunpack.c.l.b16 %v3027
    %v3092 = vunpack.c.l.b16 %v3028
    %v3093 = vunpack.c.l.b16 %v3029
    %v3094 = vunpack.c.l.b16 %v3030
    %v3095 = vunpack.c.l.b16 %v3031
    %v3096 = vunpack.c.l.b16 %v3032
    %v3097 = vunpack.c.l.b16 %v3033
    %v3098 = vunpack.c.l.b16 %v3034
    %v3099 = vunpack.c.l.b16 %v3035
    %v3100 = vpack.c.b16 %v3069, %v3068
    %v3101 = vpack.c.b16 %v3071, %v3070
    %v3102 = vpack.c.b16 %v3073, %v3072
    %v3103 = vpack.c.b16 %v3075, %v3074
    %v3104 = vpack.c.b16 %v3077, %v3076
    %v3105 = vpack.c.b16 %v3079, %v3078
    %v3106 = vpack.c.b16 %v3081, %v3080
    %v3107 = vpack.c.b16 %v3083, %v3082
    %v3108 = vpack.c.b16 %v3085, %v3084
    %v3109 = vpack.c.b16 %v3087, %v3086
    %v3110 = vpack.c.b16 %v3089, %v3088
    %v3111 = vpack.c.b16 %v3091, %v3090
    %v3112 = vpack.c.b16 %v3093, %v3092
    %v3113 = vpack.c.b16 %v3095, %v3094
    %v3114 = vpack.c.b16 %v3097, %v3096
    %v3115 = vpack.c.b16 %v3099, %v3098
    %3132 = vmatprep.subr.bf16.mxu0 0
    %3133 = vmatpush1.bf16.msra.mxu0 %v3107
    %3134 = vmatprep.subr.bf16.mxu0 0
    %3135 = vmatpush1.bf16.msra.mxu0 %v3106
    %3136 = vmatprep.subr.bf16.mxu0 0
    %3137 = vmatpush1.bf16.msra.mxu0 %v3105
    %3138 = vmatprep.subr.bf16.mxu0 0
    %3139 = vmatpush1.bf16.msra.mxu0 %v3104
    %3140 = vmatprep.subr.bf16.mxu0 0
    %3141 = vmatpush1.bf16.msra.mxu0 %v3103
    %3142 = vmatprep.subr.bf16.mxu0 0
    %3143 = vmatpush1.bf16.msra.mxu0 %v3102
    %3144 = vmatprep.subr.bf16.mxu0 0
    %3145 = vmatpush1.bf16.msra.mxu0 %v3101
    %3146 = vmatprep.subr.bf16.mxu0 0
    %3147 = vmatpush1.bf16.msra.mxu0 %v3100
    %3148 = vmatprep.subr.bf16.mxu0 0
    %3149 = vmatpush2.bf16.msra.mxu0 %v3115
    %3150 = vmatprep.subr.bf16.mxu0 0
    %3151 = vmatpush2.bf16.msra.mxu0 %v3114
    %3152 = vmatprep.subr.bf16.mxu0 0
    %3153 = vmatpush2.bf16.msra.mxu0 %v3113
    %3154 = vmatprep.subr.bf16.mxu0 0
    %3155 = vmatpush2.bf16.msra.mxu0 %v3112
    %3156 = vmatprep.subr.bf16.mxu0 0
    %3157 = vmatpush2.bf16.msra.mxu0 %v3111
    %3158 = vmatprep.subr.bf16.mxu0 0
    %3159 = vmatpush2.bf16.msra.mxu0 %v3110
    %3160 = vmatprep.subr.bf16.mxu0 0
    %3161 = vmatpush2.bf16.msra.mxu0 %v3109
    %3162 = vmatprep.subr.bf16.mxu0 0
    %3163 = vmatpush2.bf16.msra.mxu0 %v3108
    %3164 = vmatprep.mubr.bf16.mxu0 %v3002
    %3165 = vmatmul.mubr.bf16.gmra.mxu0 %v3001
    %v3166 = vpop.f32.mrf.mxu0
    %v3167 = vadd.f32 0.0, %v3166
    %v3168 = vpop.f32.mrf.mxu0
    %v3169 = vpop.f32.mrf.mxu0
    %v3170 = vpop.f32.mrf.mxu0
    %3171 = vdwg.mxu0
    %v3172 = vadd.f32 %v2975, %v3167
    %s3173 = scalar_lea.vmem [#allocation2], 34
    %v3174 = vld [vmem:[%s3173] ss:$8 sm:$0xf]
    %v3176 = vlaneseq
    %v3177 = vshrl.u32 %v3176, 7
    %v3178 = vsub.s32 0, %v3177
    %v3179 = vrot.slane %v3174, %v3178
    %v3180 = vlaneseq
    %v3181 = vshrl.u32 %v3180, 7
    %v3182 = vsub.s32 1, %v3181
    %v3183 = vrot.slane %v3174, %v3182
    %v3186 = vlaneseq
    %v3187 = vshrl.u32 %v3186, 7
    %v3188 = vsub.s32 2, %v3187
    %v3189 = vrot.slane %v3174, %v3188
    %v3190 = vlaneseq
    %v3191 = vshrl.u32 %v3190, 7
    %v3192 = vsub.s32 3, %v3191
    %v3193 = vrot.slane %v3174, %v3192
    %v3196 = vsel %vm1228, %v3179, %v3189
    %v3197 = vsel %vm1228, %v3183, %v3193
    %v3198 = vpack.c.bf16 %v3196, %v3196
    %v3199 = vpack.c.bf16 %v3197, %v3197
    %s3200 = scalar_lea.vmem %s6, 1280
    %v3201 = vld [vmem:[%s3200] sm:$0xf]
    %v3202 = vld [vmem:[%s3200 + $0x4] sm:$0xf]
    %v3203 = vld [vmem:[%s3200 + $0x8] sm:$0xf]
    %v3204 = vld [vmem:[%s3200 + $0xc] sm:$0xf]
    %v3205 = vld [vmem:[%s3200 + $0x10] sm:$0xf]
    %v3206 = vld [vmem:[%s3200 + $0x14] sm:$0xf]
    %v3207 = vld [vmem:[%s3200 + $0x18] sm:$0xf]
    %v3208 = vld [vmem:[%s3200 + $0x1c] sm:$0xf]
    %v3209 = vld [vmem:[%s3200 + $0x20] sm:$0xf]
    %v3210 = vld [vmem:[%s3200 + $0x24] sm:$0xf]
    %v3211 = vld [vmem:[%s3200 + $0x28] sm:$0xf]
    %v3212 = vld [vmem:[%s3200 + $0x2c] sm:$0xf]
    %v3213 = vld [vmem:[%s3200 + $0x30] sm:$0xf]
    %v3214 = vld [vmem:[%s3200 + $0x34] sm:$0xf]
    %v3215 = vld [vmem:[%s3200 + $0x38] sm:$0xf]
    %v3216 = vld [vmem:[%s3200 + $0x3c] sm:$0xf]
    %v3217 = vld [vmem:[%s3200 + $0x40] sm:$0xf]
    %v3218 = vld [vmem:[%s3200 + $0x44] sm:$0xf]
    %v3219 = vld [vmem:[%s3200 + $0x48] sm:$0xf]
    %v3220 = vld [vmem:[%s3200 + $0x4c] sm:$0xf]
    %v3221 = vld [vmem:[%s3200 + $0x50] sm:$0xf]
    %v3222 = vld [vmem:[%s3200 + $0x54] sm:$0xf]
    %v3223 = vld [vmem:[%s3200 + $0x58] sm:$0xf]
    %v3224 = vld [vmem:[%s3200 + $0x5c] sm:$0xf]
    %v3225 = vld [vmem:[%s3200 + $0x60] sm:$0xf]
    %v3226 = vld [vmem:[%s3200 + $0x64] sm:$0xf]
    %v3227 = vld [vmem:[%s3200 + $0x68] sm:$0xf]
    %v3228 = vld [vmem:[%s3200 + $0x6c] sm:$0xf]
    %v3229 = vld [vmem:[%s3200 + $0x70] sm:$0xf]
    %v3230 = vld [vmem:[%s3200 + $0x74] sm:$0xf]
    %v3231 = vld [vmem:[%s3200 + $0x78] sm:$0xf]
    %v3232 = vld [vmem:[%s3200 + $0x7c] sm:$0xf]
    %v3265 = vunpack.c.l.b16 %v3201
    %v3266 = vunpack.c.l.b16 %v3202
    %v3267 = vunpack.c.l.b16 %v3203
    %v3268 = vunpack.c.l.b16 %v3204
    %v3269 = vunpack.c.l.b16 %v3205
    %v3270 = vunpack.c.l.b16 %v3206
    %v3271 = vunpack.c.l.b16 %v3207
    %v3272 = vunpack.c.l.b16 %v3208
    %v3273 = vunpack.c.l.b16 %v3209
    %v3274 = vunpack.c.l.b16 %v3210
    %v3275 = vunpack.c.l.b16 %v3211
    %v3276 = vunpack.c.l.b16 %v3212
    %v3277 = vunpack.c.l.b16 %v3213
    %v3278 = vunpack.c.l.b16 %v3214
    %v3279 = vunpack.c.l.b16 %v3215
    %v3280 = vunpack.c.l.b16 %v3216
    %v3281 = vunpack.c.l.b16 %v3217
    %v3282 = vunpack.c.l.b16 %v3218
    %v3283 = vunpack.c.l.b16 %v3219
    %v3284 = vunpack.c.l.b16 %v3220
    %v3285 = vunpack.c.l.b16 %v3221
    %v3286 = vunpack.c.l.b16 %v3222
    %v3287 = vunpack.c.l.b16 %v3223
    %v3288 = vunpack.c.l.b16 %v3224
    %v3289 = vunpack.c.l.b16 %v3225
    %v3290 = vunpack.c.l.b16 %v3226
    %v3291 = vunpack.c.l.b16 %v3227
    %v3292 = vunpack.c.l.b16 %v3228
    %v3293 = vunpack.c.l.b16 %v3229
    %v3294 = vunpack.c.l.b16 %v3230
    %v3295 = vunpack.c.l.b16 %v3231
    %v3296 = vunpack.c.l.b16 %v3232
    %v3297 = vpack.c.b16 %v3266, %v3265
    %v3298 = vpack.c.b16 %v3268, %v3267
    %v3299 = vpack.c.b16 %v3270, %v3269
    %v3300 = vpack.c.b16 %v3272, %v3271
    %v3301 = vpack.c.b16 %v3274, %v3273
    %v3302 = vpack.c.b16 %v3276, %v3275
    %v3303 = vpack.c.b16 %v3278, %v3277
    %v3304 = vpack.c.b16 %v3280, %v3279
    %v3305 = vpack.c.b16 %v3282, %v3281
    %v3306 = vpack.c.b16 %v3284, %v3283
    %v3307 = vpack.c.b16 %v3286, %v3285
    %v3308 = vpack.c.b16 %v3288, %v3287
    %v3309 = vpack.c.b16 %v3290, %v3289
    %v3310 = vpack.c.b16 %v3292, %v3291
    %v3311 = vpack.c.b16 %v3294, %v3293
    %v3312 = vpack.c.b16 %v3296, %v3295
    %3329 = vmatprep.subr.bf16.mxu0 0
    %3330 = vmatpush1.bf16.msra.mxu0 %v3304
    %3331 = vmatprep.subr.bf16.mxu0 0
    %3332 = vmatpush1.bf16.msra.mxu0 %v3303
    %3333 = vmatprep.subr.bf16.mxu0 0
    %3334 = vmatpush1.bf16.msra.mxu0 %v3302
    %3335 = vmatprep.subr.bf16.mxu0 0
    %3336 = vmatpush1.bf16.msra.mxu0 %v3301
    %3337 = vmatprep.subr.bf16.mxu0 0
    %3338 = vmatpush1.bf16.msra.mxu0 %v3300
    %3339 = vmatprep.subr.bf16.mxu0 0
    %3340 = vmatpush1.bf16.msra.mxu0 %v3299
    %3341 = vmatprep.subr.bf16.mxu0 0
    %3342 = vmatpush1.bf16.msra.mxu0 %v3298
    %3343 = vmatprep.subr.bf16.mxu0 0
    %3344 = vmatpush1.bf16.msra.mxu0 %v3297
    %3345 = vmatprep.subr.bf16.mxu0 0
    %3346 = vmatpush2.bf16.msra.mxu0 %v3312
    %3347 = vmatprep.subr.bf16.mxu0 0
    %3348 = vmatpush2.bf16.msra.mxu0 %v3311
    %3349 = vmatprep.subr.bf16.mxu0 0
    %3350 = vmatpush2.bf16.msra.mxu0 %v3310
    %3351 = vmatprep.subr.bf16.mxu0 0
    %3352 = vmatpush2.bf16.msra.mxu0 %v3309
    %3353 = vmatprep.subr.bf16.mxu0 0
    %3354 = vmatpush2.bf16.msra.mxu0 %v3308
    %3355 = vmatprep.subr.bf16.mxu0 0
    %3356 = vmatpush2.bf16.msra.mxu0 %v3307
    %3357 = vmatprep.subr.bf16.mxu0 0
    %3358 = vmatpush2.bf16.msra.mxu0 %v3306
    %3359 = vmatprep.subr.bf16.mxu0 0
    %3360 = vmatpush2.bf16.msra.mxu0 %v3305
    %3361 = vmatprep.mubr.bf16.mxu0 %v3199
    %3362 = vmatmul.mubr.bf16.gmra.mxu0 %v3198
    %v3363 = vpop.f32.mrf.mxu0
    %v3364 = vadd.f32 0.0, %v3363
    %v3365 = vpop.f32.mrf.mxu0
    %v3366 = vpop.f32.mrf.mxu0
    %v3367 = vpop.f32.mrf.mxu0
    %3368 = vdwg.mxu0
    %v3369 = vadd.f32 %v3172, %v3364
    %s3370 = scalar_lea.vmem [#allocation2], 35
    %v3371 = vld [vmem:[%s3370] ss:$8 sm:$0xf]
    %v3373 = vlaneseq
    %v3374 = vshrl.u32 %v3373, 7
    %v3375 = vsub.s32 0, %v3374
    %v3376 = vrot.slane %v3371, %v3375
    %v3377 = vlaneseq
    %v3378 = vshrl.u32 %v3377, 7
    %v3379 = vsub.s32 1, %v3378
    %v3380 = vrot.slane %v3371, %v3379
    %v3383 = vlaneseq
    %v3384 = vshrl.u32 %v3383, 7
    %v3385 = vsub.s32 2, %v3384
    %v3386 = vrot.slane %v3371, %v3385
    %v3387 = vlaneseq
    %v3388 = vshrl.u32 %v3387, 7
    %v3389 = vsub.s32 3, %v3388
    %v3390 = vrot.slane %v3371, %v3389
    %v3393 = vsel %vm1228, %v3376, %v3386
    %v3394 = vsel %vm1228, %v3380, %v3390
    %v3395 = vpack.c.bf16 %v3393, %v3393
    %v3396 = vpack.c.bf16 %v3394, %v3394
    %s3397 = scalar_lea.vmem %s6, 1408
    %v3398 = vld [vmem:[%s3397] sm:$0xf]
    %v3399 = vld [vmem:[%s3397 + $0x4] sm:$0xf]
    %v3400 = vld [vmem:[%s3397 + $0x8] sm:$0xf]
    %v3401 = vld [vmem:[%s3397 + $0xc] sm:$0xf]
    %v3402 = vld [vmem:[%s3397 + $0x10] sm:$0xf]
    %v3403 = vld [vmem:[%s3397 + $0x14] sm:$0xf]
    %v3404 = vld [vmem:[%s3397 + $0x18] sm:$0xf]
    %v3405 = vld [vmem:[%s3397 + $0x1c] sm:$0xf]
    %v3406 = vld [vmem:[%s3397 + $0x20] sm:$0xf]
    %v3407 = vld [vmem:[%s3397 + $0x24] sm:$0xf]
    %v3408 = vld [vmem:[%s3397 + $0x28] sm:$0xf]
    %v3409 = vld [vmem:[%s3397 + $0x2c] sm:$0xf]
    %v3410 = vld [vmem:[%s3397 + $0x30] sm:$0xf]
    %v3411 = vld [vmem:[%s3397 + $0x34] sm:$0xf]
    %v3412 = vld [vmem:[%s3397 + $0x38] sm:$0xf]
    %v3413 = vld [vmem:[%s3397 + $0x3c] sm:$0xf]
    %v3414 = vld [vmem:[%s3397 + $0x40] sm:$0xf]
    %v3415 = vld [vmem:[%s3397 + $0x44] sm:$0xf]
    %v3416 = vld [vmem:[%s3397 + $0x48] sm:$0xf]
    %v3417 = vld [vmem:[%s3397 + $0x4c] sm:$0xf]
    %v3418 = vld [vmem:[%s3397 + $0x50] sm:$0xf]
    %v3419 = vld [vmem:[%s3397 + $0x54] sm:$0xf]
    %v3420 = vld [vmem:[%s3397 + $0x58] sm:$0xf]
    %v3421 = vld [vmem:[%s3397 + $0x5c] sm:$0xf]
    %v3422 = vld [vmem:[%s3397 + $0x60] sm:$0xf]
    %v3423 = vld [vmem:[%s3397 + $0x64] sm:$0xf]
    %v3424 = vld [vmem:[%s3397 + $0x68] sm:$0xf]
    %v3425 = vld [vmem:[%s3397 + $0x6c] sm:$0xf]
    %v3426 = vld [vmem:[%s3397 + $0x70] sm:$0xf]
    %v3427 = vld [vmem:[%s3397 + $0x74] sm:$0xf]
    %v3428 = vld [vmem:[%s3397 + $0x78] sm:$0xf]
    %v3429 = vld [vmem:[%s3397 + $0x7c] sm:$0xf]
    %v3462 = vunpack.c.l.b16 %v3398
    %v3463 = vunpack.c.l.b16 %v3399
    %v3464 = vunpack.c.l.b16 %v3400
    %v3465 = vunpack.c.l.b16 %v3401
    %v3466 = vunpack.c.l.b16 %v3402
    %v3467 = vunpack.c.l.b16 %v3403
    %v3468 = vunpack.c.l.b16 %v3404
    %v3469 = vunpack.c.l.b16 %v3405
    %v3470 = vunpack.c.l.b16 %v3406
    %v3471 = vunpack.c.l.b16 %v3407
    %v3472 = vunpack.c.l.b16 %v3408
    %v3473 = vunpack.c.l.b16 %v3409
    %v3474 = vunpack.c.l.b16 %v3410
    %v3475 = vunpack.c.l.b16 %v3411
    %v3476 = vunpack.c.l.b16 %v3412
    %v3477 = vunpack.c.l.b16 %v3413
    %v3478 = vunpack.c.l.b16 %v3414
    %v3479 = vunpack.c.l.b16 %v3415
    %v3480 = vunpack.c.l.b16 %v3416
    %v3481 = vunpack.c.l.b16 %v3417
    %v3482 = vunpack.c.l.b16 %v3418
    %v3483 = vunpack.c.l.b16 %v3419
    %v3484 = vunpack.c.l.b16 %v3420
    %v3485 = vunpack.c.l.b16 %v3421
    %v3486 = vunpack.c.l.b16 %v3422
    %v3487 = vunpack.c.l.b16 %v3423
    %v3488 = vunpack.c.l.b16 %v3424
    %v3489 = vunpack.c.l.b16 %v3425
    %v3490 = vunpack.c.l.b16 %v3426
    %v3491 = vunpack.c.l.b16 %v3427
    %v3492 = vunpack.c.l.b16 %v3428
    %v3493 = vunpack.c.l.b16 %v3429
    %v3494 = vpack.c.b16 %v3463, %v3462
    %v3495 = vpack.c.b16 %v3465, %v3464
    %v3496 = vpack.c.b16 %v3467, %v3466
    %v3497 = vpack.c.b16 %v3469, %v3468
    %v3498 = vpack.c.b16 %v3471, %v3470
    %v3499 = vpack.c.b16 %v3473, %v3472
    %v3500 = vpack.c.b16 %v3475, %v3474
    %v3501 = vpack.c.b16 %v3477, %v3476
    %v3502 = vpack.c.b16 %v3479, %v3478
    %v3503 = vpack.c.b16 %v3481, %v3480
    %v3504 = vpack.c.b16 %v3483, %v3482
    %v3505 = vpack.c.b16 %v3485, %v3484
    %v3506 = vpack.c.b16 %v3487, %v3486
    %v3507 = vpack.c.b16 %v3489, %v3488
    %v3508 = vpack.c.b16 %v3491, %v3490
    %v3509 = vpack.c.b16 %v3493, %v3492
    %3526 = vmatprep.subr.bf16.mxu0 0
    %3527 = vmatpush1.bf16.msra.mxu0 %v3501
    %3528 = vmatprep.subr.bf16.mxu0 0
    %3529 = vmatpush1.bf16.msra.mxu0 %v3500
    %3530 = vmatprep.subr.bf16.mxu0 0
    %3531 = vmatpush1.bf16.msra.mxu0 %v3499
    %3532 = vmatprep.subr.bf16.mxu0 0
    %3533 = vmatpush1.bf16.msra.mxu0 %v3498
    %3534 = vmatprep.subr.bf16.mxu0 0
    %3535 = vmatpush1.bf16.msra.mxu0 %v3497
    %3536 = vmatprep.subr.bf16.mxu0 0
    %3537 = vmatpush1.bf16.msra.mxu0 %v3496
    %3538 = vmatprep.subr.bf16.mxu0 0
    %3539 = vmatpush1.bf16.msra.mxu0 %v3495
    %3540 = vmatprep.subr.bf16.mxu0 0
    %3541 = vmatpush1.bf16.msra.mxu0 %v3494
    %3542 = vmatprep.subr.bf16.mxu0 0
    %3543 = vmatpush2.bf16.msra.mxu0 %v3509
    %3544 = vmatprep.subr.bf16.mxu0 0
    %3545 = vmatpush2.bf16.msra.mxu0 %v3508
    %3546 = vmatprep.subr.bf16.mxu0 0
    %3547 = vmatpush2.bf16.msra.mxu0 %v3507
    %3548 = vmatprep.subr.bf16.mxu0 0
    %3549 = vmatpush2.bf16.msra.mxu0 %v3506
    %3550 = vmatprep.subr.bf16.mxu0 0
    %3551 = vmatpush2.bf16.msra.mxu0 %v3505
    %3552 = vmatprep.subr.bf16.mxu0 0
    %3553 = vmatpush2.bf16.msra.mxu0 %v3504
    %3554 = vmatprep.subr.bf16.mxu0 0
    %3555 = vmatpush2.bf16.msra.mxu0 %v3503
    %3556 = vmatprep.subr.bf16.mxu0 0
    %3557 = vmatpush2.bf16.msra.mxu0 %v3502
    %3558 = vmatprep.mubr.bf16.mxu0 %v3396
    %3559 = vmatmul.mubr.bf16.gmra.mxu0 %v3395
    %v3560 = vpop.f32.mrf.mxu0
    %v3561 = vadd.f32 0.0, %v3560
    %v3562 = vpop.f32.mrf.mxu0
    %v3563 = vpop.f32.mrf.mxu0
    %v3564 = vpop.f32.mrf.mxu0
    %3565 = vdwg.mxu0
    %v3566 = vadd.f32 %v3369, %v3561
    %s3567 = scalar_lea.vmem [#allocation2], 36
    %v3568 = vld [vmem:[%s3567] ss:$8 sm:$0xf]
    %v3570 = vlaneseq
    %v3571 = vshrl.u32 %v3570, 7
    %v3572 = vsub.s32 0, %v3571
    %v3573 = vrot.slane %v3568, %v3572
    %v3574 = vlaneseq
    %v3575 = vshrl.u32 %v3574, 7
    %v3576 = vsub.s32 1, %v3575
    %v3577 = vrot.slane %v3568, %v3576
    %v3580 = vlaneseq
    %v3581 = vshrl.u32 %v3580, 7
    %v3582 = vsub.s32 2, %v3581
    %v3583 = vrot.slane %v3568, %v3582
    %v3584 = vlaneseq
    %v3585 = vshrl.u32 %v3584, 7
    %v3586 = vsub.s32 3, %v3585
    %v3587 = vrot.slane %v3568, %v3586
    %v3590 = vsel %vm1228, %v3573, %v3583
    %v3591 = vsel %vm1228, %v3577, %v3587
    %v3592 = vpack.c.bf16 %v3590, %v3590
    %v3593 = vpack.c.bf16 %v3591, %v3591
    %s3594 = scalar_lea.vmem %s6, 1536
    %v3595 = vld [vmem:[%s3594] sm:$0xf]
    %v3596 = vld [vmem:[%s3594 + $0x4] sm:$0xf]
    %v3597 = vld [vmem:[%s3594 + $0x8] sm:$0xf]
    %v3598 = vld [vmem:[%s3594 + $0xc] sm:$0xf]
    %v3599 = vld [vmem:[%s3594 + $0x10] sm:$0xf]
    %v3600 = vld [vmem:[%s3594 + $0x14] sm:$0xf]
    %v3601 = vld [vmem:[%s3594 + $0x18] sm:$0xf]
    %v3602 = vld [vmem:[%s3594 + $0x1c] sm:$0xf]
    %v3603 = vld [vmem:[%s3594 + $0x20] sm:$0xf]
    %v3604 = vld [vmem:[%s3594 + $0x24] sm:$0xf]
    %v3605 = vld [vmem:[%s3594 + $0x28] sm:$0xf]
    %v3606 = vld [vmem:[%s3594 + $0x2c] sm:$0xf]
    %v3607 = vld [vmem:[%s3594 + $0x30] sm:$0xf]
    %v3608 = vld [vmem:[%s3594 + $0x34] sm:$0xf]
    %v3609 = vld [vmem:[%s3594 + $0x38] sm:$0xf]
    %v3610 = vld [vmem:[%s3594 + $0x3c] sm:$0xf]
    %v3611 = vld [vmem:[%s3594 + $0x40] sm:$0xf]
    %v3612 = vld [vmem:[%s3594 + $0x44] sm:$0xf]
    %v3613 = vld [vmem:[%s3594 + $0x48] sm:$0xf]
    %v3614 = vld [vmem:[%s3594 + $0x4c] sm:$0xf]
    %v3615 = vld [vmem:[%s3594 + $0x50] sm:$0xf]
    %v3616 = vld [vmem:[%s3594 + $0x54] sm:$0xf]
    %v3617 = vld [vmem:[%s3594 + $0x58] sm:$0xf]
    %v3618 = vld [vmem:[%s3594 + $0x5c] sm:$0xf]
    %v3619 = vld [vmem:[%s3594 + $0x60] sm:$0xf]
    %v3620 = vld [vmem:[%s3594 + $0x64] sm:$0xf]
    %v3621 = vld [vmem:[%s3594 + $0x68] sm:$0xf]
    %v3622 = vld [vmem:[%s3594 + $0x6c] sm:$0xf]
    %v3623 = vld [vmem:[%s3594 + $0x70] sm:$0xf]
    %v3624 = vld [vmem:[%s3594 + $0x74] sm:$0xf]
    %v3625 = vld [vmem:[%s3594 + $0x78] sm:$0xf]
    %v3626 = vld [vmem:[%s3594 + $0x7c] sm:$0xf]
    %v3659 = vunpack.c.l.b16 %v3595
    %v3660 = vunpack.c.l.b16 %v3596
    %v3661 = vunpack.c.l.b16 %v3597
    %v3662 = vunpack.c.l.b16 %v3598
    %v3663 = vunpack.c.l.b16 %v3599
    %v3664 = vunpack.c.l.b16 %v3600
    %v3665 = vunpack.c.l.b16 %v3601
    %v3666 = vunpack.c.l.b16 %v3602
    %v3667 = vunpack.c.l.b16 %v3603
    %v3668 = vunpack.c.l.b16 %v3604
    %v3669 = vunpack.c.l.b16 %v3605
    %v3670 = vunpack.c.l.b16 %v3606
    %v3671 = vunpack.c.l.b16 %v3607
    %v3672 = vunpack.c.l.b16 %v3608
    %v3673 = vunpack.c.l.b16 %v3609
    %v3674 = vunpack.c.l.b16 %v3610
    %v3675 = vunpack.c.l.b16 %v3611
    %v3676 = vunpack.c.l.b16 %v3612
    %v3677 = vunpack.c.l.b16 %v3613
    %v3678 = vunpack.c.l.b16 %v3614
    %v3679 = vunpack.c.l.b16 %v3615
    %v3680 = vunpack.c.l.b16 %v3616
    %v3681 = vunpack.c.l.b16 %v3617
    %v3682 = vunpack.c.l.b16 %v3618
    %v3683 = vunpack.c.l.b16 %v3619
    %v3684 = vunpack.c.l.b16 %v3620
    %v3685 = vunpack.c.l.b16 %v3621
    %v3686 = vunpack.c.l.b16 %v3622
    %v3687 = vunpack.c.l.b16 %v3623
    %v3688 = vunpack.c.l.b16 %v3624
    %v3689 = vunpack.c.l.b16 %v3625
    %v3690 = vunpack.c.l.b16 %v3626
    %v3691 = vpack.c.b16 %v3660, %v3659
    %v3692 = vpack.c.b16 %v3662, %v3661
    %v3693 = vpack.c.b16 %v3664, %v3663
    %v3694 = vpack.c.b16 %v3666, %v3665
    %v3695 = vpack.c.b16 %v3668, %v3667
    %v3696 = vpack.c.b16 %v3670, %v3669
    %v3697 = vpack.c.b16 %v3672, %v3671
    %v3698 = vpack.c.b16 %v3674, %v3673
    %v3699 = vpack.c.b16 %v3676, %v3675
    %v3700 = vpack.c.b16 %v3678, %v3677
    %v3701 = vpack.c.b16 %v3680, %v3679
    %v3702 = vpack.c.b16 %v3682, %v3681
    %v3703 = vpack.c.b16 %v3684, %v3683
    %v3704 = vpack.c.b16 %v3686, %v3685
    %v3705 = vpack.c.b16 %v3688, %v3687
    %v3706 = vpack.c.b16 %v3690, %v3689
    %3723 = vmatprep.subr.bf16.mxu0 0
    %3724 = vmatpush1.bf16.msra.mxu0 %v3698
    %3725 = vmatprep.subr.bf16.mxu0 0
    %3726 = vmatpush1.bf16.msra.mxu0 %v3697
    %3727 = vmatprep.subr.bf16.mxu0 0
    %3728 = vmatpush1.bf16.msra.mxu0 %v3696
    %3729 = vmatprep.subr.bf16.mxu0 0
    %3730 = vmatpush1.bf16.msra.mxu0 %v3695
    %3731 = vmatprep.subr.bf16.mxu0 0
    %3732 = vmatpush1.bf16.msra.mxu0 %v3694
    %3733 = vmatprep.subr.bf16.mxu0 0
    %3734 = vmatpush1.bf16.msra.mxu0 %v3693
    %3735 = vmatprep.subr.bf16.mxu0 0
    %3736 = vmatpush1.bf16.msra.mxu0 %v3692
    %3737 = vmatprep.subr.bf16.mxu0 0
    %3738 = vmatpush1.bf16.msra.mxu0 %v3691
    %3739 = vmatprep.subr.bf16.mxu0 0
    %3740 = vmatpush2.bf16.msra.mxu0 %v3706
    %3741 = vmatprep.subr.bf16.mxu0 0
    %3742 = vmatpush2.bf16.msra.mxu0 %v3705
    %3743 = vmatprep.subr.bf16.mxu0 0
    %3744 = vmatpush2.bf16.msra.mxu0 %v3704
    %3745 = vmatprep.subr.bf16.mxu0 0
    %3746 = vmatpush2.bf16.msra.mxu0 %v3703
    %3747 = vmatprep.subr.bf16.mxu0 0
    %3748 = vmatpush2.bf16.msra.mxu0 %v3702
    %3749 = vmatprep.subr.bf16.mxu0 0
    %3750 = vmatpush2.bf16.msra.mxu0 %v3701
    %3751 = vmatprep.subr.bf16.mxu0 0
    %3752 = vmatpush2.bf16.msra.mxu0 %v3700
    %3753 = vmatprep.subr.bf16.mxu0 0
    %3754 = vmatpush2.bf16.msra.mxu0 %v3699
    %3755 = vmatprep.mubr.bf16.mxu0 %v3593
    %3756 = vmatmul.mubr.bf16.gmra.mxu0 %v3592
    %v3757 = vpop.f32.mrf.mxu0
    %v3758 = vadd.f32 0.0, %v3757
    %v3759 = vpop.f32.mrf.mxu0
    %v3760 = vpop.f32.mrf.mxu0
    %v3761 = vpop.f32.mrf.mxu0
    %3762 = vdwg.mxu0
    %v3763 = vadd.f32 %v3566, %v3758
    %s3764 = scalar_lea.vmem [#allocation2], 37
    %v3765 = vld [vmem:[%s3764] ss:$8 sm:$0xf]
    %v3767 = vlaneseq
    %v3768 = vshrl.u32 %v3767, 7
    %v3769 = vsub.s32 0, %v3768
    %v3770 = vrot.slane %v3765, %v3769
    %v3771 = vlaneseq
    %v3772 = vshrl.u32 %v3771, 7
    %v3773 = vsub.s32 1, %v3772
    %v3774 = vrot.slane %v3765, %v3773
    %v3777 = vlaneseq
    %v3778 = vshrl.u32 %v3777, 7
    %v3779 = vsub.s32 2, %v3778
    %v3780 = vrot.slane %v3765, %v3779
    %v3781 = vlaneseq
    %v3782 = vshrl.u32 %v3781, 7
    %v3783 = vsub.s32 3, %v3782
    %v3784 = vrot.slane %v3765, %v3783
    %v3787 = vsel %vm1228, %v3770, %v3780
    %v3788 = vsel %vm1228, %v3774, %v3784
    %v3789 = vpack.c.bf16 %v3787, %v3787
    %v3790 = vpack.c.bf16 %v3788, %v3788
    %s3791 = scalar_lea.vmem %s6, 1664
    %v3792 = vld [vmem:[%s3791] sm:$0xf]
    %v3793 = vld [vmem:[%s3791 + $0x4] sm:$0xf]
    %v3794 = vld [vmem:[%s3791 + $0x8] sm:$0xf]
    %v3795 = vld [vmem:[%s3791 + $0xc] sm:$0xf]
    %v3796 = vld [vmem:[%s3791 + $0x10] sm:$0xf]
    %v3797 = vld [vmem:[%s3791 + $0x14] sm:$0xf]
    %v3798 = vld [vmem:[%s3791 + $0x18] sm:$0xf]
    %v3799 = vld [vmem:[%s3791 + $0x1c] sm:$0xf]
    %v3800 = vld [vmem:[%s3791 + $0x20] sm:$0xf]
    %v3801 = vld [vmem:[%s3791 + $0x24] sm:$0xf]
    %v3802 = vld [vmem:[%s3791 + $0x28] sm:$0xf]
    %v3803 = vld [vmem:[%s3791 + $0x2c] sm:$0xf]
    %v3804 = vld [vmem:[%s3791 + $0x30] sm:$0xf]
    %v3805 = vld [vmem:[%s3791 + $0x34] sm:$0xf]
    %v3806 = vld [vmem:[%s3791 + $0x38] sm:$0xf]
    %v3807 = vld [vmem:[%s3791 + $0x3c] sm:$0xf]
    %v3808 = vld [vmem:[%s3791 + $0x40] sm:$0xf]
    %v3809 = vld [vmem:[%s3791 + $0x44] sm:$0xf]
    %v3810 = vld [vmem:[%s3791 + $0x48] sm:$0xf]
    %v3811 = vld [vmem:[%s3791 + $0x4c] sm:$0xf]
    %v3812 = vld [vmem:[%s3791 + $0x50] sm:$0xf]
    %v3813 = vld [vmem:[%s3791 + $0x54] sm:$0xf]
    %v3814 = vld [vmem:[%s3791 + $0x58] sm:$0xf]
    %v3815 = vld [vmem:[%s3791 + $0x5c] sm:$0xf]
    %v3816 = vld [vmem:[%s3791 + $0x60] sm:$0xf]
    %v3817 = vld [vmem:[%s3791 + $0x64] sm:$0xf]
    %v3818 = vld [vmem:[%s3791 + $0x68] sm:$0xf]
    %v3819 = vld [vmem:[%s3791 + $0x6c] sm:$0xf]
    %v3820 = vld [vmem:[%s3791 + $0x70] sm:$0xf]
    %v3821 = vld [vmem:[%s3791 + $0x74] sm:$0xf]
    %v3822 = vld [vmem:[%s3791 + $0x78] sm:$0xf]
    %v3823 = vld [vmem:[%s3791 + $0x7c] sm:$0xf]
    %v3856 = vunpack.c.l.b16 %v3792
    %v3857 = vunpack.c.l.b16 %v3793
    %v3858 = vunpack.c.l.b16 %v3794
    %v3859 = vunpack.c.l.b16 %v3795
    %v3860 = vunpack.c.l.b16 %v3796
    %v3861 = vunpack.c.l.b16 %v3797
    %v3862 = vunpack.c.l.b16 %v3798
    %v3863 = vunpack.c.l.b16 %v3799
    %v3864 = vunpack.c.l.b16 %v3800
    %v3865 = vunpack.c.l.b16 %v3801
    %v3866 = vunpack.c.l.b16 %v3802
    %v3867 = vunpack.c.l.b16 %v3803
    %v3868 = vunpack.c.l.b16 %v3804
    %v3869 = vunpack.c.l.b16 %v3805
    %v3870 = vunpack.c.l.b16 %v3806
    %v3871 = vunpack.c.l.b16 %v3807
    %v3872 = vunpack.c.l.b16 %v3808
    %v3873 = vunpack.c.l.b16 %v3809
    %v3874 = vunpack.c.l.b16 %v3810
    %v3875 = vunpack.c.l.b16 %v3811
    %v3876 = vunpack.c.l.b16 %v3812
    %v3877 = vunpack.c.l.b16 %v3813
    %v3878 = vunpack.c.l.b16 %v3814
    %v3879 = vunpack.c.l.b16 %v3815
    %v3880 = vunpack.c.l.b16 %v3816
    %v3881 = vunpack.c.l.b16 %v3817
    %v3882 = vunpack.c.l.b16 %v3818
    %v3883 = vunpack.c.l.b16 %v3819
    %v3884 = vunpack.c.l.b16 %v3820
    %v3885 = vunpack.c.l.b16 %v3821
    %v3886 = vunpack.c.l.b16 %v3822
    %v3887 = vunpack.c.l.b16 %v3823
    %v3888 = vpack.c.b16 %v3857, %v3856
    %v3889 = vpack.c.b16 %v3859, %v3858
    %v3890 = vpack.c.b16 %v3861, %v3860
    %v3891 = vpack.c.b16 %v3863, %v3862
    %v3892 = vpack.c.b16 %v3865, %v3864
    %v3893 = vpack.c.b16 %v3867, %v3866
    %v3894 = vpack.c.b16 %v3869, %v3868
    %v3895 = vpack.c.b16 %v3871, %v3870
    %v3896 = vpack.c.b16 %v3873, %v3872
    %v3897 = vpack.c.b16 %v3875, %v3874
    %v3898 = vpack.c.b16 %v3877, %v3876
    %v3899 = vpack.c.b16 %v3879, %v3878
    %v3900 = vpack.c.b16 %v3881, %v3880
    %v3901 = vpack.c.b16 %v3883, %v3882
    %v3902 = vpack.c.b16 %v3885, %v3884
    %v3903 = vpack.c.b16 %v3887, %v3886
    %3920 = vmatprep.subr.bf16.mxu0 0
    %3921 = vmatpush1.bf16.msra.mxu0 %v3895
    %3922 = vmatprep.subr.bf16.mxu0 0
    %3923 = vmatpush1.bf16.msra.mxu0 %v3894
    %3924 = vmatprep.subr.bf16.mxu0 0
    %3925 = vmatpush1.bf16.msra.mxu0 %v3893
    %3926 = vmatprep.subr.bf16.mxu0 0
    %3927 = vmatpush1.bf16.msra.mxu0 %v3892
    %3928 = vmatprep.subr.bf16.mxu0 0
    %3929 = vmatpush1.bf16.msra.mxu0 %v3891
    %3930 = vmatprep.subr.bf16.mxu0 0
    %3931 = vmatpush1.bf16.msra.mxu0 %v3890
    %3932 = vmatprep.subr.bf16.mxu0 0
    %3933 = vmatpush1.bf16.msra.mxu0 %v3889
    %3934 = vmatprep.subr.bf16.mxu0 0
    %3935 = vmatpush1.bf16.msra.mxu0 %v3888
    %3936 = vmatprep.subr.bf16.mxu0 0
    %3937 = vmatpush2.bf16.msra.mxu0 %v3903
    %3938 = vmatprep.subr.bf16.mxu0 0
    %3939 = vmatpush2.bf16.msra.mxu0 %v3902
    %3940 = vmatprep.subr.bf16.mxu0 0
    %3941 = vmatpush2.bf16.msra.mxu0 %v3901
    %3942 = vmatprep.subr.bf16.mxu0 0
    %3943 = vmatpush2.bf16.msra.mxu0 %v3900
    %3944 = vmatprep.subr.bf16.mxu0 0
    %3945 = vmatpush2.bf16.msra.mxu0 %v3899
    %3946 = vmatprep.subr.bf16.mxu0 0
    %3947 = vmatpush2.bf16.msra.mxu0 %v3898
    %3948 = vmatprep.subr.bf16.mxu0 0
    %3949 = vmatpush2.bf16.msra.mxu0 %v3897
    %3950 = vmatprep.subr.bf16.mxu0 0
    %3951 = vmatpush2.bf16.msra.mxu0 %v3896
    %3952 = vmatprep.mubr.bf16.mxu0 %v3790
    %3953 = vmatmul.mubr.bf16.gmra.mxu0 %v3789
    %v3954 = vpop.f32.mrf.mxu0
    %v3955 = vadd.f32 0.0, %v3954
    %v3956 = vpop.f32.mrf.mxu0
    %v3957 = vpop.f32.mrf.mxu0
    %v3958 = vpop.f32.mrf.mxu0
    %3959 = vdwg.mxu0
    %v3960 = vadd.f32 %v3763, %v3955
    %s3961 = scalar_lea.vmem [#allocation2], 38
    %v3962 = vld [vmem:[%s3961] ss:$8 sm:$0xf]
    %v3964 = vlaneseq
    %v3965 = vshrl.u32 %v3964, 7
    %v3966 = vsub.s32 0, %v3965
    %v3967 = vrot.slane %v3962, %v3966
    %v3968 = vlaneseq
    %v3969 = vshrl.u32 %v3968, 7
    %v3970 = vsub.s32 1, %v3969
    %v3971 = vrot.slane %v3962, %v3970
    %v3974 = vlaneseq
    %v3975 = vshrl.u32 %v3974, 7
    %v3976 = vsub.s32 2, %v3975
    %v3977 = vrot.slane %v3962, %v3976
    %v3978 = vlaneseq
    %v3979 = vshrl.u32 %v3978, 7
    %v3980 = vsub.s32 3, %v3979
    %v3981 = vrot.slane %v3962, %v3980
    %v3984 = vsel %vm1228, %v3967, %v3977
    %v3985 = vsel %vm1228, %v3971, %v3981
    %v3986 = vpack.c.bf16 %v3984, %v3984
    %v3987 = vpack.c.bf16 %v3985, %v3985
    %s3988 = scalar_lea.vmem %s6, 1792
    %v3989 = vld [vmem:[%s3988] sm:$0xf]
    %v3990 = vld [vmem:[%s3988 + $0x4] sm:$0xf]
    %v3991 = vld [vmem:[%s3988 + $0x8] sm:$0xf]
    %v3992 = vld [vmem:[%s3988 + $0xc] sm:$0xf]
    %v3993 = vld [vmem:[%s3988 + $0x10] sm:$0xf]
    %v3994 = vld [vmem:[%s3988 + $0x14] sm:$0xf]
    %v3995 = vld [vmem:[%s3988 + $0x18] sm:$0xf]
    %v3996 = vld [vmem:[%s3988 + $0x1c] sm:$0xf]
    %v3997 = vld [vmem:[%s3988 + $0x20] sm:$0xf]
    %v3998 = vld [vmem:[%s3988 + $0x24] sm:$0xf]
    %v3999 = vld [vmem:[%s3988 + $0x28] sm:$0xf]
    %v4000 = vld [vmem:[%s3988 + $0x2c] sm:$0xf]
    %v4001 = vld [vmem:[%s3988 + $0x30] sm:$0xf]
    %v4002 = vld [vmem:[%s3988 + $0x34] sm:$0xf]
    %v4003 = vld [vmem:[%s3988 + $0x38] sm:$0xf]
    %v4004 = vld [vmem:[%s3988 + $0x3c] sm:$0xf]
    %v4005 = vld [vmem:[%s3988 + $0x40] sm:$0xf]
    %v4006 = vld [vmem:[%s3988 + $0x44] sm:$0xf]
    %v4007 = vld [vmem:[%s3988 + $0x48] sm:$0xf]
    %v4008 = vld [vmem:[%s3988 + $0x4c] sm:$0xf]
    %v4009 = vld [vmem:[%s3988 + $0x50] sm:$0xf]
    %v4010 = vld [vmem:[%s3988 + $0x54] sm:$0xf]
    %v4011 = vld [vmem:[%s3988 + $0x58] sm:$0xf]
    %v4012 = vld [vmem:[%s3988 + $0x5c] sm:$0xf]
    %v4013 = vld [vmem:[%s3988 + $0x60] sm:$0xf]
    %v4014 = vld [vmem:[%s3988 + $0x64] sm:$0xf]
    %v4015 = vld [vmem:[%s3988 + $0x68] sm:$0xf]
    %v4016 = vld [vmem:[%s3988 + $0x6c] sm:$0xf]
    %v4017 = vld [vmem:[%s3988 + $0x70] sm:$0xf]
    %v4018 = vld [vmem:[%s3988 + $0x74] sm:$0xf]
    %v4019 = vld [vmem:[%s3988 + $0x78] sm:$0xf]
    %v4020 = vld [vmem:[%s3988 + $0x7c] sm:$0xf]
    %v4053 = vunpack.c.l.b16 %v3989
    %v4054 = vunpack.c.l.b16 %v3990
    %v4055 = vunpack.c.l.b16 %v3991
    %v4056 = vunpack.c.l.b16 %v3992
    %v4057 = vunpack.c.l.b16 %v3993
    %v4058 = vunpack.c.l.b16 %v3994
    %v4059 = vunpack.c.l.b16 %v3995
    %v4060 = vunpack.c.l.b16 %v3996
    %v4061 = vunpack.c.l.b16 %v3997
    %v4062 = vunpack.c.l.b16 %v3998
    %v4063 = vunpack.c.l.b16 %v3999
    %v4064 = vunpack.c.l.b16 %v4000
    %v4065 = vunpack.c.l.b16 %v4001
    %v4066 = vunpack.c.l.b16 %v4002
    %v4067 = vunpack.c.l.b16 %v4003
    %v4068 = vunpack.c.l.b16 %v4004
    %v4069 = vunpack.c.l.b16 %v4005
    %v4070 = vunpack.c.l.b16 %v4006
    %v4071 = vunpack.c.l.b16 %v4007
    %v4072 = vunpack.c.l.b16 %v4008
    %v4073 = vunpack.c.l.b16 %v4009
    %v4074 = vunpack.c.l.b16 %v4010
    %v4075 = vunpack.c.l.b16 %v4011
    %v4076 = vunpack.c.l.b16 %v4012
    %v4077 = vunpack.c.l.b16 %v4013
    %v4078 = vunpack.c.l.b16 %v4014
    %v4079 = vunpack.c.l.b16 %v4015
    %v4080 = vunpack.c.l.b16 %v4016
    %v4081 = vunpack.c.l.b16 %v4017
    %v4082 = vunpack.c.l.b16 %v4018
    %v4083 = vunpack.c.l.b16 %v4019
    %v4084 = vunpack.c.l.b16 %v4020
    %v4085 = vpack.c.b16 %v4054, %v4053
    %v4086 = vpack.c.b16 %v4056, %v4055
    %v4087 = vpack.c.b16 %v4058, %v4057
    %v4088 = vpack.c.b16 %v4060, %v4059
    %v4089 = vpack.c.b16 %v4062, %v4061
    %v4090 = vpack.c.b16 %v4064, %v4063
    %v4091 = vpack.c.b16 %v4066, %v4065
    %v4092 = vpack.c.b16 %v4068, %v4067
    %v4093 = vpack.c.b16 %v4070, %v4069
    %v4094 = vpack.c.b16 %v4072, %v4071
    %v4095 = vpack.c.b16 %v4074, %v4073
    %v4096 = vpack.c.b16 %v4076, %v4075
    %v4097 = vpack.c.b16 %v4078, %v4077
    %v4098 = vpack.c.b16 %v4080, %v4079
    %v4099 = vpack.c.b16 %v4082, %v4081
    %v4100 = vpack.c.b16 %v4084, %v4083
    %4117 = vmatprep.subr.bf16.mxu0 0
    %4118 = vmatpush1.bf16.msra.mxu0 %v4092
    %4119 = vmatprep.subr.bf16.mxu0 0
    %4120 = vmatpush1.bf16.msra.mxu0 %v4091
    %4121 = vmatprep.subr.bf16.mxu0 0
    %4122 = vmatpush1.bf16.msra.mxu0 %v4090
    %4123 = vmatprep.subr.bf16.mxu0 0
    %4124 = vmatpush1.bf16.msra.mxu0 %v4089
    %4125 = vmatprep.subr.bf16.mxu0 0
    %4126 = vmatpush1.bf16.msra.mxu0 %v4088
    %4127 = vmatprep.subr.bf16.mxu0 0
    %4128 = vmatpush1.bf16.msra.mxu0 %v4087
    %4129 = vmatprep.subr.bf16.mxu0 0
    %4130 = vmatpush1.bf16.msra.mxu0 %v4086
    %4131 = vmatprep.subr.bf16.mxu0 0
    %4132 = vmatpush1.bf16.msra.mxu0 %v4085
    %4133 = vmatprep.subr.bf16.mxu0 0
    %4134 = vmatpush2.bf16.msra.mxu0 %v4100
    %4135 = vmatprep.subr.bf16.mxu0 0
    %4136 = vmatpush2.bf16.msra.mxu0 %v4099
    %4137 = vmatprep.subr.bf16.mxu0 0
    %4138 = vmatpush2.bf16.msra.mxu0 %v4098
    %4139 = vmatprep.subr.bf16.mxu0 0
    %4140 = vmatpush2.bf16.msra.mxu0 %v4097
    %4141 = vmatprep.subr.bf16.mxu0 0
    %4142 = vmatpush2.bf16.msra.mxu0 %v4096
    %4143 = vmatprep.subr.bf16.mxu0 0
    %4144 = vmatpush2.bf16.msra.mxu0 %v4095
    %4145 = vmatprep.subr.bf16.mxu0 0
    %4146 = vmatpush2.bf16.msra.mxu0 %v4094
    %4147 = vmatprep.subr.bf16.mxu0 0
    %4148 = vmatpush2.bf16.msra.mxu0 %v4093
    %4149 = vmatprep.mubr.bf16.mxu0 %v3987
    %4150 = vmatmul.mubr.bf16.gmra.mxu0 %v3986
    %v4151 = vpop.f32.mrf.mxu0
    %v4152 = vadd.f32 0.0, %v4151
    %v4153 = vpop.f32.mrf.mxu0
    %v4154 = vpop.f32.mrf.mxu0
    %v4155 = vpop.f32.mrf.mxu0
    %4156 = vdwg.mxu0
    %v4157 = vadd.f32 %v3960, %v4152
    %s4158 = scalar_lea.vmem [#allocation2], 39
    %v4159 = vld [vmem:[%s4158] ss:$8 sm:$0xf]
    %v4161 = vlaneseq
    %v4162 = vshrl.u32 %v4161, 7
    %v4163 = vsub.s32 0, %v4162
    %v4164 = vrot.slane %v4159, %v4163
    %v4165 = vlaneseq
    %v4166 = vshrl.u32 %v4165, 7
    %v4167 = vsub.s32 1, %v4166
    %v4168 = vrot.slane %v4159, %v4167
    %v4171 = vlaneseq
    %v4172 = vshrl.u32 %v4171, 7
    %v4173 = vsub.s32 2, %v4172
    %v4174 = vrot.slane %v4159, %v4173
    %v4175 = vlaneseq
    %v4176 = vshrl.u32 %v4175, 7
    %v4177 = vsub.s32 3, %v4176
    %v4178 = vrot.slane %v4159, %v4177
    %v4181 = vsel %vm1228, %v4164, %v4174
    %v4182 = vsel %vm1228, %v4168, %v4178
    %v4183 = vpack.c.bf16 %v4181, %v4181
    %v4184 = vpack.c.bf16 %v4182, %v4182
    %s4185 = scalar_lea.vmem %s6, 1920
    %v4186 = vld [vmem:[%s4185] sm:$0xf]
    %v4187 = vld [vmem:[%s4185 + $0x4] sm:$0xf]
    %v4188 = vld [vmem:[%s4185 + $0x8] sm:$0xf]
    %v4189 = vld [vmem:[%s4185 + $0xc] sm:$0xf]
    %v4190 = vld [vmem:[%s4185 + $0x10] sm:$0xf]
    %v4191 = vld [vmem:[%s4185 + $0x14] sm:$0xf]
    %v4192 = vld [vmem:[%s4185 + $0x18] sm:$0xf]
    %v4193 = vld [vmem:[%s4185 + $0x1c] sm:$0xf]
    %v4194 = vld [vmem:[%s4185 + $0x20] sm:$0xf]
    %v4195 = vld [vmem:[%s4185 + $0x24] sm:$0xf]
    %v4196 = vld [vmem:[%s4185 + $0x28] sm:$0xf]
    %v4197 = vld [vmem:[%s4185 + $0x2c] sm:$0xf]
    %v4198 = vld [vmem:[%s4185 + $0x30] sm:$0xf]
    %v4199 = vld [vmem:[%s4185 + $0x34] sm:$0xf]
    %v4200 = vld [vmem:[%s4185 + $0x38] sm:$0xf]
    %v4201 = vld [vmem:[%s4185 + $0x3c] sm:$0xf]
    %v4202 = vld [vmem:[%s4185 + $0x40] sm:$0xf]
    %v4203 = vld [vmem:[%s4185 + $0x44] sm:$0xf]
    %v4204 = vld [vmem:[%s4185 + $0x48] sm:$0xf]
    %v4205 = vld [vmem:[%s4185 + $0x4c] sm:$0xf]
    %v4206 = vld [vmem:[%s4185 + $0x50] sm:$0xf]
    %v4207 = vld [vmem:[%s4185 + $0x54] sm:$0xf]
    %v4208 = vld [vmem:[%s4185 + $0x58] sm:$0xf]
    %v4209 = vld [vmem:[%s4185 + $0x5c] sm:$0xf]
    %v4210 = vld [vmem:[%s4185 + $0x60] sm:$0xf]
    %v4211 = vld [vmem:[%s4185 + $0x64] sm:$0xf]
    %v4212 = vld [vmem:[%s4185 + $0x68] sm:$0xf]
    %v4213 = vld [vmem:[%s4185 + $0x6c] sm:$0xf]
    %v4214 = vld [vmem:[%s4185 + $0x70] sm:$0xf]
    %v4215 = vld [vmem:[%s4185 + $0x74] sm:$0xf]
    %v4216 = vld [vmem:[%s4185 + $0x78] sm:$0xf]
    %v4217 = vld [vmem:[%s4185 + $0x7c] sm:$0xf]
    %v4250 = vunpack.c.l.b16 %v4186
    %v4251 = vunpack.c.l.b16 %v4187
    %v4252 = vunpack.c.l.b16 %v4188
    %v4253 = vunpack.c.l.b16 %v4189
    %v4254 = vunpack.c.l.b16 %v4190
    %v4255 = vunpack.c.l.b16 %v4191
    %v4256 = vunpack.c.l.b16 %v4192
    %v4257 = vunpack.c.l.b16 %v4193
    %v4258 = vunpack.c.l.b16 %v4194
    %v4259 = vunpack.c.l.b16 %v4195
    %v4260 = vunpack.c.l.b16 %v4196
    %v4261 = vunpack.c.l.b16 %v4197
    %v4262 = vunpack.c.l.b16 %v4198
    %v4263 = vunpack.c.l.b16 %v4199
    %v4264 = vunpack.c.l.b16 %v4200
    %v4265 = vunpack.c.l.b16 %v4201
    %v4266 = vunpack.c.l.b16 %v4202
    %v4267 = vunpack.c.l.b16 %v4203
    %v4268 = vunpack.c.l.b16 %v4204
    %v4269 = vunpack.c.l.b16 %v4205
    %v4270 = vunpack.c.l.b16 %v4206
    %v4271 = vunpack.c.l.b16 %v4207
    %v4272 = vunpack.c.l.b16 %v4208
    %v4273 = vunpack.c.l.b16 %v4209
    %v4274 = vunpack.c.l.b16 %v4210
    %v4275 = vunpack.c.l.b16 %v4211
    %v4276 = vunpack.c.l.b16 %v4212
    %v4277 = vunpack.c.l.b16 %v4213
    %v4278 = vunpack.c.l.b16 %v4214
    %v4279 = vunpack.c.l.b16 %v4215
    %v4280 = vunpack.c.l.b16 %v4216
    %v4281 = vunpack.c.l.b16 %v4217
    %v4282 = vpack.c.b16 %v4251, %v4250
    %v4283 = vpack.c.b16 %v4253, %v4252
    %v4284 = vpack.c.b16 %v4255, %v4254
    %v4285 = vpack.c.b16 %v4257, %v4256
    %v4286 = vpack.c.b16 %v4259, %v4258
    %v4287 = vpack.c.b16 %v4261, %v4260
    %v4288 = vpack.c.b16 %v4263, %v4262
    %v4289 = vpack.c.b16 %v4265, %v4264
    %v4290 = vpack.c.b16 %v4267, %v4266
    %v4291 = vpack.c.b16 %v4269, %v4268
    %v4292 = vpack.c.b16 %v4271, %v4270
    %v4293 = vpack.c.b16 %v4273, %v4272
    %v4294 = vpack.c.b16 %v4275, %v4274
    %v4295 = vpack.c.b16 %v4277, %v4276
    %v4296 = vpack.c.b16 %v4279, %v4278
    %v4297 = vpack.c.b16 %v4281, %v4280
    %4314 = vmatprep.subr.bf16.mxu0 0
    %4315 = vmatpush1.bf16.msra.mxu0 %v4289
    %4316 = vmatprep.subr.bf16.mxu0 0
    %4317 = vmatpush1.bf16.msra.mxu0 %v4288
    %4318 = vmatprep.subr.bf16.mxu0 0
    %4319 = vmatpush1.bf16.msra.mxu0 %v4287
    %4320 = vmatprep.subr.bf16.mxu0 0
    %4321 = vmatpush1.bf16.msra.mxu0 %v4286
    %4322 = vmatprep.subr.bf16.mxu0 0
    %4323 = vmatpush1.bf16.msra.mxu0 %v4285
    %4324 = vmatprep.subr.bf16.mxu0 0
    %4325 = vmatpush1.bf16.msra.mxu0 %v4284
    %4326 = vmatprep.subr.bf16.mxu0 0
    %4327 = vmatpush1.bf16.msra.mxu0 %v4283
    %4328 = vmatprep.subr.bf16.mxu0 0
    %4329 = vmatpush1.bf16.msra.mxu0 %v4282
    %4330 = vmatprep.subr.bf16.mxu0 0
    %4331 = vmatpush2.bf16.msra.mxu0 %v4297
    %4332 = vmatprep.subr.bf16.mxu0 0
    %4333 = vmatpush2.bf16.msra.mxu0 %v4296
    %4334 = vmatprep.subr.bf16.mxu0 0
    %4335 = vmatpush2.bf16.msra.mxu0 %v4295
    %4336 = vmatprep.subr.bf16.mxu0 0
    %4337 = vmatpush2.bf16.msra.mxu0 %v4294
    %4338 = vmatprep.subr.bf16.mxu0 0
    %4339 = vmatpush2.bf16.msra.mxu0 %v4293
    %4340 = vmatprep.subr.bf16.mxu0 0
    %4341 = vmatpush2.bf16.msra.mxu0 %v4292
    %4342 = vmatprep.subr.bf16.mxu0 0
    %4343 = vmatpush2.bf16.msra.mxu0 %v4291
    %4344 = vmatprep.subr.bf16.mxu0 0
    %4345 = vmatpush2.bf16.msra.mxu0 %v4290
    %4346 = vmatprep.mubr.bf16.mxu0 %v4184
    %4347 = vmatmul.mubr.bf16.gmra.mxu0 %v4183
    %v4348 = vpop.f32.mrf.mxu0
    %v4349 = vadd.f32 0.0, %v4348
    %v4350 = vpop.f32.mrf.mxu0
    %v4351 = vpop.f32.mrf.mxu0
    %v4352 = vpop.f32.mrf.mxu0
    %4353 = vdwg.mxu0
    %v4354 = vadd.f32 %v4157, %v4349
    %s4355 = scalar_lea.vmem [#allocation2], 64
    %v4356 = vld [vmem:[%s4355] ss:$8 sm:$0xf]
    %v4358 = vlaneseq
    %v4359 = vshrl.u32 %v4358, 7
    %v4360 = vsub.s32 0, %v4359
    %v4361 = vrot.slane %v4356, %v4360
    %v4362 = vlaneseq
    %v4363 = vshrl.u32 %v4362, 7
    %v4364 = vsub.s32 1, %v4363
    %v4365 = vrot.slane %v4356, %v4364
    %v4368 = vlaneseq
    %v4369 = vshrl.u32 %v4368, 7
    %v4370 = vsub.s32 2, %v4369
    %v4371 = vrot.slane %v4356, %v4370
    %v4372 = vlaneseq
    %v4373 = vshrl.u32 %v4372, 7
    %v4374 = vsub.s32 3, %v4373
    %v4375 = vrot.slane %v4356, %v4374
    %v4378 = vsel %vm1228, %v4361, %v4371
    %v4379 = vsel %vm1228, %v4365, %v4375
    %v4380 = vpack.c.bf16 %v4378, %v4378
    %v4381 = vpack.c.bf16 %v4379, %v4379
    %s4382 = scalar_lea.vmem %s6, 2048
    %v4383 = vld [vmem:[%s4382] sm:$0xf]
    %v4384 = vld [vmem:[%s4382 + $0x4] sm:$0xf]
    %v4385 = vld [vmem:[%s4382 + $0x8] sm:$0xf]
    %v4386 = vld [vmem:[%s4382 + $0xc] sm:$0xf]
    %v4387 = vld [vmem:[%s4382 + $0x10] sm:$0xf]
    %v4388 = vld [vmem:[%s4382 + $0x14] sm:$0xf]
    %v4389 = vld [vmem:[%s4382 + $0x18] sm:$0xf]
    %v4390 = vld [vmem:[%s4382 + $0x1c] sm:$0xf]
    %v4391 = vld [vmem:[%s4382 + $0x20] sm:$0xf]
    %v4392 = vld [vmem:[%s4382 + $0x24] sm:$0xf]
    %v4393 = vld [vmem:[%s4382 + $0x28] sm:$0xf]
    %v4394 = vld [vmem:[%s4382 + $0x2c] sm:$0xf]
    %v4395 = vld [vmem:[%s4382 + $0x30] sm:$0xf]
    %v4396 = vld [vmem:[%s4382 + $0x34] sm:$0xf]
    %v4397 = vld [vmem:[%s4382 + $0x38] sm:$0xf]
    %v4398 = vld [vmem:[%s4382 + $0x3c] sm:$0xf]
    %v4399 = vld [vmem:[%s4382 + $0x40] sm:$0xf]
    %v4400 = vld [vmem:[%s4382 + $0x44] sm:$0xf]
    %v4401 = vld [vmem:[%s4382 + $0x48] sm:$0xf]
    %v4402 = vld [vmem:[%s4382 + $0x4c] sm:$0xf]
    %v4403 = vld [vmem:[%s4382 + $0x50] sm:$0xf]
    %v4404 = vld [vmem:[%s4382 + $0x54] sm:$0xf]
    %v4405 = vld [vmem:[%s4382 + $0x58] sm:$0xf]
    %v4406 = vld [vmem:[%s4382 + $0x5c] sm:$0xf]
    %v4407 = vld [vmem:[%s4382 + $0x60] sm:$0xf]
    %v4408 = vld [vmem:[%s4382 + $0x64] sm:$0xf]
    %v4409 = vld [vmem:[%s4382 + $0x68] sm:$0xf]
    %v4410 = vld [vmem:[%s4382 + $0x6c] sm:$0xf]
    %v4411 = vld [vmem:[%s4382 + $0x70] sm:$0xf]
    %v4412 = vld [vmem:[%s4382 + $0x74] sm:$0xf]
    %v4413 = vld [vmem:[%s4382 + $0x78] sm:$0xf]
    %v4414 = vld [vmem:[%s4382 + $0x7c] sm:$0xf]
    %v4447 = vunpack.c.l.b16 %v4383
    %v4448 = vunpack.c.l.b16 %v4384
    %v4449 = vunpack.c.l.b16 %v4385
    %v4450 = vunpack.c.l.b16 %v4386
    %v4451 = vunpack.c.l.b16 %v4387
    %v4452 = vunpack.c.l.b16 %v4388
    %v4453 = vunpack.c.l.b16 %v4389
    %v4454 = vunpack.c.l.b16 %v4390
    %v4455 = vunpack.c.l.b16 %v4391
    %v4456 = vunpack.c.l.b16 %v4392
    %v4457 = vunpack.c.l.b16 %v4393
    %v4458 = vunpack.c.l.b16 %v4394
    %v4459 = vunpack.c.l.b16 %v4395
    %v4460 = vunpack.c.l.b16 %v4396
    %v4461 = vunpack.c.l.b16 %v4397
    %v4462 = vunpack.c.l.b16 %v4398
    %v4463 = vunpack.c.l.b16 %v4399
    %v4464 = vunpack.c.l.b16 %v4400
    %v4465 = vunpack.c.l.b16 %v4401
    %v4466 = vunpack.c.l.b16 %v4402
    %v4467 = vunpack.c.l.b16 %v4403
    %v4468 = vunpack.c.l.b16 %v4404
    %v4469 = vunpack.c.l.b16 %v4405
    %v4470 = vunpack.c.l.b16 %v4406
    %v4471 = vunpack.c.l.b16 %v4407
    %v4472 = vunpack.c.l.b16 %v4408
    %v4473 = vunpack.c.l.b16 %v4409
    %v4474 = vunpack.c.l.b16 %v4410
    %v4475 = vunpack.c.l.b16 %v4411
    %v4476 = vunpack.c.l.b16 %v4412
    %v4477 = vunpack.c.l.b16 %v4413
    %v4478 = vunpack.c.l.b16 %v4414
    %v4479 = vpack.c.b16 %v4448, %v4447
    %v4480 = vpack.c.b16 %v4450, %v4449
    %v4481 = vpack.c.b16 %v4452, %v4451
    %v4482 = vpack.c.b16 %v4454, %v4453
    %v4483 = vpack.c.b16 %v4456, %v4455
    %v4484 = vpack.c.b16 %v4458, %v4457
    %v4485 = vpack.c.b16 %v4460, %v4459
    %v4486 = vpack.c.b16 %v4462, %v4461
    %v4487 = vpack.c.b16 %v4464, %v4463
    %v4488 = vpack.c.b16 %v4466, %v4465
    %v4489 = vpack.c.b16 %v4468, %v4467
    %v4490 = vpack.c.b16 %v4470, %v4469
    %v4491 = vpack.c.b16 %v4472, %v4471
    %v4492 = vpack.c.b16 %v4474, %v4473
    %v4493 = vpack.c.b16 %v4476, %v4475
    %v4494 = vpack.c.b16 %v4478, %v4477
    %4511 = vmatprep.subr.bf16.mxu0 0
    %4512 = vmatpush1.bf16.msra.mxu0 %v4486
    %4513 = vmatprep.subr.bf16.mxu0 0
    %4514 = vmatpush1.bf16.msra.mxu0 %v4485
    %4515 = vmatprep.subr.bf16.mxu0 0
    %4516 = vmatpush1.bf16.msra.mxu0 %v4484
    %4517 = vmatprep.subr.bf16.mxu0 0
    %4518 = vmatpush1.bf16.msra.mxu0 %v4483
    %4519 = vmatprep.subr.bf16.mxu0 0
    %4520 = vmatpush1.bf16.msra.mxu0 %v4482
    %4521 = vmatprep.subr.bf16.mxu0 0
    %4522 = vmatpush1.bf16.msra.mxu0 %v4481
    %4523 = vmatprep.subr.bf16.mxu0 0
    %4524 = vmatpush1.bf16.msra.mxu0 %v4480
    %4525 = vmatprep.subr.bf16.mxu0 0
    %4526 = vmatpush1.bf16.msra.mxu0 %v4479
    %4527 = vmatprep.subr.bf16.mxu0 0
    %4528 = vmatpush2.bf16.msra.mxu0 %v4494
    %4529 = vmatprep.subr.bf16.mxu0 0
    %4530 = vmatpush2.bf16.msra.mxu0 %v4493
    %4531 = vmatprep.subr.bf16.mxu0 0
    %4532 = vmatpush2.bf16.msra.mxu0 %v4492
    %4533 = vmatprep.subr.bf16.mxu0 0
    %4534 = vmatpush2.bf16.msra.mxu0 %v4491
    %4535 = vmatprep.subr.bf16.mxu0 0
    %4536 = vmatpush2.bf16.msra.mxu0 %v4490
    %4537 = vmatprep.subr.bf16.mxu0 0
    %4538 = vmatpush2.bf16.msra.mxu0 %v4489
    %4539 = vmatprep.subr.bf16.mxu0 0
    %4540 = vmatpush2.bf16.msra.mxu0 %v4488
    %4541 = vmatprep.subr.bf16.mxu0 0
    %4542 = vmatpush2.bf16.msra.mxu0 %v4487
    %4543 = vmatprep.mubr.bf16.mxu0 %v4381
    %4544 = vmatmul.mubr.bf16.gmra.mxu0 %v4380
    %v4545 = vpop.f32.mrf.mxu0
    %v4546 = vadd.f32 0.0, %v4545
    %v4547 = vpop.f32.mrf.mxu0
    %v4548 = vpop.f32.mrf.mxu0
    %v4549 = vpop.f32.mrf.mxu0
    %4550 = vdwg.mxu0
    %v4551 = vadd.f32 %v4354, %v4546
    %s4552 = scalar_lea.vmem [#allocation2], 65
    %v4553 = vld [vmem:[%s4552] ss:$8 sm:$0xf]
    %v4555 = vlaneseq
    %v4556 = vshrl.u32 %v4555, 7
    %v4557 = vsub.s32 0, %v4556
    %v4558 = vrot.slane %v4553, %v4557
    %v4559 = vlaneseq
    %v4560 = vshrl.u32 %v4559, 7
    %v4561 = vsub.s32 1, %v4560
    %v4562 = vrot.slane %v4553, %v4561
    %v4565 = vlaneseq
    %v4566 = vshrl.u32 %v4565, 7
    %v4567 = vsub.s32 2, %v4566
    %v4568 = vrot.slane %v4553, %v4567
    %v4569 = vlaneseq
    %v4570 = vshrl.u32 %v4569, 7
    %v4571 = vsub.s32 3, %v4570
    %v4572 = vrot.slane %v4553, %v4571
    %v4575 = vsel %vm1228, %v4558, %v4568
    %v4576 = vsel %vm1228, %v4562, %v4572
    %v4577 = vpack.c.bf16 %v4575, %v4575
    %v4578 = vpack.c.bf16 %v4576, %v4576
    %s4579 = scalar_lea.vmem %s6, 2176
    %v4580 = vld [vmem:[%s4579] sm:$0xf]
    %v4581 = vld [vmem:[%s4579 + $0x4] sm:$0xf]
    %v4582 = vld [vmem:[%s4579 + $0x8] sm:$0xf]
    %v4583 = vld [vmem:[%s4579 + $0xc] sm:$0xf]
    %v4584 = vld [vmem:[%s4579 + $0x10] sm:$0xf]
    %v4585 = vld [vmem:[%s4579 + $0x14] sm:$0xf]
    %v4586 = vld [vmem:[%s4579 + $0x18] sm:$0xf]
    %v4587 = vld [vmem:[%s4579 + $0x1c] sm:$0xf]
    %v4588 = vld [vmem:[%s4579 + $0x20] sm:$0xf]
    %v4589 = vld [vmem:[%s4579 + $0x24] sm:$0xf]
    %v4590 = vld [vmem:[%s4579 + $0x28] sm:$0xf]
    %v4591 = vld [vmem:[%s4579 + $0x2c] sm:$0xf]
    %v4592 = vld [vmem:[%s4579 + $0x30] sm:$0xf]
    %v4593 = vld [vmem:[%s4579 + $0x34] sm:$0xf]
    %v4594 = vld [vmem:[%s4579 + $0x38] sm:$0xf]
    %v4595 = vld [vmem:[%s4579 + $0x3c] sm:$0xf]
    %v4596 = vld [vmem:[%s4579 + $0x40] sm:$0xf]
    %v4597 = vld [vmem:[%s4579 + $0x44] sm:$0xf]
    %v4598 = vld [vmem:[%s4579 + $0x48] sm:$0xf]
    %v4599 = vld [vmem:[%s4579 + $0x4c] sm:$0xf]
    %v4600 = vld [vmem:[%s4579 + $0x50] sm:$0xf]
    %v4601 = vld [vmem:[%s4579 + $0x54] sm:$0xf]
    %v4602 = vld [vmem:[%s4579 + $0x58] sm:$0xf]
    %v4603 = vld [vmem:[%s4579 + $0x5c] sm:$0xf]
    %v4604 = vld [vmem:[%s4579 + $0x60] sm:$0xf]
    %v4605 = vld [vmem:[%s4579 + $0x64] sm:$0xf]
    %v4606 = vld [vmem:[%s4579 + $0x68] sm:$0xf]
    %v4607 = vld [vmem:[%s4579 + $0x6c] sm:$0xf]
    %v4608 = vld [vmem:[%s4579 + $0x70] sm:$0xf]
    %v4609 = vld [vmem:[%s4579 + $0x74] sm:$0xf]
    %v4610 = vld [vmem:[%s4579 + $0x78] sm:$0xf]
    %v4611 = vld [vmem:[%s4579 + $0x7c] sm:$0xf]
    %v4644 = vunpack.c.l.b16 %v4580
    %v4645 = vunpack.c.l.b16 %v4581
    %v4646 = vunpack.c.l.b16 %v4582
    %v4647 = vunpack.c.l.b16 %v4583
    %v4648 = vunpack.c.l.b16 %v4584
    %v4649 = vunpack.c.l.b16 %v4585
    %v4650 = vunpack.c.l.b16 %v4586
    %v4651 = vunpack.c.l.b16 %v4587
    %v4652 = vunpack.c.l.b16 %v4588
    %v4653 = vunpack.c.l.b16 %v4589
    %v4654 = vunpack.c.l.b16 %v4590
    %v4655 = vunpack.c.l.b16 %v4591
    %v4656 = vunpack.c.l.b16 %v4592
    %v4657 = vunpack.c.l.b16 %v4593
    %v4658 = vunpack.c.l.b16 %v4594
    %v4659 = vunpack.c.l.b16 %v4595
    %v4660 = vunpack.c.l.b16 %v4596
    %v4661 = vunpack.c.l.b16 %v4597
    %v4662 = vunpack.c.l.b16 %v4598
    %v4663 = vunpack.c.l.b16 %v4599
    %v4664 = vunpack.c.l.b16 %v4600
    %v4665 = vunpack.c.l.b16 %v4601
    %v4666 = vunpack.c.l.b16 %v4602
    %v4667 = vunpack.c.l.b16 %v4603
    %v4668 = vunpack.c.l.b16 %v4604
    %v4669 = vunpack.c.l.b16 %v4605
    %v4670 = vunpack.c.l.b16 %v4606
    %v4671 = vunpack.c.l.b16 %v4607
    %v4672 = vunpack.c.l.b16 %v4608
    %v4673 = vunpack.c.l.b16 %v4609
    %v4674 = vunpack.c.l.b16 %v4610
    %v4675 = vunpack.c.l.b16 %v4611
    %v4676 = vpack.c.b16 %v4645, %v4644
    %v4677 = vpack.c.b16 %v4647, %v4646
    %v4678 = vpack.c.b16 %v4649, %v4648
    %v4679 = vpack.c.b16 %v4651, %v4650
    %v4680 = vpack.c.b16 %v4653, %v4652
    %v4681 = vpack.c.b16 %v4655, %v4654
    %v4682 = vpack.c.b16 %v4657, %v4656
    %v4683 = vpack.c.b16 %v4659, %v4658
    %v4684 = vpack.c.b16 %v4661, %v4660
    %v4685 = vpack.c.b16 %v4663, %v4662
    %v4686 = vpack.c.b16 %v4665, %v4664
    %v4687 = vpack.c.b16 %v4667, %v4666
    %v4688 = vpack.c.b16 %v4669, %v4668
    %v4689 = vpack.c.b16 %v4671, %v4670
    %v4690 = vpack.c.b16 %v4673, %v4672
    %v4691 = vpack.c.b16 %v4675, %v4674
    %4708 = vmatprep.subr.bf16.mxu0 0
    %4709 = vmatpush1.bf16.msra.mxu0 %v4683
    %4710 = vmatprep.subr.bf16.mxu0 0
    %4711 = vmatpush1.bf16.msra.mxu0 %v4682
    %4712 = vmatprep.subr.bf16.mxu0 0
    %4713 = vmatpush1.bf16.msra.mxu0 %v4681
    %4714 = vmatprep.subr.bf16.mxu0 0
    %4715 = vmatpush1.bf16.msra.mxu0 %v4680
    %4716 = vmatprep.subr.bf16.mxu0 0
    %4717 = vmatpush1.bf16.msra.mxu0 %v4679
    %4718 = vmatprep.subr.bf16.mxu0 0
    %4719 = vmatpush1.bf16.msra.mxu0 %v4678
    %4720 = vmatprep.subr.bf16.mxu0 0
    %4721 = vmatpush1.bf16.msra.mxu0 %v4677
    %4722 = vmatprep.subr.bf16.mxu0 0
    %4723 = vmatpush1.bf16.msra.mxu0 %v4676
    %4724 = vmatprep.subr.bf16.mxu0 0
    %4725 = vmatpush2.bf16.msra.mxu0 %v4691
    %4726 = vmatprep.subr.bf16.mxu0 0
    %4727 = vmatpush2.bf16.msra.mxu0 %v4690
    %4728 = vmatprep.subr.bf16.mxu0 0
    %4729 = vmatpush2.bf16.msra.mxu0 %v4689
    %4730 = vmatprep.subr.bf16.mxu0 0
    %4731 = vmatpush2.bf16.msra.mxu0 %v4688
    %4732 = vmatprep.subr.bf16.mxu0 0
    %4733 = vmatpush2.bf16.msra.mxu0 %v4687
    %4734 = vmatprep.subr.bf16.mxu0 0
    %4735 = vmatpush2.bf16.msra.mxu0 %v4686
    %4736 = vmatprep.subr.bf16.mxu0 0
    %4737 = vmatpush2.bf16.msra.mxu0 %v4685
    %4738 = vmatprep.subr.bf16.mxu0 0
    %4739 = vmatpush2.bf16.msra.mxu0 %v4684
    %4740 = vmatprep.mubr.bf16.mxu0 %v4578
    %4741 = vmatmul.mubr.bf16.gmra.mxu0 %v4577
    %v4742 = vpop.f32.mrf.mxu0
    %v4743 = vadd.f32 0.0, %v4742
    %v4744 = vpop.f32.mrf.mxu0
    %v4745 = vpop.f32.mrf.mxu0
    %v4746 = vpop.f32.mrf.mxu0
    %4747 = vdwg.mxu0
    %v4748 = vadd.f32 %v4551, %v4743
    %s4749 = scalar_lea.vmem [#allocation2], 66
    %v4750 = vld [vmem:[%s4749] ss:$8 sm:$0xf]
    %v4752 = vlaneseq
    %v4753 = vshrl.u32 %v4752, 7
    %v4754 = vsub.s32 0, %v4753
    %v4755 = vrot.slane %v4750, %v4754
    %v4756 = vlaneseq
    %v4757 = vshrl.u32 %v4756, 7
    %v4758 = vsub.s32 1, %v4757
    %v4759 = vrot.slane %v4750, %v4758
    %v4762 = vlaneseq
    %v4763 = vshrl.u32 %v4762, 7
    %v4764 = vsub.s32 2, %v4763
    %v4765 = vrot.slane %v4750, %v4764
    %v4766 = vlaneseq
    %v4767 = vshrl.u32 %v4766, 7
    %v4768 = vsub.s32 3, %v4767
    %v4769 = vrot.slane %v4750, %v4768
    %v4772 = vsel %vm1228, %v4755, %v4765
    %v4773 = vsel %vm1228, %v4759, %v4769
    %v4774 = vpack.c.bf16 %v4772, %v4772
    %v4775 = vpack.c.bf16 %v4773, %v4773
    %s4776 = scalar_lea.vmem %s6, 2304
    %v4777 = vld [vmem:[%s4776] sm:$0xf]
    %v4778 = vld [vmem:[%s4776 + $0x4] sm:$0xf]
    %v4779 = vld [vmem:[%s4776 + $0x8] sm:$0xf]
    %v4780 = vld [vmem:[%s4776 + $0xc] sm:$0xf]
    %v4781 = vld [vmem:[%s4776 + $0x10] sm:$0xf]
    %v4782 = vld [vmem:[%s4776 + $0x14] sm:$0xf]
    %v4783 = vld [vmem:[%s4776 + $0x18] sm:$0xf]
    %v4784 = vld [vmem:[%s4776 + $0x1c] sm:$0xf]
    %v4785 = vld [vmem:[%s4776 + $0x20] sm:$0xf]
    %v4786 = vld [vmem:[%s4776 + $0x24] sm:$0xf]
    %v4787 = vld [vmem:[%s4776 + $0x28] sm:$0xf]
    %v4788 = vld [vmem:[%s4776 + $0x2c] sm:$0xf]
    %v4789 = vld [vmem:[%s4776 + $0x30] sm:$0xf]
    %v4790 = vld [vmem:[%s4776 + $0x34] sm:$0xf]
    %v4791 = vld [vmem:[%s4776 + $0x38] sm:$0xf]
    %v4792 = vld [vmem:[%s4776 + $0x3c] sm:$0xf]
    %v4793 = vld [vmem:[%s4776 + $0x40] sm:$0xf]
    %v4794 = vld [vmem:[%s4776 + $0x44] sm:$0xf]
    %v4795 = vld [vmem:[%s4776 + $0x48] sm:$0xf]
    %v4796 = vld [vmem:[%s4776 + $0x4c] sm:$0xf]
    %v4797 = vld [vmem:[%s4776 + $0x50] sm:$0xf]
    %v4798 = vld [vmem:[%s4776 + $0x54] sm:$0xf]
    %v4799 = vld [vmem:[%s4776 + $0x58] sm:$0xf]
    %v4800 = vld [vmem:[%s4776 + $0x5c] sm:$0xf]
    %v4801 = vld [vmem:[%s4776 + $0x60] sm:$0xf]
    %v4802 = vld [vmem:[%s4776 + $0x64] sm:$0xf]
    %v4803 = vld [vmem:[%s4776 + $0x68] sm:$0xf]
    %v4804 = vld [vmem:[%s4776 + $0x6c] sm:$0xf]
    %v4805 = vld [vmem:[%s4776 + $0x70] sm:$0xf]
    %v4806 = vld [vmem:[%s4776 + $0x74] sm:$0xf]
    %v4807 = vld [vmem:[%s4776 + $0x78] sm:$0xf]
    %v4808 = vld [vmem:[%s4776 + $0x7c] sm:$0xf]
    %v4841 = vunpack.c.l.b16 %v4777
    %v4842 = vunpack.c.l.b16 %v4778
    %v4843 = vunpack.c.l.b16 %v4779
    %v4844 = vunpack.c.l.b16 %v4780
    %v4845 = vunpack.c.l.b16 %v4781
    %v4846 = vunpack.c.l.b16 %v4782
    %v4847 = vunpack.c.l.b16 %v4783
    %v4848 = vunpack.c.l.b16 %v4784
    %v4849 = vunpack.c.l.b16 %v4785
    %v4850 = vunpack.c.l.b16 %v4786
    %v4851 = vunpack.c.l.b16 %v4787
    %v4852 = vunpack.c.l.b16 %v4788
    %v4853 = vunpack.c.l.b16 %v4789
    %v4854 = vunpack.c.l.b16 %v4790
    %v4855 = vunpack.c.l.b16 %v4791
    %v4856 = vunpack.c.l.b16 %v4792
    %v4857 = vunpack.c.l.b16 %v4793
    %v4858 = vunpack.c.l.b16 %v4794
    %v4859 = vunpack.c.l.b16 %v4795
    %v4860 = vunpack.c.l.b16 %v4796
    %v4861 = vunpack.c.l.b16 %v4797
    %v4862 = vunpack.c.l.b16 %v4798
    %v4863 = vunpack.c.l.b16 %v4799
    %v4864 = vunpack.c.l.b16 %v4800
    %v4865 = vunpack.c.l.b16 %v4801
    %v4866 = vunpack.c.l.b16 %v4802
    %v4867 = vunpack.c.l.b16 %v4803
    %v4868 = vunpack.c.l.b16 %v4804
    %v4869 = vunpack.c.l.b16 %v4805
    %v4870 = vunpack.c.l.b16 %v4806
    %v4871 = vunpack.c.l.b16 %v4807
    %v4872 = vunpack.c.l.b16 %v4808
    %v4873 = vpack.c.b16 %v4842, %v4841
    %v4874 = vpack.c.b16 %v4844, %v4843
    %v4875 = vpack.c.b16 %v4846, %v4845
    %v4876 = vpack.c.b16 %v4848, %v4847
    %v4877 = vpack.c.b16 %v4850, %v4849
    %v4878 = vpack.c.b16 %v4852, %v4851
    %v4879 = vpack.c.b16 %v4854, %v4853
    %v4880 = vpack.c.b16 %v4856, %v4855
    %v4881 = vpack.c.b16 %v4858, %v4857
    %v4882 = vpack.c.b16 %v4860, %v4859
    %v4883 = vpack.c.b16 %v4862, %v4861
    %v4884 = vpack.c.b16 %v4864, %v4863
    %v4885 = vpack.c.b16 %v4866, %v4865
    %v4886 = vpack.c.b16 %v4868, %v4867
    %v4887 = vpack.c.b16 %v4870, %v4869
    %v4888 = vpack.c.b16 %v4872, %v4871
    %4905 = vmatprep.subr.bf16.mxu0 0
    %4906 = vmatpush1.bf16.msra.mxu0 %v4880
    %4907 = vmatprep.subr.bf16.mxu0 0
    %4908 = vmatpush1.bf16.msra.mxu0 %v4879
    %4909 = vmatprep.subr.bf16.mxu0 0
    %4910 = vmatpush1.bf16.msra.mxu0 %v4878
    %4911 = vmatprep.subr.bf16.mxu0 0
    %4912 = vmatpush1.bf16.msra.mxu0 %v4877
    %4913 = vmatprep.subr.bf16.mxu0 0
    %4914 = vmatpush1.bf16.msra.mxu0 %v4876
    %4915 = vmatprep.subr.bf16.mxu0 0
    %4916 = vmatpush1.bf16.msra.mxu0 %v4875
    %4917 = vmatprep.subr.bf16.mxu0 0
    %4918 = vmatpush1.bf16.msra.mxu0 %v4874
    %4919 = vmatprep.subr.bf16.mxu0 0
    %4920 = vmatpush1.bf16.msra.mxu0 %v4873
    %4921 = vmatprep.subr.bf16.mxu0 0
    %4922 = vmatpush2.bf16.msra.mxu0 %v4888
    %4923 = vmatprep.subr.bf16.mxu0 0
    %4924 = vmatpush2.bf16.msra.mxu0 %v4887
    %4925 = vmatprep.subr.bf16.mxu0 0
    %4926 = vmatpush2.bf16.msra.mxu0 %v4886
    %4927 = vmatprep.subr.bf16.mxu0 0
    %4928 = vmatpush2.bf16.msra.mxu0 %v4885
    %4929 = vmatprep.subr.bf16.mxu0 0
    %4930 = vmatpush2.bf16.msra.mxu0 %v4884
    %4931 = vmatprep.subr.bf16.mxu0 0
    %4932 = vmatpush2.bf16.msra.mxu0 %v4883
    %4933 = vmatprep.subr.bf16.mxu0 0
    %4934 = vmatpush2.bf16.msra.mxu0 %v4882
    %4935 = vmatprep.subr.bf16.mxu0 0
    %4936 = vmatpush2.bf16.msra.mxu0 %v4881
    %4937 = vmatprep.mubr.bf16.mxu0 %v4775
    %4938 = vmatmul.mubr.bf16.gmra.mxu0 %v4774
    %v4939 = vpop.f32.mrf.mxu0
    %v4940 = vadd.f32 0.0, %v4939
    %v4941 = vpop.f32.mrf.mxu0
    %v4942 = vpop.f32.mrf.mxu0
    %v4943 = vpop.f32.mrf.mxu0
    %4944 = vdwg.mxu0
    %v4945 = vadd.f32 %v4748, %v4940
    %s4946 = scalar_lea.vmem [#allocation2], 67
    %v4947 = vld [vmem:[%s4946] ss:$8 sm:$0xf]
    %v4949 = vlaneseq
    %v4950 = vshrl.u32 %v4949, 7
    %v4951 = vsub.s32 0, %v4950
    %v4952 = vrot.slane %v4947, %v4951
    %v4953 = vlaneseq
    %v4954 = vshrl.u32 %v4953, 7
    %v4955 = vsub.s32 1, %v4954
    %v4956 = vrot.slane %v4947, %v4955
    %v4959 = vlaneseq
    %v4960 = vshrl.u32 %v4959, 7
    %v4961 = vsub.s32 2, %v4960
    %v4962 = vrot.slane %v4947, %v4961
    %v4963 = vlaneseq
    %v4964 = vshrl.u32 %v4963, 7
    %v4965 = vsub.s32 3, %v4964
    %v4966 = vrot.slane %v4947, %v4965
    %v4969 = vsel %vm1228, %v4952, %v4962
    %v4970 = vsel %vm1228, %v4956, %v4966
    %v4971 = vpack.c.bf16 %v4969, %v4969
    %v4972 = vpack.c.bf16 %v4970, %v4970
    %s4973 = scalar_lea.vmem %s6, 2432
    %v4974 = vld [vmem:[%s4973] sm:$0xf]
    %v4975 = vld [vmem:[%s4973 + $0x4] sm:$0xf]
    %v4976 = vld [vmem:[%s4973 + $0x8] sm:$0xf]
    %v4977 = vld [vmem:[%s4973 + $0xc] sm:$0xf]
    %v4978 = vld [vmem:[%s4973 + $0x10] sm:$0xf]
    %v4979 = vld [vmem:[%s4973 + $0x14] sm:$0xf]
    %v4980 = vld [vmem:[%s4973 + $0x18] sm:$0xf]
    %v4981 = vld [vmem:[%s4973 + $0x1c] sm:$0xf]
    %v4982 = vld [vmem:[%s4973 + $0x20] sm:$0xf]
    %v4983 = vld [vmem:[%s4973 + $0x24] sm:$0xf]
    %v4984 = vld [vmem:[%s4973 + $0x28] sm:$0xf]
    %v4985 = vld [vmem:[%s4973 + $0x2c] sm:$0xf]
    %v4986 = vld [vmem:[%s4973 + $0x30] sm:$0xf]
    %v4987 = vld [vmem:[%s4973 + $0x34] sm:$0xf]
    %v4988 = vld [vmem:[%s4973 + $0x38] sm:$0xf]
    %v4989 = vld [vmem:[%s4973 + $0x3c] sm:$0xf]
    %v4990 = vld [vmem:[%s4973 + $0x40] sm:$0xf]
    %v4991 = vld [vmem:[%s4973 + $0x44] sm:$0xf]
    %v4992 = vld [vmem:[%s4973 + $0x48] sm:$0xf]
    %v4993 = vld [vmem:[%s4973 + $0x4c] sm:$0xf]
    %v4994 = vld [vmem:[%s4973 + $0x50] sm:$0xf]
    %v4995 = vld [vmem:[%s4973 + $0x54] sm:$0xf]
    %v4996 = vld [vmem:[%s4973 + $0x58] sm:$0xf]
    %v4997 = vld [vmem:[%s4973 + $0x5c] sm:$0xf]
    %v4998 = vld [vmem:[%s4973 + $0x60] sm:$0xf]
    %v4999 = vld [vmem:[%s4973 + $0x64] sm:$0xf]
    %v5000 = vld [vmem:[%s4973 + $0x68] sm:$0xf]
    %v5001 = vld [vmem:[%s4973 + $0x6c] sm:$0xf]
    %v5002 = vld [vmem:[%s4973 + $0x70] sm:$0xf]
    %v5003 = vld [vmem:[%s4973 + $0x74] sm:$0xf]
    %v5004 = vld [vmem:[%s4973 + $0x78] sm:$0xf]
    %v5005 = vld [vmem:[%s4973 + $0x7c] sm:$0xf]
    %v5038 = vunpack.c.l.b16 %v4974
    %v5039 = vunpack.c.l.b16 %v4975
    %v5040 = vunpack.c.l.b16 %v4976
    %v5041 = vunpack.c.l.b16 %v4977
    %v5042 = vunpack.c.l.b16 %v4978
    %v5043 = vunpack.c.l.b16 %v4979
    %v5044 = vunpack.c.l.b16 %v4980
    %v5045 = vunpack.c.l.b16 %v4981
    %v5046 = vunpack.c.l.b16 %v4982
    %v5047 = vunpack.c.l.b16 %v4983
    %v5048 = vunpack.c.l.b16 %v4984
    %v5049 = vunpack.c.l.b16 %v4985
    %v5050 = vunpack.c.l.b16 %v4986
    %v5051 = vunpack.c.l.b16 %v4987
    %v5052 = vunpack.c.l.b16 %v4988
    %v5053 = vunpack.c.l.b16 %v4989
    %v5054 = vunpack.c.l.b16 %v4990
    %v5055 = vunpack.c.l.b16 %v4991
    %v5056 = vunpack.c.l.b16 %v4992
    %v5057 = vunpack.c.l.b16 %v4993
    %v5058 = vunpack.c.l.b16 %v4994
    %v5059 = vunpack.c.l.b16 %v4995
    %v5060 = vunpack.c.l.b16 %v4996
    %v5061 = vunpack.c.l.b16 %v4997
    %v5062 = vunpack.c.l.b16 %v4998
    %v5063 = vunpack.c.l.b16 %v4999
    %v5064 = vunpack.c.l.b16 %v5000
    %v5065 = vunpack.c.l.b16 %v5001
    %v5066 = vunpack.c.l.b16 %v5002
    %v5067 = vunpack.c.l.b16 %v5003
    %v5068 = vunpack.c.l.b16 %v5004
    %v5069 = vunpack.c.l.b16 %v5005
    %v5070 = vpack.c.b16 %v5039, %v5038
    %v5071 = vpack.c.b16 %v5041, %v5040
    %v5072 = vpack.c.b16 %v5043, %v5042
    %v5073 = vpack.c.b16 %v5045, %v5044
    %v5074 = vpack.c.b16 %v5047, %v5046
    %v5075 = vpack.c.b16 %v5049, %v5048
    %v5076 = vpack.c.b16 %v5051, %v5050
    %v5077 = vpack.c.b16 %v5053, %v5052
    %v5078 = vpack.c.b16 %v5055, %v5054
    %v5079 = vpack.c.b16 %v5057, %v5056
    %v5080 = vpack.c.b16 %v5059, %v5058
    %v5081 = vpack.c.b16 %v5061, %v5060
    %v5082 = vpack.c.b16 %v5063, %v5062
    %v5083 = vpack.c.b16 %v5065, %v5064
    %v5084 = vpack.c.b16 %v5067, %v5066
    %v5085 = vpack.c.b16 %v5069, %v5068
    %5102 = vmatprep.subr.bf16.mxu0 0
    %5103 = vmatpush1.bf16.msra.mxu0 %v5077
    %5104 = vmatprep.subr.bf16.mxu0 0
    %5105 = vmatpush1.bf16.msra.mxu0 %v5076
    %5106 = vmatprep.subr.bf16.mxu0 0
    %5107 = vmatpush1.bf16.msra.mxu0 %v5075
    %5108 = vmatprep.subr.bf16.mxu0 0
    %5109 = vmatpush1.bf16.msra.mxu0 %v5074
    %5110 = vmatprep.subr.bf16.mxu0 0
    %5111 = vmatpush1.bf16.msra.mxu0 %v5073
    %5112 = vmatprep.subr.bf16.mxu0 0
    %5113 = vmatpush1.bf16.msra.mxu0 %v5072
    %5114 = vmatprep.subr.bf16.mxu0 0
    %5115 = vmatpush1.bf16.msra.mxu0 %v5071
    %5116 = vmatprep.subr.bf16.mxu0 0
    %5117 = vmatpush1.bf16.msra.mxu0 %v5070
    %5118 = vmatprep.subr.bf16.mxu0 0
    %5119 = vmatpush2.bf16.msra.mxu0 %v5085
    %5120 = vmatprep.subr.bf16.mxu0 0
    %5121 = vmatpush2.bf16.msra.mxu0 %v5084
    %5122 = vmatprep.subr.bf16.mxu0 0
    %5123 = vmatpush2.bf16.msra.mxu0 %v5083
    %5124 = vmatprep.subr.bf16.mxu0 0
    %5125 = vmatpush2.bf16.msra.mxu0 %v5082
    %5126 = vmatprep.subr.bf16.mxu0 0
    %5127 = vmatpush2.bf16.msra.mxu0 %v5081
    %5128 = vmatprep.subr.bf16.mxu0 0
    %5129 = vmatpush2.bf16.msra.mxu0 %v5080
    %5130 = vmatprep.subr.bf16.mxu0 0
    %5131 = vmatpush2.bf16.msra.mxu0 %v5079
    %5132 = vmatprep.subr.bf16.mxu0 0
    %5133 = vmatpush2.bf16.msra.mxu0 %v5078
    %5134 = vmatprep.mubr.bf16.mxu0 %v4972
    %5135 = vmatmul.mubr.bf16.gmra.mxu0 %v4971
    %v5136 = vpop.f32.mrf.mxu0
    %v5137 = vadd.f32 0.0, %v5136
    %v5138 = vpop.f32.mrf.mxu0
    %v5139 = vpop.f32.mrf.mxu0
    %v5140 = vpop.f32.mrf.mxu0
    %5141 = vdwg.mxu0
    %v5142 = vadd.f32 %v4945, %v5137
    %s5143 = scalar_lea.vmem [#allocation2], 68
    %v5144 = vld [vmem:[%s5143] ss:$8 sm:$0xf]
    %v5146 = vlaneseq
    %v5147 = vshrl.u32 %v5146, 7
    %v5148 = vsub.s32 0, %v5147
    %v5149 = vrot.slane %v5144, %v5148
    %v5150 = vlaneseq
    %v5151 = vshrl.u32 %v5150, 7
    %v5152 = vsub.s32 1, %v5151
    %v5153 = vrot.slane %v5144, %v5152
    %v5156 = vlaneseq
    %v5157 = vshrl.u32 %v5156, 7
    %v5158 = vsub.s32 2, %v5157
    %v5159 = vrot.slane %v5144, %v5158
    %v5160 = vlaneseq
    %v5161 = vshrl.u32 %v5160, 7
    %v5162 = vsub.s32 3, %v5161
    %v5163 = vrot.slane %v5144, %v5162
    %v5166 = vsel %vm1228, %v5149, %v5159
    %v5167 = vsel %vm1228, %v5153, %v5163
    %v5168 = vpack.c.bf16 %v5166, %v5166
    %v5169 = vpack.c.bf16 %v5167, %v5167
    %s5170 = scalar_lea.vmem %s6, 2560
    %v5171 = vld [vmem:[%s5170] sm:$0xf]
    %v5172 = vld [vmem:[%s5170 + $0x4] sm:$0xf]
    %v5173 = vld [vmem:[%s5170 + $0x8] sm:$0xf]
    %v5174 = vld [vmem:[%s5170 + $0xc] sm:$0xf]
    %v5175 = vld [vmem:[%s5170 + $0x10] sm:$0xf]
    %v5176 = vld [vmem:[%s5170 + $0x14] sm:$0xf]
    %v5177 = vld [vmem:[%s5170 + $0x18] sm:$0xf]
    %v5178 = vld [vmem:[%s5170 + $0x1c] sm:$0xf]
    %v5179 = vld [vmem:[%s5170 + $0x20] sm:$0xf]
    %v5180 = vld [vmem:[%s5170 + $0x24] sm:$0xf]
    %v5181 = vld [vmem:[%s5170 + $0x28] sm:$0xf]
    %v5182 = vld [vmem:[%s5170 + $0x2c] sm:$0xf]
    %v5183 = vld [vmem:[%s5170 + $0x30] sm:$0xf]
    %v5184 = vld [vmem:[%s5170 + $0x34] sm:$0xf]
    %v5185 = vld [vmem:[%s5170 + $0x38] sm:$0xf]
    %v5186 = vld [vmem:[%s5170 + $0x3c] sm:$0xf]
    %v5187 = vld [vmem:[%s5170 + $0x40] sm:$0xf]
    %v5188 = vld [vmem:[%s5170 + $0x44] sm:$0xf]
    %v5189 = vld [vmem:[%s5170 + $0x48] sm:$0xf]
    %v5190 = vld [vmem:[%s5170 + $0x4c] sm:$0xf]
    %v5191 = vld [vmem:[%s5170 + $0x50] sm:$0xf]
    %v5192 = vld [vmem:[%s5170 + $0x54] sm:$0xf]
    %v5193 = vld [vmem:[%s5170 + $0x58] sm:$0xf]
    %v5194 = vld [vmem:[%s5170 + $0x5c] sm:$0xf]
    %v5195 = vld [vmem:[%s5170 + $0x60] sm:$0xf]
    %v5196 = vld [vmem:[%s5170 + $0x64] sm:$0xf]
    %v5197 = vld [vmem:[%s5170 + $0x68] sm:$0xf]
    %v5198 = vld [vmem:[%s5170 + $0x6c] sm:$0xf]
    %v5199 = vld [vmem:[%s5170 + $0x70] sm:$0xf]
    %v5200 = vld [vmem:[%s5170 + $0x74] sm:$0xf]
    %v5201 = vld [vmem:[%s5170 + $0x78] sm:$0xf]
    %v5202 = vld [vmem:[%s5170 + $0x7c] sm:$0xf]
    %v5235 = vunpack.c.l.b16 %v5171
    %v5236 = vunpack.c.l.b16 %v5172
    %v5237 = vunpack.c.l.b16 %v5173
    %v5238 = vunpack.c.l.b16 %v5174
    %v5239 = vunpack.c.l.b16 %v5175
    %v5240 = vunpack.c.l.b16 %v5176
    %v5241 = vunpack.c.l.b16 %v5177
    %v5242 = vunpack.c.l.b16 %v5178
    %v5243 = vunpack.c.l.b16 %v5179
    %v5244 = vunpack.c.l.b16 %v5180
    %v5245 = vunpack.c.l.b16 %v5181
    %v5246 = vunpack.c.l.b16 %v5182
    %v5247 = vunpack.c.l.b16 %v5183
    %v5248 = vunpack.c.l.b16 %v5184
    %v5249 = vunpack.c.l.b16 %v5185
    %v5250 = vunpack.c.l.b16 %v5186
    %v5251 = vunpack.c.l.b16 %v5187
    %v5252 = vunpack.c.l.b16 %v5188
    %v5253 = vunpack.c.l.b16 %v5189
    %v5254 = vunpack.c.l.b16 %v5190
    %v5255 = vunpack.c.l.b16 %v5191
    %v5256 = vunpack.c.l.b16 %v5192
    %v5257 = vunpack.c.l.b16 %v5193
    %v5258 = vunpack.c.l.b16 %v5194
    %v5259 = vunpack.c.l.b16 %v5195
    %v5260 = vunpack.c.l.b16 %v5196
    %v5261 = vunpack.c.l.b16 %v5197
    %v5262 = vunpack.c.l.b16 %v5198
    %v5263 = vunpack.c.l.b16 %v5199
    %v5264 = vunpack.c.l.b16 %v5200
    %v5265 = vunpack.c.l.b16 %v5201
    %v5266 = vunpack.c.l.b16 %v5202
    %v5267 = vpack.c.b16 %v5236, %v5235
    %v5268 = vpack.c.b16 %v5238, %v5237
    %v5269 = vpack.c.b16 %v5240, %v5239
    %v5270 = vpack.c.b16 %v5242, %v5241
    %v5271 = vpack.c.b16 %v5244, %v5243
    %v5272 = vpack.c.b16 %v5246, %v5245
    %v5273 = vpack.c.b16 %v5248, %v5247
    %v5274 = vpack.c.b16 %v5250, %v5249
    %v5275 = vpack.c.b16 %v5252, %v5251
    %v5276 = vpack.c.b16 %v5254, %v5253
    %v5277 = vpack.c.b16 %v5256, %v5255
    %v5278 = vpack.c.b16 %v5258, %v5257
    %v5279 = vpack.c.b16 %v5260, %v5259
    %v5280 = vpack.c.b16 %v5262, %v5261
    %v5281 = vpack.c.b16 %v5264, %v5263
    %v5282 = vpack.c.b16 %v5266, %v5265
    %5299 = vmatprep.subr.bf16.mxu0 0
    %5300 = vmatpush1.bf16.msra.mxu0 %v5274
    %5301 = vmatprep.subr.bf16.mxu0 0
    %5302 = vmatpush1.bf16.msra.mxu0 %v5273
    %5303 = vmatprep.subr.bf16.mxu0 0
    %5304 = vmatpush1.bf16.msra.mxu0 %v5272
    %5305 = vmatprep.subr.bf16.mxu0 0
    %5306 = vmatpush1.bf16.msra.mxu0 %v5271
    %5307 = vmatprep.subr.bf16.mxu0 0
    %5308 = vmatpush1.bf16.msra.mxu0 %v5270
    %5309 = vmatprep.subr.bf16.mxu0 0
    %5310 = vmatpush1.bf16.msra.mxu0 %v5269
    %5311 = vmatprep.subr.bf16.mxu0 0
    %5312 = vmatpush1.bf16.msra.mxu0 %v5268
    %5313 = vmatprep.subr.bf16.mxu0 0
    %5314 = vmatpush1.bf16.msra.mxu0 %v5267
    %5315 = vmatprep.subr.bf16.mxu0 0
    %5316 = vmatpush2.bf16.msra.mxu0 %v5282
    %5317 = vmatprep.subr.bf16.mxu0 0
    %5318 = vmatpush2.bf16.msra.mxu0 %v5281
    %5319 = vmatprep.subr.bf16.mxu0 0
    %5320 = vmatpush2.bf16.msra.mxu0 %v5280
    %5321 = vmatprep.subr.bf16.mxu0 0
    %5322 = vmatpush2.bf16.msra.mxu0 %v5279
    %5323 = vmatprep.subr.bf16.mxu0 0
    %5324 = vmatpush2.bf16.msra.mxu0 %v5278
    %5325 = vmatprep.subr.bf16.mxu0 0
    %5326 = vmatpush2.bf16.msra.mxu0 %v5277
    %5327 = vmatprep.subr.bf16.mxu0 0
    %5328 = vmatpush2.bf16.msra.mxu0 %v5276
    %5329 = vmatprep.subr.bf16.mxu0 0
    %5330 = vmatpush2.bf16.msra.mxu0 %v5275
    %5331 = vmatprep.mubr.bf16.mxu0 %v5169
    %5332 = vmatmul.mubr.bf16.gmra.mxu0 %v5168
    %v5333 = vpop.f32.mrf.mxu0
    %v5334 = vadd.f32 0.0, %v5333
    %v5335 = vpop.f32.mrf.mxu0
    %v5336 = vpop.f32.mrf.mxu0
    %v5337 = vpop.f32.mrf.mxu0
    %5338 = vdwg.mxu0
    %v5339 = vadd.f32 %v5142, %v5334
    %s5340 = scalar_lea.vmem [#allocation2], 69
    %v5341 = vld [vmem:[%s5340] ss:$8 sm:$0xf]
    %v5343 = vlaneseq
    %v5344 = vshrl.u32 %v5343, 7
    %v5345 = vsub.s32 0, %v5344
    %v5346 = vrot.slane %v5341, %v5345
    %v5347 = vlaneseq
    %v5348 = vshrl.u32 %v5347, 7
    %v5349 = vsub.s32 1, %v5348
    %v5350 = vrot.slane %v5341, %v5349
    %v5353 = vlaneseq
    %v5354 = vshrl.u32 %v5353, 7
    %v5355 = vsub.s32 2, %v5354
    %v5356 = vrot.slane %v5341, %v5355
    %v5357 = vlaneseq
    %v5358 = vshrl.u32 %v5357, 7
    %v5359 = vsub.s32 3, %v5358
    %v5360 = vrot.slane %v5341, %v5359
    %v5363 = vsel %vm1228, %v5346, %v5356
    %v5364 = vsel %vm1228, %v5350, %v5360
    %v5365 = vpack.c.bf16 %v5363, %v5363
    %v5366 = vpack.c.bf16 %v5364, %v5364
    %s5367 = scalar_lea.vmem %s6, 2688
    %v5368 = vld [vmem:[%s5367] sm:$0xf]
    %v5369 = vld [vmem:[%s5367 + $0x4] sm:$0xf]
    %v5370 = vld [vmem:[%s5367 + $0x8] sm:$0xf]
    %v5371 = vld [vmem:[%s5367 + $0xc] sm:$0xf]
    %v5372 = vld [vmem:[%s5367 + $0x10] sm:$0xf]
    %v5373 = vld [vmem:[%s5367 + $0x14] sm:$0xf]
    %v5374 = vld [vmem:[%s5367 + $0x18] sm:$0xf]
    %v5375 = vld [vmem:[%s5367 + $0x1c] sm:$0xf]
    %v5376 = vld [vmem:[%s5367 + $0x20] sm:$0xf]
    %v5377 = vld [vmem:[%s5367 + $0x24] sm:$0xf]
    %v5378 = vld [vmem:[%s5367 + $0x28] sm:$0xf]
    %v5379 = vld [vmem:[%s5367 + $0x2c] sm:$0xf]
    %v5380 = vld [vmem:[%s5367 + $0x30] sm:$0xf]
    %v5381 = vld [vmem:[%s5367 + $0x34] sm:$0xf]
    %v5382 = vld [vmem:[%s5367 + $0x38] sm:$0xf]
    %v5383 = vld [vmem:[%s5367 + $0x3c] sm:$0xf]
    %v5384 = vld [vmem:[%s5367 + $0x40] sm:$0xf]
    %v5385 = vld [vmem:[%s5367 + $0x44] sm:$0xf]
    %v5386 = vld [vmem:[%s5367 + $0x48] sm:$0xf]
    %v5387 = vld [vmem:[%s5367 + $0x4c] sm:$0xf]
    %v5388 = vld [vmem:[%s5367 + $0x50] sm:$0xf]
    %v5389 = vld [vmem:[%s5367 + $0x54] sm:$0xf]
    %v5390 = vld [vmem:[%s5367 + $0x58] sm:$0xf]
    %v5391 = vld [vmem:[%s5367 + $0x5c] sm:$0xf]
    %v5392 = vld [vmem:[%s5367 + $0x60] sm:$0xf]
    %v5393 = vld [vmem:[%s5367 + $0x64] sm:$0xf]
    %v5394 = vld [vmem:[%s5367 + $0x68] sm:$0xf]
    %v5395 = vld [vmem:[%s5367 + $0x6c] sm:$0xf]
    %v5396 = vld [vmem:[%s5367 + $0x70] sm:$0xf]
    %v5397 = vld [vmem:[%s5367 + $0x74] sm:$0xf]
    %v5398 = vld [vmem:[%s5367 + $0x78] sm:$0xf]
    %v5399 = vld [vmem:[%s5367 + $0x7c] sm:$0xf]
    %v5432 = vunpack.c.l.b16 %v5368
    %v5433 = vunpack.c.l.b16 %v5369
    %v5434 = vunpack.c.l.b16 %v5370
    %v5435 = vunpack.c.l.b16 %v5371
    %v5436 = vunpack.c.l.b16 %v5372
    %v5437 = vunpack.c.l.b16 %v5373
    %v5438 = vunpack.c.l.b16 %v5374
    %v5439 = vunpack.c.l.b16 %v5375
    %v5440 = vunpack.c.l.b16 %v5376
    %v5441 = vunpack.c.l.b16 %v5377
    %v5442 = vunpack.c.l.b16 %v5378
    %v5443 = vunpack.c.l.b16 %v5379
    %v5444 = vunpack.c.l.b16 %v5380
    %v5445 = vunpack.c.l.b16 %v5381
    %v5446 = vunpack.c.l.b16 %v5382
    %v5447 = vunpack.c.l.b16 %v5383
    %v5448 = vunpack.c.l.b16 %v5384
    %v5449 = vunpack.c.l.b16 %v5385
    %v5450 = vunpack.c.l.b16 %v5386
    %v5451 = vunpack.c.l.b16 %v5387
    %v5452 = vunpack.c.l.b16 %v5388
    %v5453 = vunpack.c.l.b16 %v5389
    %v5454 = vunpack.c.l.b16 %v5390
    %v5455 = vunpack.c.l.b16 %v5391
    %v5456 = vunpack.c.l.b16 %v5392
    %v5457 = vunpack.c.l.b16 %v5393
    %v5458 = vunpack.c.l.b16 %v5394
    %v5459 = vunpack.c.l.b16 %v5395
    %v5460 = vunpack.c.l.b16 %v5396
    %v5461 = vunpack.c.l.b16 %v5397
    %v5462 = vunpack.c.l.b16 %v5398
    %v5463 = vunpack.c.l.b16 %v5399
    %v5464 = vpack.c.b16 %v5433, %v5432
    %v5465 = vpack.c.b16 %v5435, %v5434
    %v5466 = vpack.c.b16 %v5437, %v5436
    %v5467 = vpack.c.b16 %v5439, %v5438
    %v5468 = vpack.c.b16 %v5441, %v5440
    %v5469 = vpack.c.b16 %v5443, %v5442
    %v5470 = vpack.c.b16 %v5445, %v5444
    %v5471 = vpack.c.b16 %v5447, %v5446
    %v5472 = vpack.c.b16 %v5449, %v5448
    %v5473 = vpack.c.b16 %v5451, %v5450
    %v5474 = vpack.c.b16 %v5453, %v5452
    %v5475 = vpack.c.b16 %v5455, %v5454
    %v5476 = vpack.c.b16 %v5457, %v5456
    %v5477 = vpack.c.b16 %v5459, %v5458
    %v5478 = vpack.c.b16 %v5461, %v5460
    %v5479 = vpack.c.b16 %v5463, %v5462
    %5496 = vmatprep.subr.bf16.mxu0 0
    %5497 = vmatpush1.bf16.msra.mxu0 %v5471
    %5498 = vmatprep.subr.bf16.mxu0 0
    %5499 = vmatpush1.bf16.msra.mxu0 %v5470
    %5500 = vmatprep.subr.bf16.mxu0 0
    %5501 = vmatpush1.bf16.msra.mxu0 %v5469
    %5502 = vmatprep.subr.bf16.mxu0 0
    %5503 = vmatpush1.bf16.msra.mxu0 %v5468
    %5504 = vmatprep.subr.bf16.mxu0 0
    %5505 = vmatpush1.bf16.msra.mxu0 %v5467
    %5506 = vmatprep.subr.bf16.mxu0 0
    %5507 = vmatpush1.bf16.msra.mxu0 %v5466
    %5508 = vmatprep.subr.bf16.mxu0 0
    %5509 = vmatpush1.bf16.msra.mxu0 %v5465
    %5510 = vmatprep.subr.bf16.mxu0 0
    %5511 = vmatpush1.bf16.msra.mxu0 %v5464
    %5512 = vmatprep.subr.bf16.mxu0 0
    %5513 = vmatpush2.bf16.msra.mxu0 %v5479
    %5514 = vmatprep.subr.bf16.mxu0 0
    %5515 = vmatpush2.bf16.msra.mxu0 %v5478
    %5516 = vmatprep.subr.bf16.mxu0 0
    %5517 = vmatpush2.bf16.msra.mxu0 %v5477
    %5518 = vmatprep.subr.bf16.mxu0 0
    %5519 = vmatpush2.bf16.msra.mxu0 %v5476
    %5520 = vmatprep.subr.bf16.mxu0 0
    %5521 = vmatpush2.bf16.msra.mxu0 %v5475
    %5522 = vmatprep.subr.bf16.mxu0 0
    %5523 = vmatpush2.bf16.msra.mxu0 %v5474
    %5524 = vmatprep.subr.bf16.mxu0 0
    %5525 = vmatpush2.bf16.msra.mxu0 %v5473
    %5526 = vmatprep.subr.bf16.mxu0 0
    %5527 = vmatpush2.bf16.msra.mxu0 %v5472
    %5528 = vmatprep.mubr.bf16.mxu0 %v5366
    %5529 = vmatmul.mubr.bf16.gmra.mxu0 %v5365
    %v5530 = vpop.f32.mrf.mxu0
    %v5531 = vadd.f32 0.0, %v5530
    %v5532 = vpop.f32.mrf.mxu0
    %v5533 = vpop.f32.mrf.mxu0
    %v5534 = vpop.f32.mrf.mxu0
    %5535 = vdwg.mxu0
    %v5536 = vadd.f32 %v5339, %v5531
    %s5537 = scalar_lea.vmem [#allocation2], 70
    %v5538 = vld [vmem:[%s5537] ss:$8 sm:$0xf]
    %v5540 = vlaneseq
    %v5541 = vshrl.u32 %v5540, 7
    %v5542 = vsub.s32 0, %v5541
    %v5543 = vrot.slane %v5538, %v5542
    %v5544 = vlaneseq
    %v5545 = vshrl.u32 %v5544, 7
    %v5546 = vsub.s32 1, %v5545
    %v5547 = vrot.slane %v5538, %v5546
    %v5550 = vlaneseq
    %v5551 = vshrl.u32 %v5550, 7
    %v5552 = vsub.s32 2, %v5551
    %v5553 = vrot.slane %v5538, %v5552
    %v5554 = vlaneseq
    %v5555 = vshrl.u32 %v5554, 7
    %v5556 = vsub.s32 3, %v5555
    %v5557 = vrot.slane %v5538, %v5556
    %v5560 = vsel %vm1228, %v5543, %v5553
    %v5561 = vsel %vm1228, %v5547, %v5557
    %v5562 = vpack.c.bf16 %v5560, %v5560
    %v5563 = vpack.c.bf16 %v5561, %v5561
    %s5564 = scalar_lea.vmem %s6, 2816
    %v5565 = vld [vmem:[%s5564] sm:$0xf]
    %v5566 = vld [vmem:[%s5564 + $0x4] sm:$0xf]
    %v5567 = vld [vmem:[%s5564 + $0x8] sm:$0xf]
    %v5568 = vld [vmem:[%s5564 + $0xc] sm:$0xf]
    %v5569 = vld [vmem:[%s5564 + $0x10] sm:$0xf]
    %v5570 = vld [vmem:[%s5564 + $0x14] sm:$0xf]
    %v5571 = vld [vmem:[%s5564 + $0x18] sm:$0xf]
    %v5572 = vld [vmem:[%s5564 + $0x1c] sm:$0xf]
    %v5573 = vld [vmem:[%s5564 + $0x20] sm:$0xf]
    %v5574 = vld [vmem:[%s5564 + $0x24] sm:$0xf]
    %v5575 = vld [vmem:[%s5564 + $0x28] sm:$0xf]
    %v5576 = vld [vmem:[%s5564 + $0x2c] sm:$0xf]
    %v5577 = vld [vmem:[%s5564 + $0x30] sm:$0xf]
    %v5578 = vld [vmem:[%s5564 + $0x34] sm:$0xf]
    %v5579 = vld [vmem:[%s5564 + $0x38] sm:$0xf]
    %v5580 = vld [vmem:[%s5564 + $0x3c] sm:$0xf]
    %v5581 = vld [vmem:[%s5564 + $0x40] sm:$0xf]
    %v5582 = vld [vmem:[%s5564 + $0x44] sm:$0xf]
    %v5583 = vld [vmem:[%s5564 + $0x48] sm:$0xf]
    %v5584 = vld [vmem:[%s5564 + $0x4c] sm:$0xf]
    %v5585 = vld [vmem:[%s5564 + $0x50] sm:$0xf]
    %v5586 = vld [vmem:[%s5564 + $0x54] sm:$0xf]
    %v5587 = vld [vmem:[%s5564 + $0x58] sm:$0xf]
    %v5588 = vld [vmem:[%s5564 + $0x5c] sm:$0xf]
    %v5589 = vld [vmem:[%s5564 + $0x60] sm:$0xf]
    %v5590 = vld [vmem:[%s5564 + $0x64] sm:$0xf]
    %v5591 = vld [vmem:[%s5564 + $0x68] sm:$0xf]
    %v5592 = vld [vmem:[%s5564 + $0x6c] sm:$0xf]
    %v5593 = vld [vmem:[%s5564 + $0x70] sm:$0xf]
    %v5594 = vld [vmem:[%s5564 + $0x74] sm:$0xf]
    %v5595 = vld [vmem:[%s5564 + $0x78] sm:$0xf]
    %v5596 = vld [vmem:[%s5564 + $0x7c] sm:$0xf]
    %v5629 = vunpack.c.l.b16 %v5565
    %v5630 = vunpack.c.l.b16 %v5566
    %v5631 = vunpack.c.l.b16 %v5567
    %v5632 = vunpack.c.l.b16 %v5568
    %v5633 = vunpack.c.l.b16 %v5569
    %v5634 = vunpack.c.l.b16 %v5570
    %v5635 = vunpack.c.l.b16 %v5571
    %v5636 = vunpack.c.l.b16 %v5572
    %v5637 = vunpack.c.l.b16 %v5573
    %v5638 = vunpack.c.l.b16 %v5574
    %v5639 = vunpack.c.l.b16 %v5575
    %v5640 = vunpack.c.l.b16 %v5576
    %v5641 = vunpack.c.l.b16 %v5577
    %v5642 = vunpack.c.l.b16 %v5578
    %v5643 = vunpack.c.l.b16 %v5579
    %v5644 = vunpack.c.l.b16 %v5580
    %v5645 = vunpack.c.l.b16 %v5581
    %v5646 = vunpack.c.l.b16 %v5582
    %v5647 = vunpack.c.l.b16 %v5583
    %v5648 = vunpack.c.l.b16 %v5584
    %v5649 = vunpack.c.l.b16 %v5585
    %v5650 = vunpack.c.l.b16 %v5586
    %v5651 = vunpack.c.l.b16 %v5587
    %v5652 = vunpack.c.l.b16 %v5588
    %v5653 = vunpack.c.l.b16 %v5589
    %v5654 = vunpack.c.l.b16 %v5590
    %v5655 = vunpack.c.l.b16 %v5591
    %v5656 = vunpack.c.l.b16 %v5592
    %v5657 = vunpack.c.l.b16 %v5593
    %v5658 = vunpack.c.l.b16 %v5594
    %v5659 = vunpack.c.l.b16 %v5595
    %v5660 = vunpack.c.l.b16 %v5596
    %v5661 = vpack.c.b16 %v5630, %v5629
    %v5662 = vpack.c.b16 %v5632, %v5631
    %v5663 = vpack.c.b16 %v5634, %v5633
    %v5664 = vpack.c.b16 %v5636, %v5635
    %v5665 = vpack.c.b16 %v5638, %v5637
    %v5666 = vpack.c.b16 %v5640, %v5639
    %v5667 = vpack.c.b16 %v5642, %v5641
    %v5668 = vpack.c.b16 %v5644, %v5643
    %v5669 = vpack.c.b16 %v5646, %v5645
    %v5670 = vpack.c.b16 %v5648, %v5647
    %v5671 = vpack.c.b16 %v5650, %v5649
    %v5672 = vpack.c.b16 %v5652, %v5651
    %v5673 = vpack.c.b16 %v5654, %v5653
    %v5674 = vpack.c.b16 %v5656, %v5655
    %v5675 = vpack.c.b16 %v5658, %v5657
    %v5676 = vpack.c.b16 %v5660, %v5659
    %5693 = vmatprep.subr.bf16.mxu0 0
    %5694 = vmatpush1.bf16.msra.mxu0 %v5668
    %5695 = vmatprep.subr.bf16.mxu0 0
    %5696 = vmatpush1.bf16.msra.mxu0 %v5667
    %5697 = vmatprep.subr.bf16.mxu0 0
    %5698 = vmatpush1.bf16.msra.mxu0 %v5666
    %5699 = vmatprep.subr.bf16.mxu0 0
    %5700 = vmatpush1.bf16.msra.mxu0 %v5665
    %5701 = vmatprep.subr.bf16.mxu0 0
    %5702 = vmatpush1.bf16.msra.mxu0 %v5664
    %5703 = vmatprep.subr.bf16.mxu0 0
    %5704 = vmatpush1.bf16.msra.mxu0 %v5663
    %5705 = vmatprep.subr.bf16.mxu0 0
    %5706 = vmatpush1.bf16.msra.mxu0 %v5662
    %5707 = vmatprep.subr.bf16.mxu0 0
    %5708 = vmatpush1.bf16.msra.mxu0 %v5661
    %5709 = vmatprep.subr.bf16.mxu0 0
    %5710 = vmatpush2.bf16.msra.mxu0 %v5676
    %5711 = vmatprep.subr.bf16.mxu0 0
    %5712 = vmatpush2.bf16.msra.mxu0 %v5675
    %5713 = vmatprep.subr.bf16.mxu0 0
    %5714 = vmatpush2.bf16.msra.mxu0 %v5674
    %5715 = vmatprep.subr.bf16.mxu0 0
    %5716 = vmatpush2.bf16.msra.mxu0 %v5673
    %5717 = vmatprep.subr.bf16.mxu0 0
    %5718 = vmatpush2.bf16.msra.mxu0 %v5672
    %5719 = vmatprep.subr.bf16.mxu0 0
    %5720 = vmatpush2.bf16.msra.mxu0 %v5671
    %5721 = vmatprep.subr.bf16.mxu0 0
    %5722 = vmatpush2.bf16.msra.mxu0 %v5670
    %5723 = vmatprep.subr.bf16.mxu0 0
    %5724 = vmatpush2.bf16.msra.mxu0 %v5669
    %5725 = vmatprep.mubr.bf16.mxu0 %v5563
    %5726 = vmatmul.mubr.bf16.gmra.mxu0 %v5562
    %v5727 = vpop.f32.mrf.mxu0
    %v5728 = vadd.f32 0.0, %v5727
    %v5729 = vpop.f32.mrf.mxu0
    %v5730 = vpop.f32.mrf.mxu0
    %v5731 = vpop.f32.mrf.mxu0
    %5732 = vdwg.mxu0
    %v5733 = vadd.f32 %v5536, %v5728
    %s5734 = scalar_lea.vmem [#allocation2], 71
    %v5735 = vld [vmem:[%s5734] ss:$8 sm:$0xf]
    %v5737 = vlaneseq
    %v5738 = vshrl.u32 %v5737, 7
    %v5739 = vsub.s32 0, %v5738
    %v5740 = vrot.slane %v5735, %v5739
    %v5741 = vlaneseq
    %v5742 = vshrl.u32 %v5741, 7
    %v5743 = vsub.s32 1, %v5742
    %v5744 = vrot.slane %v5735, %v5743
    %v5747 = vlaneseq
    %v5748 = vshrl.u32 %v5747, 7
    %v5749 = vsub.s32 2, %v5748
    %v5750 = vrot.slane %v5735, %v5749
    %v5751 = vlaneseq
    %v5752 = vshrl.u32 %v5751, 7
    %v5753 = vsub.s32 3, %v5752
    %v5754 = vrot.slane %v5735, %v5753
    %v5757 = vsel %vm1228, %v5740, %v5750
    %v5758 = vsel %vm1228, %v5744, %v5754
    %v5759 = vpack.c.bf16 %v5757, %v5757
    %v5760 = vpack.c.bf16 %v5758, %v5758
    %s5761 = scalar_lea.vmem %s6, 2944
    %v5762 = vld [vmem:[%s5761] sm:$0xf]
    %v5763 = vld [vmem:[%s5761 + $0x4] sm:$0xf]
    %v5764 = vld [vmem:[%s5761 + $0x8] sm:$0xf]
    %v5765 = vld [vmem:[%s5761 + $0xc] sm:$0xf]
    %v5766 = vld [vmem:[%s5761 + $0x10] sm:$0xf]
    %v5767 = vld [vmem:[%s5761 + $0x14] sm:$0xf]
    %v5768 = vld [vmem:[%s5761 + $0x18] sm:$0xf]
    %v5769 = vld [vmem:[%s5761 + $0x1c] sm:$0xf]
    %v5770 = vld [vmem:[%s5761 + $0x20] sm:$0xf]
    %v5771 = vld [vmem:[%s5761 + $0x24] sm:$0xf]
    %v5772 = vld [vmem:[%s5761 + $0x28] sm:$0xf]
    %v5773 = vld [vmem:[%s5761 + $0x2c] sm:$0xf]
    %v5774 = vld [vmem:[%s5761 + $0x30] sm:$0xf]
    %v5775 = vld [vmem:[%s5761 + $0x34] sm:$0xf]
    %v5776 = vld [vmem:[%s5761 + $0x38] sm:$0xf]
    %v5777 = vld [vmem:[%s5761 + $0x3c] sm:$0xf]
    %v5778 = vld [vmem:[%s5761 + $0x40] sm:$0xf]
    %v5779 = vld [vmem:[%s5761 + $0x44] sm:$0xf]
    %v5780 = vld [vmem:[%s5761 + $0x48] sm:$0xf]
    %v5781 = vld [vmem:[%s5761 + $0x4c] sm:$0xf]
    %v5782 = vld [vmem:[%s5761 + $0x50] sm:$0xf]
    %v5783 = vld [vmem:[%s5761 + $0x54] sm:$0xf]
    %v5784 = vld [vmem:[%s5761 + $0x58] sm:$0xf]
    %v5785 = vld [vmem:[%s5761 + $0x5c] sm:$0xf]
    %v5786 = vld [vmem:[%s5761 + $0x60] sm:$0xf]
    %v5787 = vld [vmem:[%s5761 + $0x64] sm:$0xf]
    %v5788 = vld [vmem:[%s5761 + $0x68] sm:$0xf]
    %v5789 = vld [vmem:[%s5761 + $0x6c] sm:$0xf]
    %v5790 = vld [vmem:[%s5761 + $0x70] sm:$0xf]
    %v5791 = vld [vmem:[%s5761 + $0x74] sm:$0xf]
    %v5792 = vld [vmem:[%s5761 + $0x78] sm:$0xf]
    %v5793 = vld [vmem:[%s5761 + $0x7c] sm:$0xf]
    %v5826 = vunpack.c.l.b16 %v5762
    %v5827 = vunpack.c.l.b16 %v5763
    %v5828 = vunpack.c.l.b16 %v5764
    %v5829 = vunpack.c.l.b16 %v5765
    %v5830 = vunpack.c.l.b16 %v5766
    %v5831 = vunpack.c.l.b16 %v5767
    %v5832 = vunpack.c.l.b16 %v5768
    %v5833 = vunpack.c.l.b16 %v5769
    %v5834 = vunpack.c.l.b16 %v5770
    %v5835 = vunpack.c.l.b16 %v5771
    %v5836 = vunpack.c.l.b16 %v5772
    %v5837 = vunpack.c.l.b16 %v5773
    %v5838 = vunpack.c.l.b16 %v5774
    %v5839 = vunpack.c.l.b16 %v5775
    %v5840 = vunpack.c.l.b16 %v5776
    %v5841 = vunpack.c.l.b16 %v5777
    %v5842 = vunpack.c.l.b16 %v5778
    %v5843 = vunpack.c.l.b16 %v5779
    %v5844 = vunpack.c.l.b16 %v5780
    %v5845 = vunpack.c.l.b16 %v5781
    %v5846 = vunpack.c.l.b16 %v5782
    %v5847 = vunpack.c.l.b16 %v5783
    %v5848 = vunpack.c.l.b16 %v5784
    %v5849 = vunpack.c.l.b16 %v5785
    %v5850 = vunpack.c.l.b16 %v5786
    %v5851 = vunpack.c.l.b16 %v5787
    %v5852 = vunpack.c.l.b16 %v5788
    %v5853 = vunpack.c.l.b16 %v5789
    %v5854 = vunpack.c.l.b16 %v5790
    %v5855 = vunpack.c.l.b16 %v5791
    %v5856 = vunpack.c.l.b16 %v5792
    %v5857 = vunpack.c.l.b16 %v5793
    %v5858 = vpack.c.b16 %v5827, %v5826
    %v5859 = vpack.c.b16 %v5829, %v5828
    %v5860 = vpack.c.b16 %v5831, %v5830
    %v5861 = vpack.c.b16 %v5833, %v5832
    %v5862 = vpack.c.b16 %v5835, %v5834
    %v5863 = vpack.c.b16 %v5837, %v5836
    %v5864 = vpack.c.b16 %v5839, %v5838
    %v5865 = vpack.c.b16 %v5841, %v5840
    %v5866 = vpack.c.b16 %v5843, %v5842
    %v5867 = vpack.c.b16 %v5845, %v5844
    %v5868 = vpack.c.b16 %v5847, %v5846
    %v5869 = vpack.c.b16 %v5849, %v5848
    %v5870 = vpack.c.b16 %v5851, %v5850
    %v5871 = vpack.c.b16 %v5853, %v5852
    %v5872 = vpack.c.b16 %v5855, %v5854
    %v5873 = vpack.c.b16 %v5857, %v5856
    %5890 = vmatprep.subr.bf16.mxu0 0
    %5891 = vmatpush1.bf16.msra.mxu0 %v5865
    %5892 = vmatprep.subr.bf16.mxu0 0
    %5893 = vmatpush1.bf16.msra.mxu0 %v5864
    %5894 = vmatprep.subr.bf16.mxu0 0
    %5895 = vmatpush1.bf16.msra.mxu0 %v5863
    %5896 = vmatprep.subr.bf16.mxu0 0
    %5897 = vmatpush1.bf16.msra.mxu0 %v5862
    %5898 = vmatprep.subr.bf16.mxu0 0
    %5899 = vmatpush1.bf16.msra.mxu0 %v5861
    %5900 = vmatprep.subr.bf16.mxu0 0
    %5901 = vmatpush1.bf16.msra.mxu0 %v5860
    %5902 = vmatprep.subr.bf16.mxu0 0
    %5903 = vmatpush1.bf16.msra.mxu0 %v5859
    %5904 = vmatprep.subr.bf16.mxu0 0
    %5905 = vmatpush1.bf16.msra.mxu0 %v5858
    %5906 = vmatprep.subr.bf16.mxu0 0
    %5907 = vmatpush2.bf16.msra.mxu0 %v5873
    %5908 = vmatprep.subr.bf16.mxu0 0
    %5909 = vmatpush2.bf16.msra.mxu0 %v5872
    %5910 = vmatprep.subr.bf16.mxu0 0
    %5911 = vmatpush2.bf16.msra.mxu0 %v5871
    %5912 = vmatprep.subr.bf16.mxu0 0
    %5913 = vmatpush2.bf16.msra.mxu0 %v5870
    %5914 = vmatprep.subr.bf16.mxu0 0
    %5915 = vmatpush2.bf16.msra.mxu0 %v5869
    %5916 = vmatprep.subr.bf16.mxu0 0
    %5917 = vmatpush2.bf16.msra.mxu0 %v5868
    %5918 = vmatprep.subr.bf16.mxu0 0
    %5919 = vmatpush2.bf16.msra.mxu0 %v5867
    %5920 = vmatprep.subr.bf16.mxu0 0
    %5921 = vmatpush2.bf16.msra.mxu0 %v5866
    %5922 = vmatprep.mubr.bf16.mxu0 %v5760
    %5923 = vmatmul.mubr.bf16.gmra.mxu0 %v5759
    %v5924 = vpop.f32.mrf.mxu0
    %v5925 = vadd.f32 0.0, %v5924
    %v5926 = vpop.f32.mrf.mxu0
    %v5927 = vpop.f32.mrf.mxu0
    %v5928 = vpop.f32.mrf.mxu0
    %5929 = vdwg.mxu0
    %v5930 = vadd.f32 %v5733, %v5925
    %s5931 = scalar_lea.vmem [#allocation2], 96
    %v5932 = vld [vmem:[%s5931] ss:$8 sm:$0xf]
    %v5934 = vlaneseq
    %v5935 = vshrl.u32 %v5934, 7
    %v5936 = vsub.s32 0, %v5935
    %v5937 = vrot.slane %v5932, %v5936
    %v5938 = vlaneseq
    %v5939 = vshrl.u32 %v5938, 7
    %v5940 = vsub.s32 1, %v5939
    %v5941 = vrot.slane %v5932, %v5940
    %v5944 = vlaneseq
    %v5945 = vshrl.u32 %v5944, 7
    %v5946 = vsub.s32 2, %v5945
    %v5947 = vrot.slane %v5932, %v5946
    %v5948 = vlaneseq
    %v5949 = vshrl.u32 %v5948, 7
    %v5950 = vsub.s32 3, %v5949
    %v5951 = vrot.slane %v5932, %v5950
    %v5954 = vsel %vm1228, %v5937, %v5947
    %v5955 = vsel %vm1228, %v5941, %v5951
    %v5956 = vpack.c.bf16 %v5954, %v5954
    %v5957 = vpack.c.bf16 %v5955, %v5955
    %s5958 = scalar_lea.vmem %s6, 3072
    %v5959 = vld [vmem:[%s5958] sm:$0xf]
    %v5960 = vld [vmem:[%s5958 + $0x4] sm:$0xf]
    %v5961 = vld [vmem:[%s5958 + $0x8] sm:$0xf]
    %v5962 = vld [vmem:[%s5958 + $0xc] sm:$0xf]
    %v5963 = vld [vmem:[%s5958 + $0x10] sm:$0xf]
    %v5964 = vld [vmem:[%s5958 + $0x14] sm:$0xf]
    %v5965 = vld [vmem:[%s5958 + $0x18] sm:$0xf]
    %v5966 = vld [vmem:[%s5958 + $0x1c] sm:$0xf]
    %v5967 = vld [vmem:[%s5958 + $0x20] sm:$0xf]
    %v5968 = vld [vmem:[%s5958 + $0x24] sm:$0xf]
    %v5969 = vld [vmem:[%s5958 + $0x28] sm:$0xf]
    %v5970 = vld [vmem:[%s5958 + $0x2c] sm:$0xf]
    %v5971 = vld [vmem:[%s5958 + $0x30] sm:$0xf]
    %v5972 = vld [vmem:[%s5958 + $0x34] sm:$0xf]
    %v5973 = vld [vmem:[%s5958 + $0x38] sm:$0xf]
    %v5974 = vld [vmem:[%s5958 + $0x3c] sm:$0xf]
    %v5975 = vld [vmem:[%s5958 + $0x40] sm:$0xf]
    %v5976 = vld [vmem:[%s5958 + $0x44] sm:$0xf]
    %v5977 = vld [vmem:[%s5958 + $0x48] sm:$0xf]
    %v5978 = vld [vmem:[%s5958 + $0x4c] sm:$0xf]
    %v5979 = vld [vmem:[%s5958 + $0x50] sm:$0xf]
    %v5980 = vld [vmem:[%s5958 + $0x54] sm:$0xf]
    %v5981 = vld [vmem:[%s5958 + $0x58] sm:$0xf]
    %v5982 = vld [vmem:[%s5958 + $0x5c] sm:$0xf]
    %v5983 = vld [vmem:[%s5958 + $0x60] sm:$0xf]
    %v5984 = vld [vmem:[%s5958 + $0x64] sm:$0xf]
    %v5985 = vld [vmem:[%s5958 + $0x68] sm:$0xf]
    %v5986 = vld [vmem:[%s5958 + $0x6c] sm:$0xf]
    %v5987 = vld [vmem:[%s5958 + $0x70] sm:$0xf]
    %v5988 = vld [vmem:[%s5958 + $0x74] sm:$0xf]
    %v5989 = vld [vmem:[%s5958 + $0x78] sm:$0xf]
    %v5990 = vld [vmem:[%s5958 + $0x7c] sm:$0xf]
    %v6023 = vunpack.c.l.b16 %v5959
    %v6024 = vunpack.c.l.b16 %v5960
    %v6025 = vunpack.c.l.b16 %v5961
    %v6026 = vunpack.c.l.b16 %v5962
    %v6027 = vunpack.c.l.b16 %v5963
    %v6028 = vunpack.c.l.b16 %v5964
    %v6029 = vunpack.c.l.b16 %v5965
    %v6030 = vunpack.c.l.b16 %v5966
    %v6031 = vunpack.c.l.b16 %v5967
    %v6032 = vunpack.c.l.b16 %v5968
    %v6033 = vunpack.c.l.b16 %v5969
    %v6034 = vunpack.c.l.b16 %v5970
    %v6035 = vunpack.c.l.b16 %v5971
    %v6036 = vunpack.c.l.b16 %v5972
    %v6037 = vunpack.c.l.b16 %v5973
    %v6038 = vunpack.c.l.b16 %v5974
    %v6039 = vunpack.c.l.b16 %v5975
    %v6040 = vunpack.c.l.b16 %v5976
    %v6041 = vunpack.c.l.b16 %v5977
    %v6042 = vunpack.c.l.b16 %v5978
    %v6043 = vunpack.c.l.b16 %v5979
    %v6044 = vunpack.c.l.b16 %v5980
    %v6045 = vunpack.c.l.b16 %v5981
    %v6046 = vunpack.c.l.b16 %v5982
    %v6047 = vunpack.c.l.b16 %v5983
    %v6048 = vunpack.c.l.b16 %v5984
    %v6049 = vunpack.c.l.b16 %v5985
    %v6050 = vunpack.c.l.b16 %v5986
    %v6051 = vunpack.c.l.b16 %v5987
    %v6052 = vunpack.c.l.b16 %v5988
    %v6053 = vunpack.c.l.b16 %v5989
    %v6054 = vunpack.c.l.b16 %v5990
    %v6055 = vpack.c.b16 %v6024, %v6023
    %v6056 = vpack.c.b16 %v6026, %v6025
    %v6057 = vpack.c.b16 %v6028, %v6027
    %v6058 = vpack.c.b16 %v6030, %v6029
    %v6059 = vpack.c.b16 %v6032, %v6031
    %v6060 = vpack.c.b16 %v6034, %v6033
    %v6061 = vpack.c.b16 %v6036, %v6035
    %v6062 = vpack.c.b16 %v6038, %v6037
    %v6063 = vpack.c.b16 %v6040, %v6039
    %v6064 = vpack.c.b16 %v6042, %v6041
    %v6065 = vpack.c.b16 %v6044, %v6043
    %v6066 = vpack.c.b16 %v6046, %v6045
    %v6067 = vpack.c.b16 %v6048, %v6047
    %v6068 = vpack.c.b16 %v6050, %v6049
    %v6069 = vpack.c.b16 %v6052, %v6051
    %v6070 = vpack.c.b16 %v6054, %v6053
    %6087 = vmatprep.subr.bf16.mxu0 0
    %6088 = vmatpush1.bf16.msra.mxu0 %v6062
    %6089 = vmatprep.subr.bf16.mxu0 0
    %6090 = vmatpush1.bf16.msra.mxu0 %v6061
    %6091 = vmatprep.subr.bf16.mxu0 0
    %6092 = vmatpush1.bf16.msra.mxu0 %v6060
    %6093 = vmatprep.subr.bf16.mxu0 0
    %6094 = vmatpush1.bf16.msra.mxu0 %v6059
    %6095 = vmatprep.subr.bf16.mxu0 0
    %6096 = vmatpush1.bf16.msra.mxu0 %v6058
    %6097 = vmatprep.subr.bf16.mxu0 0
    %6098 = vmatpush1.bf16.msra.mxu0 %v6057
    %6099 = vmatprep.subr.bf16.mxu0 0
    %6100 = vmatpush1.bf16.msra.mxu0 %v6056
    %6101 = vmatprep.subr.bf16.mxu0 0
    %6102 = vmatpush1.bf16.msra.mxu0 %v6055
    %6103 = vmatprep.subr.bf16.mxu0 0
    %6104 = vmatpush2.bf16.msra.mxu0 %v6070
    %6105 = vmatprep.subr.bf16.mxu0 0
    %6106 = vmatpush2.bf16.msra.mxu0 %v6069
    %6107 = vmatprep.subr.bf16.mxu0 0
    %6108 = vmatpush2.bf16.msra.mxu0 %v6068
    %6109 = vmatprep.subr.bf16.mxu0 0
    %6110 = vmatpush2.bf16.msra.mxu0 %v6067
    %6111 = vmatprep.subr.bf16.mxu0 0
    %6112 = vmatpush2.bf16.msra.mxu0 %v6066
    %6113 = vmatprep.subr.bf16.mxu0 0
    %6114 = vmatpush2.bf16.msra.mxu0 %v6065
    %6115 = vmatprep.subr.bf16.mxu0 0
    %6116 = vmatpush2.bf16.msra.mxu0 %v6064
    %6117 = vmatprep.subr.bf16.mxu0 0
    %6118 = vmatpush2.bf16.msra.mxu0 %v6063
    %6119 = vmatprep.mubr.bf16.mxu0 %v5957
    %6120 = vmatmul.mubr.bf16.gmra.mxu0 %v5956
    %v6121 = vpop.f32.mrf.mxu0
    %v6122 = vadd.f32 0.0, %v6121
    %v6123 = vpop.f32.mrf.mxu0
    %v6124 = vpop.f32.mrf.mxu0
    %v6125 = vpop.f32.mrf.mxu0
    %6126 = vdwg.mxu0
    %v6127 = vadd.f32 %v5930, %v6122
    %s6128 = scalar_lea.vmem [#allocation2], 97
    %v6129 = vld [vmem:[%s6128] ss:$8 sm:$0xf]
    %v6131 = vlaneseq
    %v6132 = vshrl.u32 %v6131, 7
    %v6133 = vsub.s32 0, %v6132
    %v6134 = vrot.slane %v6129, %v6133
    %v6135 = vlaneseq
    %v6136 = vshrl.u32 %v6135, 7
    %v6137 = vsub.s32 1, %v6136
    %v6138 = vrot.slane %v6129, %v6137
    %v6141 = vlaneseq
    %v6142 = vshrl.u32 %v6141, 7
    %v6143 = vsub.s32 2, %v6142
    %v6144 = vrot.slane %v6129, %v6143
    %v6145 = vlaneseq
    %v6146 = vshrl.u32 %v6145, 7
    %v6147 = vsub.s32 3, %v6146
    %v6148 = vrot.slane %v6129, %v6147
    %v6151 = vsel %vm1228, %v6134, %v6144
    %v6152 = vsel %vm1228, %v6138, %v6148
    %v6153 = vpack.c.bf16 %v6151, %v6151
    %v6154 = vpack.c.bf16 %v6152, %v6152
    %s6155 = scalar_lea.vmem %s6, 3200
    %v6156 = vld [vmem:[%s6155] sm:$0xf]
    %v6157 = vld [vmem:[%s6155 + $0x4] sm:$0xf]
    %v6158 = vld [vmem:[%s6155 + $0x8] sm:$0xf]
    %v6159 = vld [vmem:[%s6155 + $0xc] sm:$0xf]
    %v6160 = vld [vmem:[%s6155 + $0x10] sm:$0xf]
    %v6161 = vld [vmem:[%s6155 + $0x14] sm:$0xf]
    %v6162 = vld [vmem:[%s6155 + $0x18] sm:$0xf]
    %v6163 = vld [vmem:[%s6155 + $0x1c] sm:$0xf]
    %v6164 = vld [vmem:[%s6155 + $0x20] sm:$0xf]
    %v6165 = vld [vmem:[%s6155 + $0x24] sm:$0xf]
    %v6166 = vld [vmem:[%s6155 + $0x28] sm:$0xf]
    %v6167 = vld [vmem:[%s6155 + $0x2c] sm:$0xf]
    %v6168 = vld [vmem:[%s6155 + $0x30] sm:$0xf]
    %v6169 = vld [vmem:[%s6155 + $0x34] sm:$0xf]
    %v6170 = vld [vmem:[%s6155 + $0x38] sm:$0xf]
    %v6171 = vld [vmem:[%s6155 + $0x3c] sm:$0xf]
    %v6172 = vld [vmem:[%s6155 + $0x40] sm:$0xf]
    %v6173 = vld [vmem:[%s6155 + $0x44] sm:$0xf]
    %v6174 = vld [vmem:[%s6155 + $0x48] sm:$0xf]
    %v6175 = vld [vmem:[%s6155 + $0x4c] sm:$0xf]
    %v6176 = vld [vmem:[%s6155 + $0x50] sm:$0xf]
    %v6177 = vld [vmem:[%s6155 + $0x54] sm:$0xf]
    %v6178 = vld [vmem:[%s6155 + $0x58] sm:$0xf]
    %v6179 = vld [vmem:[%s6155 + $0x5c] sm:$0xf]
    %v6180 = vld [vmem:[%s6155 + $0x60] sm:$0xf]
    %v6181 = vld [vmem:[%s6155 + $0x64] sm:$0xf]
    %v6182 = vld [vmem:[%s6155 + $0x68] sm:$0xf]
    %v6183 = vld [vmem:[%s6155 + $0x6c] sm:$0xf]
    %v6184 = vld [vmem:[%s6155 + $0x70] sm:$0xf]
    %v6185 = vld [vmem:[%s6155 + $0x74] sm:$0xf]
    %v6186 = vld [vmem:[%s6155 + $0x78] sm:$0xf]
    %v6187 = vld [vmem:[%s6155 + $0x7c] sm:$0xf]
    %v6220 = vunpack.c.l.b16 %v6156
    %v6221 = vunpack.c.l.b16 %v6157
    %v6222 = vunpack.c.l.b16 %v6158
    %v6223 = vunpack.c.l.b16 %v6159
    %v6224 = vunpack.c.l.b16 %v6160
    %v6225 = vunpack.c.l.b16 %v6161
    %v6226 = vunpack.c.l.b16 %v6162
    %v6227 = vunpack.c.l.b16 %v6163
    %v6228 = vunpack.c.l.b16 %v6164
    %v6229 = vunpack.c.l.b16 %v6165
    %v6230 = vunpack.c.l.b16 %v6166
    %v6231 = vunpack.c.l.b16 %v6167
    %v6232 = vunpack.c.l.b16 %v6168
    %v6233 = vunpack.c.l.b16 %v6169
    %v6234 = vunpack.c.l.b16 %v6170
    %v6235 = vunpack.c.l.b16 %v6171
    %v6236 = vunpack.c.l.b16 %v6172
    %v6237 = vunpack.c.l.b16 %v6173
    %v6238 = vunpack.c.l.b16 %v6174
    %v6239 = vunpack.c.l.b16 %v6175
    %v6240 = vunpack.c.l.b16 %v6176
    %v6241 = vunpack.c.l.b16 %v6177
    %v6242 = vunpack.c.l.b16 %v6178
    %v6243 = vunpack.c.l.b16 %v6179
    %v6244 = vunpack.c.l.b16 %v6180
    %v6245 = vunpack.c.l.b16 %v6181
    %v6246 = vunpack.c.l.b16 %v6182
    %v6247 = vunpack.c.l.b16 %v6183
    %v6248 = vunpack.c.l.b16 %v6184
    %v6249 = vunpack.c.l.b16 %v6185
    %v6250 = vunpack.c.l.b16 %v6186
    %v6251 = vunpack.c.l.b16 %v6187
    %v6252 = vpack.c.b16 %v6221, %v6220
    %v6253 = vpack.c.b16 %v6223, %v6222
    %v6254 = vpack.c.b16 %v6225, %v6224
    %v6255 = vpack.c.b16 %v6227, %v6226
    %v6256 = vpack.c.b16 %v6229, %v6228
    %v6257 = vpack.c.b16 %v6231, %v6230
    %v6258 = vpack.c.b16 %v6233, %v6232
    %v6259 = vpack.c.b16 %v6235, %v6234
    %v6260 = vpack.c.b16 %v6237, %v6236
    %v6261 = vpack.c.b16 %v6239, %v6238
    %v6262 = vpack.c.b16 %v6241, %v6240
    %v6263 = vpack.c.b16 %v6243, %v6242
    %v6264 = vpack.c.b16 %v6245, %v6244
    %v6265 = vpack.c.b16 %v6247, %v6246
    %v6266 = vpack.c.b16 %v6249, %v6248
    %v6267 = vpack.c.b16 %v6251, %v6250
    %6284 = vmatprep.subr.bf16.mxu0 0
    %6285 = vmatpush1.bf16.msra.mxu0 %v6259
    %6286 = vmatprep.subr.bf16.mxu0 0
    %6287 = vmatpush1.bf16.msra.mxu0 %v6258
    %6288 = vmatprep.subr.bf16.mxu0 0
    %6289 = vmatpush1.bf16.msra.mxu0 %v6257
    %6290 = vmatprep.subr.bf16.mxu0 0
    %6291 = vmatpush1.bf16.msra.mxu0 %v6256
    %6292 = vmatprep.subr.bf16.mxu0 0
    %6293 = vmatpush1.bf16.msra.mxu0 %v6255
    %6294 = vmatprep.subr.bf16.mxu0 0
    %6295 = vmatpush1.bf16.msra.mxu0 %v6254
    %6296 = vmatprep.subr.bf16.mxu0 0
    %6297 = vmatpush1.bf16.msra.mxu0 %v6253
    %6298 = vmatprep.subr.bf16.mxu0 0
    %6299 = vmatpush1.bf16.msra.mxu0 %v6252
    %6300 = vmatprep.subr.bf16.mxu0 0
    %6301 = vmatpush2.bf16.msra.mxu0 %v6267
    %6302 = vmatprep.subr.bf16.mxu0 0
    %6303 = vmatpush2.bf16.msra.mxu0 %v6266
    %6304 = vmatprep.subr.bf16.mxu0 0
    %6305 = vmatpush2.bf16.msra.mxu0 %v6265
    %6306 = vmatprep.subr.bf16.mxu0 0
    %6307 = vmatpush2.bf16.msra.mxu0 %v6264
    %6308 = vmatprep.subr.bf16.mxu0 0
    %6309 = vmatpush2.bf16.msra.mxu0 %v6263
    %6310 = vmatprep.subr.bf16.mxu0 0
    %6311 = vmatpush2.bf16.msra.mxu0 %v6262
    %6312 = vmatprep.subr.bf16.mxu0 0
    %6313 = vmatpush2.bf16.msra.mxu0 %v6261
    %6314 = vmatprep.subr.bf16.mxu0 0
    %6315 = vmatpush2.bf16.msra.mxu0 %v6260
    %6316 = vmatprep.mubr.bf16.mxu0 %v6154
    %6317 = vmatmul.mubr.bf16.gmra.mxu0 %v6153
    %v6318 = vpop.f32.mrf.mxu0
    %v6319 = vadd.f32 0.0, %v6318
    %v6320 = vpop.f32.mrf.mxu0
    %v6321 = vpop.f32.mrf.mxu0
    %v6322 = vpop.f32.mrf.mxu0
    %6323 = vdwg.mxu0
    %v6324 = vadd.f32 %v6127, %v6319
    %s6325 = scalar_lea.vmem [#allocation2], 98
    %v6326 = vld [vmem:[%s6325] ss:$8 sm:$0xf]
    %v6328 = vlaneseq
    %v6329 = vshrl.u32 %v6328, 7
    %v6330 = vsub.s32 0, %v6329
    %v6331 = vrot.slane %v6326, %v6330
    %v6332 = vlaneseq
    %v6333 = vshrl.u32 %v6332, 7
    %v6334 = vsub.s32 1, %v6333
    %v6335 = vrot.slane %v6326, %v6334
    %v6338 = vlaneseq
    %v6339 = vshrl.u32 %v6338, 7
    %v6340 = vsub.s32 2, %v6339
    %v6341 = vrot.slane %v6326, %v6340
    %v6342 = vlaneseq
    %v6343 = vshrl.u32 %v6342, 7
    %v6344 = vsub.s32 3, %v6343
    %v6345 = vrot.slane %v6326, %v6344
    %v6348 = vsel %vm1228, %v6331, %v6341
    %v6349 = vsel %vm1228, %v6335, %v6345
    %v6350 = vpack.c.bf16 %v6348, %v6348
    %v6351 = vpack.c.bf16 %v6349, %v6349
    %s6352 = scalar_lea.vmem %s6, 3328
    %v6353 = vld [vmem:[%s6352] sm:$0xf]
    %v6354 = vld [vmem:[%s6352 + $0x4] sm:$0xf]
    %v6355 = vld [vmem:[%s6352 + $0x8] sm:$0xf]
    %v6356 = vld [vmem:[%s6352 + $0xc] sm:$0xf]
    %v6357 = vld [vmem:[%s6352 + $0x10] sm:$0xf]
    %v6358 = vld [vmem:[%s6352 + $0x14] sm:$0xf]
    %v6359 = vld [vmem:[%s6352 + $0x18] sm:$0xf]
    %v6360 = vld [vmem:[%s6352 + $0x1c] sm:$0xf]
    %v6361 = vld [vmem:[%s6352 + $0x20] sm:$0xf]
    %v6362 = vld [vmem:[%s6352 + $0x24] sm:$0xf]
    %v6363 = vld [vmem:[%s6352 + $0x28] sm:$0xf]
    %v6364 = vld [vmem:[%s6352 + $0x2c] sm:$0xf]
    %v6365 = vld [vmem:[%s6352 + $0x30] sm:$0xf]
    %v6366 = vld [vmem:[%s6352 + $0x34] sm:$0xf]
    %v6367 = vld [vmem:[%s6352 + $0x38] sm:$0xf]
    %v6368 = vld [vmem:[%s6352 + $0x3c] sm:$0xf]
    %v6369 = vld [vmem:[%s6352 + $0x40] sm:$0xf]
    %v6370 = vld [vmem:[%s6352 + $0x44] sm:$0xf]
    %v6371 = vld [vmem:[%s6352 + $0x48] sm:$0xf]
    %v6372 = vld [vmem:[%s6352 + $0x4c] sm:$0xf]
    %v6373 = vld [vmem:[%s6352 + $0x50] sm:$0xf]
    %v6374 = vld [vmem:[%s6352 + $0x54] sm:$0xf]
    %v6375 = vld [vmem:[%s6352 + $0x58] sm:$0xf]
    %v6376 = vld [vmem:[%s6352 + $0x5c] sm:$0xf]
    %v6377 = vld [vmem:[%s6352 + $0x60] sm:$0xf]
    %v6378 = vld [vmem:[%s6352 + $0x64] sm:$0xf]
    %v6379 = vld [vmem:[%s6352 + $0x68] sm:$0xf]
    %v6380 = vld [vmem:[%s6352 + $0x6c] sm:$0xf]
    %v6381 = vld [vmem:[%s6352 + $0x70] sm:$0xf]
    %v6382 = vld [vmem:[%s6352 + $0x74] sm:$0xf]
    %v6383 = vld [vmem:[%s6352 + $0x78] sm:$0xf]
    %v6384 = vld [vmem:[%s6352 + $0x7c] sm:$0xf]
    %v6417 = vunpack.c.l.b16 %v6353
    %v6418 = vunpack.c.l.b16 %v6354
    %v6419 = vunpack.c.l.b16 %v6355
    %v6420 = vunpack.c.l.b16 %v6356
    %v6421 = vunpack.c.l.b16 %v6357
    %v6422 = vunpack.c.l.b16 %v6358
    %v6423 = vunpack.c.l.b16 %v6359
    %v6424 = vunpack.c.l.b16 %v6360
    %v6425 = vunpack.c.l.b16 %v6361
    %v6426 = vunpack.c.l.b16 %v6362
    %v6427 = vunpack.c.l.b16 %v6363
    %v6428 = vunpack.c.l.b16 %v6364
    %v6429 = vunpack.c.l.b16 %v6365
    %v6430 = vunpack.c.l.b16 %v6366
    %v6431 = vunpack.c.l.b16 %v6367
    %v6432 = vunpack.c.l.b16 %v6368
    %v6433 = vunpack.c.l.b16 %v6369
    %v6434 = vunpack.c.l.b16 %v6370
    %v6435 = vunpack.c.l.b16 %v6371
    %v6436 = vunpack.c.l.b16 %v6372
    %v6437 = vunpack.c.l.b16 %v6373
    %v6438 = vunpack.c.l.b16 %v6374
    %v6439 = vunpack.c.l.b16 %v6375
    %v6440 = vunpack.c.l.b16 %v6376
    %v6441 = vunpack.c.l.b16 %v6377
    %v6442 = vunpack.c.l.b16 %v6378
    %v6443 = vunpack.c.l.b16 %v6379
    %v6444 = vunpack.c.l.b16 %v6380
    %v6445 = vunpack.c.l.b16 %v6381
    %v6446 = vunpack.c.l.b16 %v6382
    %v6447 = vunpack.c.l.b16 %v6383
    %v6448 = vunpack.c.l.b16 %v6384
    %v6449 = vpack.c.b16 %v6418, %v6417
    %v6450 = vpack.c.b16 %v6420, %v6419
    %v6451 = vpack.c.b16 %v6422, %v6421
    %v6452 = vpack.c.b16 %v6424, %v6423
    %v6453 = vpack.c.b16 %v6426, %v6425
    %v6454 = vpack.c.b16 %v6428, %v6427
    %v6455 = vpack.c.b16 %v6430, %v6429
    %v6456 = vpack.c.b16 %v6432, %v6431
    %v6457 = vpack.c.b16 %v6434, %v6433
    %v6458 = vpack.c.b16 %v6436, %v6435
    %v6459 = vpack.c.b16 %v6438, %v6437
    %v6460 = vpack.c.b16 %v6440, %v6439
    %v6461 = vpack.c.b16 %v6442, %v6441
    %v6462 = vpack.c.b16 %v6444, %v6443
    %v6463 = vpack.c.b16 %v6446, %v6445
    %v6464 = vpack.c.b16 %v6448, %v6447
    %6481 = vmatprep.subr.bf16.mxu0 0
    %6482 = vmatpush1.bf16.msra.mxu0 %v6456
    %6483 = vmatprep.subr.bf16.mxu0 0
    %6484 = vmatpush1.bf16.msra.mxu0 %v6455
    %6485 = vmatprep.subr.bf16.mxu0 0
    %6486 = vmatpush1.bf16.msra.mxu0 %v6454
    %6487 = vmatprep.subr.bf16.mxu0 0
    %6488 = vmatpush1.bf16.msra.mxu0 %v6453
    %6489 = vmatprep.subr.bf16.mxu0 0
    %6490 = vmatpush1.bf16.msra.mxu0 %v6452
    %6491 = vmatprep.subr.bf16.mxu0 0
    %6492 = vmatpush1.bf16.msra.mxu0 %v6451
    %6493 = vmatprep.subr.bf16.mxu0 0
    %6494 = vmatpush1.bf16.msra.mxu0 %v6450
    %6495 = vmatprep.subr.bf16.mxu0 0
    %6496 = vmatpush1.bf16.msra.mxu0 %v6449
    %6497 = vmatprep.subr.bf16.mxu0 0
    %6498 = vmatpush2.bf16.msra.mxu0 %v6464
    %6499 = vmatprep.subr.bf16.mxu0 0
    %6500 = vmatpush2.bf16.msra.mxu0 %v6463
    %6501 = vmatprep.subr.bf16.mxu0 0
    %6502 = vmatpush2.bf16.msra.mxu0 %v6462
    %6503 = vmatprep.subr.bf16.mxu0 0
    %6504 = vmatpush2.bf16.msra.mxu0 %v6461
    %6505 = vmatprep.subr.bf16.mxu0 0
    %6506 = vmatpush2.bf16.msra.mxu0 %v6460
    %6507 = vmatprep.subr.bf16.mxu0 0
    %6508 = vmatpush2.bf16.msra.mxu0 %v6459
    %6509 = vmatprep.subr.bf16.mxu0 0
    %6510 = vmatpush2.bf16.msra.mxu0 %v6458
    %6511 = vmatprep.subr.bf16.mxu0 0
    %6512 = vmatpush2.bf16.msra.mxu0 %v6457
    %6513 = vmatprep.mubr.bf16.mxu0 %v6351
    %6514 = vmatmul.mubr.bf16.gmra.mxu0 %v6350
    %v6515 = vpop.f32.mrf.mxu0
    %v6516 = vadd.f32 0.0, %v6515
    %v6517 = vpop.f32.mrf.mxu0
    %v6518 = vpop.f32.mrf.mxu0
    %v6519 = vpop.f32.mrf.mxu0
    %6520 = vdwg.mxu0
    %v6521 = vadd.f32 %v6324, %v6516
    %s6522 = scalar_lea.vmem [#allocation2], 99
    %v6523 = vld [vmem:[%s6522] ss:$8 sm:$0xf]
    %v6525 = vlaneseq
    %v6526 = vshrl.u32 %v6525, 7
    %v6527 = vsub.s32 0, %v6526
    %v6528 = vrot.slane %v6523, %v6527
    %v6529 = vlaneseq
    %v6530 = vshrl.u32 %v6529, 7
    %v6531 = vsub.s32 1, %v6530
    %v6532 = vrot.slane %v6523, %v6531
    %v6535 = vlaneseq
    %v6536 = vshrl.u32 %v6535, 7
    %v6537 = vsub.s32 2, %v6536
    %v6538 = vrot.slane %v6523, %v6537
    %v6539 = vlaneseq
    %v6540 = vshrl.u32 %v6539, 7
    %v6541 = vsub.s32 3, %v6540
    %v6542 = vrot.slane %v6523, %v6541
    %v6545 = vsel %vm1228, %v6528, %v6538
    %v6546 = vsel %vm1228, %v6532, %v6542
    %v6547 = vpack.c.bf16 %v6545, %v6545
    %v6548 = vpack.c.bf16 %v6546, %v6546
    %s6549 = scalar_lea.vmem %s6, 3456
    %v6550 = vld [vmem:[%s6549] sm:$0xf]
    %v6551 = vld [vmem:[%s6549 + $0x4] sm:$0xf]
    %v6552 = vld [vmem:[%s6549 + $0x8] sm:$0xf]
    %v6553 = vld [vmem:[%s6549 + $0xc] sm:$0xf]
    %v6554 = vld [vmem:[%s6549 + $0x10] sm:$0xf]
    %v6555 = vld [vmem:[%s6549 + $0x14] sm:$0xf]
    %v6556 = vld [vmem:[%s6549 + $0x18] sm:$0xf]
    %v6557 = vld [vmem:[%s6549 + $0x1c] sm:$0xf]
    %v6558 = vld [vmem:[%s6549 + $0x20] sm:$0xf]
    %v6559 = vld [vmem:[%s6549 + $0x24] sm:$0xf]
    %v6560 = vld [vmem:[%s6549 + $0x28] sm:$0xf]
    %v6561 = vld [vmem:[%s6549 + $0x2c] sm:$0xf]
    %v6562 = vld [vmem:[%s6549 + $0x30] sm:$0xf]
    %v6563 = vld [vmem:[%s6549 + $0x34] sm:$0xf]
    %v6564 = vld [vmem:[%s6549 + $0x38] sm:$0xf]
    %v6565 = vld [vmem:[%s6549 + $0x3c] sm:$0xf]
    %v6566 = vld [vmem:[%s6549 + $0x40] sm:$0xf]
    %v6567 = vld [vmem:[%s6549 + $0x44] sm:$0xf]
    %v6568 = vld [vmem:[%s6549 + $0x48] sm:$0xf]
    %v6569 = vld [vmem:[%s6549 + $0x4c] sm:$0xf]
    %v6570 = vld [vmem:[%s6549 + $0x50] sm:$0xf]
    %v6571 = vld [vmem:[%s6549 + $0x54] sm:$0xf]
    %v6572 = vld [vmem:[%s6549 + $0x58] sm:$0xf]
    %v6573 = vld [vmem:[%s6549 + $0x5c] sm:$0xf]
    %v6574 = vld [vmem:[%s6549 + $0x60] sm:$0xf]
    %v6575 = vld [vmem:[%s6549 + $0x64] sm:$0xf]
    %v6576 = vld [vmem:[%s6549 + $0x68] sm:$0xf]
    %v6577 = vld [vmem:[%s6549 + $0x6c] sm:$0xf]
    %v6578 = vld [vmem:[%s6549 + $0x70] sm:$0xf]
    %v6579 = vld [vmem:[%s6549 + $0x74] sm:$0xf]
    %v6580 = vld [vmem:[%s6549 + $0x78] sm:$0xf]
    %v6581 = vld [vmem:[%s6549 + $0x7c] sm:$0xf]
    %v6614 = vunpack.c.l.b16 %v6550
    %v6615 = vunpack.c.l.b16 %v6551
    %v6616 = vunpack.c.l.b16 %v6552
    %v6617 = vunpack.c.l.b16 %v6553
    %v6618 = vunpack.c.l.b16 %v6554
    %v6619 = vunpack.c.l.b16 %v6555
    %v6620 = vunpack.c.l.b16 %v6556
    %v6621 = vunpack.c.l.b16 %v6557
    %v6622 = vunpack.c.l.b16 %v6558
    %v6623 = vunpack.c.l.b16 %v6559
    %v6624 = vunpack.c.l.b16 %v6560
    %v6625 = vunpack.c.l.b16 %v6561
    %v6626 = vunpack.c.l.b16 %v6562
    %v6627 = vunpack.c.l.b16 %v6563
    %v6628 = vunpack.c.l.b16 %v6564
    %v6629 = vunpack.c.l.b16 %v6565
    %v6630 = vunpack.c.l.b16 %v6566
    %v6631 = vunpack.c.l.b16 %v6567
    %v6632 = vunpack.c.l.b16 %v6568
    %v6633 = vunpack.c.l.b16 %v6569
    %v6634 = vunpack.c.l.b16 %v6570
    %v6635 = vunpack.c.l.b16 %v6571
    %v6636 = vunpack.c.l.b16 %v6572
    %v6637 = vunpack.c.l.b16 %v6573
    %v6638 = vunpack.c.l.b16 %v6574
    %v6639 = vunpack.c.l.b16 %v6575
    %v6640 = vunpack.c.l.b16 %v6576
    %v6641 = vunpack.c.l.b16 %v6577
    %v6642 = vunpack.c.l.b16 %v6578
    %v6643 = vunpack.c.l.b16 %v6579
    %v6644 = vunpack.c.l.b16 %v6580
    %v6645 = vunpack.c.l.b16 %v6581
    %v6646 = vpack.c.b16 %v6615, %v6614
    %v6647 = vpack.c.b16 %v6617, %v6616
    %v6648 = vpack.c.b16 %v6619, %v6618
    %v6649 = vpack.c.b16 %v6621, %v6620
    %v6650 = vpack.c.b16 %v6623, %v6622
    %v6651 = vpack.c.b16 %v6625, %v6624
    %v6652 = vpack.c.b16 %v6627, %v6626
    %v6653 = vpack.c.b16 %v6629, %v6628
    %v6654 = vpack.c.b16 %v6631, %v6630
    %v6655 = vpack.c.b16 %v6633, %v6632
    %v6656 = vpack.c.b16 %v6635, %v6634
    %v6657 = vpack.c.b16 %v6637, %v6636
    %v6658 = vpack.c.b16 %v6639, %v6638
    %v6659 = vpack.c.b16 %v6641, %v6640
    %v6660 = vpack.c.b16 %v6643, %v6642
    %v6661 = vpack.c.b16 %v6645, %v6644
    %6678 = vmatprep.subr.bf16.mxu0 0
    %6679 = vmatpush1.bf16.msra.mxu0 %v6653
    %6680 = vmatprep.subr.bf16.mxu0 0
    %6681 = vmatpush1.bf16.msra.mxu0 %v6652
    %6682 = vmatprep.subr.bf16.mxu0 0
    %6683 = vmatpush1.bf16.msra.mxu0 %v6651
    %6684 = vmatprep.subr.bf16.mxu0 0
    %6685 = vmatpush1.bf16.msra.mxu0 %v6650
    %6686 = vmatprep.subr.bf16.mxu0 0
    %6687 = vmatpush1.bf16.msra.mxu0 %v6649
    %6688 = vmatprep.subr.bf16.mxu0 0
    %6689 = vmatpush1.bf16.msra.mxu0 %v6648
    %6690 = vmatprep.subr.bf16.mxu0 0
    %6691 = vmatpush1.bf16.msra.mxu0 %v6647
    %6692 = vmatprep.subr.bf16.mxu0 0
    %6693 = vmatpush1.bf16.msra.mxu0 %v6646
    %6694 = vmatprep.subr.bf16.mxu0 0
    %6695 = vmatpush2.bf16.msra.mxu0 %v6661
    %6696 = vmatprep.subr.bf16.mxu0 0
    %6697 = vmatpush2.bf16.msra.mxu0 %v6660
    %6698 = vmatprep.subr.bf16.mxu0 0
    %6699 = vmatpush2.bf16.msra.mxu0 %v6659
    %6700 = vmatprep.subr.bf16.mxu0 0
    %6701 = vmatpush2.bf16.msra.mxu0 %v6658
    %6702 = vmatprep.subr.bf16.mxu0 0
    %6703 = vmatpush2.bf16.msra.mxu0 %v6657
    %6704 = vmatprep.subr.bf16.mxu0 0
    %6705 = vmatpush2.bf16.msra.mxu0 %v6656
    %6706 = vmatprep.subr.bf16.mxu0 0
    %6707 = vmatpush2.bf16.msra.mxu0 %v6655
    %6708 = vmatprep.subr.bf16.mxu0 0
    %6709 = vmatpush2.bf16.msra.mxu0 %v6654
    %6710 = vmatprep.mubr.bf16.mxu0 %v6548
    %6711 = vmatmul.mubr.bf16.gmra.mxu0 %v6547
    %v6712 = vpop.f32.mrf.mxu0
    %v6713 = vadd.f32 0.0, %v6712
    %v6714 = vpop.f32.mrf.mxu0
    %v6715 = vpop.f32.mrf.mxu0
    %v6716 = vpop.f32.mrf.mxu0
    %6717 = vdwg.mxu0
    %v6718 = vadd.f32 %v6521, %v6713
    %s6719 = scalar_lea.vmem [#allocation2], 100
    %v6720 = vld [vmem:[%s6719] ss:$8 sm:$0xf]
    %v6722 = vlaneseq
    %v6723 = vshrl.u32 %v6722, 7
    %v6724 = vsub.s32 0, %v6723
    %v6725 = vrot.slane %v6720, %v6724
    %v6726 = vlaneseq
    %v6727 = vshrl.u32 %v6726, 7
    %v6728 = vsub.s32 1, %v6727
    %v6729 = vrot.slane %v6720, %v6728
    %v6732 = vlaneseq
    %v6733 = vshrl.u32 %v6732, 7
    %v6734 = vsub.s32 2, %v6733
    %v6735 = vrot.slane %v6720, %v6734
    %v6736 = vlaneseq
    %v6737 = vshrl.u32 %v6736, 7
    %v6738 = vsub.s32 3, %v6737
    %v6739 = vrot.slane %v6720, %v6738
    %v6742 = vsel %vm1228, %v6725, %v6735
    %v6743 = vsel %vm1228, %v6729, %v6739
    %v6744 = vpack.c.bf16 %v6742, %v6742
    %v6745 = vpack.c.bf16 %v6743, %v6743
    %s6746 = scalar_lea.vmem %s6, 3584
    %v6747 = vld [vmem:[%s6746] sm:$0xf]
    %v6748 = vld [vmem:[%s6746 + $0x4] sm:$0xf]
    %v6749 = vld [vmem:[%s6746 + $0x8] sm:$0xf]
    %v6750 = vld [vmem:[%s6746 + $0xc] sm:$0xf]
    %v6751 = vld [vmem:[%s6746 + $0x10] sm:$0xf]
    %v6752 = vld [vmem:[%s6746 + $0x14] sm:$0xf]
    %v6753 = vld [vmem:[%s6746 + $0x18] sm:$0xf]
    %v6754 = vld [vmem:[%s6746 + $0x1c] sm:$0xf]
    %v6755 = vld [vmem:[%s6746 + $0x20] sm:$0xf]
    %v6756 = vld [vmem:[%s6746 + $0x24] sm:$0xf]
    %v6757 = vld [vmem:[%s6746 + $0x28] sm:$0xf]
    %v6758 = vld [vmem:[%s6746 + $0x2c] sm:$0xf]
    %v6759 = vld [vmem:[%s6746 + $0x30] sm:$0xf]
    %v6760 = vld [vmem:[%s6746 + $0x34] sm:$0xf]
    %v6761 = vld [vmem:[%s6746 + $0x38] sm:$0xf]
    %v6762 = vld [vmem:[%s6746 + $0x3c] sm:$0xf]
    %v6763 = vld [vmem:[%s6746 + $0x40] sm:$0xf]
    %v6764 = vld [vmem:[%s6746 + $0x44] sm:$0xf]
    %v6765 = vld [vmem:[%s6746 + $0x48] sm:$0xf]
    %v6766 = vld [vmem:[%s6746 + $0x4c] sm:$0xf]
    %v6767 = vld [vmem:[%s6746 + $0x50] sm:$0xf]
    %v6768 = vld [vmem:[%s6746 + $0x54] sm:$0xf]
    %v6769 = vld [vmem:[%s6746 + $0x58] sm:$0xf]
    %v6770 = vld [vmem:[%s6746 + $0x5c] sm:$0xf]
    %v6771 = vld [vmem:[%s6746 + $0x60] sm:$0xf]
    %v6772 = vld [vmem:[%s6746 + $0x64] sm:$0xf]
    %v6773 = vld [vmem:[%s6746 + $0x68] sm:$0xf]
    %v6774 = vld [vmem:[%s6746 + $0x6c] sm:$0xf]
    %v6775 = vld [vmem:[%s6746 + $0x70] sm:$0xf]
    %v6776 = vld [vmem:[%s6746 + $0x74] sm:$0xf]
    %v6777 = vld [vmem:[%s6746 + $0x78] sm:$0xf]
    %v6778 = vld [vmem:[%s6746 + $0x7c] sm:$0xf]
    %v6811 = vunpack.c.l.b16 %v6747
    %v6812 = vunpack.c.l.b16 %v6748
    %v6813 = vunpack.c.l.b16 %v6749
    %v6814 = vunpack.c.l.b16 %v6750
    %v6815 = vunpack.c.l.b16 %v6751
    %v6816 = vunpack.c.l.b16 %v6752
    %v6817 = vunpack.c.l.b16 %v6753
    %v6818 = vunpack.c.l.b16 %v6754
    %v6819 = vunpack.c.l.b16 %v6755
    %v6820 = vunpack.c.l.b16 %v6756
    %v6821 = vunpack.c.l.b16 %v6757
    %v6822 = vunpack.c.l.b16 %v6758
    %v6823 = vunpack.c.l.b16 %v6759
    %v6824 = vunpack.c.l.b16 %v6760
    %v6825 = vunpack.c.l.b16 %v6761
    %v6826 = vunpack.c.l.b16 %v6762
    %v6827 = vunpack.c.l.b16 %v6763
    %v6828 = vunpack.c.l.b16 %v6764
    %v6829 = vunpack.c.l.b16 %v6765
    %v6830 = vunpack.c.l.b16 %v6766
    %v6831 = vunpack.c.l.b16 %v6767
    %v6832 = vunpack.c.l.b16 %v6768
    %v6833 = vunpack.c.l.b16 %v6769
    %v6834 = vunpack.c.l.b16 %v6770
    %v6835 = vunpack.c.l.b16 %v6771
    %v6836 = vunpack.c.l.b16 %v6772
    %v6837 = vunpack.c.l.b16 %v6773
    %v6838 = vunpack.c.l.b16 %v6774
    %v6839 = vunpack.c.l.b16 %v6775
    %v6840 = vunpack.c.l.b16 %v6776
    %v6841 = vunpack.c.l.b16 %v6777
    %v6842 = vunpack.c.l.b16 %v6778
    %v6843 = vpack.c.b16 %v6812, %v6811
    %v6844 = vpack.c.b16 %v6814, %v6813
    %v6845 = vpack.c.b16 %v6816, %v6815
    %v6846 = vpack.c.b16 %v6818, %v6817
    %v6847 = vpack.c.b16 %v6820, %v6819
    %v6848 = vpack.c.b16 %v6822, %v6821
    %v6849 = vpack.c.b16 %v6824, %v6823
    %v6850 = vpack.c.b16 %v6826, %v6825
    %v6851 = vpack.c.b16 %v6828, %v6827
    %v6852 = vpack.c.b16 %v6830, %v6829
    %v6853 = vpack.c.b16 %v6832, %v6831
    %v6854 = vpack.c.b16 %v6834, %v6833
    %v6855 = vpack.c.b16 %v6836, %v6835
    %v6856 = vpack.c.b16 %v6838, %v6837
    %v6857 = vpack.c.b16 %v6840, %v6839
    %v6858 = vpack.c.b16 %v6842, %v6841
    %6875 = vmatprep.subr.bf16.mxu0 0
    %6876 = vmatpush1.bf16.msra.mxu0 %v6850
    %6877 = vmatprep.subr.bf16.mxu0 0
    %6878 = vmatpush1.bf16.msra.mxu0 %v6849
    %6879 = vmatprep.subr.bf16.mxu0 0
    %6880 = vmatpush1.bf16.msra.mxu0 %v6848
    %6881 = vmatprep.subr.bf16.mxu0 0
    %6882 = vmatpush1.bf16.msra.mxu0 %v6847
    %6883 = vmatprep.subr.bf16.mxu0 0
    %6884 = vmatpush1.bf16.msra.mxu0 %v6846
    %6885 = vmatprep.subr.bf16.mxu0 0
    %6886 = vmatpush1.bf16.msra.mxu0 %v6845
    %6887 = vmatprep.subr.bf16.mxu0 0
    %6888 = vmatpush1.bf16.msra.mxu0 %v6844
    %6889 = vmatprep.subr.bf16.mxu0 0
    %6890 = vmatpush1.bf16.msra.mxu0 %v6843
    %6891 = vmatprep.subr.bf16.mxu0 0
    %6892 = vmatpush2.bf16.msra.mxu0 %v6858
    %6893 = vmatprep.subr.bf16.mxu0 0
    %6894 = vmatpush2.bf16.msra.mxu0 %v6857
    %6895 = vmatprep.subr.bf16.mxu0 0
    %6896 = vmatpush2.bf16.msra.mxu0 %v6856
    %6897 = vmatprep.subr.bf16.mxu0 0
    %6898 = vmatpush2.bf16.msra.mxu0 %v6855
    %6899 = vmatprep.subr.bf16.mxu0 0
    %6900 = vmatpush2.bf16.msra.mxu0 %v6854
    %6901 = vmatprep.subr.bf16.mxu0 0
    %6902 = vmatpush2.bf16.msra.mxu0 %v6853
    %6903 = vmatprep.subr.bf16.mxu0 0
    %6904 = vmatpush2.bf16.msra.mxu0 %v6852
    %6905 = vmatprep.subr.bf16.mxu0 0
    %6906 = vmatpush2.bf16.msra.mxu0 %v6851
    %6907 = vmatprep.mubr.bf16.mxu0 %v6745
    %6908 = vmatmul.mubr.bf16.gmra.mxu0 %v6744
    %v6909 = vpop.f32.mrf.mxu0
    %v6910 = vadd.f32 0.0, %v6909
    %v6911 = vpop.f32.mrf.mxu0
    %v6912 = vpop.f32.mrf.mxu0
    %v6913 = vpop.f32.mrf.mxu0
    %6914 = vdwg.mxu0
    %v6915 = vadd.f32 %v6718, %v6910
    %s6916 = scalar_lea.vmem [#allocation2], 101
    %v6917 = vld [vmem:[%s6916] ss:$8 sm:$0xf]
    %v6919 = vlaneseq
    %v6920 = vshrl.u32 %v6919, 7
    %v6921 = vsub.s32 0, %v6920
    %v6922 = vrot.slane %v6917, %v6921
    %v6923 = vlaneseq
    %v6924 = vshrl.u32 %v6923, 7
    %v6925 = vsub.s32 1, %v6924
    %v6926 = vrot.slane %v6917, %v6925
    %v6929 = vlaneseq
    %v6930 = vshrl.u32 %v6929, 7
    %v6931 = vsub.s32 2, %v6930
    %v6932 = vrot.slane %v6917, %v6931
    %v6933 = vlaneseq
    %v6934 = vshrl.u32 %v6933, 7
    %v6935 = vsub.s32 3, %v6934
    %v6936 = vrot.slane %v6917, %v6935
    %v6939 = vsel %vm1228, %v6922, %v6932
    %v6940 = vsel %vm1228, %v6926, %v6936
    %v6941 = vpack.c.bf16 %v6939, %v6939
    %v6942 = vpack.c.bf16 %v6940, %v6940
    %s6943 = scalar_lea.vmem %s6, 3712
    %v6944 = vld [vmem:[%s6943] sm:$0xf]
    %v6945 = vld [vmem:[%s6943 + $0x4] sm:$0xf]
    %v6946 = vld [vmem:[%s6943 + $0x8] sm:$0xf]
    %v6947 = vld [vmem:[%s6943 + $0xc] sm:$0xf]
    %v6948 = vld [vmem:[%s6943 + $0x10] sm:$0xf]
    %v6949 = vld [vmem:[%s6943 + $0x14] sm:$0xf]
    %v6950 = vld [vmem:[%s6943 + $0x18] sm:$0xf]
    %v6951 = vld [vmem:[%s6943 + $0x1c] sm:$0xf]
    %v6952 = vld [vmem:[%s6943 + $0x20] sm:$0xf]
    %v6953 = vld [vmem:[%s6943 + $0x24] sm:$0xf]
    %v6954 = vld [vmem:[%s6943 + $0x28] sm:$0xf]
    %v6955 = vld [vmem:[%s6943 + $0x2c] sm:$0xf]
    %v6956 = vld [vmem:[%s6943 + $0x30] sm:$0xf]
    %v6957 = vld [vmem:[%s6943 + $0x34] sm:$0xf]
    %v6958 = vld [vmem:[%s6943 + $0x38] sm:$0xf]
    %v6959 = vld [vmem:[%s6943 + $0x3c] sm:$0xf]
    %v6960 = vld [vmem:[%s6943 + $0x40] sm:$0xf]
    %v6961 = vld [vmem:[%s6943 + $0x44] sm:$0xf]
    %v6962 = vld [vmem:[%s6943 + $0x48] sm:$0xf]
    %v6963 = vld [vmem:[%s6943 + $0x4c] sm:$0xf]
    %v6964 = vld [vmem:[%s6943 + $0x50] sm:$0xf]
    %v6965 = vld [vmem:[%s6943 + $0x54] sm:$0xf]
    %v6966 = vld [vmem:[%s6943 + $0x58] sm:$0xf]
    %v6967 = vld [vmem:[%s6943 + $0x5c] sm:$0xf]
    %v6968 = vld [vmem:[%s6943 + $0x60] sm:$0xf]
    %v6969 = vld [vmem:[%s6943 + $0x64] sm:$0xf]
    %v6970 = vld [vmem:[%s6943 + $0x68] sm:$0xf]
    %v6971 = vld [vmem:[%s6943 + $0x6c] sm:$0xf]
    %v6972 = vld [vmem:[%s6943 + $0x70] sm:$0xf]
    %v6973 = vld [vmem:[%s6943 + $0x74] sm:$0xf]
    %v6974 = vld [vmem:[%s6943 + $0x78] sm:$0xf]
    %v6975 = vld [vmem:[%s6943 + $0x7c] sm:$0xf]
    %v7008 = vunpack.c.l.b16 %v6944
    %v7009 = vunpack.c.l.b16 %v6945
    %v7010 = vunpack.c.l.b16 %v6946
    %v7011 = vunpack.c.l.b16 %v6947
    %v7012 = vunpack.c.l.b16 %v6948
    %v7013 = vunpack.c.l.b16 %v6949
    %v7014 = vunpack.c.l.b16 %v6950
    %v7015 = vunpack.c.l.b16 %v6951
    %v7016 = vunpack.c.l.b16 %v6952
    %v7017 = vunpack.c.l.b16 %v6953
    %v7018 = vunpack.c.l.b16 %v6954
    %v7019 = vunpack.c.l.b16 %v6955
    %v7020 = vunpack.c.l.b16 %v6956
    %v7021 = vunpack.c.l.b16 %v6957
    %v7022 = vunpack.c.l.b16 %v6958
    %v7023 = vunpack.c.l.b16 %v6959
    %v7024 = vunpack.c.l.b16 %v6960
    %v7025 = vunpack.c.l.b16 %v6961
    %v7026 = vunpack.c.l.b16 %v6962
    %v7027 = vunpack.c.l.b16 %v6963
    %v7028 = vunpack.c.l.b16 %v6964
    %v7029 = vunpack.c.l.b16 %v6965
    %v7030 = vunpack.c.l.b16 %v6966
    %v7031 = vunpack.c.l.b16 %v6967
    %v7032 = vunpack.c.l.b16 %v6968
    %v7033 = vunpack.c.l.b16 %v6969
    %v7034 = vunpack.c.l.b16 %v6970
    %v7035 = vunpack.c.l.b16 %v6971
    %v7036 = vunpack.c.l.b16 %v6972
    %v7037 = vunpack.c.l.b16 %v6973
    %v7038 = vunpack.c.l.b16 %v6974
    %v7039 = vunpack.c.l.b16 %v6975
    %v7040 = vpack.c.b16 %v7009, %v7008
    %v7041 = vpack.c.b16 %v7011, %v7010
    %v7042 = vpack.c.b16 %v7013, %v7012
    %v7043 = vpack.c.b16 %v7015, %v7014
    %v7044 = vpack.c.b16 %v7017, %v7016
    %v7045 = vpack.c.b16 %v7019, %v7018
    %v7046 = vpack.c.b16 %v7021, %v7020
    %v7047 = vpack.c.b16 %v7023, %v7022
    %v7048 = vpack.c.b16 %v7025, %v7024
    %v7049 = vpack.c.b16 %v7027, %v7026
    %v7050 = vpack.c.b16 %v7029, %v7028
    %v7051 = vpack.c.b16 %v7031, %v7030
    %v7052 = vpack.c.b16 %v7033, %v7032
    %v7053 = vpack.c.b16 %v7035, %v7034
    %v7054 = vpack.c.b16 %v7037, %v7036
    %v7055 = vpack.c.b16 %v7039, %v7038
    %7072 = vmatprep.subr.bf16.mxu0 0
    %7073 = vmatpush1.bf16.msra.mxu0 %v7047
    %7074 = vmatprep.subr.bf16.mxu0 0
    %7075 = vmatpush1.bf16.msra.mxu0 %v7046
    %7076 = vmatprep.subr.bf16.mxu0 0
    %7077 = vmatpush1.bf16.msra.mxu0 %v7045
    %7078 = vmatprep.subr.bf16.mxu0 0
    %7079 = vmatpush1.bf16.msra.mxu0 %v7044
    %7080 = vmatprep.subr.bf16.mxu0 0
    %7081 = vmatpush1.bf16.msra.mxu0 %v7043
    %7082 = vmatprep.subr.bf16.mxu0 0
    %7083 = vmatpush1.bf16.msra.mxu0 %v7042
    %7084 = vmatprep.subr.bf16.mxu0 0
    %7085 = vmatpush1.bf16.msra.mxu0 %v7041
    %7086 = vmatprep.subr.bf16.mxu0 0
    %7087 = vmatpush1.bf16.msra.mxu0 %v7040
    %7088 = vmatprep.subr.bf16.mxu0 0
    %7089 = vmatpush2.bf16.msra.mxu0 %v7055
    %7090 = vmatprep.subr.bf16.mxu0 0
    %7091 = vmatpush2.bf16.msra.mxu0 %v7054
    %7092 = vmatprep.subr.bf16.mxu0 0
    %7093 = vmatpush2.bf16.msra.mxu0 %v7053
    %7094 = vmatprep.subr.bf16.mxu0 0
    %7095 = vmatpush2.bf16.msra.mxu0 %v7052
    %7096 = vmatprep.subr.bf16.mxu0 0
    %7097 = vmatpush2.bf16.msra.mxu0 %v7051
    %7098 = vmatprep.subr.bf16.mxu0 0
    %7099 = vmatpush2.bf16.msra.mxu0 %v7050
    %7100 = vmatprep.subr.bf16.mxu0 0
    %7101 = vmatpush2.bf16.msra.mxu0 %v7049
    %7102 = vmatprep.subr.bf16.mxu0 0
    %7103 = vmatpush2.bf16.msra.mxu0 %v7048
    %7104 = vmatprep.mubr.bf16.mxu0 %v6942
    %7105 = vmatmul.mubr.bf16.gmra.mxu0 %v6941
    %v7106 = vpop.f32.mrf.mxu0
    %v7107 = vadd.f32 0.0, %v7106
    %v7108 = vpop.f32.mrf.mxu0
    %v7109 = vpop.f32.mrf.mxu0
    %v7110 = vpop.f32.mrf.mxu0
    %7111 = vdwg.mxu0
    %v7112 = vadd.f32 %v6915, %v7107
    %s7113 = scalar_lea.vmem [#allocation2], 102
    %v7114 = vld [vmem:[%s7113] ss:$8 sm:$0xf]
    %v7116 = vlaneseq
    %v7117 = vshrl.u32 %v7116, 7
    %v7118 = vsub.s32 0, %v7117
    %v7119 = vrot.slane %v7114, %v7118
    %v7120 = vlaneseq
    %v7121 = vshrl.u32 %v7120, 7
    %v7122 = vsub.s32 1, %v7121
    %v7123 = vrot.slane %v7114, %v7122
    %v7126 = vlaneseq
    %v7127 = vshrl.u32 %v7126, 7
    %v7128 = vsub.s32 2, %v7127
    %v7129 = vrot.slane %v7114, %v7128
    %v7130 = vlaneseq
    %v7131 = vshrl.u32 %v7130, 7
    %v7132 = vsub.s32 3, %v7131
    %v7133 = vrot.slane %v7114, %v7132
    %v7136 = vsel %vm1228, %v7119, %v7129
    %v7137 = vsel %vm1228, %v7123, %v7133
    %v7138 = vpack.c.bf16 %v7136, %v7136
    %v7139 = vpack.c.bf16 %v7137, %v7137
    %s7140 = scalar_lea.vmem %s6, 3840
    %v7141 = vld [vmem:[%s7140] sm:$0xf]
    %v7142 = vld [vmem:[%s7140 + $0x4] sm:$0xf]
    %v7143 = vld [vmem:[%s7140 + $0x8] sm:$0xf]
    %v7144 = vld [vmem:[%s7140 + $0xc] sm:$0xf]
    %v7145 = vld [vmem:[%s7140 + $0x10] sm:$0xf]
    %v7146 = vld [vmem:[%s7140 + $0x14] sm:$0xf]
    %v7147 = vld [vmem:[%s7140 + $0x18] sm:$0xf]
    %v7148 = vld [vmem:[%s7140 + $0x1c] sm:$0xf]
    %v7149 = vld [vmem:[%s7140 + $0x20] sm:$0xf]
    %v7150 = vld [vmem:[%s7140 + $0x24] sm:$0xf]
    %v7151 = vld [vmem:[%s7140 + $0x28] sm:$0xf]
    %v7152 = vld [vmem:[%s7140 + $0x2c] sm:$0xf]
    %v7153 = vld [vmem:[%s7140 + $0x30] sm:$0xf]
    %v7154 = vld [vmem:[%s7140 + $0x34] sm:$0xf]
    %v7155 = vld [vmem:[%s7140 + $0x38] sm:$0xf]
    %v7156 = vld [vmem:[%s7140 + $0x3c] sm:$0xf]
    %v7157 = vld [vmem:[%s7140 + $0x40] sm:$0xf]
    %v7158 = vld [vmem:[%s7140 + $0x44] sm:$0xf]
    %v7159 = vld [vmem:[%s7140 + $0x48] sm:$0xf]
    %v7160 = vld [vmem:[%s7140 + $0x4c] sm:$0xf]
    %v7161 = vld [vmem:[%s7140 + $0x50] sm:$0xf]
    %v7162 = vld [vmem:[%s7140 + $0x54] sm:$0xf]
    %v7163 = vld [vmem:[%s7140 + $0x58] sm:$0xf]
    %v7164 = vld [vmem:[%s7140 + $0x5c] sm:$0xf]
    %v7165 = vld [vmem:[%s7140 + $0x60] sm:$0xf]
    %v7166 = vld [vmem:[%s7140 + $0x64] sm:$0xf]
    %v7167 = vld [vmem:[%s7140 + $0x68] sm:$0xf]
    %v7168 = vld [vmem:[%s7140 + $0x6c] sm:$0xf]
    %v7169 = vld [vmem:[%s7140 + $0x70] sm:$0xf]
    %v7170 = vld [vmem:[%s7140 + $0x74] sm:$0xf]
    %v7171 = vld [vmem:[%s7140 + $0x78] sm:$0xf]
    %v7172 = vld [vmem:[%s7140 + $0x7c] sm:$0xf]
    %v7205 = vunpack.c.l.b16 %v7141
    %v7206 = vunpack.c.l.b16 %v7142
    %v7207 = vunpack.c.l.b16 %v7143
    %v7208 = vunpack.c.l.b16 %v7144
    %v7209 = vunpack.c.l.b16 %v7145
    %v7210 = vunpack.c.l.b16 %v7146
    %v7211 = vunpack.c.l.b16 %v7147
    %v7212 = vunpack.c.l.b16 %v7148
    %v7213 = vunpack.c.l.b16 %v7149
    %v7214 = vunpack.c.l.b16 %v7150
    %v7215 = vunpack.c.l.b16 %v7151
    %v7216 = vunpack.c.l.b16 %v7152
    %v7217 = vunpack.c.l.b16 %v7153
    %v7218 = vunpack.c.l.b16 %v7154
    %v7219 = vunpack.c.l.b16 %v7155
    %v7220 = vunpack.c.l.b16 %v7156
    %v7221 = vunpack.c.l.b16 %v7157
    %v7222 = vunpack.c.l.b16 %v7158
    %v7223 = vunpack.c.l.b16 %v7159
    %v7224 = vunpack.c.l.b16 %v7160
    %v7225 = vunpack.c.l.b16 %v7161
    %v7226 = vunpack.c.l.b16 %v7162
    %v7227 = vunpack.c.l.b16 %v7163
    %v7228 = vunpack.c.l.b16 %v7164
    %v7229 = vunpack.c.l.b16 %v7165
    %v7230 = vunpack.c.l.b16 %v7166
    %v7231 = vunpack.c.l.b16 %v7167
    %v7232 = vunpack.c.l.b16 %v7168
    %v7233 = vunpack.c.l.b16 %v7169
    %v7234 = vunpack.c.l.b16 %v7170
    %v7235 = vunpack.c.l.b16 %v7171
    %v7236 = vunpack.c.l.b16 %v7172
    %v7237 = vpack.c.b16 %v7206, %v7205
    %v7238 = vpack.c.b16 %v7208, %v7207
    %v7239 = vpack.c.b16 %v7210, %v7209
    %v7240 = vpack.c.b16 %v7212, %v7211
    %v7241 = vpack.c.b16 %v7214, %v7213
    %v7242 = vpack.c.b16 %v7216, %v7215
    %v7243 = vpack.c.b16 %v7218, %v7217
    %v7244 = vpack.c.b16 %v7220, %v7219
    %v7245 = vpack.c.b16 %v7222, %v7221
    %v7246 = vpack.c.b16 %v7224, %v7223
    %v7247 = vpack.c.b16 %v7226, %v7225
    %v7248 = vpack.c.b16 %v7228, %v7227
    %v7249 = vpack.c.b16 %v7230, %v7229
    %v7250 = vpack.c.b16 %v7232, %v7231
    %v7251 = vpack.c.b16 %v7234, %v7233
    %v7252 = vpack.c.b16 %v7236, %v7235
    %7269 = vmatprep.subr.bf16.mxu0 0
    %7270 = vmatpush1.bf16.msra.mxu0 %v7244
    %7271 = vmatprep.subr.bf16.mxu0 0
    %7272 = vmatpush1.bf16.msra.mxu0 %v7243
    %7273 = vmatprep.subr.bf16.mxu0 0
    %7274 = vmatpush1.bf16.msra.mxu0 %v7242
    %7275 = vmatprep.subr.bf16.mxu0 0
    %7276 = vmatpush1.bf16.msra.mxu0 %v7241
    %7277 = vmatprep.subr.bf16.mxu0 0
    %7278 = vmatpush1.bf16.msra.mxu0 %v7240
    %7279 = vmatprep.subr.bf16.mxu0 0
    %7280 = vmatpush1.bf16.msra.mxu0 %v7239
    %7281 = vmatprep.subr.bf16.mxu0 0
    %7282 = vmatpush1.bf16.msra.mxu0 %v7238
    %7283 = vmatprep.subr.bf16.mxu0 0
    %7284 = vmatpush1.bf16.msra.mxu0 %v7237
    %7285 = vmatprep.subr.bf16.mxu0 0
    %7286 = vmatpush2.bf16.msra.mxu0 %v7252
    %7287 = vmatprep.subr.bf16.mxu0 0
    %7288 = vmatpush2.bf16.msra.mxu0 %v7251
    %7289 = vmatprep.subr.bf16.mxu0 0
    %7290 = vmatpush2.bf16.msra.mxu0 %v7250
    %7291 = vmatprep.subr.bf16.mxu0 0
    %7292 = vmatpush2.bf16.msra.mxu0 %v7249
    %7293 = vmatprep.subr.bf16.mxu0 0
    %7294 = vmatpush2.bf16.msra.mxu0 %v7248
    %7295 = vmatprep.subr.bf16.mxu0 0
    %7296 = vmatpush2.bf16.msra.mxu0 %v7247
    %7297 = vmatprep.subr.bf16.mxu0 0
    %7298 = vmatpush2.bf16.msra.mxu0 %v7246
    %7299 = vmatprep.subr.bf16.mxu0 0
    %7300 = vmatpush2.bf16.msra.mxu0 %v7245
    %7301 = vmatprep.mubr.bf16.mxu0 %v7139
    %7302 = vmatmul.mubr.bf16.gmra.mxu0 %v7138
    %v7303 = vpop.f32.mrf.mxu0
    %v7304 = vadd.f32 0.0, %v7303
    %v7305 = vpop.f32.mrf.mxu0
    %v7306 = vpop.f32.mrf.mxu0
    %v7307 = vpop.f32.mrf.mxu0
    %7308 = vdwg.mxu0
    %v7309 = vadd.f32 %v7112, %v7304
    %s7310 = scalar_lea.vmem [#allocation2], 103
    %v7311 = vld [vmem:[%s7310] ss:$8 sm:$0xf]
    %v7313 = vlaneseq
    %v7314 = vshrl.u32 %v7313, 7
    %v7315 = vsub.s32 0, %v7314
    %v7316 = vrot.slane %v7311, %v7315
    %v7317 = vlaneseq
    %v7318 = vshrl.u32 %v7317, 7
    %v7319 = vsub.s32 1, %v7318
    %v7320 = vrot.slane %v7311, %v7319
    %v7323 = vlaneseq
    %v7324 = vshrl.u32 %v7323, 7
    %v7325 = vsub.s32 2, %v7324
    %v7326 = vrot.slane %v7311, %v7325
    %v7327 = vlaneseq
    %v7328 = vshrl.u32 %v7327, 7
    %v7329 = vsub.s32 3, %v7328
    %v7330 = vrot.slane %v7311, %v7329
    %v7333 = vsel %vm1228, %v7316, %v7326
    %v7334 = vsel %vm1228, %v7320, %v7330
    %v7335 = vpack.c.bf16 %v7333, %v7333
    %v7336 = vpack.c.bf16 %v7334, %v7334
    %s7337 = scalar_lea.vmem %s6, 3968
    %v7338 = vld [vmem:[%s7337] sm:$0xf]
    %v7339 = vld [vmem:[%s7337 + $0x4] sm:$0xf]
    %v7340 = vld [vmem:[%s7337 + $0x8] sm:$0xf]
    %v7341 = vld [vmem:[%s7337 + $0xc] sm:$0xf]
    %v7342 = vld [vmem:[%s7337 + $0x10] sm:$0xf]
    %v7343 = vld [vmem:[%s7337 + $0x14] sm:$0xf]
    %v7344 = vld [vmem:[%s7337 + $0x18] sm:$0xf]
    %v7345 = vld [vmem:[%s7337 + $0x1c] sm:$0xf]
    %v7346 = vld [vmem:[%s7337 + $0x20] sm:$0xf]
    %v7347 = vld [vmem:[%s7337 + $0x24] sm:$0xf]
    %v7348 = vld [vmem:[%s7337 + $0x28] sm:$0xf]
    %v7349 = vld [vmem:[%s7337 + $0x2c] sm:$0xf]
    %v7350 = vld [vmem:[%s7337 + $0x30] sm:$0xf]
    %v7351 = vld [vmem:[%s7337 + $0x34] sm:$0xf]
    %v7352 = vld [vmem:[%s7337 + $0x38] sm:$0xf]
    %v7353 = vld [vmem:[%s7337 + $0x3c] sm:$0xf]
    %v7354 = vld [vmem:[%s7337 + $0x40] sm:$0xf]
    %v7355 = vld [vmem:[%s7337 + $0x44] sm:$0xf]
    %v7356 = vld [vmem:[%s7337 + $0x48] sm:$0xf]
    %v7357 = vld [vmem:[%s7337 + $0x4c] sm:$0xf]
    %v7358 = vld [vmem:[%s7337 + $0x50] sm:$0xf]
    %v7359 = vld [vmem:[%s7337 + $0x54] sm:$0xf]
    %v7360 = vld [vmem:[%s7337 + $0x58] sm:$0xf]
    %v7361 = vld [vmem:[%s7337 + $0x5c] sm:$0xf]
    %v7362 = vld [vmem:[%s7337 + $0x60] sm:$0xf]
    %v7363 = vld [vmem:[%s7337 + $0x64] sm:$0xf]
    %v7364 = vld [vmem:[%s7337 + $0x68] sm:$0xf]
    %v7365 = vld [vmem:[%s7337 + $0x6c] sm:$0xf]
    %v7366 = vld [vmem:[%s7337 + $0x70] sm:$0xf]
    %v7367 = vld [vmem:[%s7337 + $0x74] sm:$0xf]
    %v7368 = vld [vmem:[%s7337 + $0x78] sm:$0xf]
    %v7369 = vld [vmem:[%s7337 + $0x7c] sm:$0xf]
    %v7402 = vunpack.c.l.b16 %v7338
    %v7403 = vunpack.c.l.b16 %v7339
    %v7404 = vunpack.c.l.b16 %v7340
    %v7405 = vunpack.c.l.b16 %v7341
    %v7406 = vunpack.c.l.b16 %v7342
    %v7407 = vunpack.c.l.b16 %v7343
    %v7408 = vunpack.c.l.b16 %v7344
    %v7409 = vunpack.c.l.b16 %v7345
    %v7410 = vunpack.c.l.b16 %v7346
    %v7411 = vunpack.c.l.b16 %v7347
    %v7412 = vunpack.c.l.b16 %v7348
    %v7413 = vunpack.c.l.b16 %v7349
    %v7414 = vunpack.c.l.b16 %v7350
    %v7415 = vunpack.c.l.b16 %v7351
    %v7416 = vunpack.c.l.b16 %v7352
    %v7417 = vunpack.c.l.b16 %v7353
    %v7418 = vunpack.c.l.b16 %v7354
    %v7419 = vunpack.c.l.b16 %v7355
    %v7420 = vunpack.c.l.b16 %v7356
    %v7421 = vunpack.c.l.b16 %v7357
    %v7422 = vunpack.c.l.b16 %v7358
    %v7423 = vunpack.c.l.b16 %v7359
    %v7424 = vunpack.c.l.b16 %v7360
    %v7425 = vunpack.c.l.b16 %v7361
    %v7426 = vunpack.c.l.b16 %v7362
    %v7427 = vunpack.c.l.b16 %v7363
    %v7428 = vunpack.c.l.b16 %v7364
    %v7429 = vunpack.c.l.b16 %v7365
    %v7430 = vunpack.c.l.b16 %v7366
    %v7431 = vunpack.c.l.b16 %v7367
    %v7432 = vunpack.c.l.b16 %v7368
    %v7433 = vunpack.c.l.b16 %v7369
    %v7434 = vpack.c.b16 %v7403, %v7402
    %v7435 = vpack.c.b16 %v7405, %v7404
    %v7436 = vpack.c.b16 %v7407, %v7406
    %v7437 = vpack.c.b16 %v7409, %v7408
    %v7438 = vpack.c.b16 %v7411, %v7410
    %v7439 = vpack.c.b16 %v7413, %v7412
    %v7440 = vpack.c.b16 %v7415, %v7414
    %v7441 = vpack.c.b16 %v7417, %v7416
    %v7442 = vpack.c.b16 %v7419, %v7418
    %v7443 = vpack.c.b16 %v7421, %v7420
    %v7444 = vpack.c.b16 %v7423, %v7422
    %v7445 = vpack.c.b16 %v7425, %v7424
    %v7446 = vpack.c.b16 %v7427, %v7426
    %v7447 = vpack.c.b16 %v7429, %v7428
    %v7448 = vpack.c.b16 %v7431, %v7430
    %v7449 = vpack.c.b16 %v7433, %v7432
    %7466 = vmatprep.subr.bf16.mxu0 0
    %7467 = vmatpush1.bf16.msra.mxu0 %v7441
    %7468 = vmatprep.subr.bf16.mxu0 0
    %7469 = vmatpush1.bf16.msra.mxu0 %v7440
    %7470 = vmatprep.subr.bf16.mxu0 0
    %7471 = vmatpush1.bf16.msra.mxu0 %v7439
    %7472 = vmatprep.subr.bf16.mxu0 0
    %7473 = vmatpush1.bf16.msra.mxu0 %v7438
    %7474 = vmatprep.subr.bf16.mxu0 0
    %7475 = vmatpush1.bf16.msra.mxu0 %v7437
    %7476 = vmatprep.subr.bf16.mxu0 0
    %7477 = vmatpush1.bf16.msra.mxu0 %v7436
    %7478 = vmatprep.subr.bf16.mxu0 0
    %7479 = vmatpush1.bf16.msra.mxu0 %v7435
    %7480 = vmatprep.subr.bf16.mxu0 0
    %7481 = vmatpush1.bf16.msra.mxu0 %v7434
    %7482 = vmatprep.subr.bf16.mxu0 0
    %7483 = vmatpush2.bf16.msra.mxu0 %v7449
    %7484 = vmatprep.subr.bf16.mxu0 0
    %7485 = vmatpush2.bf16.msra.mxu0 %v7448
    %7486 = vmatprep.subr.bf16.mxu0 0
    %7487 = vmatpush2.bf16.msra.mxu0 %v7447
    %7488 = vmatprep.subr.bf16.mxu0 0
    %7489 = vmatpush2.bf16.msra.mxu0 %v7446
    %7490 = vmatprep.subr.bf16.mxu0 0
    %7491 = vmatpush2.bf16.msra.mxu0 %v7445
    %7492 = vmatprep.subr.bf16.mxu0 0
    %7493 = vmatpush2.bf16.msra.mxu0 %v7444
    %7494 = vmatprep.subr.bf16.mxu0 0
    %7495 = vmatpush2.bf16.msra.mxu0 %v7443
    %7496 = vmatprep.subr.bf16.mxu0 0
    %7497 = vmatpush2.bf16.msra.mxu0 %v7442
    %7498 = vmatprep.mubr.bf16.mxu0 %v7336
    %7499 = vmatmul.mubr.bf16.gmra.mxu0 %v7335
    %v7500 = vpop.f32.mrf.mxu0
    %v7501 = vadd.f32 0.0, %v7500
    %v7502 = vpop.f32.mrf.mxu0
    %v7503 = vpop.f32.mrf.mxu0
    %v7504 = vpop.f32.mrf.mxu0
    %7505 = vdwg.mxu0
    %v7506 = vadd.f32 %v7309, %v7501
    %v7507 = vld [vmem:[%s7] sm:$0x1]
    %v7509 = vlaneseq
    %v7510 = vshrl.u32 %v7509, 7
    %v7511 = vsub.s32 0, %v7510
    %v7512 = vrot.slane %v7507, %v7511
    %v7514 = vadd.f32 %v7506, %v7512
    %v7515 = vmax.f32 %v7514, 0.0
    %vm7516 = vcmask 254976
    %7517 = vst.msk [vmem:[#allocation3] sm:$0x3] %vm7516, %v7515
    // Predicated region
    $region34: #{task_monitor_forward.1} parent=1 // pred_check
      _
    $region35: #{task_monitor_forward.1} parent=1 // pred_check_branch
      %7519 = sbr.rel (0) target = $region37
    $region36: #{task_monitor_forward.1} parent=1 // pred_region
      %s7521 = ssub.s32 32, 32
      %7522 = vsyncadd [#allocation4], %s7521
      %s7524 = sshll.u32 [#allocation3], 4
      %s7525 = int_to_ptr.vmem [resolvable:$true] %s7524
      %7527 = dma.vmem_to_hbm [thread:$0]  %s7525, 32, %s8, [#allocation4]
    $region37: #{task_monitor_forward.1} parent=1 // pred_fallthru
      _
    // Predicated region
    $region38: #{task_monitor_forward.1} parent=1 // pred_check
      _
    $region39: #{task_monitor_forward.1} parent=1 // pred_check_branch
      %7529 = sbr.rel (0) target = $region41
    $region40: #{task_monitor_forward.1} parent=1 // pred_region
      %7530 = dma.done [#allocation4], 32
    $region41: #{task_monitor_forward.1} parent=1 // pred_fallthru
      _
    %7531 = vsyncpa [#allocation4], 1

</llo_original>
